<compile_context>
chip_gen: v6e
topology: v6e:2x2x1
jax: 0.10.0
libtpu: 0.0.40
codegen_flags: <defaults>
</compile_context>

<pallas_src>
import functools

import jax
import jax.numpy as jnp
from jax.experimental import pallas as pl
from jax.experimental.pallas import tpu as pltpu

_REF_PRECISION = jax.lax.Precision.HIGHEST      # ground-truth reference only
_LANE = 128


def _nonlin(x):
    # `nonlinearity()` constructor argument: instantiated here as ReLU.
    return jnp.maximum(x, 0.0)


# ----------------------------- Pallas kernel ------------------------------

def _block_kernel(x_ref, w1_ref, b1_ref, w2_ref, b2_ref, w3_ref, b3_ref,
                  w4_ref, b4_ref, o_ref, *, inv_beta, alpha, seq_len,
                  batch_block):
    L = seq_len
    Nb = batch_block
    rows = Nb * L
    x_bf = x_ref[...]                              # [rows, C] bf16
    C = x_bf.shape[-1]
    Cp = w1_ref.shape[1]                           # Cmid padded to 128 lanes

    def mm(a, b):
        # single-pass bf16 MXU matmul, f32 accumulation
        return jnp.dot(a, b, preferred_element_type=jnp.float32)

    # Per-sample boundary masks as narrow [rows, 1] columns (broadcast inside
    # where): they zero the rows that pltpu.roll wraps across sample
    # boundaries inside the Nb-sample block.
    pos = jax.lax.broadcasted_iota(jnp.int32, (rows, 1), 0) % L
    is_first = pos == 0
    is_last = pos == (L - 1)

    # Rescale(1/beta) + 1x1 conv C -> Cp + ReLU.  The 1/beta scale is folded
    # in after the matmul (mathematically identical, keeps x in bf16 for MXU).
    h = _nonlin(mm(x_bf, w1_ref[...]) * inv_beta + b1_ref[...])      # f32

    def conv3(hh_f32, w_ref, b_ref):
        # k=3 / padding=1 conv as three accumulating matmuls against the
        # 128-aligned tap slices of the stacked weight [3*Cp, Cp]:
        #   rows [0:Cp)    -> tap k=0 (acts on x[l-1])
        #   rows [Cp:2Cp)  -> tap k=1 (acts on x[l])
        #   rows [2Cp:3Cp) -> tap k=2 (acts on x[l+1])
        hh = hh_f32.astype(jnp.bfloat16)
        acc = mm(hh, w_ref[pl.ds(Cp, Cp), :]) + b_ref[...]
        h_prev = jnp.where(is_first, 0.0,
                           pltpu.roll(hh_f32, 1, axis=0)).astype(jnp.bfloat16)
        acc += mm(h_prev, w_ref[pl.ds(0, Cp), :])
        h_next = jnp.where(is_last, 0.0,
                           pltpu.roll(hh_f32, rows - 1, axis=0)
                           ).astype(jnp.bfloat16)
        acc += mm(h_next, w_ref[pl.ds(2 * Cp, Cp), :])
        return acc

    h = _nonlin(conv3(h, w2_ref, b2_ref))
    h = _nonlin(conv3(h, w3_ref, b3_ref))

    h = mm(h.astype(jnp.bfloat16), w4_ref[...]) + b4_ref[...]        # Cp -> C

    # SEBlock: per-sample squeeze over L, 2*sigmoid channel gate.
    # TODO(synk): layers.SEBlock internals unknown (constructor takes no
    # channel arg); implemented as a parameter-free 2*sigmoid(global-avg-pool)
    # gate, consistent with the in-file reference.
    h = h.reshape(Nb, L, C)
    gate = 2.0 * jax.nn.sigmoid(jnp.mean(h, axis=1, keepdims=True))  # [Nb,1,C]
    h = (h * gate).reshape(rows, C)

    # Rescale(alpha) + skip connection, accumulated in f32, stored as bf16.
    out = x_bf.astype(jnp.float32) + alpha * h
    o_ref[...] = out.astype(o_ref.dtype)


# ------------------------ block sizing / HW query --------------------------

def _hw_info():
    """(vmem_limit_bytes, n_tensorcores) for the local TPU generation."""
    cap = None
    try:
        cap = int(pltpu.get_tpu_info().vmem_capacity_bytes)
    except Exception:
        cap = None
    n_tc = 1
    try:
        kind = jax.devices()[0].device_kind.lower()
        if "v7" in kind or "7x" in kind:
            n_tc = 2          # v7x: two TensorCores share the grid
    except Exception:
        pass
    if cap is None:
        limit = 32 * 1024 * 1024                       # unknown chip: stay safe
    elif cap >= 128 * 1024 * 1024:
        limit = 96 * 1024 * 1024                       # v5e / v6e (128 MiB VMEM)
    else:
        limit = min(48 * 1024 * 1024, (3 * cap) // 4)  # v7x (64 MiB per TC)
    return limit, n_tc


def _pick_batch_block(N, L, C, cp, *, vmem_budget_bytes, n_tensorcores,
                      weight_buffers=2):
    """Largest Nb (batch elements per grid step) that fits the VMEM budget.

    Input/output blocks are double-buffered bf16; weights counted
    `weight_buffers` times (2 by default, 1 with single-buffered weights);
    generous allowance for f32 body intermediates.  On multi-TensorCore chips
    (v7x) prefer an even program count with >= 2 steps per core so both cores
    get work and per-core steps still overlap DMA with compute; on single-core
    chips a one-program grid with the biggest block is best.
    """
    weight_bytes = weight_buffers * (
        2 * (C * cp + 2 * (3 * cp) * cp + cp * C)      # bf16 weights
        + 4 * (3 * cp + C))                            # f32 biases

    def fits(nb):
        r = nb * L
        io = 2 * 2 * (r * C * 2)                       # in+out blocks, 2x buffered
        tmp = 6 * r * max(C, cp) * 4                   # f32 intermediates
        return weight_bytes + io + tmp <= vmem_budget_bytes

    cands = []
    for nb in range(1, N + 1):
        if N % nb:
            continue
        if (nb * L) % 16 and nb != N:                  # bf16 (16, 128) tiling
            continue
        if fits(nb):
            cands.append(nb)
    if not cands:
        return 1
    if n_tensorcores > 1:
        pref = [nb for nb in cands if (N // nb) % n_tensorcores == 0
                and (N // nb) >= 2 * n_tensorcores]
        okay = [nb for nb in cands if (N // nb) % n_tensorcores == 0
                and (N // nb) >= n_tensorcores]
        cands = pref or okay or cands
    return max(cands)


# ------------------------------- wrapper ------------------------------------

def non_transition_block(x_nlc, kparams, *, beta, alpha, batch_block=None,
                         single_buffer_weights=False):
    """Fused NonTransitionBlock forward.  x_nlc: [N, L, C] (channels last).

    Keep activations channels-last in the surrounding model so no NCL<->NLC
    transposes are needed around this kernel (each costs a full HBM round
    trip on a bandwidth-bound block).
    """
    N, L, C = x_nlc.shape
    w1t, b1, w2s, b2, w3s, b3, w4t, b4 = kparams
    Cp = w1t.shape[1]
    assert C % _LANE == 0, "channels must be a multiple of 128"

    vmem_limit, n_tc = _hw_info()
    if batch_block is None:
        batch_block = _pick_batch_block(
            N, L, C, Cp,
            vmem_budget_bytes=(7 * vmem_limit) // 10,
            n_tensorcores=n_tc,
            weight_buffers=1 if single_buffer_weights else 2)
    Nb = batch_block
    assert N % Nb == 0, (
        f"batch {N} must be divisible by batch_block {Nb} "
        "(ragged tails are not supported)")
    rows = Nb * L

    # bf16 at the HBM boundary: halves input/output bytes on a bandwidth-bound
    # kernel; all accumulation stays f32 inside the kernel.
    x2d = x_nlc.reshape(N * L, C).astype(jnp.bfloat16)

    kernel = functools.partial(_block_kernel, inv_beta=1.0 / beta, alpha=alpha,
                               seq_len=L, batch_block=Nb)

    def wspec(shape):
        # Grid-invariant weights/biases (constant index map -> DMA'd once).
        # On VMEM-tight large-C configs (v7x) single-buffer them so Pallas
        # does not reserve a second, never-used buffer.
        if single_buffer_weights:
            return pl.BlockSpec(shape, lambda i: (0, 0),
                                pipeline_mode=pl.Buffered(1))
        return pl.BlockSpec(shape, lambda i: (0, 0))

    out2d = pl.pallas_call(
        kernel,
        out_shape=jax.ShapeDtypeStruct((N * L, C), jnp.bfloat16),
        grid_spec=pltpu.PrefetchScalarGridSpec(
            num_scalar_prefetch=0,
            grid=(N // Nb,),
            in_specs=[
                pl.BlockSpec((rows, C), lambda i: (i, 0)),    # x row-block
                wspec((C, Cp)),                               # w1^T
                wspec((1, Cp)),                               # b1
                wspec((3 * Cp, Cp)),                          # w2 stacked taps
                wspec((1, Cp)),                               # b2
                wspec((3 * Cp, Cp)),                          # w3 stacked taps
                wspec((1, Cp)),                               # b3
                wspec((Cp, C)),                               # w4^T
                wspec((1, C)),                                # b4
            ],
            out_specs=pl.BlockSpec((rows, C), lambda i: (i, 0)),
        ),
        compiler_params=pltpu.CompilerParams(
            dimension_semantics=("parallel",),
            vmem_limit_bytes=vmem_limit),
    )(x2d, w1t, b1, w2s, b2, w3s, b3, w4t, b4)
    return out2d.reshape(N, L, C)


# ---------------- parameter setup (plain JAX glue) ----------------

def init_params(key, channels, groups):
    """PyTorch-shaped Conv1d weights [Cout, Cin/groups, K], deterministic."""
    cmid = channels // 2
    cin_g = cmid // groups
    ks = jax.random.split(key, 8)

    def w(k, shape, fan_in):
        return jax.random.normal(k, shape, jnp.float32) / jnp.sqrt(float(fan_in))

    w1 = w(ks[0], (cmid, channels, 1), channels)
    b1 = w(ks[1], (cmid,), channels)
    w2 = w(ks[2], (cmid, cin_g, 3), cin_g * 3)
    b2 = w(ks[3], (cmid,), cin_g * 3)
    w3 = w(ks[4], (cmid, cin_g, 3), cin_g * 3)
    b3 = w(ks[5], (cmid,), cin_g * 3)
    w4 = w(ks[6], (channels, cmid, 1), cmid)
    b4 = w(ks[7], (channels,), cmid)
    return (w1, b1, w2, b2, w3, b3, w4, b4)


def _expand_grouped(w, groups):
    """[Cout, Cin/groups, K] grouped weight -> block-diagonal [Cout, Cin, K].

    TODO(synk): for groups > 1 this densification multiplies FLOPs/VMEM by
    `groups`; replace with a per-group contraction (group axis folded into the
    grid) before scaling channels to 512/1024.
    """
    cout, cin_g, k = w.shape
    cout_g = cout // groups
    full = jnp.zeros((cout, cin_g * groups, k), w.dtype)
    for g in range(groups):
        full = full.at[g * cout_g:(g + 1) * cout_g,
                       g * cin_g:(g + 1) * cin_g, :].set(
                           w[g * cout_g:(g + 1) * cout_g])
    return full


def to_kernel_params(params, groups):
    """PyTorch-shaped params -> bf16, lane-padded, matmul-ready kernel params."""
    w1, b1, w2, b2, w3, b3, w4, b4 = params
    cmid = w1.shape[0]
    channels = w1.shape[1]
    cp = ((cmid + _LANE - 1) // _LANE) * _LANE       # pad Cmid to 128 lanes

    w2f = _expand_grouped(w2, groups)                # [Cmid, Cmid, 3]
    w3f = _expand_grouped(w3, groups)

    def pad2(a, r, c):
        return jnp.pad(a, ((0, r - a.shape[0]), (0, c - a.shape[1])))

    def stack_taps(wf):
        # Per-tap [Cin, Cout] blocks, zero-padded to [Cp, Cp], stacked along K
        # (rows [0:Cp)=tap k=0 / x[l-1], [Cp:2Cp)=k=1, [2Cp:3Cp)=k=2 / x[l+1]).
        taps = [pad2(jnp.transpose(wf[:, :, k]), cp, cp) for k in range(3)]
        return jnp.concatenate(taps, axis=0)         # [3*Cp, Cp]

    w1t = pad2(jnp.transpose(w1[:, :, 0]), channels, cp)     # [C, Cp]
    w4t = pad2(jnp.transpose(w4[:, :, 0]), cp, channels)     # [Cp, C]
    w2s = stack_taps(w2f)
    w3s = stack_taps(w3f)

    def padb(b):                                      # bias -> f32 [1, Cp]
        return jnp.pad(b[None, :], ((0, 0), (0, cp - b.shape[0])))

    bf = lambda a: a.astype(jnp.bfloat16)
    return (bf(w1t), padb(b1), bf(w2s), padb(b2), bf(w3s), padb(b3),
            bf(w4t), b4[None, :].astype(jnp.float32))


# ---------------- pure-JAX reference (PyTorch NCL semantics) ----------------

def _conv1d(x, w, b, groups=1, padding=0):
    out = jax.lax.conv_general_dilated(
        x, w, window_strides=(1,), padding=[(padding, padding)],
        dimension_numbers=('NCH', 'OIH', 'NCH'),
        feature_group_count=groups, precision=_REF_PRECISION)
    return out + b[None, :, None]


def ref_forward(x_ncl, params, *, beta, alpha, groups):
    w1, b1, w2, b2, w3, b3, w4, b4 = params
    h = x_ncl * (1.0 / beta)
    h = jnp.maximum(_conv1d(h, w1, b1), 0.0)
    h = jnp.maximum(_conv1d(h, w2, b2, groups=groups, padding=1), 0.0)
    h = jnp.maximum(_conv1d(h, w3, b3, groups=groups, padding=1), 0.0)
    h = _conv1d(h, w4, b4)
    gate = 2.0 * jax.nn.sigmoid(jnp.mean(h, axis=2, keepdims=True))   # [N, C, 1]
    h = h * gate
    h = h * alpha
    return x_ncl + h


if __name__ == "__main__":
    # channels must be a multiple of 128 (groups = channels // 128).
    N, C, L = 8, 128, 64
    groups = C // 128
    beta = 2.0 ** 0.5
    alpha = 0.2

    key = jax.random.PRNGKey(0)
    kx, kp = jax.random.split(key)
    x_ncl = jax.random.normal(kx, (N, C, L), jnp.float32)
    params = init_params(kp, C, groups)
    kparams = to_kernel_params(params, groups)

    # Harness-only transpose to channels-last (a real model should keep
    # activations NLC so this HBM round trip disappears).
    x_nlc = jnp.transpose(x_ncl, (0, 2, 1))
    out_nlc = non_transition_block(x_nlc, kparams, beta=beta, alpha=alpha)
    out_nlc = jax.block_until_ready(out_nlc)
    out_ncl = jnp.transpose(out_nlc.astype(jnp.float32), (0, 2, 1))

    # Correctness check against the plain-JAX f32 reference.  The kernel is
    # bf16 at the HBM boundary with single-pass bf16 MXU matmuls, so the
    # tolerance is bf16-level rather than an f32-level 1e-3.
    ref = ref_forward(x_ncl, params, beta=beta, alpha=alpha, groups=groups)
    max_err = float(jnp.max(jnp.abs(out_ncl - ref)))
    assert jnp.allclose(out_ncl, ref, atol=5e-2, rtol=5e-2), max_err

    print("KERNEL_OK")
</pallas_src>

<mosaic_0001>
module attributes {stable_mosaic.version = 11 : i64} {
  func.func @_block_kernel(%arg0: i32, %arg1: memref<512x128xbf16, #tpu.memory_space<vmem>>, %arg2: memref<128x128xbf16, #tpu.memory_space<vmem>>, %arg3: memref<1x128xf32, #tpu.memory_space<vmem>>, %arg4: memref<384x128xbf16, #tpu.memory_space<vmem>>, %arg5: memref<1x128xf32, #tpu.memory_space<vmem>>, %arg6: memref<384x128xbf16, #tpu.memory_space<vmem>>, %arg7: memref<1x128xf32, #tpu.memory_space<vmem>>, %arg8: memref<128x128xbf16, #tpu.memory_space<vmem>>, %arg9: memref<1x128xf32, #tpu.memory_space<vmem>>, %arg10: memref<512x128xbf16, #tpu.memory_space<vmem>>) attributes {dimension_semantics = [#tpu.dimension_semantics<parallel>], iteration_bounds = array<i64: 1>, scalar_prefetch = 0 : i64, scratch_operands = 0 : i64, tpu.core_type = #tpu.core_type<tc>, window_params = [{transform_indices = @transform_0, window_bounds = array<i64: 512, 128>}, {pipeline_mode = #tpu.pipeline_mode<synchronous>, transform_indices = @transform_1, window_bounds = array<i64: 128, 128>}, {pipeline_mode = #tpu.pipeline_mode<synchronous>, transform_indices = @transform_2, window_bounds = array<i64: 1, 128>}, {pipeline_mode = #tpu.pipeline_mode<synchronous>, transform_indices = @transform_3, window_bounds = array<i64: 384, 128>}, {pipeline_mode = #tpu.pipeline_mode<synchronous>, transform_indices = @transform_4, window_bounds = array<i64: 1, 128>}, {pipeline_mode = #tpu.pipeline_mode<synchronous>, transform_indices = @transform_5, window_bounds = array<i64: 384, 128>}, {pipeline_mode = #tpu.pipeline_mode<synchronous>, transform_indices = @transform_6, window_bounds = array<i64: 1, 128>}, {pipeline_mode = #tpu.pipeline_mode<synchronous>, transform_indices = @transform_7, window_bounds = array<i64: 128, 128>}, {pipeline_mode = #tpu.pipeline_mode<synchronous>, transform_indices = @transform_8, window_bounds = array<i64: 1, 128>}, {transform_indices = @transform_9, window_bounds = array<i64: 512, 128>}]} {
    %c0 = arith.constant 0 : index
    %c0_0 = arith.constant 0 : index
    %0 = vector.load %arg1[%c0, %c0_0] : memref<512x128xbf16, #tpu.memory_space<vmem>>, vector<512x128xbf16>
    %1 = tpu.iota {dimensions = array<i32: 0>} : vector<512x1xi32>
    %c64_i32 = arith.constant 64 : i32
    %c0_i32 = arith.constant 0 : i32
    %2 = arith.cmpi eq, %c64_i32, %c0_i32 : i32
    %c1_i32 = arith.constant 1 : i32
    %3 = arith.select %2, %c1_i32, %c64_i32 : i32
    %4 = vector.broadcast %3 : i32 to vector<512x1xi32>
    %5 = arith.remsi %1, %4 : vector<512x1xi32>
    %c0_i32_1 = arith.constant 0 : i32
    %6 = vector.broadcast %c0_i32_1 : i32 to vector<512x1xi32>
    %7 = arith.cmpi ne, %5, %6 : vector<512x1xi32>
    %c0_i32_2 = arith.constant 0 : i32
    %8 = vector.broadcast %c0_i32_2 : i32 to vector<512x1xi32>
    %9 = arith.cmpi slt, %5, %8 : vector<512x1xi32>
    %c0_i32_3 = arith.constant 0 : i32
    %10 = arith.cmpi slt, %3, %c0_i32_3 : i32
    %11 = vector.broadcast %10 : i1 to vector<512x1xi1>
    %12 = vector.broadcast %11 : vector<512x1xi1> to vector<512x1xi1>
    %13 = arith.xori %9, %12 : vector<512x1xi1>
    %14 = arith.andi %13, %7 : vector<512x1xi1>
    %15 = vector.broadcast %3 : i32 to vector<512x1xi32>
    %16 = arith.addi %5, %15 : vector<512x1xi32>
    %17 = arith.select %14, %16, %5 : vector<512x1xi1>, vector<512x1xi32>
    %c0_i32_4 = arith.constant 0 : i32
    %18 = vector.broadcast %c0_i32_4 : i32 to vector<512x1xi32>
    %19 = arith.cmpi eq, %17, %18 : vector<512x1xi32>
    %c63_i32 = arith.constant 63 : i32
    %20 = vector.broadcast %c63_i32 : i32 to vector<512x1xi32>
    %21 = arith.cmpi eq, %17, %20 : vector<512x1xi32>
    %c0_5 = arith.constant 0 : index
    %c0_6 = arith.constant 0 : index
    %22 = vector.load %arg2[%c0_5, %c0_6] : memref<128x128xbf16, #tpu.memory_space<vmem>>, vector<128x128xbf16>
    %cst = arith.constant dense<0.000000e+00> : vector<512x128xf32>
    %23 = tpu.matmul %0, %22, %cst {dimension_numbers = #tpu.dot_dimension_numbers<[1], [0], [0], [1], [0, 0, 1, 1], [], []>} : vector<512x128xbf16>, vector<128x128xbf16>, vector<512x128xf32> -> vector<512x128xf32>
    %cst_7 = arith.constant 0.707106769 : f32
    %24 = vector.broadcast %cst_7 : f32 to vector<512x128xf32>
    %25 = arith.mulf %23, %24 : vector<512x128xf32>
    %c0_8 = arith.constant 0 : index
    %c0_9 = arith.constant 0 : index
    %26 = vector.load %arg3[%c0_8, %c0_9] : memref<1x128xf32, #tpu.memory_space<vmem>>, vector<1x128xf32>
    %27 = vector.broadcast %26 : vector<1x128xf32> to vector<512x128xf32>
    %28 = arith.addf %25, %27 : vector<512x128xf32>
    %cst_10 = arith.constant 0.000000e+00 : f32
    %29 = vector.broadcast %cst_10 : f32 to vector<512x128xf32>
    %30 = arith.maximumf %28, %29 : vector<512x128xf32>
    %31 = arith.truncf %30 : vector<512x128xf32> to vector<512x128xbf16>
    %c128 = arith.constant 128 : index
    %c0_11 = arith.constant 0 : index
    %32 = vector.load %arg4[%c128, %c0_11] : memref<384x128xbf16, #tpu.memory_space<vmem>>, vector<128x128xbf16>
    %cst_12 = arith.constant dense<0.000000e+00> : vector<512x128xf32>
    %33 = tpu.matmul %31, %32, %cst_12 {dimension_numbers = #tpu.dot_dimension_numbers<[1], [0], [0], [1], [0, 0, 1, 1], [], []>} : vector<512x128xbf16>, vector<128x128xbf16>, vector<512x128xf32> -> vector<512x128xf32>
    %c0_13 = arith.constant 0 : index
    %c0_14 = arith.constant 0 : index
    %34 = vector.load %arg5[%c0_13, %c0_14] : memref<1x128xf32, #tpu.memory_space<vmem>>, vector<1x128xf32>
    %35 = vector.broadcast %34 : vector<1x128xf32> to vector<512x128xf32>
    %36 = arith.addf %33, %35 : vector<512x128xf32>
    %c1_i32_15 = arith.constant 1 : i32
    %37 = tpu.dynamic_rotate %30 by %c1_i32_15 dim 0 : vector<512x128xf32>, i32 -> vector<512x128xf32>
    %cst_16 = arith.constant 0.000000e+00 : f32
    %38 = vector.shape_cast %19 : vector<512x1xi1> to vector<512x1xi1>
    %39 = vector.broadcast %38 : vector<512x1xi1> to vector<512x128xi1>
    %40 = vector.broadcast %cst_16 : f32 to vector<512x128xf32>
    %41 = arith.select %39, %40, %37 : vector<512x128xi1>, vector<512x128xf32>
    %42 = arith.truncf %41 : vector<512x128xf32> to vector<512x128xbf16>
    %c0_17 = arith.constant 0 : index
    %c0_18 = arith.constant 0 : index
    %43 = vector.load %arg4[%c0_17, %c0_18] : memref<384x128xbf16, #tpu.memory_space<vmem>>, vector<128x128xbf16>
    %cst_19 = arith.constant dense<0.000000e+00> : vector<512x128xf32>
    %44 = tpu.matmul %42, %43, %cst_19 {dimension_numbers = #tpu.dot_dimension_numbers<[1], [0], [0], [1], [0, 0, 1, 1], [], []>} : vector<512x128xbf16>, vector<128x128xbf16>, vector<512x128xf32> -> vector<512x128xf32>
    %45 = arith.addf %36, %44 : vector<512x128xf32>
    %c511_i32 = arith.constant 511 : i32
    %46 = tpu.dynamic_rotate %30 by %c511_i32 dim 0 : vector<512x128xf32>, i32 -> vector<512x128xf32>
    %cst_20 = arith.constant 0.000000e+00 : f32
    %47 = vector.shape_cast %21 : vector<512x1xi1> to vector<512x1xi1>
    %48 = vector.broadcast %47 : vector<512x1xi1> to vector<512x128xi1>
    %49 = vector.broadcast %cst_20 : f32 to vector<512x128xf32>
    %50 = arith.select %48, %49, %46 : vector<512x128xi1>, vector<512x128xf32>
    %51 = arith.truncf %50 : vector<512x128xf32> to vector<512x128xbf16>
    %c256 = arith.constant 256 : index
    %c0_21 = arith.constant 0 : index
    %52 = vector.load %arg4[%c256, %c0_21] : memref<384x128xbf16, #tpu.memory_space<vmem>>, vector<128x128xbf16>
    %cst_22 = arith.constant dense<0.000000e+00> : vector<512x128xf32>
    %53 = tpu.matmul %51, %52, %cst_22 {dimension_numbers = #tpu.dot_dimension_numbers<[1], [0], [0], [1], [0, 0, 1, 1], [], []>} : vector<512x128xbf16>, vector<128x128xbf16>, vector<512x128xf32> -> vector<512x128xf32>
    %54 = arith.addf %45, %53 : vector<512x128xf32>
    %cst_23 = arith.constant 0.000000e+00 : f32
    %55 = vector.broadcast %cst_23 : f32 to vector<512x128xf32>
    %56 = arith.maximumf %54, %55 : vector<512x128xf32>
    %57 = arith.truncf %56 : vector<512x128xf32> to vector<512x128xbf16>
    %c128_24 = arith.constant 128 : index
    %c0_25 = arith.constant 0 : index
    %58 = vector.load %arg6[%c128_24, %c0_25] : memref<384x128xbf16, #tpu.memory_space<vmem>>, vector<128x128xbf16>
    %cst_26 = arith.constant dense<0.000000e+00> : vector<512x128xf32>
    %59 = tpu.matmul %57, %58, %cst_26 {dimension_numbers = #tpu.dot_dimension_numbers<[1], [0], [0], [1], [0, 0, 1, 1], [], []>} : vector<512x128xbf16>, vector<128x128xbf16>, vector<512x128xf32> -> vector<512x128xf32>
    %c0_27 = arith.constant 0 : index
    %c0_28 = arith.constant 0 : index
    %60 = vector.load %arg7[%c0_27, %c0_28] : memref<1x128xf32, #tpu.memory_space<vmem>>, vector<1x128xf32>
    %61 = vector.broadcast %60 : vector<1x128xf32> to vector<512x128xf32>
    %62 = arith.addf %59, %61 : vector<512x128xf32>
    %c1_i32_29 = arith.constant 1 : i32
    %63 = tpu.dynamic_rotate %56 by %c1_i32_29 dim 0 : vector<512x128xf32>, i32 -> vector<512x128xf32>
    %cst_30 = arith.constant 0.000000e+00 : f32
    %64 = vector.shape_cast %19 : vector<512x1xi1> to vector<512x1xi1>
    %65 = vector.broadcast %64 : vector<512x1xi1> to vector<512x128xi1>
    %66 = vector.broadcast %cst_30 : f32 to vector<512x128xf32>
    %67 = arith.select %65, %66, %63 : vector<512x128xi1>, vector<512x128xf32>
    %68 = arith.truncf %67 : vector<512x128xf32> to vector<512x128xbf16>
    %c0_31 = arith.constant 0 : index
    %c0_32 = arith.constant 0 : index
    %69 = vector.load %arg6[%c0_31, %c0_32] : memref<384x128xbf16, #tpu.memory_space<vmem>>, vector<128x128xbf16>
    %cst_33 = arith.constant dense<0.000000e+00> : vector<512x128xf32>
    %70 = tpu.matmul %68, %69, %cst_33 {dimension_numbers = #tpu.dot_dimension_numbers<[1], [0], [0], [1], [0, 0, 1, 1], [], []>} : vector<512x128xbf16>, vector<128x128xbf16>, vector<512x128xf32> -> vector<512x128xf32>
    %71 = arith.addf %62, %70 : vector<512x128xf32>
    %c511_i32_34 = arith.constant 511 : i32
    %72 = tpu.dynamic_rotate %56 by %c511_i32_34 dim 0 : vector<512x128xf32>, i32 -> vector<512x128xf32>
    %cst_35 = arith.constant 0.000000e+00 : f32
    %73 = vector.shape_cast %21 : vector<512x1xi1> to vector<512x1xi1>
    %74 = vector.broadcast %73 : vector<512x1xi1> to vector<512x128xi1>
    %75 = vector.broadcast %cst_35 : f32 to vector<512x128xf32>
    %76 = arith.select %74, %75, %72 : vector<512x128xi1>, vector<512x128xf32>
    %77 = arith.truncf %76 : vector<512x128xf32> to vector<512x128xbf16>
    %c256_36 = arith.constant 256 : index
    %c0_37 = arith.constant 0 : index
    %78 = vector.load %arg6[%c256_36, %c0_37] : memref<384x128xbf16, #tpu.memory_space<vmem>>, vector<128x128xbf16>
    %cst_38 = arith.constant dense<0.000000e+00> : vector<512x128xf32>
    %79 = tpu.matmul %77, %78, %cst_38 {dimension_numbers = #tpu.dot_dimension_numbers<[1], [0], [0], [1], [0, 0, 1, 1], [], []>} : vector<512x128xbf16>, vector<128x128xbf16>, vector<512x128xf32> -> vector<512x128xf32>
    %80 = arith.addf %71, %79 : vector<512x128xf32>
    %cst_39 = arith.constant 0.000000e+00 : f32
    %81 = vector.broadcast %cst_39 : f32 to vector<512x128xf32>
    %82 = arith.maximumf %80, %81 : vector<512x128xf32>
    %83 = arith.truncf %82 : vector<512x128xf32> to vector<512x128xbf16>
    %c0_40 = arith.constant 0 : index
    %c0_41 = arith.constant 0 : index
    %84 = vector.load %arg8[%c0_40, %c0_41] : memref<128x128xbf16, #tpu.memory_space<vmem>>, vector<128x128xbf16>
    %cst_42 = arith.constant dense<0.000000e+00> : vector<512x128xf32>
    %85 = tpu.matmul %83, %84, %cst_42 {dimension_numbers = #tpu.dot_dimension_numbers<[1], [0], [0], [1], [0, 0, 1, 1], [], []>} : vector<512x128xbf16>, vector<128x128xbf16>, vector<512x128xf32> -> vector<512x128xf32>
    %c0_43 = arith.constant 0 : index
    %c0_44 = arith.constant 0 : index
    %86 = vector.load %arg9[%c0_43, %c0_44] : memref<1x128xf32, #tpu.memory_space<vmem>>, vector<1x128xf32>
    %87 = vector.broadcast %86 : vector<1x128xf32> to vector<512x128xf32>
    %88 = arith.addf %85, %87 : vector<512x128xf32>
    %89 = vector.shape_cast %88 : vector<512x128xf32> to vector<8x64x128xf32>
    %cst_45 = arith.constant dense<0.000000e+00> : vector<8x128xf32>
    %90 = vector.multi_reduction <add>, %89, %cst_45 [1] : vector<8x64x128xf32> to vector<8x128xf32>
    %91 = vector.shape_cast %90 : vector<8x128xf32> to vector<8x1x128xf32>
    %cst_46 = arith.constant 6.400000e+01 : f32
    %92 = vector.broadcast %cst_46 : f32 to vector<8x1x128xf32>
    %93 = arith.divf %91, %92 : vector<8x1x128xf32>
    %94 = arith.negf %93 : vector<8x1x128xf32>
    %95 = math.exp %94 : vector<8x1x128xf32>
    %cst_47 = arith.constant 1.000000e+00 : f32
    %96 = vector.broadcast %cst_47 : f32 to vector<8x1x128xf32>
    %97 = arith.addf %96, %95 : vector<8x1x128xf32>
    %98 = arith.divf %96, %97 : vector<8x1x128xf32>
    %cst_48 = arith.constant 2.000000e+00 : f32
    %99 = vector.broadcast %cst_48 : f32 to vector<8x1x128xf32>
    %100 = arith.mulf %99, %98 : vector<8x1x128xf32>
    %101 = vector.broadcast %100 : vector<8x1x128xf32> to vector<8x64x128xf32>
    %102 = arith.mulf %89, %101 : vector<8x64x128xf32>
    %103 = vector.shape_cast %102 : vector<8x64x128xf32> to vector<512x128xf32>
    %104 = arith.extf %0 : vector<512x128xbf16> to vector<512x128xf32>
    %cst_49 = arith.constant 2.000000e-01 : f32
    %105 = vector.broadcast %cst_49 : f32 to vector<512x128xf32>
    %106 = arith.mulf %105, %103 : vector<512x128xf32>
    %107 = arith.addf %104, %106 : vector<512x128xf32>
    %108 = arith.truncf %107 : vector<512x128xf32> to vector<512x128xbf16>
    %c0_50 = arith.constant 0 : index
    %c0_51 = arith.constant 0 : index
    %109 = vector.load %arg10[%c0_50, %c0_51] : memref<512x128xbf16, #tpu.memory_space<vmem>>, vector<512x128xbf16>
    tpu.vector_store %arg10[%c0_50, %c0_51], %108 {strides = array<i32>} : memref<512x128xbf16, #tpu.memory_space<vmem>>, vector<512x128xbf16>,
    return
  }
  func.func @transform_0(%arg0: i32) -> (i32, i32) {
    %c0_i32 = arith.constant 0 : i32
    %c0_i32_0 = arith.constant 0 : i32
    return %arg0, %c0_i32 : i32, i32
  }
  func.func @transform_1(%arg0: i32) -> (i32, i32) {
    %c0_i32 = arith.constant 0 : i32
    %c0_i32_0 = arith.constant 0 : i32
    %c0_i32_1 = arith.constant 0 : i32
    return %c0_i32, %c0_i32_0 : i32, i32
  }
  func.func @transform_2(%arg0: i32) -> (i32, i32) {
    %c0_i32 = arith.constant 0 : i32
    %c0_i32_0 = arith.constant 0 : i32
    %c0_i32_1 = arith.constant 0 : i32
    return %c0_i32, %c0_i32_0 : i32, i32
  }
  func.func @transform_3(%arg0: i32) -> (i32, i32) {
    %c0_i32 = arith.constant 0 : i32
    %c0_i32_0 = arith.constant 0 : i32
    %c0_i32_1 = arith.constant 0 : i32
    return %c0_i32, %c0_i32_0 : i32, i32
  }
  func.func @transform_4(%arg0: i32) -> (i32, i32) {
    %c0_i32 = arith.constant 0 : i32
    %c0_i32_0 = arith.constant 0 : i32
    %c0_i32_1 = arith.constant 0 : i32
    return %c0_i32, %c0_i32_0 : i32, i32
  }
  func.func @transform_5(%arg0: i32) -> (i32, i32) {
    %c0_i32 = arith.constant 0 : i32
    %c0_i32_0 = arith.constant 0 : i32
    %c0_i32_1 = arith.constant 0 : i32
    return %c0_i32, %c0_i32_0 : i32, i32
  }
  func.func @transform_6(%arg0: i32) -> (i32, i32) {
    %c0_i32 = arith.constant 0 : i32
    %c0_i32_0 = arith.constant 0 : i32
    %c0_i32_1 = arith.constant 0 : i32
    return %c0_i32, %c0_i32_0 : i32, i32
  }
  func.func @transform_7(%arg0: i32) -> (i32, i32) {
    %c0_i32 = arith.constant 0 : i32
    %c0_i32_0 = arith.constant 0 : i32
    %c0_i32_1 = arith.constant 0 : i32
    return %c0_i32, %c0_i32_0 : i32, i32
  }
  func.func @transform_8(%arg0: i32) -> (i32, i32) {
    %c0_i32 = arith.constant 0 : i32
    %c0_i32_0 = arith.constant 0 : i32
    %c0_i32_1 = arith.constant 0 : i32
    return %c0_i32, %c0_i32_0 : i32, i32
  }
  func.func @transform_9(%arg0: i32) -> (i32, i32) {
    %c0_i32 = arith.constant 0 : i32
    %c0_i32_0 = arith.constant 0 : i32
    return %arg0, %c0_i32 : i32, i32
  }
}

</mosaic_0001>

<llo_original>
// kernel: tpu_custom_call.1
$region0: #{tpu_custom_call.1}
  #allocation0 [shape = 'u32[]', space=smem, size = 0x4, offset = 0x4, fixed_abs, tag = 'smem constant byte address 0x4 - core index']
  #allocation1 [shape = 'u32[144,128]{1,0:T(1,128)}', space=vmem, size = 0x12000, scoped, tag = 'internal scratch']
  %s0 = inlined_call_operand.hbm [shape: bf16[512,128], index: 0, kind: input, shape index: {}]
  %s1 = inlined_call_operand.hbm [shape: bf16[128,128], index: 1, kind: input, shape index: {}]
  %s2 = inlined_call_operand.vmem [shape: f32[1,128], index: 2, kind: input, shape index: {}]
  %s3 = inlined_call_operand.hbm [shape: bf16[384,128], index: 3, kind: input, shape index: {}]
  %s4 = inlined_call_operand.vmem [shape: f32[1,128], index: 4, kind: input, shape index: {}]
  %s5 = inlined_call_operand.hbm [shape: bf16[384,128], index: 5, kind: input, shape index: {}]
  %s6 = inlined_call_operand.vmem [shape: f32[1,128], index: 6, kind: input, shape index: {}]
  %s7 = inlined_call_operand.hbm [shape: bf16[128,128], index: 7, kind: input, shape index: {}]
  %s8 = inlined_call_operand.vmem [shape: f32[1,128], index: 8, kind: input, shape index: {}]
  %s9 = inlined_call_operand.hbm [shape: bf16[512,128], index: 9, kind: output, shape index: {}]
  %s10 = sld [smem:[#allocation0]]
  $region66: #{tpu_custom_call.1} parent=0
    _
  %s12 = ssub.s32 1, %s10
  %s13 = scalar_select 0, %s12, %s10
  $region1: #{tpu_custom_call.1} parent=0
    #allocation2 [shape = 'u8[131072]{0}', space=vmem, size = 0x20000, scoped, tag = 'input window, operand 0, single buffered']
    #allocation3 [shape = 's32[1]{0}', space=sflag, size = 0x4, scoped, tag = 'scoped memory for tpu_custom_call.1']
    #allocation4 [shape = 's32[1]{0}', space=sflag, size = 0x4, scoped, tag = 'scoped memory for tpu_custom_call.1']
    #allocation5 [shape = 'u8[32768]{0}', space=vmem, size = 0x8000, scoped, tag = 'input window, operand 1, single buffered']
    #allocation6 [shape = 's32[1]{0}', space=sflag, size = 0x4, scoped, tag = 'scoped memory for tpu_custom_call.1']
    #allocation7 [shape = 'u8[98304]{0}', space=vmem, size = 0x18000, scoped, tag = 'input window, operand 3, single buffered']
    #allocation8 [shape = 'u8[98304]{0}', space=vmem, size = 0x18000, scoped, tag = 'input window, operand 5, single buffered']
    #allocation9 [shape = 's32[1]{0}', space=sflag, size = 0x4, scoped, tag = 'scoped memory for tpu_custom_call.1']
    #allocation10 [shape = 'u8[32768]{0}', space=vmem, size = 0x8000, scoped, tag = 'input window, operand 7, single buffered']
    #allocation11 [shape = 'u8[131072]{0}', space=vmem, size = 0x20000, scoped, tag = 'output window, operand 0, single buffered']
    %14 = vsyncpa [#allocation3], 0
    %15 = vsyncpa [#allocation6], 0
    %16 = vsyncpa [#allocation9], 0
    %17 = vsyncpa [#allocation4], 0
    // Predicated region
    $region2: #{tpu_custom_call.1} parent=1 // pred_check
      _
    $region3: #{tpu_custom_call.1} parent=1 // pred_check_branch
      %19 = sbr.rel (0) target = $region5
    $region4: #{tpu_custom_call.1} parent=1 // pred_region
      %s21 = ssub.s32 4096, 4096
      %22 = vsyncadd [#allocation3], %s21
      %s23 = sshll.u32 [#allocation2], 4
      %s24 = int_to_ptr.vmem [resolvable:$true] %s23
      %29 = dma.hbm_to_vmem [thread:$0]  %s0, 4096, %s24, [#allocation3], 64, 64, 4
    $region5: #{tpu_custom_call.1} parent=1 // pred_fallthru
      _
    // Predicated region
    $region6: #{tpu_custom_call.1} parent=1 // pred_check
      _
    $region7: #{tpu_custom_call.1} parent=1 // pred_check_branch
      %31 = sbr.rel (0) target = $region9
    $region8: #{tpu_custom_call.1} parent=1 // pred_region
      %s33 = ssub.s32 1024, 1024
      %34 = vsyncadd [#allocation6], %s33
      %s35 = sshll.u32 [#allocation5], 4
      %s36 = int_to_ptr.vmem [resolvable:$true] %s35
      %41 = dma.hbm_to_vmem [thread:$0]  %s1, 1024, %s36, [#allocation6], 64, 64, 4
    $region9: #{tpu_custom_call.1} parent=1 // pred_fallthru
      _
    // Predicated region
    $region10: #{tpu_custom_call.1} parent=1 // pred_check
      _
    $region11: #{tpu_custom_call.1} parent=1 // pred_check_branch
      %43 = sbr.rel (0) target = $region13
    $region12: #{tpu_custom_call.1} parent=1 // pred_region
      _
    $region13: #{tpu_custom_call.1} parent=1 // pred_fallthru
      _
    // Predicated region
    $region14: #{tpu_custom_call.1} parent=1 // pred_check
      _
    $region15: #{tpu_custom_call.1} parent=1 // pred_check_branch
      %45 = sbr.rel (0) target = $region17
    $region16: #{tpu_custom_call.1} parent=1 // pred_region
      %s47 = ssub.s32 3072, 3072
      %48 = vsyncadd [#allocation6], %s47
      %s49 = sshll.u32 [#allocation7], 4
      %s50 = int_to_ptr.vmem [resolvable:$true] %s49
      %55 = dma.hbm_to_vmem [thread:$0]  %s3, 3072, %s50, [#allocation6], 64, 64, 4
    $region17: #{tpu_custom_call.1} parent=1 // pred_fallthru
      _
    // Predicated region
    $region18: #{tpu_custom_call.1} parent=1 // pred_check
      _
    $region19: #{tpu_custom_call.1} parent=1 // pred_check_branch
      %57 = sbr.rel (0) target = $region21
    $region20: #{tpu_custom_call.1} parent=1 // pred_region
      _
    $region21: #{tpu_custom_call.1} parent=1 // pred_fallthru
      _
    // Predicated region
    $region22: #{tpu_custom_call.1} parent=1 // pred_check
      _
    $region23: #{tpu_custom_call.1} parent=1 // pred_check_branch
      %59 = sbr.rel (0) target = $region25
    $region24: #{tpu_custom_call.1} parent=1 // pred_region
      %s61 = ssub.s32 3072, 3072
      %62 = vsyncadd [#allocation9], %s61
      %s63 = sshll.u32 [#allocation8], 4
      %s64 = int_to_ptr.vmem [resolvable:$true] %s63
      %69 = dma.hbm_to_vmem [thread:$0]  %s5, 3072, %s64, [#allocation9], 64, 64, 4
    $region25: #{tpu_custom_call.1} parent=1 // pred_fallthru
      _
    // Predicated region
    $region26: #{tpu_custom_call.1} parent=1 // pred_check
      _
    $region27: #{tpu_custom_call.1} parent=1 // pred_check_branch
      %71 = sbr.rel (0) target = $region29
    $region28: #{tpu_custom_call.1} parent=1 // pred_region
      _
    $region29: #{tpu_custom_call.1} parent=1 // pred_fallthru
      _
    // Predicated region
    $region30: #{tpu_custom_call.1} parent=1 // pred_check
      _
    $region31: #{tpu_custom_call.1} parent=1 // pred_check_branch
      %73 = sbr.rel (0) target = $region33
    $region32: #{tpu_custom_call.1} parent=1 // pred_region
      %s75 = ssub.s32 1024, 1024
      %76 = vsyncadd [#allocation9], %s75
      %s77 = sshll.u32 [#allocation10], 4
      %s78 = int_to_ptr.vmem [resolvable:$true] %s77
      %83 = dma.hbm_to_vmem [thread:$0]  %s7, 1024, %s78, [#allocation9], 64, 64, 4
    $region33: #{tpu_custom_call.1} parent=1 // pred_fallthru
      _
    // Predicated region
    $region34: #{tpu_custom_call.1} parent=1 // pred_check
      _
    $region35: #{tpu_custom_call.1} parent=1 // pred_check_branch
      %85 = sbr.rel (0) target = $region37
    $region36: #{tpu_custom_call.1} parent=1 // pred_region
      _
    $region37: #{tpu_custom_call.1} parent=1 // pred_fallthru
      _
    // Predicated region
    $region38: #{tpu_custom_call.1} parent=1 // pred_check
      _
    $region39: #{tpu_custom_call.1} parent=1 // pred_check_branch
      %87 = sbr.rel (0) target = $region41
    $region40: #{tpu_custom_call.1} parent=1 // pred_region
      %88 = dma.done [#allocation3], 4096
    $region41: #{tpu_custom_call.1} parent=1 // pred_fallthru
      _
    // Predicated region
    $region42: #{tpu_custom_call.1} parent=1 // pred_check
      _
    $region43: #{tpu_custom_call.1} parent=1 // pred_check_branch
      %90 = sbr.rel (0) target = $region45
    $region44: #{tpu_custom_call.1} parent=1 // pred_region
      %91 = dma.done [#allocation6], 1024
    $region45: #{tpu_custom_call.1} parent=1 // pred_fallthru
      _
    // Predicated region
    $region46: #{tpu_custom_call.1} parent=1 // pred_check
      _
    $region47: #{tpu_custom_call.1} parent=1 // pred_check_branch
      %93 = sbr.rel (0) target = $region49
    $region48: #{tpu_custom_call.1} parent=1 // pred_region
      %94 = dma.done [#allocation6], 3072
    $region49: #{tpu_custom_call.1} parent=1 // pred_fallthru
      _
    // Predicated region
    $region50: #{tpu_custom_call.1} parent=1 // pred_check
      _
    $region51: #{tpu_custom_call.1} parent=1 // pred_check_branch
      %96 = sbr.rel (0) target = $region53
    $region52: #{tpu_custom_call.1} parent=1 // pred_region
      %97 = dma.done [#allocation9], 3072
    $region53: #{tpu_custom_call.1} parent=1 // pred_fallthru
      _
    // Predicated region
    $region54: #{tpu_custom_call.1} parent=1 // pred_check
      _
    $region55: #{tpu_custom_call.1} parent=1 // pred_check_branch
      %99 = sbr.rel (0) target = $region57
    $region56: #{tpu_custom_call.1} parent=1 // pred_region
      %100 = dma.done [#allocation9], 1024
    $region57: #{tpu_custom_call.1} parent=1 // pred_fallthru
      _
    %v102 = vld [vmem:[#allocation2] sm:$0xf]
    %v103 = vld [vmem:[#allocation2 + $0x4] sm:$0xf]
    %v104 = vld [vmem:[#allocation2 + $0x8] sm:$0xf]
    %v105 = vld [vmem:[#allocation2 + $0xc] sm:$0xf]
    %v106 = vld [vmem:[#allocation2 + $0x10] sm:$0xf]
    %v107 = vld [vmem:[#allocation2 + $0x14] sm:$0xf]
    %v108 = vld [vmem:[#allocation2 + $0x18] sm:$0xf]
    %v109 = vld [vmem:[#allocation2 + $0x1c] sm:$0xf]
    %v110 = vld [vmem:[#allocation2 + $0x20] sm:$0xf]
    %v111 = vld [vmem:[#allocation2 + $0x24] sm:$0xf]
    %v112 = vld [vmem:[#allocation2 + $0x28] sm:$0xf]
    %v113 = vld [vmem:[#allocation2 + $0x2c] sm:$0xf]
    %v114 = vld [vmem:[#allocation2 + $0x30] sm:$0xf]
    %v115 = vld [vmem:[#allocation2 + $0x34] sm:$0xf]
    %v116 = vld [vmem:[#allocation2 + $0x38] sm:$0xf]
    %v117 = vld [vmem:[#allocation2 + $0x3c] sm:$0xf]
    %v118 = vld [vmem:[#allocation2 + $0x40] sm:$0xf]
    %v119 = vld [vmem:[#allocation2 + $0x44] sm:$0xf]
    %v120 = vld [vmem:[#allocation2 + $0x48] sm:$0xf]
    %v121 = vld [vmem:[#allocation2 + $0x4c] sm:$0xf]
    %v122 = vld [vmem:[#allocation2 + $0x50] sm:$0xf]
    %v123 = vld [vmem:[#allocation2 + $0x54] sm:$0xf]
    %v124 = vld [vmem:[#allocation2 + $0x58] sm:$0xf]
    %v125 = vld [vmem:[#allocation2 + $0x5c] sm:$0xf]
    %v126 = vld [vmem:[#allocation2 + $0x60] sm:$0xf]
    %v127 = vld [vmem:[#allocation2 + $0x64] sm:$0xf]
    %v128 = vld [vmem:[#allocation2 + $0x68] sm:$0xf]
    %v129 = vld [vmem:[#allocation2 + $0x6c] sm:$0xf]
    %v130 = vld [vmem:[#allocation2 + $0x70] sm:$0xf]
    %v131 = vld [vmem:[#allocation2 + $0x74] sm:$0xf]
    %v132 = vld [vmem:[#allocation2 + $0x78] sm:$0xf]
    %v133 = vld [vmem:[#allocation2 + $0x7c] sm:$0xf]
    %v134 = vld [vmem:[#allocation2 + $0x80] sm:$0xf]
    %v135 = vld [vmem:[#allocation2 + $0x84] sm:$0xf]
    %v136 = vld [vmem:[#allocation2 + $0x88] sm:$0xf]
    %v137 = vld [vmem:[#allocation2 + $0x8c] sm:$0xf]
    %v138 = vld [vmem:[#allocation2 + $0x90] sm:$0xf]
    %v139 = vld [vmem:[#allocation2 + $0x94] sm:$0xf]
    %v140 = vld [vmem:[#allocation2 + $0x98] sm:$0xf]
    %v141 = vld [vmem:[#allocation2 + $0x9c] sm:$0xf]
    %v142 = vld [vmem:[#allocation2 + $0xa0] sm:$0xf]
    %v143 = vld [vmem:[#allocation2 + $0xa4] sm:$0xf]
    %v144 = vld [vmem:[#allocation2 + $0xa8] sm:$0xf]
    %v145 = vld [vmem:[#allocation2 + $0xac] sm:$0xf]
    %v146 = vld [vmem:[#allocation2 + $0xb0] sm:$0xf]
    %v147 = vld [vmem:[#allocation2 + $0xb4] sm:$0xf]
    %v148 = vld [vmem:[#allocation2 + $0xb8] sm:$0xf]
    %v149 = vld [vmem:[#allocation2 + $0xbc] sm:$0xf]
    %v150 = vld [vmem:[#allocation2 + $0xc0] sm:$0xf]
    %v151 = vld [vmem:[#allocation2 + $0xc4] sm:$0xf]
    %v152 = vld [vmem:[#allocation2 + $0xc8] sm:$0xf]
    %v153 = vld [vmem:[#allocation2 + $0xcc] sm:$0xf]
    %v154 = vld [vmem:[#allocation2 + $0xd0] sm:$0xf]
    %v155 = vld [vmem:[#allocation2 + $0xd4] sm:$0xf]
    %v156 = vld [vmem:[#allocation2 + $0xd8] sm:$0xf]
    %v157 = vld [vmem:[#allocation2 + $0xdc] sm:$0xf]
    %v158 = vld [vmem:[#allocation2 + $0xe0] sm:$0xf]
    %v159 = vld [vmem:[#allocation2 + $0xe4] sm:$0xf]
    %v160 = vld [vmem:[#allocation2 + $0xe8] sm:$0xf]
    %v161 = vld [vmem:[#allocation2 + $0xec] sm:$0xf]
    %v162 = vld [vmem:[#allocation2 + $0xf0] sm:$0xf]
    %v163 = vld [vmem:[#allocation2 + $0xf4] sm:$0xf]
    %v164 = vld [vmem:[#allocation2 + $0xf8] sm:$0xf]
    %v165 = vld [vmem:[#allocation2 + $0xfc] sm:$0xf]
    %v166 = vlaneseq
    %v167 = vshrl.u32 %v166, 7
    %v168 = vadd.s32 %v167, 8
    %v169 = vadd.s32 %v167, 16
    %v170 = vadd.s32 %v167, 24
    %v171 = vadd.s32 %v167, 32
    %v172 = vadd.s32 %v167, 40
    %v173 = vadd.s32 %v167, 48
    %v174 = vadd.s32 %v167, 56
    %v175 = vadd.s32 %v167, 64
    %v176 = vadd.s32 %v167, 72
    %v177 = vadd.s32 %v167, 80
    %v178 = vadd.s32 %v167, 88
    %v179 = vadd.s32 %v167, 96
    %v180 = vadd.s32 %v167, 104
    %v181 = vadd.s32 %v167, 112
    %v182 = vadd.s32 %v167, 120
    %v183 = vadd.s32 %v167, 128
    %v184 = vadd.s32 %v167, 136
    %v185 = vadd.s32 %v167, 144
    %v186 = vadd.s32 %v167, 152
    %v187 = vadd.s32 %v167, 160
    %v188 = vadd.s32 %v167, 168
    %v189 = vadd.s32 %v167, 176
    %v190 = vadd.s32 %v167, 184
    %v191 = vadd.s32 %v167, 192
    %v192 = vadd.s32 %v167, 200
    %v193 = vadd.s32 %v167, 208
    %v194 = vadd.s32 %v167, 216
    %v195 = vadd.s32 %v167, 224
    %v196 = vadd.s32 %v167, 232
    %v197 = vadd.s32 %v167, 240
    %v198 = vadd.s32 %v167, 248
    %v199 = vadd.s32 %v167, 256
    %v200 = vadd.s32 %v167, 264
    %v201 = vadd.s32 %v167, 272
    %v202 = vadd.s32 %v167, 280
    %v203 = vadd.s32 %v167, 288
    %v204 = vadd.s32 %v167, 296
    %v205 = vadd.s32 %v167, 304
    %v206 = vadd.s32 %v167, 312
    %v207 = vadd.s32 %v167, 320
    %v208 = vadd.s32 %v167, 328
    %v209 = vadd.s32 %v167, 336
    %v210 = vadd.s32 %v167, 344
    %v211 = vadd.s32 %v167, 352
    %v212 = vadd.s32 %v167, 360
    %v213 = vadd.s32 %v167, 368
    %v214 = vadd.s32 %v167, 376
    %v215 = vadd.s32 %v167, 384
    %v216 = vadd.s32 %v167, 392
    %v217 = vadd.s32 %v167, 400
    %v218 = vadd.s32 %v167, 408
    %v219 = vadd.s32 %v167, 416
    %v220 = vadd.s32 %v167, 424
    %v221 = vadd.s32 %v167, 432
    %v222 = vadd.s32 %v167, 440
    %v223 = vadd.s32 %v167, 448
    %v224 = vadd.s32 %v167, 456
    %v225 = vadd.s32 %v167, 464
    %v226 = vadd.s32 %v167, 472
    %v227 = vadd.s32 %v167, 480
    %v228 = vadd.s32 %v167, 488
    %v229 = vadd.s32 %v167, 496
    %v230 = vadd.s32 %v167, 504
    %vm231 = vcmp.lt.s32.totalorder %v167, 0
    %v232 = vsub.s32 0, %v167
    %v233 = vsel %vm231, %v232, %v167
    %v234 = vshrl.u32 %v233, 6
    %v235 = vand.u32 %v233, 63
    %v236 = vsub.s32 0, %v235
    %v237 = vsel %vm231, %v236, %v235
    %vm238 = vcmp.lt.s32.totalorder %v168, 0
    %v239 = vsub.s32 0, %v168
    %v240 = vsel %vm238, %v239, %v168
    %v241 = vshrl.u32 %v240, 6
    %v242 = vand.u32 %v240, 63
    %v243 = vsub.s32 0, %v242
    %v244 = vsel %vm238, %v243, %v242
    %vm245 = vcmp.lt.s32.totalorder %v169, 0
    %v246 = vsub.s32 0, %v169
    %v247 = vsel %vm245, %v246, %v169
    %v248 = vshrl.u32 %v247, 6
    %v249 = vand.u32 %v247, 63
    %v250 = vsub.s32 0, %v249
    %v251 = vsel %vm245, %v250, %v249
    %vm252 = vcmp.lt.s32.totalorder %v170, 0
    %v253 = vsub.s32 0, %v170
    %v254 = vsel %vm252, %v253, %v170
    %v255 = vshrl.u32 %v254, 6
    %v256 = vand.u32 %v254, 63
    %v257 = vsub.s32 0, %v256
    %v258 = vsel %vm252, %v257, %v256
    %vm259 = vcmp.lt.s32.totalorder %v171, 0
    %v260 = vsub.s32 0, %v171
    %v261 = vsel %vm259, %v260, %v171
    %v262 = vshrl.u32 %v261, 6
    %v263 = vand.u32 %v261, 63
    %v264 = vsub.s32 0, %v263
    %v265 = vsel %vm259, %v264, %v263
    %vm266 = vcmp.lt.s32.totalorder %v172, 0
    %v267 = vsub.s32 0, %v172
    %v268 = vsel %vm266, %v267, %v172
    %v269 = vshrl.u32 %v268, 6
    %v270 = vand.u32 %v268, 63
    %v271 = vsub.s32 0, %v270
    %v272 = vsel %vm266, %v271, %v270
    %vm273 = vcmp.lt.s32.totalorder %v173, 0
    %v274 = vsub.s32 0, %v173
    %v275 = vsel %vm273, %v274, %v173
    %v276 = vshrl.u32 %v275, 6
    %v277 = vand.u32 %v275, 63
    %v278 = vsub.s32 0, %v277
    %v279 = vsel %vm273, %v278, %v277
    %vm280 = vcmp.lt.s32.totalorder %v174, 0
    %v281 = vsub.s32 0, %v174
    %v282 = vsel %vm280, %v281, %v174
    %v283 = vshrl.u32 %v282, 6
    %v284 = vand.u32 %v282, 63
    %v285 = vsub.s32 0, %v284
    %v286 = vsel %vm280, %v285, %v284
    %vm287 = vcmp.lt.s32.totalorder %v175, 0
    %v288 = vsub.s32 0, %v175
    %v289 = vsel %vm287, %v288, %v175
    %v290 = vshrl.u32 %v289, 6
    %v291 = vand.u32 %v289, 63
    %v292 = vsub.s32 0, %v291
    %v293 = vsel %vm287, %v292, %v291
    %vm294 = vcmp.lt.s32.totalorder %v176, 0
    %v295 = vsub.s32 0, %v176
    %v296 = vsel %vm294, %v295, %v176
    %v297 = vshrl.u32 %v296, 6
    %v298 = vand.u32 %v296, 63
    %v299 = vsub.s32 0, %v298
    %v300 = vsel %vm294, %v299, %v298
    %vm301 = vcmp.lt.s32.totalorder %v177, 0
    %v302 = vsub.s32 0, %v177
    %v303 = vsel %vm301, %v302, %v177
    %v304 = vshrl.u32 %v303, 6
    %v305 = vand.u32 %v303, 63
    %v306 = vsub.s32 0, %v305
    %v307 = vsel %vm301, %v306, %v305
    %vm308 = vcmp.lt.s32.totalorder %v178, 0
    %v309 = vsub.s32 0, %v178
    %v310 = vsel %vm308, %v309, %v178
    %v311 = vshrl.u32 %v310, 6
    %v312 = vand.u32 %v310, 63
    %v313 = vsub.s32 0, %v312
    %v314 = vsel %vm308, %v313, %v312
    %vm315 = vcmp.lt.s32.totalorder %v179, 0
    %v316 = vsub.s32 0, %v179
    %v317 = vsel %vm315, %v316, %v179
    %v318 = vshrl.u32 %v317, 6
    %v319 = vand.u32 %v317, 63
    %v320 = vsub.s32 0, %v319
    %v321 = vsel %vm315, %v320, %v319
    %vm322 = vcmp.lt.s32.totalorder %v180, 0
    %v323 = vsub.s32 0, %v180
    %v324 = vsel %vm322, %v323, %v180
    %v325 = vshrl.u32 %v324, 6
    %v326 = vand.u32 %v324, 63
    %v327 = vsub.s32 0, %v326
    %v328 = vsel %vm322, %v327, %v326
    %vm329 = vcmp.lt.s32.totalorder %v181, 0
    %v330 = vsub.s32 0, %v181
    %v331 = vsel %vm329, %v330, %v181
    %v332 = vshrl.u32 %v331, 6
    %v333 = vand.u32 %v331, 63
    %v334 = vsub.s32 0, %v333
    %v335 = vsel %vm329, %v334, %v333
    %vm336 = vcmp.lt.s32.totalorder %v182, 0
    %v337 = vsub.s32 0, %v182
    %v338 = vsel %vm336, %v337, %v182
    %v339 = vshrl.u32 %v338, 6
    %v340 = vand.u32 %v338, 63
    %v341 = vsub.s32 0, %v340
    %v342 = vsel %vm336, %v341, %v340
    %vm343 = vcmp.lt.s32.totalorder %v183, 0
    %v344 = vsub.s32 0, %v183
    %v345 = vsel %vm343, %v344, %v183
    %v346 = vshrl.u32 %v345, 6
    %v347 = vand.u32 %v345, 63
    %v348 = vsub.s32 0, %v347
    %v349 = vsel %vm343, %v348, %v347
    %vm350 = vcmp.lt.s32.totalorder %v184, 0
    %v351 = vsub.s32 0, %v184
    %v352 = vsel %vm350, %v351, %v184
    %v353 = vshrl.u32 %v352, 6
    %v354 = vand.u32 %v352, 63
    %v355 = vsub.s32 0, %v354
    %v356 = vsel %vm350, %v355, %v354
    %vm357 = vcmp.lt.s32.totalorder %v185, 0
    %v358 = vsub.s32 0, %v185
    %v359 = vsel %vm357, %v358, %v185
    %v360 = vshrl.u32 %v359, 6
    %v361 = vand.u32 %v359, 63
    %v362 = vsub.s32 0, %v361
    %v363 = vsel %vm357, %v362, %v361
    %vm364 = vcmp.lt.s32.totalorder %v186, 0
    %v365 = vsub.s32 0, %v186
    %v366 = vsel %vm364, %v365, %v186
    %v367 = vshrl.u32 %v366, 6
    %v368 = vand.u32 %v366, 63
    %v369 = vsub.s32 0, %v368
    %v370 = vsel %vm364, %v369, %v368
    %vm371 = vcmp.lt.s32.totalorder %v187, 0
    %v372 = vsub.s32 0, %v187
    %v373 = vsel %vm371, %v372, %v187
    %v374 = vshrl.u32 %v373, 6
    %v375 = vand.u32 %v373, 63
    %v376 = vsub.s32 0, %v375
    %v377 = vsel %vm371, %v376, %v375
    %vm378 = vcmp.lt.s32.totalorder %v188, 0
    %v379 = vsub.s32 0, %v188
    %v380 = vsel %vm378, %v379, %v188
    %v381 = vshrl.u32 %v380, 6
    %v382 = vand.u32 %v380, 63
    %v383 = vsub.s32 0, %v382
    %v384 = vsel %vm378, %v383, %v382
    %vm385 = vcmp.lt.s32.totalorder %v189, 0
    %v386 = vsub.s32 0, %v189
    %v387 = vsel %vm385, %v386, %v189
    %v388 = vshrl.u32 %v387, 6
    %v389 = vand.u32 %v387, 63
    %v390 = vsub.s32 0, %v389
    %v391 = vsel %vm385, %v390, %v389
    %vm392 = vcmp.lt.s32.totalorder %v190, 0
    %v393 = vsub.s32 0, %v190
    %v394 = vsel %vm392, %v393, %v190
    %v395 = vshrl.u32 %v394, 6
    %v396 = vand.u32 %v394, 63
    %v397 = vsub.s32 0, %v396
    %v398 = vsel %vm392, %v397, %v396
    %vm399 = vcmp.lt.s32.totalorder %v191, 0
    %v400 = vsub.s32 0, %v191
    %v401 = vsel %vm399, %v400, %v191
    %v402 = vshrl.u32 %v401, 6
    %v403 = vand.u32 %v401, 63
    %v404 = vsub.s32 0, %v403
    %v405 = vsel %vm399, %v404, %v403
    %vm406 = vcmp.lt.s32.totalorder %v192, 0
    %v407 = vsub.s32 0, %v192
    %v408 = vsel %vm406, %v407, %v192
    %v409 = vshrl.u32 %v408, 6
    %v410 = vand.u32 %v408, 63
    %v411 = vsub.s32 0, %v410
    %v412 = vsel %vm406, %v411, %v410
    %vm413 = vcmp.lt.s32.totalorder %v193, 0
    %v414 = vsub.s32 0, %v193
    %v415 = vsel %vm413, %v414, %v193
    %v416 = vshrl.u32 %v415, 6
    %v417 = vand.u32 %v415, 63
    %v418 = vsub.s32 0, %v417
    %v419 = vsel %vm413, %v418, %v417
    %vm420 = vcmp.lt.s32.totalorder %v194, 0
    %v421 = vsub.s32 0, %v194
    %v422 = vsel %vm420, %v421, %v194
    %v423 = vshrl.u32 %v422, 6
    %v424 = vand.u32 %v422, 63
    %v425 = vsub.s32 0, %v424
    %v426 = vsel %vm420, %v425, %v424
    %vm427 = vcmp.lt.s32.totalorder %v195, 0
    %v428 = vsub.s32 0, %v195
    %v429 = vsel %vm427, %v428, %v195
    %v430 = vshrl.u32 %v429, 6
    %v431 = vand.u32 %v429, 63
    %v432 = vsub.s32 0, %v431
    %v433 = vsel %vm427, %v432, %v431
    %vm434 = vcmp.lt.s32.totalorder %v196, 0
    %v435 = vsub.s32 0, %v196
    %v436 = vsel %vm434, %v435, %v196
    %v437 = vshrl.u32 %v436, 6
    %v438 = vand.u32 %v436, 63
    %v439 = vsub.s32 0, %v438
    %v440 = vsel %vm434, %v439, %v438
    %vm441 = vcmp.lt.s32.totalorder %v197, 0
    %v442 = vsub.s32 0, %v197
    %v443 = vsel %vm441, %v442, %v197
    %v444 = vshrl.u32 %v443, 6
    %v445 = vand.u32 %v443, 63
    %v446 = vsub.s32 0, %v445
    %v447 = vsel %vm441, %v446, %v445
    %vm448 = vcmp.lt.s32.totalorder %v198, 0
    %v449 = vsub.s32 0, %v198
    %v450 = vsel %vm448, %v449, %v198
    %v451 = vshrl.u32 %v450, 6
    %v452 = vand.u32 %v450, 63
    %v453 = vsub.s32 0, %v452
    %v454 = vsel %vm448, %v453, %v452
    %vm455 = vcmp.lt.s32.totalorder %v199, 0
    %v456 = vsub.s32 0, %v199
    %v457 = vsel %vm455, %v456, %v199
    %v458 = vshrl.u32 %v457, 6
    %v459 = vand.u32 %v457, 63
    %v460 = vsub.s32 0, %v459
    %v461 = vsel %vm455, %v460, %v459
    %vm462 = vcmp.lt.s32.totalorder %v200, 0
    %v463 = vsub.s32 0, %v200
    %v464 = vsel %vm462, %v463, %v200
    %v465 = vshrl.u32 %v464, 6
    %v466 = vand.u32 %v464, 63
    %v467 = vsub.s32 0, %v466
    %v468 = vsel %vm462, %v467, %v466
    %vm469 = vcmp.lt.s32.totalorder %v201, 0
    %v470 = vsub.s32 0, %v201
    %v471 = vsel %vm469, %v470, %v201
    %v472 = vshrl.u32 %v471, 6
    %v473 = vand.u32 %v471, 63
    %v474 = vsub.s32 0, %v473
    %v475 = vsel %vm469, %v474, %v473
    %vm476 = vcmp.lt.s32.totalorder %v202, 0
    %v477 = vsub.s32 0, %v202
    %v478 = vsel %vm476, %v477, %v202
    %v479 = vshrl.u32 %v478, 6
    %v480 = vand.u32 %v478, 63
    %v481 = vsub.s32 0, %v480
    %v482 = vsel %vm476, %v481, %v480
    %vm483 = vcmp.lt.s32.totalorder %v203, 0
    %v484 = vsub.s32 0, %v203
    %v485 = vsel %vm483, %v484, %v203
    %v486 = vshrl.u32 %v485, 6
    %v487 = vand.u32 %v485, 63
    %v488 = vsub.s32 0, %v487
    %v489 = vsel %vm483, %v488, %v487
    %vm490 = vcmp.lt.s32.totalorder %v204, 0
    %v491 = vsub.s32 0, %v204
    %v492 = vsel %vm490, %v491, %v204
    %v493 = vshrl.u32 %v492, 6
    %v494 = vand.u32 %v492, 63
    %v495 = vsub.s32 0, %v494
    %v496 = vsel %vm490, %v495, %v494
    %vm497 = vcmp.lt.s32.totalorder %v205, 0
    %v498 = vsub.s32 0, %v205
    %v499 = vsel %vm497, %v498, %v205
    %v500 = vshrl.u32 %v499, 6
    %v501 = vand.u32 %v499, 63
    %v502 = vsub.s32 0, %v501
    %v503 = vsel %vm497, %v502, %v501
    %vm504 = vcmp.lt.s32.totalorder %v206, 0
    %v505 = vsub.s32 0, %v206
    %v506 = vsel %vm504, %v505, %v206
    %v507 = vshrl.u32 %v506, 6
    %v508 = vand.u32 %v506, 63
    %v509 = vsub.s32 0, %v508
    %v510 = vsel %vm504, %v509, %v508
    %vm511 = vcmp.lt.s32.totalorder %v207, 0
    %v512 = vsub.s32 0, %v207
    %v513 = vsel %vm511, %v512, %v207
    %v514 = vshrl.u32 %v513, 6
    %v515 = vand.u32 %v513, 63
    %v516 = vsub.s32 0, %v515
    %v517 = vsel %vm511, %v516, %v515
    %vm518 = vcmp.lt.s32.totalorder %v208, 0
    %v519 = vsub.s32 0, %v208
    %v520 = vsel %vm518, %v519, %v208
    %v521 = vshrl.u32 %v520, 6
    %v522 = vand.u32 %v520, 63
    %v523 = vsub.s32 0, %v522
    %v524 = vsel %vm518, %v523, %v522
    %vm525 = vcmp.lt.s32.totalorder %v209, 0
    %v526 = vsub.s32 0, %v209
    %v527 = vsel %vm525, %v526, %v209
    %v528 = vshrl.u32 %v527, 6
    %v529 = vand.u32 %v527, 63
    %v530 = vsub.s32 0, %v529
    %v531 = vsel %vm525, %v530, %v529
    %vm532 = vcmp.lt.s32.totalorder %v210, 0
    %v533 = vsub.s32 0, %v210
    %v534 = vsel %vm532, %v533, %v210
    %v535 = vshrl.u32 %v534, 6
    %v536 = vand.u32 %v534, 63
    %v537 = vsub.s32 0, %v536
    %v538 = vsel %vm532, %v537, %v536
    %vm539 = vcmp.lt.s32.totalorder %v211, 0
    %v540 = vsub.s32 0, %v211
    %v541 = vsel %vm539, %v540, %v211
    %v542 = vshrl.u32 %v541, 6
    %v543 = vand.u32 %v541, 63
    %v544 = vsub.s32 0, %v543
    %v545 = vsel %vm539, %v544, %v543
    %vm546 = vcmp.lt.s32.totalorder %v212, 0
    %v547 = vsub.s32 0, %v212
    %v548 = vsel %vm546, %v547, %v212
    %v549 = vshrl.u32 %v548, 6
    %v550 = vand.u32 %v548, 63
    %v551 = vsub.s32 0, %v550
    %v552 = vsel %vm546, %v551, %v550
    %vm553 = vcmp.lt.s32.totalorder %v213, 0
    %v554 = vsub.s32 0, %v213
    %v555 = vsel %vm553, %v554, %v213
    %v556 = vshrl.u32 %v555, 6
    %v557 = vand.u32 %v555, 63
    %v558 = vsub.s32 0, %v557
    %v559 = vsel %vm553, %v558, %v557
    %vm560 = vcmp.lt.s32.totalorder %v214, 0
    %v561 = vsub.s32 0, %v214
    %v562 = vsel %vm560, %v561, %v214
    %v563 = vshrl.u32 %v562, 6
    %v564 = vand.u32 %v562, 63
    %v565 = vsub.s32 0, %v564
    %v566 = vsel %vm560, %v565, %v564
    %vm567 = vcmp.lt.s32.totalorder %v215, 0
    %v568 = vsub.s32 0, %v215
    %v569 = vsel %vm567, %v568, %v215
    %v570 = vshrl.u32 %v569, 6
    %v571 = vand.u32 %v569, 63
    %v572 = vsub.s32 0, %v571
    %v573 = vsel %vm567, %v572, %v571
    %vm574 = vcmp.lt.s32.totalorder %v216, 0
    %v575 = vsub.s32 0, %v216
    %v576 = vsel %vm574, %v575, %v216
    %v577 = vshrl.u32 %v576, 6
    %v578 = vand.u32 %v576, 63
    %v579 = vsub.s32 0, %v578
    %v580 = vsel %vm574, %v579, %v578
    %vm581 = vcmp.lt.s32.totalorder %v217, 0
    %v582 = vsub.s32 0, %v217
    %v583 = vsel %vm581, %v582, %v217
    %v584 = vshrl.u32 %v583, 6
    %v585 = vand.u32 %v583, 63
    %v586 = vsub.s32 0, %v585
    %v587 = vsel %vm581, %v586, %v585
    %vm588 = vcmp.lt.s32.totalorder %v218, 0
    %v589 = vsub.s32 0, %v218
    %v590 = vsel %vm588, %v589, %v218
    %v591 = vshrl.u32 %v590, 6
    %v592 = vand.u32 %v590, 63
    %v593 = vsub.s32 0, %v592
    %v594 = vsel %vm588, %v593, %v592
    %vm595 = vcmp.lt.s32.totalorder %v219, 0
    %v596 = vsub.s32 0, %v219
    %v597 = vsel %vm595, %v596, %v219
    %v598 = vshrl.u32 %v597, 6
    %v599 = vand.u32 %v597, 63
    %v600 = vsub.s32 0, %v599
    %v601 = vsel %vm595, %v600, %v599
    %vm602 = vcmp.lt.s32.totalorder %v220, 0
    %v603 = vsub.s32 0, %v220
    %v604 = vsel %vm602, %v603, %v220
    %v605 = vshrl.u32 %v604, 6
    %v606 = vand.u32 %v604, 63
    %v607 = vsub.s32 0, %v606
    %v608 = vsel %vm602, %v607, %v606
    %vm609 = vcmp.lt.s32.totalorder %v221, 0
    %v610 = vsub.s32 0, %v221
    %v611 = vsel %vm609, %v610, %v221
    %v612 = vshrl.u32 %v611, 6
    %v613 = vand.u32 %v611, 63
    %v614 = vsub.s32 0, %v613
    %v615 = vsel %vm609, %v614, %v613
    %vm616 = vcmp.lt.s32.totalorder %v222, 0
    %v617 = vsub.s32 0, %v222
    %v618 = vsel %vm616, %v617, %v222
    %v619 = vshrl.u32 %v618, 6
    %v620 = vand.u32 %v618, 63
    %v621 = vsub.s32 0, %v620
    %v622 = vsel %vm616, %v621, %v620
    %vm623 = vcmp.lt.s32.totalorder %v223, 0
    %v624 = vsub.s32 0, %v223
    %v625 = vsel %vm623, %v624, %v223
    %v626 = vshrl.u32 %v625, 6
    %v627 = vand.u32 %v625, 63
    %v628 = vsub.s32 0, %v627
    %v629 = vsel %vm623, %v628, %v627
    %vm630 = vcmp.lt.s32.totalorder %v224, 0
    %v631 = vsub.s32 0, %v224
    %v632 = vsel %vm630, %v631, %v224
    %v633 = vshrl.u32 %v632, 6
    %v634 = vand.u32 %v632, 63
    %v635 = vsub.s32 0, %v634
    %v636 = vsel %vm630, %v635, %v634
    %vm637 = vcmp.lt.s32.totalorder %v225, 0
    %v638 = vsub.s32 0, %v225
    %v639 = vsel %vm637, %v638, %v225
    %v640 = vshrl.u32 %v639, 6
    %v641 = vand.u32 %v639, 63
    %v642 = vsub.s32 0, %v641
    %v643 = vsel %vm637, %v642, %v641
    %vm644 = vcmp.lt.s32.totalorder %v226, 0
    %v645 = vsub.s32 0, %v226
    %v646 = vsel %vm644, %v645, %v226
    %v647 = vshrl.u32 %v646, 6
    %v648 = vand.u32 %v646, 63
    %v649 = vsub.s32 0, %v648
    %v650 = vsel %vm644, %v649, %v648
    %vm651 = vcmp.lt.s32.totalorder %v227, 0
    %v652 = vsub.s32 0, %v227
    %v653 = vsel %vm651, %v652, %v227
    %v654 = vshrl.u32 %v653, 6
    %v655 = vand.u32 %v653, 63
    %v656 = vsub.s32 0, %v655
    %v657 = vsel %vm651, %v656, %v655
    %vm658 = vcmp.lt.s32.totalorder %v228, 0
    %v659 = vsub.s32 0, %v228
    %v660 = vsel %vm658, %v659, %v228
    %v661 = vshrl.u32 %v660, 6
    %v662 = vand.u32 %v660, 63
    %v663 = vsub.s32 0, %v662
    %v664 = vsel %vm658, %v663, %v662
    %vm665 = vcmp.lt.s32.totalorder %v229, 0
    %v666 = vsub.s32 0, %v229
    %v667 = vsel %vm665, %v666, %v229
    %v668 = vshrl.u32 %v667, 6
    %v669 = vand.u32 %v667, 63
    %v670 = vsub.s32 0, %v669
    %v671 = vsel %vm665, %v670, %v669
    %vm672 = vcmp.lt.s32.totalorder %v230, 0
    %v673 = vsub.s32 0, %v230
    %v674 = vsel %vm672, %v673, %v230
    %v675 = vshrl.u32 %v674, 6
    %v676 = vand.u32 %v674, 63
    %v677 = vsub.s32 0, %v676
    %v678 = vsel %vm672, %v677, %v676
    %vm679 = vcmp.ne.s32.totalorder %v237, 0
    %vm680 = vcmp.ne.s32.totalorder %v244, 0
    %vm681 = vcmp.ne.s32.totalorder %v251, 0
    %vm682 = vcmp.ne.s32.totalorder %v258, 0
    %vm683 = vcmp.ne.s32.totalorder %v265, 0
    %vm684 = vcmp.ne.s32.totalorder %v272, 0
    %vm685 = vcmp.ne.s32.totalorder %v279, 0
    %vm686 = vcmp.ne.s32.totalorder %v286, 0
    %vm687 = vcmp.ne.s32.totalorder %v293, 0
    %vm688 = vcmp.ne.s32.totalorder %v300, 0
    %vm689 = vcmp.ne.s32.totalorder %v307, 0
    %vm690 = vcmp.ne.s32.totalorder %v314, 0
    %vm691 = vcmp.ne.s32.totalorder %v321, 0
    %vm692 = vcmp.ne.s32.totalorder %v328, 0
    %vm693 = vcmp.ne.s32.totalorder %v335, 0
    %vm694 = vcmp.ne.s32.totalorder %v342, 0
    %vm695 = vcmp.ne.s32.totalorder %v349, 0
    %vm696 = vcmp.ne.s32.totalorder %v356, 0
    %vm697 = vcmp.ne.s32.totalorder %v363, 0
    %vm698 = vcmp.ne.s32.totalorder %v370, 0
    %vm699 = vcmp.ne.s32.totalorder %v377, 0
    %vm700 = vcmp.ne.s32.totalorder %v384, 0
    %vm701 = vcmp.ne.s32.totalorder %v391, 0
    %vm702 = vcmp.ne.s32.totalorder %v398, 0
    %vm703 = vcmp.ne.s32.totalorder %v405, 0
    %vm704 = vcmp.ne.s32.totalorder %v412, 0
    %vm705 = vcmp.ne.s32.totalorder %v419, 0
    %vm706 = vcmp.ne.s32.totalorder %v426, 0
    %vm707 = vcmp.ne.s32.totalorder %v433, 0
    %vm708 = vcmp.ne.s32.totalorder %v440, 0
    %vm709 = vcmp.ne.s32.totalorder %v447, 0
    %vm710 = vcmp.ne.s32.totalorder %v454, 0
    %vm711 = vcmp.ne.s32.totalorder %v461, 0
    %vm712 = vcmp.ne.s32.totalorder %v468, 0
    %vm713 = vcmp.ne.s32.totalorder %v475, 0
    %vm714 = vcmp.ne.s32.totalorder %v482, 0
    %vm715 = vcmp.ne.s32.totalorder %v489, 0
    %vm716 = vcmp.ne.s32.totalorder %v496, 0
    %vm717 = vcmp.ne.s32.totalorder %v503, 0
    %vm718 = vcmp.ne.s32.totalorder %v510, 0
    %vm719 = vcmp.ne.s32.totalorder %v517, 0
    %vm720 = vcmp.ne.s32.totalorder %v524, 0
    %vm721 = vcmp.ne.s32.totalorder %v531, 0
    %vm722 = vcmp.ne.s32.totalorder %v538, 0
    %vm723 = vcmp.ne.s32.totalorder %v545, 0
    %vm724 = vcmp.ne.s32.totalorder %v552, 0
    %vm725 = vcmp.ne.s32.totalorder %v559, 0
    %vm726 = vcmp.ne.s32.totalorder %v566, 0
    %vm727 = vcmp.ne.s32.totalorder %v573, 0
    %vm728 = vcmp.ne.s32.totalorder %v580, 0
    %vm729 = vcmp.ne.s32.totalorder %v587, 0
    %vm730 = vcmp.ne.s32.totalorder %v594, 0
    %vm731 = vcmp.ne.s32.totalorder %v601, 0
    %vm732 = vcmp.ne.s32.totalorder %v608, 0
    %vm733 = vcmp.ne.s32.totalorder %v615, 0
    %vm734 = vcmp.ne.s32.totalorder %v622, 0
    %vm735 = vcmp.ne.s32.totalorder %v629, 0
    %vm736 = vcmp.ne.s32.totalorder %v636, 0
    %vm737 = vcmp.ne.s32.totalorder %v643, 0
    %vm738 = vcmp.ne.s32.totalorder %v650, 0
    %vm739 = vcmp.ne.s32.totalorder %v657, 0
    %vm740 = vcmp.ne.s32.totalorder %v664, 0
    %vm741 = vcmp.ne.s32.totalorder %v671, 0
    %vm742 = vcmp.ne.s32.totalorder %v678, 0
    %vm743 = vcmp.lt.s32.totalorder %v237, 0
    %vm744 = vcmp.lt.s32.totalorder %v244, 0
    %vm745 = vcmp.lt.s32.totalorder %v251, 0
    %vm746 = vcmp.lt.s32.totalorder %v258, 0
    %vm747 = vcmp.lt.s32.totalorder %v265, 0
    %vm748 = vcmp.lt.s32.totalorder %v272, 0
    %vm749 = vcmp.lt.s32.totalorder %v279, 0
    %vm750 = vcmp.lt.s32.totalorder %v286, 0
    %vm751 = vcmp.lt.s32.totalorder %v293, 0
    %vm752 = vcmp.lt.s32.totalorder %v300, 0
    %vm753 = vcmp.lt.s32.totalorder %v307, 0
    %vm754 = vcmp.lt.s32.totalorder %v314, 0
    %vm755 = vcmp.lt.s32.totalorder %v321, 0
    %vm756 = vcmp.lt.s32.totalorder %v328, 0
    %vm757 = vcmp.lt.s32.totalorder %v335, 0
    %vm758 = vcmp.lt.s32.totalorder %v342, 0
    %vm759 = vcmp.lt.s32.totalorder %v349, 0
    %vm760 = vcmp.lt.s32.totalorder %v356, 0
    %vm761 = vcmp.lt.s32.totalorder %v363, 0
    %vm762 = vcmp.lt.s32.totalorder %v370, 0
    %vm763 = vcmp.lt.s32.totalorder %v377, 0
    %vm764 = vcmp.lt.s32.totalorder %v384, 0
    %vm765 = vcmp.lt.s32.totalorder %v391, 0
    %vm766 = vcmp.lt.s32.totalorder %v398, 0
    %vm767 = vcmp.lt.s32.totalorder %v405, 0
    %vm768 = vcmp.lt.s32.totalorder %v412, 0
    %vm769 = vcmp.lt.s32.totalorder %v419, 0
    %vm770 = vcmp.lt.s32.totalorder %v426, 0
    %vm771 = vcmp.lt.s32.totalorder %v433, 0
    %vm772 = vcmp.lt.s32.totalorder %v440, 0
    %vm773 = vcmp.lt.s32.totalorder %v447, 0
    %vm774 = vcmp.lt.s32.totalorder %v454, 0
    %vm775 = vcmp.lt.s32.totalorder %v461, 0
    %vm776 = vcmp.lt.s32.totalorder %v468, 0
    %vm777 = vcmp.lt.s32.totalorder %v475, 0
    %vm778 = vcmp.lt.s32.totalorder %v482, 0
    %vm779 = vcmp.lt.s32.totalorder %v489, 0
    %vm780 = vcmp.lt.s32.totalorder %v496, 0
    %vm781 = vcmp.lt.s32.totalorder %v503, 0
    %vm782 = vcmp.lt.s32.totalorder %v510, 0
    %vm783 = vcmp.lt.s32.totalorder %v517, 0
    %vm784 = vcmp.lt.s32.totalorder %v524, 0
    %vm785 = vcmp.lt.s32.totalorder %v531, 0
    %vm786 = vcmp.lt.s32.totalorder %v538, 0
    %vm787 = vcmp.lt.s32.totalorder %v545, 0
    %vm788 = vcmp.lt.s32.totalorder %v552, 0
    %vm789 = vcmp.lt.s32.totalorder %v559, 0
    %vm790 = vcmp.lt.s32.totalorder %v566, 0
    %vm791 = vcmp.lt.s32.totalorder %v573, 0
    %vm792 = vcmp.lt.s32.totalorder %v580, 0
    %vm793 = vcmp.lt.s32.totalorder %v587, 0
    %vm794 = vcmp.lt.s32.totalorder %v594, 0
    %vm795 = vcmp.lt.s32.totalorder %v601, 0
    %vm796 = vcmp.lt.s32.totalorder %v608, 0
    %vm797 = vcmp.lt.s32.totalorder %v615, 0
    %vm798 = vcmp.lt.s32.totalorder %v622, 0
    %vm799 = vcmp.lt.s32.totalorder %v629, 0
    %vm800 = vcmp.lt.s32.totalorder %v636, 0
    %vm801 = vcmp.lt.s32.totalorder %v643, 0
    %vm802 = vcmp.lt.s32.totalorder %v650, 0
    %vm803 = vcmp.lt.s32.totalorder %v657, 0
    %vm804 = vcmp.lt.s32.totalorder %v664, 0
    %vm805 = vcmp.lt.s32.totalorder %v671, 0
    %vm806 = vcmp.lt.s32.totalorder %v678, 0
    %vm807 = vmand %vm743, %vm679
    %vm808 = vmand %vm744, %vm680
    %vm809 = vmand %vm745, %vm681
    %vm810 = vmand %vm746, %vm682
    %vm811 = vmand %vm747, %vm683
    %vm812 = vmand %vm748, %vm684
    %vm813 = vmand %vm749, %vm685
    %vm814 = vmand %vm750, %vm686
    %vm815 = vmand %vm751, %vm687
    %vm816 = vmand %vm752, %vm688
    %vm817 = vmand %vm753, %vm689
    %vm818 = vmand %vm754, %vm690
    %vm819 = vmand %vm755, %vm691
    %vm820 = vmand %vm756, %vm692
    %vm821 = vmand %vm757, %vm693
    %vm822 = vmand %vm758, %vm694
    %vm823 = vmand %vm759, %vm695
    %vm824 = vmand %vm760, %vm696
    %vm825 = vmand %vm761, %vm697
    %vm826 = vmand %vm762, %vm698
    %vm827 = vmand %vm763, %vm699
    %vm828 = vmand %vm764, %vm700
    %vm829 = vmand %vm765, %vm701
    %vm830 = vmand %vm766, %vm702
    %vm831 = vmand %vm767, %vm703
    %vm832 = vmand %vm768, %vm704
    %vm833 = vmand %vm769, %vm705
    %vm834 = vmand %vm770, %vm706
    %vm835 = vmand %vm771, %vm707
    %vm836 = vmand %vm772, %vm708
    %vm837 = vmand %vm773, %vm709
    %vm838 = vmand %vm774, %vm710
    %vm839 = vmand %vm775, %vm711
    %vm840 = vmand %vm776, %vm712
    %vm841 = vmand %vm777, %vm713
    %vm842 = vmand %vm778, %vm714
    %vm843 = vmand %vm779, %vm715
    %vm844 = vmand %vm780, %vm716
    %vm845 = vmand %vm781, %vm717
    %vm846 = vmand %vm782, %vm718
    %vm847 = vmand %vm783, %vm719
    %vm848 = vmand %vm784, %vm720
    %vm849 = vmand %vm785, %vm721
    %vm850 = vmand %vm786, %vm722
    %vm851 = vmand %vm787, %vm723
    %vm852 = vmand %vm788, %vm724
    %vm853 = vmand %vm789, %vm725
    %vm854 = vmand %vm790, %vm726
    %vm855 = vmand %vm791, %vm727
    %vm856 = vmand %vm792, %vm728
    %vm857 = vmand %vm793, %vm729
    %vm858 = vmand %vm794, %vm730
    %vm859 = vmand %vm795, %vm731
    %vm860 = vmand %vm796, %vm732
    %vm861 = vmand %vm797, %vm733
    %vm862 = vmand %vm798, %vm734
    %vm863 = vmand %vm799, %vm735
    %vm864 = vmand %vm800, %vm736
    %vm865 = vmand %vm801, %vm737
    %vm866 = vmand %vm802, %vm738
    %vm867 = vmand %vm803, %vm739
    %vm868 = vmand %vm804, %vm740
    %vm869 = vmand %vm805, %vm741
    %vm870 = vmand %vm806, %vm742
    %v871 = vadd.s32 %v237, 64
    %v872 = vadd.s32 %v244, 64
    %v873 = vadd.s32 %v251, 64
    %v874 = vadd.s32 %v258, 64
    %v875 = vadd.s32 %v265, 64
    %v876 = vadd.s32 %v272, 64
    %v877 = vadd.s32 %v279, 64
    %v878 = vadd.s32 %v286, 64
    %v879 = vadd.s32 %v293, 64
    %v880 = vadd.s32 %v300, 64
    %v881 = vadd.s32 %v307, 64
    %v882 = vadd.s32 %v314, 64
    %v883 = vadd.s32 %v321, 64
    %v884 = vadd.s32 %v328, 64
    %v885 = vadd.s32 %v335, 64
    %v886 = vadd.s32 %v342, 64
    %v887 = vadd.s32 %v349, 64
    %v888 = vadd.s32 %v356, 64
    %v889 = vadd.s32 %v363, 64
    %v890 = vadd.s32 %v370, 64
    %v891 = vadd.s32 %v377, 64
    %v892 = vadd.s32 %v384, 64
    %v893 = vadd.s32 %v391, 64
    %v894 = vadd.s32 %v398, 64
    %v895 = vadd.s32 %v405, 64
    %v896 = vadd.s32 %v412, 64
    %v897 = vadd.s32 %v419, 64
    %v898 = vadd.s32 %v426, 64
    %v899 = vadd.s32 %v433, 64
    %v900 = vadd.s32 %v440, 64
    %v901 = vadd.s32 %v447, 64
    %v902 = vadd.s32 %v454, 64
    %v903 = vadd.s32 %v461, 64
    %v904 = vadd.s32 %v468, 64
    %v905 = vadd.s32 %v475, 64
    %v906 = vadd.s32 %v482, 64
    %v907 = vadd.s32 %v489, 64
    %v908 = vadd.s32 %v496, 64
    %v909 = vadd.s32 %v503, 64
    %v910 = vadd.s32 %v510, 64
    %v911 = vadd.s32 %v517, 64
    %v912 = vadd.s32 %v524, 64
    %v913 = vadd.s32 %v531, 64
    %v914 = vadd.s32 %v538, 64
    %v915 = vadd.s32 %v545, 64
    %v916 = vadd.s32 %v552, 64
    %v917 = vadd.s32 %v559, 64
    %v918 = vadd.s32 %v566, 64
    %v919 = vadd.s32 %v573, 64
    %v920 = vadd.s32 %v580, 64
    %v921 = vadd.s32 %v587, 64
    %v922 = vadd.s32 %v594, 64
    %v923 = vadd.s32 %v601, 64
    %v924 = vadd.s32 %v608, 64
    %v925 = vadd.s32 %v615, 64
    %v926 = vadd.s32 %v622, 64
    %v927 = vadd.s32 %v629, 64
    %v928 = vadd.s32 %v636, 64
    %v929 = vadd.s32 %v643, 64
    %v930 = vadd.s32 %v650, 64
    %v931 = vadd.s32 %v657, 64
    %v932 = vadd.s32 %v664, 64
    %v933 = vadd.s32 %v671, 64
    %v934 = vadd.s32 %v678, 64
    %v935 = vsel %vm807, %v871, %v237
    %v936 = vsel %vm808, %v872, %v244
    %v937 = vsel %vm809, %v873, %v251
    %v938 = vsel %vm810, %v874, %v258
    %v939 = vsel %vm811, %v875, %v265
    %v940 = vsel %vm812, %v876, %v272
    %v941 = vsel %vm813, %v877, %v279
    %v942 = vsel %vm814, %v878, %v286
    %v943 = vsel %vm815, %v879, %v293
    %v944 = vsel %vm816, %v880, %v300
    %v945 = vsel %vm817, %v881, %v307
    %v946 = vsel %vm818, %v882, %v314
    %v947 = vsel %vm819, %v883, %v321
    %v948 = vsel %vm820, %v884, %v328
    %v949 = vsel %vm821, %v885, %v335
    %v950 = vsel %vm822, %v886, %v342
    %v951 = vsel %vm823, %v887, %v349
    %v952 = vsel %vm824, %v888, %v356
    %v953 = vsel %vm825, %v889, %v363
    %v954 = vsel %vm826, %v890, %v370
    %v955 = vsel %vm827, %v891, %v377
    %v956 = vsel %vm828, %v892, %v384
    %v957 = vsel %vm829, %v893, %v391
    %v958 = vsel %vm830, %v894, %v398
    %v959 = vsel %vm831, %v895, %v405
    %v960 = vsel %vm832, %v896, %v412
    %v961 = vsel %vm833, %v897, %v419
    %v962 = vsel %vm834, %v898, %v426
    %v963 = vsel %vm835, %v899, %v433
    %v964 = vsel %vm836, %v900, %v440
    %v965 = vsel %vm837, %v901, %v447
    %v966 = vsel %vm838, %v902, %v454
    %v967 = vsel %vm839, %v903, %v461
    %v968 = vsel %vm840, %v904, %v468
    %v969 = vsel %vm841, %v905, %v475
    %v970 = vsel %vm842, %v906, %v482
    %v971 = vsel %vm843, %v907, %v489
    %v972 = vsel %vm844, %v908, %v496
    %v973 = vsel %vm845, %v909, %v503
    %v974 = vsel %vm846, %v910, %v510
    %v975 = vsel %vm847, %v911, %v517
    %v976 = vsel %vm848, %v912, %v524
    %v977 = vsel %vm849, %v913, %v531
    %v978 = vsel %vm850, %v914, %v538
    %v979 = vsel %vm851, %v915, %v545
    %v980 = vsel %vm852, %v916, %v552
    %v981 = vsel %vm853, %v917, %v559
    %v982 = vsel %vm854, %v918, %v566
    %v983 = vsel %vm855, %v919, %v573
    %v984 = vsel %vm856, %v920, %v580
    %v985 = vsel %vm857, %v921, %v587
    %v986 = vsel %vm858, %v922, %v594
    %v987 = vsel %vm859, %v923, %v601
    %v988 = vsel %vm860, %v924, %v608
    %v989 = vsel %vm861, %v925, %v615
    %v990 = vsel %vm862, %v926, %v622
    %v991 = vsel %vm863, %v927, %v629
    %v992 = vsel %vm864, %v928, %v636
    %v993 = vsel %vm865, %v929, %v643
    %v994 = vsel %vm866, %v930, %v650
    %v995 = vsel %vm867, %v931, %v657
    %v996 = vsel %vm868, %v932, %v664
    %v997 = vsel %vm869, %v933, %v671
    %v998 = vsel %vm870, %v934, %v678
    %vm999 = vcmp.eq.s32.totalorder %v935, 0
    %vm1000 = vcmp.eq.s32.totalorder %v936, 0
    %vm1001 = vcmp.eq.s32.totalorder %v937, 0
    %vm1002 = vcmp.eq.s32.totalorder %v938, 0
    %vm1003 = vcmp.eq.s32.totalorder %v939, 0
    %vm1004 = vcmp.eq.s32.totalorder %v940, 0
    %vm1005 = vcmp.eq.s32.totalorder %v941, 0
    %vm1006 = vcmp.eq.s32.totalorder %v942, 0
    %vm1007 = vcmp.eq.s32.totalorder %v943, 0
    %vm1008 = vcmp.eq.s32.totalorder %v944, 0
    %vm1009 = vcmp.eq.s32.totalorder %v945, 0
    %vm1010 = vcmp.eq.s32.totalorder %v946, 0
    %vm1011 = vcmp.eq.s32.totalorder %v947, 0
    %vm1012 = vcmp.eq.s32.totalorder %v948, 0
    %vm1013 = vcmp.eq.s32.totalorder %v949, 0
    %vm1014 = vcmp.eq.s32.totalorder %v950, 0
    %vm1015 = vcmp.eq.s32.totalorder %v951, 0
    %vm1016 = vcmp.eq.s32.totalorder %v952, 0
    %vm1017 = vcmp.eq.s32.totalorder %v953, 0
    %vm1018 = vcmp.eq.s32.totalorder %v954, 0
    %vm1019 = vcmp.eq.s32.totalorder %v955, 0
    %vm1020 = vcmp.eq.s32.totalorder %v956, 0
    %vm1021 = vcmp.eq.s32.totalorder %v957, 0
    %vm1022 = vcmp.eq.s32.totalorder %v958, 0
    %vm1023 = vcmp.eq.s32.totalorder %v959, 0
    %vm1024 = vcmp.eq.s32.totalorder %v960, 0
    %vm1025 = vcmp.eq.s32.totalorder %v961, 0
    %vm1026 = vcmp.eq.s32.totalorder %v962, 0
    %vm1027 = vcmp.eq.s32.totalorder %v963, 0
    %vm1028 = vcmp.eq.s32.totalorder %v964, 0
    %vm1029 = vcmp.eq.s32.totalorder %v965, 0
    %vm1030 = vcmp.eq.s32.totalorder %v966, 0
    %vm1031 = vcmp.eq.s32.totalorder %v967, 0
    %vm1032 = vcmp.eq.s32.totalorder %v968, 0
    %vm1033 = vcmp.eq.s32.totalorder %v969, 0
    %vm1034 = vcmp.eq.s32.totalorder %v970, 0
    %vm1035 = vcmp.eq.s32.totalorder %v971, 0
    %vm1036 = vcmp.eq.s32.totalorder %v972, 0
    %vm1037 = vcmp.eq.s32.totalorder %v973, 0
    %vm1038 = vcmp.eq.s32.totalorder %v974, 0
    %vm1039 = vcmp.eq.s32.totalorder %v975, 0
    %vm1040 = vcmp.eq.s32.totalorder %v976, 0
    %vm1041 = vcmp.eq.s32.totalorder %v977, 0
    %vm1042 = vcmp.eq.s32.totalorder %v978, 0
    %vm1043 = vcmp.eq.s32.totalorder %v979, 0
    %vm1044 = vcmp.eq.s32.totalorder %v980, 0
    %vm1045 = vcmp.eq.s32.totalorder %v981, 0
    %vm1046 = vcmp.eq.s32.totalorder %v982, 0
    %vm1047 = vcmp.eq.s32.totalorder %v983, 0
    %vm1048 = vcmp.eq.s32.totalorder %v984, 0
    %vm1049 = vcmp.eq.s32.totalorder %v985, 0
    %vm1050 = vcmp.eq.s32.totalorder %v986, 0
    %vm1051 = vcmp.eq.s32.totalorder %v987, 0
    %vm1052 = vcmp.eq.s32.totalorder %v988, 0
    %vm1053 = vcmp.eq.s32.totalorder %v989, 0
    %vm1054 = vcmp.eq.s32.totalorder %v990, 0
    %vm1055 = vcmp.eq.s32.totalorder %v991, 0
    %vm1056 = vcmp.eq.s32.totalorder %v992, 0
    %vm1057 = vcmp.eq.s32.totalorder %v993, 0
    %vm1058 = vcmp.eq.s32.totalorder %v994, 0
    %vm1059 = vcmp.eq.s32.totalorder %v995, 0
    %vm1060 = vcmp.eq.s32.totalorder %v996, 0
    %vm1061 = vcmp.eq.s32.totalorder %v997, 0
    %vm1062 = vcmp.eq.s32.totalorder %v998, 0
    %vm1063 = vcmp.eq.s32.totalorder %v935, 63
    %vm1064 = vcmp.eq.s32.totalorder %v936, 63
    %vm1065 = vcmp.eq.s32.totalorder %v937, 63
    %vm1066 = vcmp.eq.s32.totalorder %v938, 63
    %vm1067 = vcmp.eq.s32.totalorder %v939, 63
    %vm1068 = vcmp.eq.s32.totalorder %v940, 63
    %vm1069 = vcmp.eq.s32.totalorder %v941, 63
    %vm1070 = vcmp.eq.s32.totalorder %v942, 63
    %vm1071 = vcmp.eq.s32.totalorder %v943, 63
    %vm1072 = vcmp.eq.s32.totalorder %v944, 63
    %vm1073 = vcmp.eq.s32.totalorder %v945, 63
    %vm1074 = vcmp.eq.s32.totalorder %v946, 63
    %vm1075 = vcmp.eq.s32.totalorder %v947, 63
    %vm1076 = vcmp.eq.s32.totalorder %v948, 63
    %vm1077 = vcmp.eq.s32.totalorder %v949, 63
    %vm1078 = vcmp.eq.s32.totalorder %v950, 63
    %vm1079 = vcmp.eq.s32.totalorder %v951, 63
    %vm1080 = vcmp.eq.s32.totalorder %v952, 63
    %vm1081 = vcmp.eq.s32.totalorder %v953, 63
    %vm1082 = vcmp.eq.s32.totalorder %v954, 63
    %vm1083 = vcmp.eq.s32.totalorder %v955, 63
    %vm1084 = vcmp.eq.s32.totalorder %v956, 63
    %vm1085 = vcmp.eq.s32.totalorder %v957, 63
    %vm1086 = vcmp.eq.s32.totalorder %v958, 63
    %vm1087 = vcmp.eq.s32.totalorder %v959, 63
    %vm1088 = vcmp.eq.s32.totalorder %v960, 63
    %vm1089 = vcmp.eq.s32.totalorder %v961, 63
    %vm1090 = vcmp.eq.s32.totalorder %v962, 63
    %vm1091 = vcmp.eq.s32.totalorder %v963, 63
    %vm1092 = vcmp.eq.s32.totalorder %v964, 63
    %vm1093 = vcmp.eq.s32.totalorder %v965, 63
    %vm1094 = vcmp.eq.s32.totalorder %v966, 63
    %vm1095 = vcmp.eq.s32.totalorder %v967, 63
    %vm1096 = vcmp.eq.s32.totalorder %v968, 63
    %vm1097 = vcmp.eq.s32.totalorder %v969, 63
    %vm1098 = vcmp.eq.s32.totalorder %v970, 63
    %vm1099 = vcmp.eq.s32.totalorder %v971, 63
    %vm1100 = vcmp.eq.s32.totalorder %v972, 63
    %vm1101 = vcmp.eq.s32.totalorder %v973, 63
    %vm1102 = vcmp.eq.s32.totalorder %v974, 63
    %vm1103 = vcmp.eq.s32.totalorder %v975, 63
    %vm1104 = vcmp.eq.s32.totalorder %v976, 63
    %vm1105 = vcmp.eq.s32.totalorder %v977, 63
    %vm1106 = vcmp.eq.s32.totalorder %v978, 63
    %vm1107 = vcmp.eq.s32.totalorder %v979, 63
    %vm1108 = vcmp.eq.s32.totalorder %v980, 63
    %vm1109 = vcmp.eq.s32.totalorder %v981, 63
    %vm1110 = vcmp.eq.s32.totalorder %v982, 63
    %vm1111 = vcmp.eq.s32.totalorder %v983, 63
    %vm1112 = vcmp.eq.s32.totalorder %v984, 63
    %vm1113 = vcmp.eq.s32.totalorder %v985, 63
    %vm1114 = vcmp.eq.s32.totalorder %v986, 63
    %vm1115 = vcmp.eq.s32.totalorder %v987, 63
    %vm1116 = vcmp.eq.s32.totalorder %v988, 63
    %vm1117 = vcmp.eq.s32.totalorder %v989, 63
    %vm1118 = vcmp.eq.s32.totalorder %v990, 63
    %vm1119 = vcmp.eq.s32.totalorder %v991, 63
    %vm1120 = vcmp.eq.s32.totalorder %v992, 63
    %vm1121 = vcmp.eq.s32.totalorder %v993, 63
    %vm1122 = vcmp.eq.s32.totalorder %v994, 63
    %vm1123 = vcmp.eq.s32.totalorder %v995, 63
    %vm1124 = vcmp.eq.s32.totalorder %v996, 63
    %vm1125 = vcmp.eq.s32.totalorder %v997, 63
    %vm1126 = vcmp.eq.s32.totalorder %v998, 63
    %v1127 = vld [vmem:[#allocation5] sm:$0xf]
    %v1128 = vld [vmem:[#allocation5 + $0x4] sm:$0xf]
    %v1129 = vld [vmem:[#allocation5 + $0x8] sm:$0xf]
    %v1130 = vld [vmem:[#allocation5 + $0xc] sm:$0xf]
    %v1131 = vld [vmem:[#allocation5 + $0x10] sm:$0xf]
    %v1132 = vld [vmem:[#allocation5 + $0x14] sm:$0xf]
    %v1133 = vld [vmem:[#allocation5 + $0x18] sm:$0xf]
    %v1134 = vld [vmem:[#allocation5 + $0x1c] sm:$0xf]
    %v1135 = vld [vmem:[#allocation5 + $0x20] sm:$0xf]
    %v1136 = vld [vmem:[#allocation5 + $0x24] sm:$0xf]
    %v1137 = vld [vmem:[#allocation5 + $0x28] sm:$0xf]
    %v1138 = vld [vmem:[#allocation5 + $0x2c] sm:$0xf]
    %v1139 = vld [vmem:[#allocation5 + $0x30] sm:$0xf]
    %v1140 = vld [vmem:[#allocation5 + $0x34] sm:$0xf]
    %v1141 = vld [vmem:[#allocation5 + $0x38] sm:$0xf]
    %v1142 = vld [vmem:[#allocation5 + $0x3c] sm:$0xf]
    %v1207 = vunpack.c.l.b16 %v102
    %v1208 = vunpack.c.l.b16 %v103
    %v1209 = vunpack.c.l.b16 %v104
    %v1210 = vunpack.c.l.b16 %v105
    %v1211 = vunpack.c.l.b16 %v106
    %v1212 = vunpack.c.l.b16 %v107
    %v1213 = vunpack.c.l.b16 %v108
    %v1214 = vunpack.c.l.b16 %v109
    %v1215 = vunpack.c.l.b16 %v110
    %v1216 = vunpack.c.l.b16 %v111
    %v1217 = vunpack.c.l.b16 %v112
    %v1218 = vunpack.c.l.b16 %v113
    %v1219 = vunpack.c.l.b16 %v114
    %v1220 = vunpack.c.l.b16 %v115
    %v1221 = vunpack.c.l.b16 %v116
    %v1222 = vunpack.c.l.b16 %v117
    %v1223 = vunpack.c.l.b16 %v118
    %v1224 = vunpack.c.l.b16 %v119
    %v1225 = vunpack.c.l.b16 %v120
    %v1226 = vunpack.c.l.b16 %v121
    %v1227 = vunpack.c.l.b16 %v122
    %v1228 = vunpack.c.l.b16 %v123
    %v1229 = vunpack.c.l.b16 %v124
    %v1230 = vunpack.c.l.b16 %v125
    %v1231 = vunpack.c.l.b16 %v126
    %v1232 = vunpack.c.l.b16 %v127
    %v1233 = vunpack.c.l.b16 %v128
    %v1234 = vunpack.c.l.b16 %v129
    %v1235 = vunpack.c.l.b16 %v130
    %v1236 = vunpack.c.l.b16 %v131
    %v1237 = vunpack.c.l.b16 %v132
    %v1238 = vunpack.c.l.b16 %v133
    %v1239 = vunpack.c.l.b16 %v134
    %v1240 = vunpack.c.l.b16 %v135
    %v1241 = vunpack.c.l.b16 %v136
    %v1242 = vunpack.c.l.b16 %v137
    %v1243 = vunpack.c.l.b16 %v138
    %v1244 = vunpack.c.l.b16 %v139
    %v1245 = vunpack.c.l.b16 %v140
    %v1246 = vunpack.c.l.b16 %v141
    %v1247 = vunpack.c.l.b16 %v142
    %v1248 = vunpack.c.l.b16 %v143
    %v1249 = vunpack.c.l.b16 %v144
    %v1250 = vunpack.c.l.b16 %v145
    %v1251 = vunpack.c.l.b16 %v146
    %v1252 = vunpack.c.l.b16 %v147
    %v1253 = vunpack.c.l.b16 %v148
    %v1254 = vunpack.c.l.b16 %v149
    %v1255 = vunpack.c.l.b16 %v150
    %v1256 = vunpack.c.l.b16 %v151
    %v1257 = vunpack.c.l.b16 %v152
    %v1258 = vunpack.c.l.b16 %v153
    %v1259 = vunpack.c.l.b16 %v154
    %v1260 = vunpack.c.l.b16 %v155
    %v1261 = vunpack.c.l.b16 %v156
    %v1262 = vunpack.c.l.b16 %v157
    %v1263 = vunpack.c.l.b16 %v158
    %v1264 = vunpack.c.l.b16 %v159
    %v1265 = vunpack.c.l.b16 %v160
    %v1266 = vunpack.c.l.b16 %v161
    %v1267 = vunpack.c.l.b16 %v162
    %v1268 = vunpack.c.l.b16 %v163
    %v1269 = vunpack.c.l.b16 %v164
    %v1270 = vunpack.c.l.b16 %v165
    %v1271 = vpack.c.b16 %v1208, %v1207
    %v1272 = vpack.c.b16 %v1210, %v1209
    %v1273 = vpack.c.b16 %v1212, %v1211
    %v1274 = vpack.c.b16 %v1214, %v1213
    %v1275 = vpack.c.b16 %v1216, %v1215
    %v1276 = vpack.c.b16 %v1218, %v1217
    %v1277 = vpack.c.b16 %v1220, %v1219
    %v1278 = vpack.c.b16 %v1222, %v1221
    %v1279 = vpack.c.b16 %v1224, %v1223
    %v1280 = vpack.c.b16 %v1226, %v1225
    %v1281 = vpack.c.b16 %v1228, %v1227
    %v1282 = vpack.c.b16 %v1230, %v1229
    %v1283 = vpack.c.b16 %v1232, %v1231
    %v1284 = vpack.c.b16 %v1234, %v1233
    %v1285 = vpack.c.b16 %v1236, %v1235
    %v1286 = vpack.c.b16 %v1238, %v1237
    %v1287 = vpack.c.b16 %v1240, %v1239
    %v1288 = vpack.c.b16 %v1242, %v1241
    %v1289 = vpack.c.b16 %v1244, %v1243
    %v1290 = vpack.c.b16 %v1246, %v1245
    %v1291 = vpack.c.b16 %v1248, %v1247
    %v1292 = vpack.c.b16 %v1250, %v1249
    %v1293 = vpack.c.b16 %v1252, %v1251
    %v1294 = vpack.c.b16 %v1254, %v1253
    %v1295 = vpack.c.b16 %v1256, %v1255
    %v1296 = vpack.c.b16 %v1258, %v1257
    %v1297 = vpack.c.b16 %v1260, %v1259
    %v1298 = vpack.c.b16 %v1262, %v1261
    %v1299 = vpack.c.b16 %v1264, %v1263
    %v1300 = vpack.c.b16 %v1266, %v1265
    %v1301 = vpack.c.b16 %v1268, %v1267
    %v1302 = vpack.c.b16 %v1270, %v1269
    %v1351 = vunpack.c.l.b16 %v1127
    %v1352 = vunpack.c.l.b16 %v1128
    %v1353 = vunpack.c.l.b16 %v1129
    %v1354 = vunpack.c.l.b16 %v1130
    %v1355 = vunpack.c.l.b16 %v1131
    %v1356 = vunpack.c.l.b16 %v1132
    %v1357 = vunpack.c.l.b16 %v1133
    %v1358 = vunpack.c.l.b16 %v1134
    %v1359 = vunpack.c.l.b16 %v1135
    %v1360 = vunpack.c.l.b16 %v1136
    %v1361 = vunpack.c.l.b16 %v1137
    %v1362 = vunpack.c.l.b16 %v1138
    %v1363 = vunpack.c.l.b16 %v1139
    %v1364 = vunpack.c.l.b16 %v1140
    %v1365 = vunpack.c.l.b16 %v1141
    %v1366 = vunpack.c.l.b16 %v1142
    %v1367 = vpack.c.b16 %v1352, %v1351
    %v1368 = vpack.c.b16 %v1354, %v1353
    %v1369 = vpack.c.b16 %v1356, %v1355
    %v1370 = vpack.c.b16 %v1358, %v1357
    %v1371 = vpack.c.b16 %v1360, %v1359
    %v1372 = vpack.c.b16 %v1362, %v1361
    %v1373 = vpack.c.b16 %v1364, %v1363
    %v1374 = vpack.c.b16 %v1366, %v1365
    %1383 = vmatprep.subr.bf16.mxu0 0
    %1384 = vmatpush1.bf16.msra.mxu0 %v1374
    %1385 = vmatprep.subr.bf16.mxu0 0
    %1386 = vmatpush1.bf16.msra.mxu0 %v1373
    %1387 = vmatprep.subr.bf16.mxu0 0
    %1388 = vmatpush1.bf16.msra.mxu0 %v1372
    %1389 = vmatprep.subr.bf16.mxu0 0
    %1390 = vmatpush1.bf16.msra.mxu0 %v1371
    %1391 = vmatprep.subr.bf16.mxu0 0
    %1392 = vmatpush1.bf16.msra.mxu0 %v1370
    %1393 = vmatprep.subr.bf16.mxu0 0
    %1394 = vmatpush1.bf16.msra.mxu0 %v1369
    %1395 = vmatprep.subr.bf16.mxu0 0
    %1396 = vmatpush1.bf16.msra.mxu0 %v1368
    %1397 = vmatprep.subr.bf16.mxu0 0
    %1398 = vmatpush1.bf16.msra.mxu0 %v1367
    %1399 = vmatprep.subr.bf16.mxu0 0
    %1400 = vmatpush2.bf16.msra.mxu0 0
    %1401 = vmatprep.subr.bf16.mxu0 0
    %1402 = vmatpush2.bf16.msra.mxu0 0
    %1403 = vmatprep.subr.bf16.mxu0 0
    %1404 = vmatpush2.bf16.msra.mxu0 0
    %1405 = vmatprep.subr.bf16.mxu0 0
    %1406 = vmatpush2.bf16.msra.mxu0 0
    %1407 = vmatprep.subr.bf16.mxu0 0
    %1408 = vmatpush2.bf16.msra.mxu0 0
    %1409 = vmatprep.subr.bf16.mxu0 0
    %1410 = vmatpush2.bf16.msra.mxu0 0
    %1411 = vmatprep.subr.bf16.mxu0 0
    %1412 = vmatpush2.bf16.msra.mxu0 0
    %1413 = vmatprep.subr.bf16.mxu0 0
    %1414 = vmatpush2.bf16.msra.mxu0 0
    %1415 = vmatprep.mubr.bf16.mxu0 0
    %1416 = vmatmul.mubr.bf16.gmra.mxu0 %v1271
    %v1417 = vpop.f32.mrf.mxu0
    %v1418 = vadd.f32 0.0, %v1417
    %v1419 = vpop.f32.mrf.mxu0
    %v1420 = vpop.f32.mrf.mxu0
    %v1421 = vadd.f32 0.0, %v1420
    %v1422 = vpop.f32.mrf.mxu0
    %1423 = vmatprep.mubr.bf16.mxu0 0
    %1424 = vmatmul.mubr.bf16.gmra.mxu0 %v1272
    %v1425 = vpop.f32.mrf.mxu0
    %v1426 = vadd.f32 0.0, %v1425
    %v1427 = vpop.f32.mrf.mxu0
    %v1428 = vpop.f32.mrf.mxu0
    %v1429 = vadd.f32 0.0, %v1428
    %v1430 = vpop.f32.mrf.mxu0
    %1431 = vmatprep.mubr.bf16.mxu0 0
    %1432 = vmatmul.mubr.bf16.gmra.mxu0 %v1273
    %v1433 = vpop.f32.mrf.mxu0
    %v1434 = vadd.f32 0.0, %v1433
    %v1435 = vpop.f32.mrf.mxu0
    %v1436 = vpop.f32.mrf.mxu0
    %v1437 = vadd.f32 0.0, %v1436
    %v1438 = vpop.f32.mrf.mxu0
    %1439 = vmatprep.mubr.bf16.mxu0 0
    %1440 = vmatmul.mubr.bf16.gmra.mxu0 %v1274
    %v1441 = vpop.f32.mrf.mxu0
    %v1442 = vadd.f32 0.0, %v1441
    %v1443 = vpop.f32.mrf.mxu0
    %v1444 = vpop.f32.mrf.mxu0
    %v1445 = vadd.f32 0.0, %v1444
    %v1446 = vpop.f32.mrf.mxu0
    %1447 = vmatprep.mubr.bf16.mxu0 0
    %1448 = vmatmul.mubr.bf16.gmra.mxu0 %v1275
    %v1449 = vpop.f32.mrf.mxu0
    %v1450 = vadd.f32 0.0, %v1449
    %v1451 = vpop.f32.mrf.mxu0
    %v1452 = vpop.f32.mrf.mxu0
    %v1453 = vadd.f32 0.0, %v1452
    %v1454 = vpop.f32.mrf.mxu0
    %1455 = vmatprep.mubr.bf16.mxu0 0
    %1456 = vmatmul.mubr.bf16.gmra.mxu0 %v1276
    %v1457 = vpop.f32.mrf.mxu0
    %v1458 = vadd.f32 0.0, %v1457
    %v1459 = vpop.f32.mrf.mxu0
    %v1460 = vpop.f32.mrf.mxu0
    %v1461 = vadd.f32 0.0, %v1460
    %v1462 = vpop.f32.mrf.mxu0
    %1463 = vmatprep.mubr.bf16.mxu0 0
    %1464 = vmatmul.mubr.bf16.gmra.mxu0 %v1277
    %v1465 = vpop.f32.mrf.mxu0
    %v1466 = vadd.f32 0.0, %v1465
    %v1467 = vpop.f32.mrf.mxu0
    %v1468 = vpop.f32.mrf.mxu0
    %v1469 = vadd.f32 0.0, %v1468
    %v1470 = vpop.f32.mrf.mxu0
    %1471 = vmatprep.mubr.bf16.mxu0 0
    %1472 = vmatmul.mubr.bf16.gmra.mxu0 %v1278
    %v1473 = vpop.f32.mrf.mxu0
    %v1474 = vadd.f32 0.0, %v1473
    %v1475 = vpop.f32.mrf.mxu0
    %v1476 = vpop.f32.mrf.mxu0
    %v1477 = vadd.f32 0.0, %v1476
    %v1478 = vpop.f32.mrf.mxu0
    %1479 = vmatprep.mubr.bf16.mxu0 0
    %1480 = vmatmul.mubr.bf16.gmra.mxu0 %v1279
    %v1481 = vpop.f32.mrf.mxu0
    %v1482 = vadd.f32 0.0, %v1481
    %v1483 = vpop.f32.mrf.mxu0
    %v1484 = vpop.f32.mrf.mxu0
    %v1485 = vadd.f32 0.0, %v1484
    %v1486 = vpop.f32.mrf.mxu0
    %1487 = vmatprep.mubr.bf16.mxu0 0
    %1488 = vmatmul.mubr.bf16.gmra.mxu0 %v1280
    %v1489 = vpop.f32.mrf.mxu0
    %v1490 = vadd.f32 0.0, %v1489
    %v1491 = vpop.f32.mrf.mxu0
    %v1492 = vpop.f32.mrf.mxu0
    %v1493 = vadd.f32 0.0, %v1492
    %v1494 = vpop.f32.mrf.mxu0
    %1495 = vmatprep.mubr.bf16.mxu0 0
    %1496 = vmatmul.mubr.bf16.gmra.mxu0 %v1281
    %v1497 = vpop.f32.mrf.mxu0
    %v1498 = vadd.f32 0.0, %v1497
    %v1499 = vpop.f32.mrf.mxu0
    %v1500 = vpop.f32.mrf.mxu0
    %v1501 = vadd.f32 0.0, %v1500
    %v1502 = vpop.f32.mrf.mxu0
    %1503 = vmatprep.mubr.bf16.mxu0 0
    %1504 = vmatmul.mubr.bf16.gmra.mxu0 %v1282
    %v1505 = vpop.f32.mrf.mxu0
    %v1506 = vadd.f32 0.0, %v1505
    %v1507 = vpop.f32.mrf.mxu0
    %v1508 = vpop.f32.mrf.mxu0
    %v1509 = vadd.f32 0.0, %v1508
    %v1510 = vpop.f32.mrf.mxu0
    %1511 = vmatprep.mubr.bf16.mxu0 0
    %1512 = vmatmul.mubr.bf16.gmra.mxu0 %v1283
    %v1513 = vpop.f32.mrf.mxu0
    %v1514 = vadd.f32 0.0, %v1513
    %v1515 = vpop.f32.mrf.mxu0
    %v1516 = vpop.f32.mrf.mxu0
    %v1517 = vadd.f32 0.0, %v1516
    %v1518 = vpop.f32.mrf.mxu0
    %1519 = vmatprep.mubr.bf16.mxu0 0
    %1520 = vmatmul.mubr.bf16.gmra.mxu0 %v1284
    %v1521 = vpop.f32.mrf.mxu0
    %v1522 = vadd.f32 0.0, %v1521
    %v1523 = vpop.f32.mrf.mxu0
    %v1524 = vpop.f32.mrf.mxu0
    %v1525 = vadd.f32 0.0, %v1524
    %v1526 = vpop.f32.mrf.mxu0
    %1527 = vmatprep.mubr.bf16.mxu0 0
    %1528 = vmatmul.mubr.bf16.gmra.mxu0 %v1285
    %v1529 = vpop.f32.mrf.mxu0
    %v1530 = vadd.f32 0.0, %v1529
    %v1531 = vpop.f32.mrf.mxu0
    %v1532 = vpop.f32.mrf.mxu0
    %v1533 = vadd.f32 0.0, %v1532
    %v1534 = vpop.f32.mrf.mxu0
    %1535 = vmatprep.mubr.bf16.mxu0 0
    %1536 = vmatmul.mubr.bf16.gmra.mxu0 %v1286
    %v1537 = vpop.f32.mrf.mxu0
    %v1538 = vadd.f32 0.0, %v1537
    %v1539 = vpop.f32.mrf.mxu0
    %v1540 = vpop.f32.mrf.mxu0
    %v1541 = vadd.f32 0.0, %v1540
    %v1542 = vpop.f32.mrf.mxu0
    %1543 = vmatprep.mubr.bf16.mxu0 0
    %1544 = vmatmul.mubr.bf16.gmra.mxu0 %v1287
    %v1545 = vpop.f32.mrf.mxu0
    %v1546 = vadd.f32 0.0, %v1545
    %v1547 = vpop.f32.mrf.mxu0
    %v1548 = vpop.f32.mrf.mxu0
    %v1549 = vadd.f32 0.0, %v1548
    %v1550 = vpop.f32.mrf.mxu0
    %1551 = vmatprep.mubr.bf16.mxu0 0
    %1552 = vmatmul.mubr.bf16.gmra.mxu0 %v1288
    %v1553 = vpop.f32.mrf.mxu0
    %v1554 = vadd.f32 0.0, %v1553
    %v1555 = vpop.f32.mrf.mxu0
    %v1556 = vpop.f32.mrf.mxu0
    %v1557 = vadd.f32 0.0, %v1556
    %v1558 = vpop.f32.mrf.mxu0
    %1559 = vmatprep.mubr.bf16.mxu0 0
    %1560 = vmatmul.mubr.bf16.gmra.mxu0 %v1289
    %v1561 = vpop.f32.mrf.mxu0
    %v1562 = vadd.f32 0.0, %v1561
    %v1563 = vpop.f32.mrf.mxu0
    %v1564 = vpop.f32.mrf.mxu0
    %v1565 = vadd.f32 0.0, %v1564
    %v1566 = vpop.f32.mrf.mxu0
    %1567 = vmatprep.mubr.bf16.mxu0 0
    %1568 = vmatmul.mubr.bf16.gmra.mxu0 %v1290
    %v1569 = vpop.f32.mrf.mxu0
    %v1570 = vadd.f32 0.0, %v1569
    %v1571 = vpop.f32.mrf.mxu0
    %v1572 = vpop.f32.mrf.mxu0
    %v1573 = vadd.f32 0.0, %v1572
    %v1574 = vpop.f32.mrf.mxu0
    %1575 = vmatprep.mubr.bf16.mxu0 0
    %1576 = vmatmul.mubr.bf16.gmra.mxu0 %v1291
    %v1577 = vpop.f32.mrf.mxu0
    %v1578 = vadd.f32 0.0, %v1577
    %v1579 = vpop.f32.mrf.mxu0
    %v1580 = vpop.f32.mrf.mxu0
    %v1581 = vadd.f32 0.0, %v1580
    %v1582 = vpop.f32.mrf.mxu0
    %1583 = vmatprep.mubr.bf16.mxu0 0
    %1584 = vmatmul.mubr.bf16.gmra.mxu0 %v1292
    %v1585 = vpop.f32.mrf.mxu0
    %v1586 = vadd.f32 0.0, %v1585
    %v1587 = vpop.f32.mrf.mxu0
    %v1588 = vpop.f32.mrf.mxu0
    %v1589 = vadd.f32 0.0, %v1588
    %v1590 = vpop.f32.mrf.mxu0
    %1591 = vmatprep.mubr.bf16.mxu0 0
    %1592 = vmatmul.mubr.bf16.gmra.mxu0 %v1293
    %v1593 = vpop.f32.mrf.mxu0
    %v1594 = vadd.f32 0.0, %v1593
    %v1595 = vpop.f32.mrf.mxu0
    %v1596 = vpop.f32.mrf.mxu0
    %v1597 = vadd.f32 0.0, %v1596
    %v1598 = vpop.f32.mrf.mxu0
    %1599 = vmatprep.mubr.bf16.mxu0 0
    %1600 = vmatmul.mubr.bf16.gmra.mxu0 %v1294
    %v1601 = vpop.f32.mrf.mxu0
    %v1602 = vadd.f32 0.0, %v1601
    %v1603 = vpop.f32.mrf.mxu0
    %v1604 = vpop.f32.mrf.mxu0
    %v1605 = vadd.f32 0.0, %v1604
    %v1606 = vpop.f32.mrf.mxu0
    %1607 = vmatprep.mubr.bf16.mxu0 0
    %1608 = vmatmul.mubr.bf16.gmra.mxu0 %v1295
    %v1609 = vpop.f32.mrf.mxu0
    %v1610 = vadd.f32 0.0, %v1609
    %v1611 = vpop.f32.mrf.mxu0
    %v1612 = vpop.f32.mrf.mxu0
    %v1613 = vadd.f32 0.0, %v1612
    %v1614 = vpop.f32.mrf.mxu0
    %1615 = vmatprep.mubr.bf16.mxu0 0
    %1616 = vmatmul.mubr.bf16.gmra.mxu0 %v1296
    %v1617 = vpop.f32.mrf.mxu0
    %v1618 = vadd.f32 0.0, %v1617
    %v1619 = vpop.f32.mrf.mxu0
    %v1620 = vpop.f32.mrf.mxu0
    %v1621 = vadd.f32 0.0, %v1620
    %v1622 = vpop.f32.mrf.mxu0
    %1623 = vmatprep.mubr.bf16.mxu0 0
    %1624 = vmatmul.mubr.bf16.gmra.mxu0 %v1297
    %v1625 = vpop.f32.mrf.mxu0
    %v1626 = vadd.f32 0.0, %v1625
    %v1627 = vpop.f32.mrf.mxu0
    %v1628 = vpop.f32.mrf.mxu0
    %v1629 = vadd.f32 0.0, %v1628
    %v1630 = vpop.f32.mrf.mxu0
    %1631 = vmatprep.mubr.bf16.mxu0 0
    %1632 = vmatmul.mubr.bf16.gmra.mxu0 %v1298
    %v1633 = vpop.f32.mrf.mxu0
    %v1634 = vadd.f32 0.0, %v1633
    %v1635 = vpop.f32.mrf.mxu0
    %v1636 = vpop.f32.mrf.mxu0
    %v1637 = vadd.f32 0.0, %v1636
    %v1638 = vpop.f32.mrf.mxu0
    %1639 = vmatprep.mubr.bf16.mxu0 0
    %1640 = vmatmul.mubr.bf16.gmra.mxu0 %v1299
    %v1641 = vpop.f32.mrf.mxu0
    %v1642 = vadd.f32 0.0, %v1641
    %v1643 = vpop.f32.mrf.mxu0
    %v1644 = vpop.f32.mrf.mxu0
    %v1645 = vadd.f32 0.0, %v1644
    %v1646 = vpop.f32.mrf.mxu0
    %1647 = vmatprep.mubr.bf16.mxu0 0
    %1648 = vmatmul.mubr.bf16.gmra.mxu0 %v1300
    %v1649 = vpop.f32.mrf.mxu0
    %v1650 = vadd.f32 0.0, %v1649
    %v1651 = vpop.f32.mrf.mxu0
    %v1652 = vpop.f32.mrf.mxu0
    %v1653 = vadd.f32 0.0, %v1652
    %v1654 = vpop.f32.mrf.mxu0
    %1655 = vmatprep.mubr.bf16.mxu0 0
    %1656 = vmatmul.mubr.bf16.gmra.mxu0 %v1301
    %v1657 = vpop.f32.mrf.mxu0
    %v1658 = vadd.f32 0.0, %v1657
    %v1659 = vpop.f32.mrf.mxu0
    %v1660 = vpop.f32.mrf.mxu0
    %v1661 = vadd.f32 0.0, %v1660
    %v1662 = vpop.f32.mrf.mxu0
    %1663 = vmatprep.mubr.bf16.mxu0 0
    %1664 = vmatmul.mubr.bf16.gmra.mxu0 %v1302
    %v1665 = vpop.f32.mrf.mxu0
    %v1666 = vadd.f32 0.0, %v1665
    %v1667 = vpop.f32.mrf.mxu0
    %v1668 = vpop.f32.mrf.mxu0
    %v1669 = vadd.f32 0.0, %v1668
    %v1670 = vpop.f32.mrf.mxu0
    %1671 = vdwg.mxu0
    %v1672 = vmul.f32 %v1418, 0.70710677
    %v1673 = vmul.f32 %v1421, 0.70710677
    %v1674 = vmul.f32 %v1426, 0.70710677
    %v1675 = vmul.f32 %v1429, 0.70710677
    %v1676 = vmul.f32 %v1434, 0.70710677
    %v1677 = vmul.f32 %v1437, 0.70710677
    %v1678 = vmul.f32 %v1442, 0.70710677
    %v1679 = vmul.f32 %v1445, 0.70710677
    %v1680 = vmul.f32 %v1450, 0.70710677
    %v1681 = vmul.f32 %v1453, 0.70710677
    %v1682 = vmul.f32 %v1458, 0.70710677
    %v1683 = vmul.f32 %v1461, 0.70710677
    %v1684 = vmul.f32 %v1466, 0.70710677
    %v1685 = vmul.f32 %v1469, 0.70710677
    %v1686 = vmul.f32 %v1474, 0.70710677
    %v1687 = vmul.f32 %v1477, 0.70710677
    %v1688 = vmul.f32 %v1482, 0.70710677
    %v1689 = vmul.f32 %v1485, 0.70710677
    %v1690 = vmul.f32 %v1490, 0.70710677
    %v1691 = vmul.f32 %v1493, 0.70710677
    %v1692 = vmul.f32 %v1498, 0.70710677
    %v1693 = vmul.f32 %v1501, 0.70710677
    %v1694 = vmul.f32 %v1506, 0.70710677
    %v1695 = vmul.f32 %v1509, 0.70710677
    %v1696 = vmul.f32 %v1514, 0.70710677
    %v1697 = vmul.f32 %v1517, 0.70710677
    %v1698 = vmul.f32 %v1522, 0.70710677
    %v1699 = vmul.f32 %v1525, 0.70710677
    %v1700 = vmul.f32 %v1530, 0.70710677
    %v1701 = vmul.f32 %v1533, 0.70710677
    %v1702 = vmul.f32 %v1538, 0.70710677
    %v1703 = vmul.f32 %v1541, 0.70710677
    %v1704 = vmul.f32 %v1546, 0.70710677
    %v1705 = vmul.f32 %v1549, 0.70710677
    %v1706 = vmul.f32 %v1554, 0.70710677
    %v1707 = vmul.f32 %v1557, 0.70710677
    %v1708 = vmul.f32 %v1562, 0.70710677
    %v1709 = vmul.f32 %v1565, 0.70710677
    %v1710 = vmul.f32 %v1570, 0.70710677
    %v1711 = vmul.f32 %v1573, 0.70710677
    %v1712 = vmul.f32 %v1578, 0.70710677
    %v1713 = vmul.f32 %v1581, 0.70710677
    %v1714 = vmul.f32 %v1586, 0.70710677
    %v1715 = vmul.f32 %v1589, 0.70710677
    %v1716 = vmul.f32 %v1594, 0.70710677
    %v1717 = vmul.f32 %v1597, 0.70710677
    %v1718 = vmul.f32 %v1602, 0.70710677
    %v1719 = vmul.f32 %v1605, 0.70710677
    %v1720 = vmul.f32 %v1610, 0.70710677
    %v1721 = vmul.f32 %v1613, 0.70710677
    %v1722 = vmul.f32 %v1618, 0.70710677
    %v1723 = vmul.f32 %v1621, 0.70710677
    %v1724 = vmul.f32 %v1626, 0.70710677
    %v1725 = vmul.f32 %v1629, 0.70710677
    %v1726 = vmul.f32 %v1634, 0.70710677
    %v1727 = vmul.f32 %v1637, 0.70710677
    %v1728 = vmul.f32 %v1642, 0.70710677
    %v1729 = vmul.f32 %v1645, 0.70710677
    %v1730 = vmul.f32 %v1650, 0.70710677
    %v1731 = vmul.f32 %v1653, 0.70710677
    %v1732 = vmul.f32 %v1658, 0.70710677
    %v1733 = vmul.f32 %v1661, 0.70710677
    %v1734 = vmul.f32 %v1666, 0.70710677
    %v1735 = vmul.f32 %v1669, 0.70710677
    %v1736 = vld [vmem:[%s2] sm:$0x1]
    %v1738 = vlaneseq
    %v1739 = vshrl.u32 %v1738, 7
    %v1740 = vsub.s32 0, %v1739
    %v1741 = vrot.slane %v1736, %v1740
    %v1743 = vadd.f32 %v1672, %v1741
    %v1744 = vadd.f32 %v1673, %v1741
    %v1745 = vadd.f32 %v1674, %v1741
    %v1746 = vadd.f32 %v1675, %v1741
    %v1747 = vadd.f32 %v1676, %v1741
    %v1748 = vadd.f32 %v1677, %v1741
    %v1749 = vadd.f32 %v1678, %v1741
    %v1750 = vadd.f32 %v1679, %v1741
    %v1751 = vadd.f32 %v1680, %v1741
    %v1752 = vadd.f32 %v1681, %v1741
    %v1753 = vadd.f32 %v1682, %v1741
    %v1754 = vadd.f32 %v1683, %v1741
    %v1755 = vadd.f32 %v1684, %v1741
    %v1756 = vadd.f32 %v1685, %v1741
    %v1757 = vadd.f32 %v1686, %v1741
    %v1758 = vadd.f32 %v1687, %v1741
    %v1759 = vadd.f32 %v1688, %v1741
    %v1760 = vadd.f32 %v1689, %v1741
    %v1761 = vadd.f32 %v1690, %v1741
    %v1762 = vadd.f32 %v1691, %v1741
    %v1763 = vadd.f32 %v1692, %v1741
    %v1764 = vadd.f32 %v1693, %v1741
    %v1765 = vadd.f32 %v1694, %v1741
    %v1766 = vadd.f32 %v1695, %v1741
    %v1767 = vadd.f32 %v1696, %v1741
    %v1768 = vadd.f32 %v1697, %v1741
    %v1769 = vadd.f32 %v1698, %v1741
    %v1770 = vadd.f32 %v1699, %v1741
    %v1771 = vadd.f32 %v1700, %v1741
    %v1772 = vadd.f32 %v1701, %v1741
    %v1773 = vadd.f32 %v1702, %v1741
    %v1774 = vadd.f32 %v1703, %v1741
    %v1775 = vadd.f32 %v1704, %v1741
    %v1776 = vadd.f32 %v1705, %v1741
    %v1777 = vadd.f32 %v1706, %v1741
    %v1778 = vadd.f32 %v1707, %v1741
    %v1779 = vadd.f32 %v1708, %v1741
    %v1780 = vadd.f32 %v1709, %v1741
    %v1781 = vadd.f32 %v1710, %v1741
    %v1782 = vadd.f32 %v1711, %v1741
    %v1783 = vadd.f32 %v1712, %v1741
    %v1784 = vadd.f32 %v1713, %v1741
    %v1785 = vadd.f32 %v1714, %v1741
    %v1786 = vadd.f32 %v1715, %v1741
    %v1787 = vadd.f32 %v1716, %v1741
    %v1788 = vadd.f32 %v1717, %v1741
    %v1789 = vadd.f32 %v1718, %v1741
    %v1790 = vadd.f32 %v1719, %v1741
    %v1791 = vadd.f32 %v1720, %v1741
    %v1792 = vadd.f32 %v1721, %v1741
    %v1793 = vadd.f32 %v1722, %v1741
    %v1794 = vadd.f32 %v1723, %v1741
    %v1795 = vadd.f32 %v1724, %v1741
    %v1796 = vadd.f32 %v1725, %v1741
    %v1797 = vadd.f32 %v1726, %v1741
    %v1798 = vadd.f32 %v1727, %v1741
    %v1799 = vadd.f32 %v1728, %v1741
    %v1800 = vadd.f32 %v1729, %v1741
    %v1801 = vadd.f32 %v1730, %v1741
    %v1802 = vadd.f32 %v1731, %v1741
    %v1803 = vadd.f32 %v1732, %v1741
    %v1804 = vadd.f32 %v1733, %v1741
    %v1805 = vadd.f32 %v1734, %v1741
    %v1806 = vadd.f32 %v1735, %v1741
    %v1807 = vmax.f32 %v1743, 0.0
    %v1808 = vmax.f32 %v1744, 0.0
    %v1809 = vmax.f32 %v1745, 0.0
    %v1810 = vmax.f32 %v1746, 0.0
    %v1811 = vmax.f32 %v1747, 0.0
    %v1812 = vmax.f32 %v1748, 0.0
    %v1813 = vmax.f32 %v1749, 0.0
    %v1814 = vmax.f32 %v1750, 0.0
    %v1815 = vmax.f32 %v1751, 0.0
    %v1816 = vmax.f32 %v1752, 0.0
    %v1817 = vmax.f32 %v1753, 0.0
    %v1818 = vmax.f32 %v1754, 0.0
    %v1819 = vmax.f32 %v1755, 0.0
    %v1820 = vmax.f32 %v1756, 0.0
    %v1821 = vmax.f32 %v1757, 0.0
    %v1822 = vmax.f32 %v1758, 0.0
    %v1823 = vmax.f32 %v1759, 0.0
    %v1824 = vmax.f32 %v1760, 0.0
    %v1825 = vmax.f32 %v1761, 0.0
    %v1826 = vmax.f32 %v1762, 0.0
    %v1827 = vmax.f32 %v1763, 0.0
    %v1828 = vmax.f32 %v1764, 0.0
    %v1829 = vmax.f32 %v1765, 0.0
    %v1830 = vmax.f32 %v1766, 0.0
    %v1831 = vmax.f32 %v1767, 0.0
    %v1832 = vmax.f32 %v1768, 0.0
    %v1833 = vmax.f32 %v1769, 0.0
    %v1834 = vmax.f32 %v1770, 0.0
    %v1835 = vmax.f32 %v1771, 0.0
    %v1836 = vmax.f32 %v1772, 0.0
    %v1837 = vmax.f32 %v1773, 0.0
    %v1838 = vmax.f32 %v1774, 0.0
    %v1839 = vmax.f32 %v1775, 0.0
    %v1840 = vmax.f32 %v1776, 0.0
    %v1841 = vmax.f32 %v1777, 0.0
    %v1842 = vmax.f32 %v1778, 0.0
    %v1843 = vmax.f32 %v1779, 0.0
    %v1844 = vmax.f32 %v1780, 0.0
    %v1845 = vmax.f32 %v1781, 0.0
    %v1846 = vmax.f32 %v1782, 0.0
    %v1847 = vmax.f32 %v1783, 0.0
    %v1848 = vmax.f32 %v1784, 0.0
    %v1849 = vmax.f32 %v1785, 0.0
    %v1850 = vmax.f32 %v1786, 0.0
    %v1851 = vmax.f32 %v1787, 0.0
    %v1852 = vmax.f32 %v1788, 0.0
    %v1853 = vmax.f32 %v1789, 0.0
    %v1854 = vmax.f32 %v1790, 0.0
    %v1855 = vmax.f32 %v1791, 0.0
    %v1856 = vmax.f32 %v1792, 0.0
    %v1857 = vmax.f32 %v1793, 0.0
    %v1858 = vmax.f32 %v1794, 0.0
    %v1859 = vmax.f32 %v1795, 0.0
    %v1860 = vmax.f32 %v1796, 0.0
    %v1861 = vmax.f32 %v1797, 0.0
    %v1862 = vmax.f32 %v1798, 0.0
    %v1863 = vmax.f32 %v1799, 0.0
    %v1864 = vmax.f32 %v1800, 0.0
    %v1865 = vmax.f32 %v1801, 0.0
    %v1866 = vmax.f32 %v1802, 0.0
    %v1867 = vmax.f32 %v1803, 0.0
    %v1868 = vmax.f32 %v1804, 0.0
    %v1869 = vmax.f32 %v1805, 0.0
    %v1870 = vmax.f32 %v1806, 0.0
    %v1871 = vpack.c.bf16 %v1808, %v1807
    %v1872 = vpack.c.bf16 %v1810, %v1809
    %v1873 = vpack.c.bf16 %v1812, %v1811
    %v1874 = vpack.c.bf16 %v1814, %v1813
    %v1875 = vpack.c.bf16 %v1816, %v1815
    %v1876 = vpack.c.bf16 %v1818, %v1817
    %v1877 = vpack.c.bf16 %v1820, %v1819
    %v1878 = vpack.c.bf16 %v1822, %v1821
    %v1879 = vpack.c.bf16 %v1824, %v1823
    %v1880 = vpack.c.bf16 %v1826, %v1825
    %v1881 = vpack.c.bf16 %v1828, %v1827
    %v1882 = vpack.c.bf16 %v1830, %v1829
    %v1883 = vpack.c.bf16 %v1832, %v1831
    %v1884 = vpack.c.bf16 %v1834, %v1833
    %v1885 = vpack.c.bf16 %v1836, %v1835
    %v1886 = vpack.c.bf16 %v1838, %v1837
    %v1887 = vpack.c.bf16 %v1840, %v1839
    %v1888 = vpack.c.bf16 %v1842, %v1841
    %v1889 = vpack.c.bf16 %v1844, %v1843
    %v1890 = vpack.c.bf16 %v1846, %v1845
    %v1891 = vpack.c.bf16 %v1848, %v1847
    %v1892 = vpack.c.bf16 %v1850, %v1849
    %v1893 = vpack.c.bf16 %v1852, %v1851
    %v1894 = vpack.c.bf16 %v1854, %v1853
    %v1895 = vpack.c.bf16 %v1856, %v1855
    %v1896 = vpack.c.bf16 %v1858, %v1857
    %v1897 = vpack.c.bf16 %v1860, %v1859
    %v1898 = vpack.c.bf16 %v1862, %v1861
    %v1899 = vpack.c.bf16 %v1864, %v1863
    %v1900 = vpack.c.bf16 %v1866, %v1865
    %v1901 = vpack.c.bf16 %v1868, %v1867
    %v1902 = vpack.c.bf16 %v1870, %v1869
    %v1903 = vld [vmem:[#allocation7 + $0x40] sm:$0xf]
    %v1904 = vld [vmem:[#allocation7 + $0x44] sm:$0xf]
    %v1905 = vld [vmem:[#allocation7 + $0x48] sm:$0xf]
    %v1906 = vld [vmem:[#allocation7 + $0x4c] sm:$0xf]
    %v1907 = vld [vmem:[#allocation7 + $0x50] sm:$0xf]
    %v1908 = vld [vmem:[#allocation7 + $0x54] sm:$0xf]
    %v1909 = vld [vmem:[#allocation7 + $0x58] sm:$0xf]
    %v1910 = vld [vmem:[#allocation7 + $0x5c] sm:$0xf]
    %v1911 = vld [vmem:[#allocation7 + $0x60] sm:$0xf]
    %v1912 = vld [vmem:[#allocation7 + $0x64] sm:$0xf]
    %v1913 = vld [vmem:[#allocation7 + $0x68] sm:$0xf]
    %v1914 = vld [vmem:[#allocation7 + $0x6c] sm:$0xf]
    %v1915 = vld [vmem:[#allocation7 + $0x70] sm:$0xf]
    %v1916 = vld [vmem:[#allocation7 + $0x74] sm:$0xf]
    %v1917 = vld [vmem:[#allocation7 + $0x78] sm:$0xf]
    %v1918 = vld [vmem:[#allocation7 + $0x7c] sm:$0xf]
    %v1919 = vld [vmem:[%s4] sm:$0x1]
    %v1921 = vlaneseq
    %v1922 = vshrl.u32 %v1921, 7
    %v1923 = vsub.s32 0, %v1922
    %v1924 = vrot.slane %v1919, %v1923
    %v1942 = vunpack.c.l.b16 %v1903
    %v1943 = vunpack.c.l.b16 %v1904
    %v1944 = vunpack.c.l.b16 %v1905
    %v1945 = vunpack.c.l.b16 %v1906
    %v1946 = vunpack.c.l.b16 %v1907
    %v1947 = vunpack.c.l.b16 %v1908
    %v1948 = vunpack.c.l.b16 %v1909
    %v1949 = vunpack.c.l.b16 %v1910
    %v1950 = vunpack.c.l.b16 %v1911
    %v1951 = vunpack.c.l.b16 %v1912
    %v1952 = vunpack.c.l.b16 %v1913
    %v1953 = vunpack.c.l.b16 %v1914
    %v1954 = vunpack.c.l.b16 %v1915
    %v1955 = vunpack.c.l.b16 %v1916
    %v1956 = vunpack.c.l.b16 %v1917
    %v1957 = vunpack.c.l.b16 %v1918
    %v1958 = vpack.c.b16 %v1943, %v1942
    %v1959 = vpack.c.b16 %v1945, %v1944
    %v1960 = vpack.c.b16 %v1947, %v1946
    %v1961 = vpack.c.b16 %v1949, %v1948
    %v1962 = vpack.c.b16 %v1951, %v1950
    %v1963 = vpack.c.b16 %v1953, %v1952
    %v1964 = vpack.c.b16 %v1955, %v1954
    %v1965 = vpack.c.b16 %v1957, %v1956
    %1974 = vmatprep.subr.bf16.mxu0 0
    %1975 = vmatpush1.bf16.msra.mxu0 %v1965
    %1976 = vmatprep.subr.bf16.mxu0 0
    %1977 = vmatpush1.bf16.msra.mxu0 %v1964
    %1978 = vmatprep.subr.bf16.mxu0 0
    %1979 = vmatpush1.bf16.msra.mxu0 %v1963
    %1980 = vmatprep.subr.bf16.mxu0 0
    %1981 = vmatpush1.bf16.msra.mxu0 %v1962
    %1982 = vmatprep.subr.bf16.mxu0 0
    %1983 = vmatpush1.bf16.msra.mxu0 %v1961
    %1984 = vmatprep.subr.bf16.mxu0 0
    %1985 = vmatpush1.bf16.msra.mxu0 %v1960
    %1986 = vmatprep.subr.bf16.mxu0 0
    %1987 = vmatpush1.bf16.msra.mxu0 %v1959
    %1988 = vmatprep.subr.bf16.mxu0 0
    %1989 = vmatpush1.bf16.msra.mxu0 %v1958
    %1990 = vmatprep.subr.bf16.mxu0 0
    %1991 = vmatpush2.bf16.msra.mxu0 0
    %1992 = vmatprep.subr.bf16.mxu0 0
    %1993 = vmatpush2.bf16.msra.mxu0 0
    %1994 = vmatprep.subr.bf16.mxu0 0
    %1995 = vmatpush2.bf16.msra.mxu0 0
    %1996 = vmatprep.subr.bf16.mxu0 0
    %1997 = vmatpush2.bf16.msra.mxu0 0
    %1998 = vmatprep.subr.bf16.mxu0 0
    %1999 = vmatpush2.bf16.msra.mxu0 0
    %2000 = vmatprep.subr.bf16.mxu0 0
    %2001 = vmatpush2.bf16.msra.mxu0 0
    %2002 = vmatprep.subr.bf16.mxu0 0
    %2003 = vmatpush2.bf16.msra.mxu0 0
    %2004 = vmatprep.subr.bf16.mxu0 0
    %2005 = vmatpush2.bf16.msra.mxu0 0
    %2006 = vmatprep.mubr.bf16.mxu0 0
    %2007 = vmatmul.mubr.bf16.gmra.mxu0 %v1871
    %v2008 = vpop.f32.mrf.mxu0
    %v2009 = vadd.f32 %v1924, %v2008
    %v2010 = vpop.f32.mrf.mxu0
    %v2011 = vpop.f32.mrf.mxu0
    %v2012 = vadd.f32 %v1924, %v2011
    %v2013 = vpop.f32.mrf.mxu0
    %2014 = vmatprep.mubr.bf16.mxu0 0
    %2015 = vmatmul.mubr.bf16.gmra.mxu0 %v1872
    %v2016 = vpop.f32.mrf.mxu0
    %v2017 = vadd.f32 %v1924, %v2016
    %v2018 = vpop.f32.mrf.mxu0
    %v2019 = vpop.f32.mrf.mxu0
    %v2020 = vadd.f32 %v1924, %v2019
    %v2021 = vpop.f32.mrf.mxu0
    %2022 = vmatprep.mubr.bf16.mxu0 0
    %2023 = vmatmul.mubr.bf16.gmra.mxu0 %v1873
    %v2024 = vpop.f32.mrf.mxu0
    %v2025 = vadd.f32 %v1924, %v2024
    %v2026 = vpop.f32.mrf.mxu0
    %v2027 = vpop.f32.mrf.mxu0
    %v2028 = vadd.f32 %v1924, %v2027
    %v2029 = vpop.f32.mrf.mxu0
    %2030 = vmatprep.mubr.bf16.mxu0 0
    %2031 = vmatmul.mubr.bf16.gmra.mxu0 %v1874
    %v2032 = vpop.f32.mrf.mxu0
    %v2033 = vadd.f32 %v1924, %v2032
    %v2034 = vpop.f32.mrf.mxu0
    %v2035 = vpop.f32.mrf.mxu0
    %v2036 = vadd.f32 %v1924, %v2035
    %v2037 = vpop.f32.mrf.mxu0
    %2038 = vmatprep.mubr.bf16.mxu0 0
    %2039 = vmatmul.mubr.bf16.gmra.mxu0 %v1875
    %v2040 = vpop.f32.mrf.mxu0
    %v2041 = vadd.f32 %v1924, %v2040
    %v2042 = vpop.f32.mrf.mxu0
    %v2043 = vpop.f32.mrf.mxu0
    %v2044 = vadd.f32 %v1924, %v2043
    %v2045 = vpop.f32.mrf.mxu0
    %2046 = vmatprep.mubr.bf16.mxu0 0
    %2047 = vmatmul.mubr.bf16.gmra.mxu0 %v1876
    %v2048 = vpop.f32.mrf.mxu0
    %v2049 = vadd.f32 %v1924, %v2048
    %v2050 = vpop.f32.mrf.mxu0
    %v2051 = vpop.f32.mrf.mxu0
    %v2052 = vadd.f32 %v1924, %v2051
    %v2053 = vpop.f32.mrf.mxu0
    %2054 = vmatprep.mubr.bf16.mxu0 0
    %2055 = vmatmul.mubr.bf16.gmra.mxu0 %v1877
    %v2056 = vpop.f32.mrf.mxu0
    %v2057 = vadd.f32 %v1924, %v2056
    %v2058 = vpop.f32.mrf.mxu0
    %v2059 = vpop.f32.mrf.mxu0
    %v2060 = vadd.f32 %v1924, %v2059
    %v2061 = vpop.f32.mrf.mxu0
    %2062 = vmatprep.mubr.bf16.mxu0 0
    %2063 = vmatmul.mubr.bf16.gmra.mxu0 %v1878
    %v2064 = vpop.f32.mrf.mxu0
    %v2065 = vadd.f32 %v1924, %v2064
    %v2066 = vpop.f32.mrf.mxu0
    %v2067 = vpop.f32.mrf.mxu0
    %v2068 = vadd.f32 %v1924, %v2067
    %v2069 = vpop.f32.mrf.mxu0
    %2070 = vmatprep.mubr.bf16.mxu0 0
    %2071 = vmatmul.mubr.bf16.gmra.mxu0 %v1879
    %v2072 = vpop.f32.mrf.mxu0
    %v2073 = vadd.f32 %v1924, %v2072
    %v2074 = vpop.f32.mrf.mxu0
    %v2075 = vpop.f32.mrf.mxu0
    %v2076 = vadd.f32 %v1924, %v2075
    %v2077 = vpop.f32.mrf.mxu0
    %2078 = vmatprep.mubr.bf16.mxu0 0
    %2079 = vmatmul.mubr.bf16.gmra.mxu0 %v1880
    %v2080 = vpop.f32.mrf.mxu0
    %v2081 = vadd.f32 %v1924, %v2080
    %v2082 = vpop.f32.mrf.mxu0
    %v2083 = vpop.f32.mrf.mxu0
    %v2084 = vadd.f32 %v1924, %v2083
    %v2085 = vpop.f32.mrf.mxu0
    %2086 = vmatprep.mubr.bf16.mxu0 0
    %2087 = vmatmul.mubr.bf16.gmra.mxu0 %v1881
    %v2088 = vpop.f32.mrf.mxu0
    %v2089 = vadd.f32 %v1924, %v2088
    %v2090 = vpop.f32.mrf.mxu0
    %v2091 = vpop.f32.mrf.mxu0
    %v2092 = vadd.f32 %v1924, %v2091
    %v2093 = vpop.f32.mrf.mxu0
    %2094 = vmatprep.mubr.bf16.mxu0 0
    %2095 = vmatmul.mubr.bf16.gmra.mxu0 %v1882
    %v2096 = vpop.f32.mrf.mxu0
    %v2097 = vadd.f32 %v1924, %v2096
    %v2098 = vpop.f32.mrf.mxu0
    %v2099 = vpop.f32.mrf.mxu0
    %v2100 = vadd.f32 %v1924, %v2099
    %v2101 = vpop.f32.mrf.mxu0
    %2102 = vmatprep.mubr.bf16.mxu0 0
    %2103 = vmatmul.mubr.bf16.gmra.mxu0 %v1883
    %v2104 = vpop.f32.mrf.mxu0
    %v2105 = vadd.f32 %v1924, %v2104
    %v2106 = vpop.f32.mrf.mxu0
    %v2107 = vpop.f32.mrf.mxu0
    %v2108 = vadd.f32 %v1924, %v2107
    %v2109 = vpop.f32.mrf.mxu0
    %2110 = vmatprep.mubr.bf16.mxu0 0
    %2111 = vmatmul.mubr.bf16.gmra.mxu0 %v1884
    %v2112 = vpop.f32.mrf.mxu0
    %v2113 = vadd.f32 %v1924, %v2112
    %v2114 = vpop.f32.mrf.mxu0
    %v2115 = vpop.f32.mrf.mxu0
    %v2116 = vadd.f32 %v1924, %v2115
    %v2117 = vpop.f32.mrf.mxu0
    %2118 = vmatprep.mubr.bf16.mxu0 0
    %2119 = vmatmul.mubr.bf16.gmra.mxu0 %v1885
    %v2120 = vpop.f32.mrf.mxu0
    %v2121 = vadd.f32 %v1924, %v2120
    %v2122 = vpop.f32.mrf.mxu0
    %v2123 = vpop.f32.mrf.mxu0
    %v2124 = vadd.f32 %v1924, %v2123
    %v2125 = vpop.f32.mrf.mxu0
    %2126 = vmatprep.mubr.bf16.mxu0 0
    %2127 = vmatmul.mubr.bf16.gmra.mxu0 %v1886
    %v2128 = vpop.f32.mrf.mxu0
    %v2129 = vadd.f32 %v1924, %v2128
    %v2130 = vpop.f32.mrf.mxu0
    %v2131 = vpop.f32.mrf.mxu0
    %v2132 = vadd.f32 %v1924, %v2131
    %v2133 = vpop.f32.mrf.mxu0
    %2134 = vmatprep.mubr.bf16.mxu0 0
    %2135 = vmatmul.mubr.bf16.gmra.mxu0 %v1887
    %v2136 = vpop.f32.mrf.mxu0
    %v2137 = vadd.f32 %v1924, %v2136
    %v2138 = vpop.f32.mrf.mxu0
    %v2139 = vpop.f32.mrf.mxu0
    %v2140 = vadd.f32 %v1924, %v2139
    %v2141 = vpop.f32.mrf.mxu0
    %2142 = vmatprep.mubr.bf16.mxu0 0
    %2143 = vmatmul.mubr.bf16.gmra.mxu0 %v1888
    %v2144 = vpop.f32.mrf.mxu0
    %v2145 = vadd.f32 %v1924, %v2144
    %v2146 = vpop.f32.mrf.mxu0
    %v2147 = vpop.f32.mrf.mxu0
    %v2148 = vadd.f32 %v1924, %v2147
    %v2149 = vpop.f32.mrf.mxu0
    %2150 = vmatprep.mubr.bf16.mxu0 0
    %2151 = vmatmul.mubr.bf16.gmra.mxu0 %v1889
    %v2152 = vpop.f32.mrf.mxu0
    %v2153 = vadd.f32 %v1924, %v2152
    %v2154 = vpop.f32.mrf.mxu0
    %v2155 = vpop.f32.mrf.mxu0
    %v2156 = vadd.f32 %v1924, %v2155
    %v2157 = vpop.f32.mrf.mxu0
    %2158 = vmatprep.mubr.bf16.mxu0 0
    %2159 = vmatmul.mubr.bf16.gmra.mxu0 %v1890
    %v2160 = vpop.f32.mrf.mxu0
    %v2161 = vadd.f32 %v1924, %v2160
    %v2162 = vpop.f32.mrf.mxu0
    %v2163 = vpop.f32.mrf.mxu0
    %v2164 = vadd.f32 %v1924, %v2163
    %v2165 = vpop.f32.mrf.mxu0
    %2166 = vmatprep.mubr.bf16.mxu0 0
    %2167 = vmatmul.mubr.bf16.gmra.mxu0 %v1891
    %v2168 = vpop.f32.mrf.mxu0
    %v2169 = vadd.f32 %v1924, %v2168
    %v2170 = vpop.f32.mrf.mxu0
    %v2171 = vpop.f32.mrf.mxu0
    %v2172 = vadd.f32 %v1924, %v2171
    %v2173 = vpop.f32.mrf.mxu0
    %2174 = vmatprep.mubr.bf16.mxu0 0
    %2175 = vmatmul.mubr.bf16.gmra.mxu0 %v1892
    %v2176 = vpop.f32.mrf.mxu0
    %v2177 = vadd.f32 %v1924, %v2176
    %v2178 = vpop.f32.mrf.mxu0
    %v2179 = vpop.f32.mrf.mxu0
    %v2180 = vadd.f32 %v1924, %v2179
    %v2181 = vpop.f32.mrf.mxu0
    %2182 = vmatprep.mubr.bf16.mxu0 0
    %2183 = vmatmul.mubr.bf16.gmra.mxu0 %v1893
    %v2184 = vpop.f32.mrf.mxu0
    %v2185 = vadd.f32 %v1924, %v2184
    %v2186 = vpop.f32.mrf.mxu0
    %v2187 = vpop.f32.mrf.mxu0
    %v2188 = vadd.f32 %v1924, %v2187
    %v2189 = vpop.f32.mrf.mxu0
    %2190 = vmatprep.mubr.bf16.mxu0 0
    %2191 = vmatmul.mubr.bf16.gmra.mxu0 %v1894
    %v2192 = vpop.f32.mrf.mxu0
    %v2193 = vadd.f32 %v1924, %v2192
    %v2194 = vpop.f32.mrf.mxu0
    %v2195 = vpop.f32.mrf.mxu0
    %v2196 = vadd.f32 %v1924, %v2195
    %v2197 = vpop.f32.mrf.mxu0
    %2198 = vmatprep.mubr.bf16.mxu0 0
    %2199 = vmatmul.mubr.bf16.gmra.mxu0 %v1895
    %v2200 = vpop.f32.mrf.mxu0
    %v2201 = vadd.f32 %v1924, %v2200
    %v2202 = vpop.f32.mrf.mxu0
    %v2203 = vpop.f32.mrf.mxu0
    %v2204 = vadd.f32 %v1924, %v2203
    %v2205 = vpop.f32.mrf.mxu0
    %2206 = vmatprep.mubr.bf16.mxu0 0
    %2207 = vmatmul.mubr.bf16.gmra.mxu0 %v1896
    %v2208 = vpop.f32.mrf.mxu0
    %v2209 = vadd.f32 %v1924, %v2208
    %v2210 = vpop.f32.mrf.mxu0
    %v2211 = vpop.f32.mrf.mxu0
    %v2212 = vadd.f32 %v1924, %v2211
    %v2213 = vpop.f32.mrf.mxu0
    %2214 = vmatprep.mubr.bf16.mxu0 0
    %2215 = vmatmul.mubr.bf16.gmra.mxu0 %v1897
    %v2216 = vpop.f32.mrf.mxu0
    %v2217 = vadd.f32 %v1924, %v2216
    %v2218 = vpop.f32.mrf.mxu0
    %v2219 = vpop.f32.mrf.mxu0
    %v2220 = vadd.f32 %v1924, %v2219
    %v2221 = vpop.f32.mrf.mxu0
    %2222 = vmatprep.mubr.bf16.mxu0 0
    %2223 = vmatmul.mubr.bf16.gmra.mxu0 %v1898
    %v2224 = vpop.f32.mrf.mxu0
    %v2225 = vadd.f32 %v1924, %v2224
    %v2226 = vpop.f32.mrf.mxu0
    %v2227 = vpop.f32.mrf.mxu0
    %v2228 = vadd.f32 %v1924, %v2227
    %v2229 = vpop.f32.mrf.mxu0
    %2230 = vmatprep.mubr.bf16.mxu0 0
    %2231 = vmatmul.mubr.bf16.gmra.mxu0 %v1899
    %v2232 = vpop.f32.mrf.mxu0
    %v2233 = vadd.f32 %v1924, %v2232
    %v2234 = vpop.f32.mrf.mxu0
    %v2235 = vpop.f32.mrf.mxu0
    %v2236 = vadd.f32 %v1924, %v2235
    %v2237 = vpop.f32.mrf.mxu0
    %2238 = vmatprep.mubr.bf16.mxu0 0
    %2239 = vmatmul.mubr.bf16.gmra.mxu0 %v1900
    %v2240 = vpop.f32.mrf.mxu0
    %v2241 = vadd.f32 %v1924, %v2240
    %v2242 = vpop.f32.mrf.mxu0
    %v2243 = vpop.f32.mrf.mxu0
    %v2244 = vadd.f32 %v1924, %v2243
    %v2245 = vpop.f32.mrf.mxu0
    %2246 = vmatprep.mubr.bf16.mxu0 0
    %2247 = vmatmul.mubr.bf16.gmra.mxu0 %v1901
    %v2248 = vpop.f32.mrf.mxu0
    %v2249 = vadd.f32 %v1924, %v2248
    %v2250 = vpop.f32.mrf.mxu0
    %v2251 = vpop.f32.mrf.mxu0
    %v2252 = vadd.f32 %v1924, %v2251
    %v2253 = vpop.f32.mrf.mxu0
    %2254 = vmatprep.mubr.bf16.mxu0 0
    %2255 = vmatmul.mubr.bf16.gmra.mxu0 %v1902
    %v2256 = vpop.f32.mrf.mxu0
    %v2257 = vadd.f32 %v1924, %v2256
    %v2258 = vpop.f32.mrf.mxu0
    %v2259 = vpop.f32.mrf.mxu0
    %v2260 = vadd.f32 %v1924, %v2259
    %v2261 = vpop.f32.mrf.mxu0
    %2262 = vdwg.mxu0
    %v2263 = vrot.slane %v1807, 7
    %v2264 = vrot.slane %v1808, 7
    %v2265 = vrot.slane %v1809, 7
    %v2266 = vrot.slane %v1810, 7
    %v2267 = vrot.slane %v1811, 7
    %v2268 = vrot.slane %v1812, 7
    %v2269 = vrot.slane %v1813, 7
    %v2270 = vrot.slane %v1814, 7
    %v2271 = vrot.slane %v1815, 7
    %v2272 = vrot.slane %v1816, 7
    %v2273 = vrot.slane %v1817, 7
    %v2274 = vrot.slane %v1818, 7
    %v2275 = vrot.slane %v1819, 7
    %v2276 = vrot.slane %v1820, 7
    %v2277 = vrot.slane %v1821, 7
    %v2278 = vrot.slane %v1822, 7
    %v2279 = vrot.slane %v1823, 7
    %v2280 = vrot.slane %v1824, 7
    %v2281 = vrot.slane %v1825, 7
    %v2282 = vrot.slane %v1826, 7
    %v2283 = vrot.slane %v1827, 7
    %v2284 = vrot.slane %v1828, 7
    %v2285 = vrot.slane %v1829, 7
    %v2286 = vrot.slane %v1830, 7
    %v2287 = vrot.slane %v1831, 7
    %v2288 = vrot.slane %v1832, 7
    %v2289 = vrot.slane %v1833, 7
    %v2290 = vrot.slane %v1834, 7
    %v2291 = vrot.slane %v1835, 7
    %v2292 = vrot.slane %v1836, 7
    %v2293 = vrot.slane %v1837, 7
    %v2294 = vrot.slane %v1838, 7
    %v2295 = vrot.slane %v1839, 7
    %v2296 = vrot.slane %v1840, 7
    %v2297 = vrot.slane %v1841, 7
    %v2298 = vrot.slane %v1842, 7
    %v2299 = vrot.slane %v1843, 7
    %v2300 = vrot.slane %v1844, 7
    %v2301 = vrot.slane %v1845, 7
    %v2302 = vrot.slane %v1846, 7
    %v2303 = vrot.slane %v1847, 7
    %v2304 = vrot.slane %v1848, 7
    %v2305 = vrot.slane %v1849, 7
    %v2306 = vrot.slane %v1850, 7
    %v2307 = vrot.slane %v1851, 7
    %v2308 = vrot.slane %v1852, 7
    %v2309 = vrot.slane %v1853, 7
    %v2310 = vrot.slane %v1854, 7
    %v2311 = vrot.slane %v1855, 7
    %v2312 = vrot.slane %v1856, 7
    %v2313 = vrot.slane %v1857, 7
    %v2314 = vrot.slane %v1858, 7
    %v2315 = vrot.slane %v1859, 7
    %v2316 = vrot.slane %v1860, 7
    %v2317 = vrot.slane %v1861, 7
    %v2318 = vrot.slane %v1862, 7
    %v2319 = vrot.slane %v1863, 7
    %v2320 = vrot.slane %v1864, 7
    %v2321 = vrot.slane %v1865, 7
    %v2322 = vrot.slane %v1866, 7
    %v2323 = vrot.slane %v1867, 7
    %v2324 = vrot.slane %v1868, 7
    %v2325 = vrot.slane %v1869, 7
    %v2326 = vrot.slane %v1870, 7
    %vm2327 = vcmp.lt.s32.totalorder %v167, 1
    %v2328 = vsel %vm2327, %v2325, %v2326
    %v2329 = vsel %vm2327, %v2324, %v2325
    %v2330 = vsel %vm2327, %v2323, %v2324
    %v2331 = vsel %vm2327, %v2322, %v2323
    %v2332 = vsel %vm2327, %v2321, %v2322
    %v2333 = vsel %vm2327, %v2320, %v2321
    %v2334 = vsel %vm2327, %v2319, %v2320
    %v2335 = vsel %vm2327, %v2318, %v2319
    %v2336 = vsel %vm2327, %v2317, %v2318
    %v2337 = vsel %vm2327, %v2316, %v2317
    %v2338 = vsel %vm2327, %v2315, %v2316
    %v2339 = vsel %vm2327, %v2314, %v2315
    %v2340 = vsel %vm2327, %v2313, %v2314
    %v2341 = vsel %vm2327, %v2312, %v2313
    %v2342 = vsel %vm2327, %v2311, %v2312
    %v2343 = vsel %vm2327, %v2310, %v2311
    %v2344 = vsel %vm2327, %v2309, %v2310
    %v2345 = vsel %vm2327, %v2308, %v2309
    %v2346 = vsel %vm2327, %v2307, %v2308
    %v2347 = vsel %vm2327, %v2306, %v2307
    %v2348 = vsel %vm2327, %v2305, %v2306
    %v2349 = vsel %vm2327, %v2304, %v2305
    %v2350 = vsel %vm2327, %v2303, %v2304
    %v2351 = vsel %vm2327, %v2302, %v2303
    %v2352 = vsel %vm2327, %v2301, %v2302
    %v2353 = vsel %vm2327, %v2300, %v2301
    %v2354 = vsel %vm2327, %v2299, %v2300
    %v2355 = vsel %vm2327, %v2298, %v2299
    %v2356 = vsel %vm2327, %v2297, %v2298
    %v2357 = vsel %vm2327, %v2296, %v2297
    %v2358 = vsel %vm2327, %v2295, %v2296
    %v2359 = vsel %vm2327, %v2294, %v2295
    %v2360 = vsel %vm2327, %v2293, %v2294
    %v2361 = vsel %vm2327, %v2292, %v2293
    %v2362 = vsel %vm2327, %v2291, %v2292
    %v2363 = vsel %vm2327, %v2290, %v2291
    %v2364 = vsel %vm2327, %v2289, %v2290
    %v2365 = vsel %vm2327, %v2288, %v2289
    %v2366 = vsel %vm2327, %v2287, %v2288
    %v2367 = vsel %vm2327, %v2286, %v2287
    %v2368 = vsel %vm2327, %v2285, %v2286
    %v2369 = vsel %vm2327, %v2284, %v2285
    %v2370 = vsel %vm2327, %v2283, %v2284
    %v2371 = vsel %vm2327, %v2282, %v2283
    %v2372 = vsel %vm2327, %v2281, %v2282
    %v2373 = vsel %vm2327, %v2280, %v2281
    %v2374 = vsel %vm2327, %v2279, %v2280
    %v2375 = vsel %vm2327, %v2278, %v2279
    %v2376 = vsel %vm2327, %v2277, %v2278
    %v2377 = vsel %vm2327, %v2276, %v2277
    %v2378 = vsel %vm2327, %v2275, %v2276
    %v2379 = vsel %vm2327, %v2274, %v2275
    %v2380 = vsel %vm2327, %v2273, %v2274
    %v2381 = vsel %vm2327, %v2272, %v2273
    %v2382 = vsel %vm2327, %v2271, %v2272
    %v2383 = vsel %vm2327, %v2270, %v2271
    %v2384 = vsel %vm2327, %v2269, %v2270
    %v2385 = vsel %vm2327, %v2268, %v2269
    %v2386 = vsel %vm2327, %v2267, %v2268
    %v2387 = vsel %vm2327, %v2266, %v2267
    %v2388 = vsel %vm2327, %v2265, %v2266
    %v2389 = vsel %vm2327, %v2264, %v2265
    %v2390 = vsel %vm2327, %v2263, %v2264
    %v2391 = vsel %vm2327, %v2326, %v2263
    %v2392 = vsel %vm999, 1, 0
    %v2393 = vsel %vm1000, 1, 0
    %v2394 = vsel %vm1001, 1, 0
    %v2395 = vsel %vm1002, 1, 0
    %v2396 = vsel %vm1003, 1, 0
    %v2397 = vsel %vm1004, 1, 0
    %v2398 = vsel %vm1005, 1, 0
    %v2399 = vsel %vm1006, 1, 0
    %v2400 = vsel %vm1007, 1, 0
    %v2401 = vsel %vm1008, 1, 0
    %v2402 = vsel %vm1009, 1, 0
    %v2403 = vsel %vm1010, 1, 0
    %v2404 = vsel %vm1011, 1, 0
    %v2405 = vsel %vm1012, 1, 0
    %v2406 = vsel %vm1013, 1, 0
    %v2407 = vsel %vm1014, 1, 0
    %v2408 = vsel %vm1015, 1, 0
    %v2409 = vsel %vm1016, 1, 0
    %v2410 = vsel %vm1017, 1, 0
    %v2411 = vsel %vm1018, 1, 0
    %v2412 = vsel %vm1019, 1, 0
    %v2413 = vsel %vm1020, 1, 0
    %v2414 = vsel %vm1021, 1, 0
    %v2415 = vsel %vm1022, 1, 0
    %v2416 = vsel %vm1023, 1, 0
    %v2417 = vsel %vm1024, 1, 0
    %v2418 = vsel %vm1025, 1, 0
    %v2419 = vsel %vm1026, 1, 0
    %v2420 = vsel %vm1027, 1, 0
    %v2421 = vsel %vm1028, 1, 0
    %v2422 = vsel %vm1029, 1, 0
    %v2423 = vsel %vm1030, 1, 0
    %v2424 = vsel %vm1031, 1, 0
    %v2425 = vsel %vm1032, 1, 0
    %v2426 = vsel %vm1033, 1, 0
    %v2427 = vsel %vm1034, 1, 0
    %v2428 = vsel %vm1035, 1, 0
    %v2429 = vsel %vm1036, 1, 0
    %v2430 = vsel %vm1037, 1, 0
    %v2431 = vsel %vm1038, 1, 0
    %v2432 = vsel %vm1039, 1, 0
    %v2433 = vsel %vm1040, 1, 0
    %v2434 = vsel %vm1041, 1, 0
    %v2435 = vsel %vm1042, 1, 0
    %v2436 = vsel %vm1043, 1, 0
    %v2437 = vsel %vm1044, 1, 0
    %v2438 = vsel %vm1045, 1, 0
    %v2439 = vsel %vm1046, 1, 0
    %v2440 = vsel %vm1047, 1, 0
    %v2441 = vsel %vm1048, 1, 0
    %v2442 = vsel %vm1049, 1, 0
    %v2443 = vsel %vm1050, 1, 0
    %v2444 = vsel %vm1051, 1, 0
    %v2445 = vsel %vm1052, 1, 0
    %v2446 = vsel %vm1053, 1, 0
    %v2447 = vsel %vm1054, 1, 0
    %v2448 = vsel %vm1055, 1, 0
    %v2449 = vsel %vm1056, 1, 0
    %v2450 = vsel %vm1057, 1, 0
    %v2451 = vsel %vm1058, 1, 0
    %v2452 = vsel %vm1059, 1, 0
    %v2453 = vsel %vm1060, 1, 0
    %v2454 = vsel %vm1061, 1, 0
    %v2455 = vsel %vm1062, 1, 0
    %vm2456 = vcmp.eq.s32.totalorder %v2392, 1
    %vm2457 = vcmp.eq.s32.totalorder %v2393, 1
    %vm2458 = vcmp.eq.s32.totalorder %v2394, 1
    %vm2459 = vcmp.eq.s32.totalorder %v2395, 1
    %vm2460 = vcmp.eq.s32.totalorder %v2396, 1
    %vm2461 = vcmp.eq.s32.totalorder %v2397, 1
    %vm2462 = vcmp.eq.s32.totalorder %v2398, 1
    %vm2463 = vcmp.eq.s32.totalorder %v2399, 1
    %vm2464 = vcmp.eq.s32.totalorder %v2400, 1
    %vm2465 = vcmp.eq.s32.totalorder %v2401, 1
    %vm2466 = vcmp.eq.s32.totalorder %v2402, 1
    %vm2467 = vcmp.eq.s32.totalorder %v2403, 1
    %vm2468 = vcmp.eq.s32.totalorder %v2404, 1
    %vm2469 = vcmp.eq.s32.totalorder %v2405, 1
    %vm2470 = vcmp.eq.s32.totalorder %v2406, 1
    %vm2471 = vcmp.eq.s32.totalorder %v2407, 1
    %vm2472 = vcmp.eq.s32.totalorder %v2408, 1
    %vm2473 = vcmp.eq.s32.totalorder %v2409, 1
    %vm2474 = vcmp.eq.s32.totalorder %v2410, 1
    %vm2475 = vcmp.eq.s32.totalorder %v2411, 1
    %vm2476 = vcmp.eq.s32.totalorder %v2412, 1
    %vm2477 = vcmp.eq.s32.totalorder %v2413, 1
    %vm2478 = vcmp.eq.s32.totalorder %v2414, 1
    %vm2479 = vcmp.eq.s32.totalorder %v2415, 1
    %vm2480 = vcmp.eq.s32.totalorder %v2416, 1
    %vm2481 = vcmp.eq.s32.totalorder %v2417, 1
    %vm2482 = vcmp.eq.s32.totalorder %v2418, 1
    %vm2483 = vcmp.eq.s32.totalorder %v2419, 1
    %vm2484 = vcmp.eq.s32.totalorder %v2420, 1
    %vm2485 = vcmp.eq.s32.totalorder %v2421, 1
    %vm2486 = vcmp.eq.s32.totalorder %v2422, 1
    %vm2487 = vcmp.eq.s32.totalorder %v2423, 1
    %vm2488 = vcmp.eq.s32.totalorder %v2424, 1
    %vm2489 = vcmp.eq.s32.totalorder %v2425, 1
    %vm2490 = vcmp.eq.s32.totalorder %v2426, 1
    %vm2491 = vcmp.eq.s32.totalorder %v2427, 1
    %vm2492 = vcmp.eq.s32.totalorder %v2428, 1
    %vm2493 = vcmp.eq.s32.totalorder %v2429, 1
    %vm2494 = vcmp.eq.s32.totalorder %v2430, 1
    %vm2495 = vcmp.eq.s32.totalorder %v2431, 1
    %vm2496 = vcmp.eq.s32.totalorder %v2432, 1
    %vm2497 = vcmp.eq.s32.totalorder %v2433, 1
    %vm2498 = vcmp.eq.s32.totalorder %v2434, 1
    %vm2499 = vcmp.eq.s32.totalorder %v2435, 1
    %vm2500 = vcmp.eq.s32.totalorder %v2436, 1
    %vm2501 = vcmp.eq.s32.totalorder %v2437, 1
    %vm2502 = vcmp.eq.s32.totalorder %v2438, 1
    %vm2503 = vcmp.eq.s32.totalorder %v2439, 1
    %vm2504 = vcmp.eq.s32.totalorder %v2440, 1
    %vm2505 = vcmp.eq.s32.totalorder %v2441, 1
    %vm2506 = vcmp.eq.s32.totalorder %v2442, 1
    %vm2507 = vcmp.eq.s32.totalorder %v2443, 1
    %vm2508 = vcmp.eq.s32.totalorder %v2444, 1
    %vm2509 = vcmp.eq.s32.totalorder %v2445, 1
    %vm2510 = vcmp.eq.s32.totalorder %v2446, 1
    %vm2511 = vcmp.eq.s32.totalorder %v2447, 1
    %vm2512 = vcmp.eq.s32.totalorder %v2448, 1
    %vm2513 = vcmp.eq.s32.totalorder %v2449, 1
    %vm2514 = vcmp.eq.s32.totalorder %v2450, 1
    %vm2515 = vcmp.eq.s32.totalorder %v2451, 1
    %vm2516 = vcmp.eq.s32.totalorder %v2452, 1
    %vm2517 = vcmp.eq.s32.totalorder %v2453, 1
    %vm2518 = vcmp.eq.s32.totalorder %v2454, 1
    %vm2519 = vcmp.eq.s32.totalorder %v2455, 1
    %v2520 = vsel %vm2456, 0.0, %v2391
    %v2521 = vsel %vm2457, 0.0, %v2390
    %v2522 = vsel %vm2458, 0.0, %v2389
    %v2523 = vsel %vm2459, 0.0, %v2388
    %v2524 = vsel %vm2460, 0.0, %v2387
    %v2525 = vsel %vm2461, 0.0, %v2386
    %v2526 = vsel %vm2462, 0.0, %v2385
    %v2527 = vsel %vm2463, 0.0, %v2384
    %v2528 = vsel %vm2464, 0.0, %v2383
    %v2529 = vsel %vm2465, 0.0, %v2382
    %v2530 = vsel %vm2466, 0.0, %v2381
    %v2531 = vsel %vm2467, 0.0, %v2380
    %v2532 = vsel %vm2468, 0.0, %v2379
    %v2533 = vsel %vm2469, 0.0, %v2378
    %v2534 = vsel %vm2470, 0.0, %v2377
    %v2535 = vsel %vm2471, 0.0, %v2376
    %v2536 = vsel %vm2472, 0.0, %v2375
    %v2537 = vsel %vm2473, 0.0, %v2374
    %v2538 = vsel %vm2474, 0.0, %v2373
    %v2539 = vsel %vm2475, 0.0, %v2372
    %v2540 = vsel %vm2476, 0.0, %v2371
    %v2541 = vsel %vm2477, 0.0, %v2370
    %v2542 = vsel %vm2478, 0.0, %v2369
    %v2543 = vsel %vm2479, 0.0, %v2368
    %v2544 = vsel %vm2480, 0.0, %v2367
    %v2545 = vsel %vm2481, 0.0, %v2366
    %v2546 = vsel %vm2482, 0.0, %v2365
    %v2547 = vsel %vm2483, 0.0, %v2364
    %v2548 = vsel %vm2484, 0.0, %v2363
    %v2549 = vsel %vm2485, 0.0, %v2362
    %v2550 = vsel %vm2486, 0.0, %v2361
    %v2551 = vsel %vm2487, 0.0, %v2360
    %v2552 = vsel %vm2488, 0.0, %v2359
    %v2553 = vsel %vm2489, 0.0, %v2358
    %v2554 = vsel %vm2490, 0.0, %v2357
    %v2555 = vsel %vm2491, 0.0, %v2356
    %v2556 = vsel %vm2492, 0.0, %v2355
    %v2557 = vsel %vm2493, 0.0, %v2354
    %v2558 = vsel %vm2494, 0.0, %v2353
    %v2559 = vsel %vm2495, 0.0, %v2352
    %v2560 = vsel %vm2496, 0.0, %v2351
    %v2561 = vsel %vm2497, 0.0, %v2350
    %v2562 = vsel %vm2498, 0.0, %v2349
    %v2563 = vsel %vm2499, 0.0, %v2348
    %v2564 = vsel %vm2500, 0.0, %v2347
    %v2565 = vsel %vm2501, 0.0, %v2346
    %v2566 = vsel %vm2502, 0.0, %v2345
    %v2567 = vsel %vm2503, 0.0, %v2344
    %v2568 = vsel %vm2504, 0.0, %v2343
    %v2569 = vsel %vm2505, 0.0, %v2342
    %v2570 = vsel %vm2506, 0.0, %v2341
    %v2571 = vsel %vm2507, 0.0, %v2340
    %v2572 = vsel %vm2508, 0.0, %v2339
    %v2573 = vsel %vm2509, 0.0, %v2338
    %v2574 = vsel %vm2510, 0.0, %v2337
    %v2575 = vsel %vm2511, 0.0, %v2336
    %v2576 = vsel %vm2512, 0.0, %v2335
    %v2577 = vsel %vm2513, 0.0, %v2334
    %v2578 = vsel %vm2514, 0.0, %v2333
    %v2579 = vsel %vm2515, 0.0, %v2332
    %v2580 = vsel %vm2516, 0.0, %v2331
    %v2581 = vsel %vm2517, 0.0, %v2330
    %v2582 = vsel %vm2518, 0.0, %v2329
    %v2583 = vsel %vm2519, 0.0, %v2328
    %v2584 = vpack.c.bf16 %v2521, %v2520
    %v2585 = vpack.c.bf16 %v2523, %v2522
    %v2586 = vpack.c.bf16 %v2525, %v2524
    %v2587 = vpack.c.bf16 %v2527, %v2526
    %v2588 = vpack.c.bf16 %v2529, %v2528
    %v2589 = vpack.c.bf16 %v2531, %v2530
    %v2590 = vpack.c.bf16 %v2533, %v2532
    %v2591 = vpack.c.bf16 %v2535, %v2534
    %v2592 = vpack.c.bf16 %v2537, %v2536
    %v2593 = vpack.c.bf16 %v2539, %v2538
    %v2594 = vpack.c.bf16 %v2541, %v2540
    %v2595 = vpack.c.bf16 %v2543, %v2542
    %v2596 = vpack.c.bf16 %v2545, %v2544
    %v2597 = vpack.c.bf16 %v2547, %v2546
    %v2598 = vpack.c.bf16 %v2549, %v2548
    %v2599 = vpack.c.bf16 %v2551, %v2550
    %v2600 = vpack.c.bf16 %v2553, %v2552
    %v2601 = vpack.c.bf16 %v2555, %v2554
    %v2602 = vpack.c.bf16 %v2557, %v2556
    %v2603 = vpack.c.bf16 %v2559, %v2558
    %v2604 = vpack.c.bf16 %v2561, %v2560
    %v2605 = vpack.c.bf16 %v2563, %v2562
    %v2606 = vpack.c.bf16 %v2565, %v2564
    %v2607 = vpack.c.bf16 %v2567, %v2566
    %v2608 = vpack.c.bf16 %v2569, %v2568
    %v2609 = vpack.c.bf16 %v2571, %v2570
    %v2610 = vpack.c.bf16 %v2573, %v2572
    %v2611 = vpack.c.bf16 %v2575, %v2574
    %v2612 = vpack.c.bf16 %v2577, %v2576
    %v2613 = vpack.c.bf16 %v2579, %v2578
    %v2614 = vpack.c.bf16 %v2581, %v2580
    %v2615 = vpack.c.bf16 %v2583, %v2582
    %v2616 = vld [vmem:[#allocation7] sm:$0xf]
    %v2617 = vld [vmem:[#allocation7 + $0x4] sm:$0xf]
    %v2618 = vld [vmem:[#allocation7 + $0x8] sm:$0xf]
    %v2619 = vld [vmem:[#allocation7 + $0xc] sm:$0xf]
    %v2620 = vld [vmem:[#allocation7 + $0x10] sm:$0xf]
    %v2621 = vld [vmem:[#allocation7 + $0x14] sm:$0xf]
    %v2622 = vld [vmem:[#allocation7 + $0x18] sm:$0xf]
    %v2623 = vld [vmem:[#allocation7 + $0x1c] sm:$0xf]
    %v2624 = vld [vmem:[#allocation7 + $0x20] sm:$0xf]
    %v2625 = vld [vmem:[#allocation7 + $0x24] sm:$0xf]
    %v2626 = vld [vmem:[#allocation7 + $0x28] sm:$0xf]
    %v2627 = vld [vmem:[#allocation7 + $0x2c] sm:$0xf]
    %v2628 = vld [vmem:[#allocation7 + $0x30] sm:$0xf]
    %v2629 = vld [vmem:[#allocation7 + $0x34] sm:$0xf]
    %v2630 = vld [vmem:[#allocation7 + $0x38] sm:$0xf]
    %v2631 = vld [vmem:[#allocation7 + $0x3c] sm:$0xf]
    %v2648 = vunpack.c.l.b16 %v2616
    %v2649 = vunpack.c.l.b16 %v2617
    %v2650 = vunpack.c.l.b16 %v2618
    %v2651 = vunpack.c.l.b16 %v2619
    %v2652 = vunpack.c.l.b16 %v2620
    %v2653 = vunpack.c.l.b16 %v2621
    %v2654 = vunpack.c.l.b16 %v2622
    %v2655 = vunpack.c.l.b16 %v2623
    %v2656 = vunpack.c.l.b16 %v2624
    %v2657 = vunpack.c.l.b16 %v2625
    %v2658 = vunpack.c.l.b16 %v2626
    %v2659 = vunpack.c.l.b16 %v2627
    %v2660 = vunpack.c.l.b16 %v2628
    %v2661 = vunpack.c.l.b16 %v2629
    %v2662 = vunpack.c.l.b16 %v2630
    %v2663 = vunpack.c.l.b16 %v2631
    %v2664 = vpack.c.b16 %v2649, %v2648
    %v2665 = vpack.c.b16 %v2651, %v2650
    %v2666 = vpack.c.b16 %v2653, %v2652
    %v2667 = vpack.c.b16 %v2655, %v2654
    %v2668 = vpack.c.b16 %v2657, %v2656
    %v2669 = vpack.c.b16 %v2659, %v2658
    %v2670 = vpack.c.b16 %v2661, %v2660
    %v2671 = vpack.c.b16 %v2663, %v2662
    %2680 = vmatprep.subr.bf16.mxu0 0
    %2681 = vmatpush1.bf16.msra.mxu0 %v2671
    %2682 = vmatprep.subr.bf16.mxu0 0
    %2683 = vmatpush1.bf16.msra.mxu0 %v2670
    %2684 = vmatprep.subr.bf16.mxu0 0
    %2685 = vmatpush1.bf16.msra.mxu0 %v2669
    %2686 = vmatprep.subr.bf16.mxu0 0
    %2687 = vmatpush1.bf16.msra.mxu0 %v2668
    %2688 = vmatprep.subr.bf16.mxu0 0
    %2689 = vmatpush1.bf16.msra.mxu0 %v2667
    %2690 = vmatprep.subr.bf16.mxu0 0
    %2691 = vmatpush1.bf16.msra.mxu0 %v2666
    %2692 = vmatprep.subr.bf16.mxu0 0
    %2693 = vmatpush1.bf16.msra.mxu0 %v2665
    %2694 = vmatprep.subr.bf16.mxu0 0
    %2695 = vmatpush1.bf16.msra.mxu0 %v2664
    %2696 = vmatprep.subr.bf16.mxu0 0
    %2697 = vmatpush2.bf16.msra.mxu0 0
    %2698 = vmatprep.subr.bf16.mxu0 0
    %2699 = vmatpush2.bf16.msra.mxu0 0
    %2700 = vmatprep.subr.bf16.mxu0 0
    %2701 = vmatpush2.bf16.msra.mxu0 0
    %2702 = vmatprep.subr.bf16.mxu0 0
    %2703 = vmatpush2.bf16.msra.mxu0 0
    %2704 = vmatprep.subr.bf16.mxu0 0
    %2705 = vmatpush2.bf16.msra.mxu0 0
    %2706 = vmatprep.subr.bf16.mxu0 0
    %2707 = vmatpush2.bf16.msra.mxu0 0
    %2708 = vmatprep.subr.bf16.mxu0 0
    %2709 = vmatpush2.bf16.msra.mxu0 0
    %2710 = vmatprep.subr.bf16.mxu0 0
    %2711 = vmatpush2.bf16.msra.mxu0 0
    %2712 = vmatprep.mubr.bf16.mxu0 0
    %2713 = vmatmul.mubr.bf16.gmra.mxu0 %v2584
    %v2714 = vpop.f32.mrf.mxu0
    %v2715 = vadd.f32 0.0, %v2714
    %v2716 = vpop.f32.mrf.mxu0
    %v2717 = vpop.f32.mrf.mxu0
    %v2718 = vadd.f32 0.0, %v2717
    %v2719 = vpop.f32.mrf.mxu0
    %2720 = vmatprep.mubr.bf16.mxu0 0
    %2721 = vmatmul.mubr.bf16.gmra.mxu0 %v2585
    %v2722 = vpop.f32.mrf.mxu0
    %v2723 = vadd.f32 0.0, %v2722
    %v2724 = vpop.f32.mrf.mxu0
    %v2725 = vpop.f32.mrf.mxu0
    %v2726 = vadd.f32 0.0, %v2725
    %v2727 = vpop.f32.mrf.mxu0
    %2728 = vmatprep.mubr.bf16.mxu0 0
    %2729 = vmatmul.mubr.bf16.gmra.mxu0 %v2586
    %v2730 = vpop.f32.mrf.mxu0
    %v2731 = vadd.f32 0.0, %v2730
    %v2732 = vpop.f32.mrf.mxu0
    %v2733 = vpop.f32.mrf.mxu0
    %v2734 = vadd.f32 0.0, %v2733
    %v2735 = vpop.f32.mrf.mxu0
    %2736 = vmatprep.mubr.bf16.mxu0 0
    %2737 = vmatmul.mubr.bf16.gmra.mxu0 %v2587
    %v2738 = vpop.f32.mrf.mxu0
    %v2739 = vadd.f32 0.0, %v2738
    %v2740 = vpop.f32.mrf.mxu0
    %v2741 = vpop.f32.mrf.mxu0
    %v2742 = vadd.f32 0.0, %v2741
    %v2743 = vpop.f32.mrf.mxu0
    %2744 = vmatprep.mubr.bf16.mxu0 0
    %2745 = vmatmul.mubr.bf16.gmra.mxu0 %v2588
    %v2746 = vpop.f32.mrf.mxu0
    %v2747 = vadd.f32 0.0, %v2746
    %v2748 = vpop.f32.mrf.mxu0
    %v2749 = vpop.f32.mrf.mxu0
    %v2750 = vadd.f32 0.0, %v2749
    %v2751 = vpop.f32.mrf.mxu0
    %2752 = vmatprep.mubr.bf16.mxu0 0
    %2753 = vmatmul.mubr.bf16.gmra.mxu0 %v2589
    %v2754 = vpop.f32.mrf.mxu0
    %v2755 = vadd.f32 0.0, %v2754
    %v2756 = vpop.f32.mrf.mxu0
    %v2757 = vpop.f32.mrf.mxu0
    %v2758 = vadd.f32 0.0, %v2757
    %v2759 = vpop.f32.mrf.mxu0
    %2760 = vmatprep.mubr.bf16.mxu0 0
    %2761 = vmatmul.mubr.bf16.gmra.mxu0 %v2590
    %v2762 = vpop.f32.mrf.mxu0
    %v2763 = vadd.f32 0.0, %v2762
    %v2764 = vpop.f32.mrf.mxu0
    %v2765 = vpop.f32.mrf.mxu0
    %v2766 = vadd.f32 0.0, %v2765
    %v2767 = vpop.f32.mrf.mxu0
    %2768 = vmatprep.mubr.bf16.mxu0 0
    %2769 = vmatmul.mubr.bf16.gmra.mxu0 %v2591
    %v2770 = vpop.f32.mrf.mxu0
    %v2771 = vadd.f32 0.0, %v2770
    %v2772 = vpop.f32.mrf.mxu0
    %v2773 = vpop.f32.mrf.mxu0
    %v2774 = vadd.f32 0.0, %v2773
    %v2775 = vpop.f32.mrf.mxu0
    %2776 = vmatprep.mubr.bf16.mxu0 0
    %2777 = vmatmul.mubr.bf16.gmra.mxu0 %v2592
    %v2778 = vpop.f32.mrf.mxu0
    %v2779 = vadd.f32 0.0, %v2778
    %v2780 = vpop.f32.mrf.mxu0
    %v2781 = vpop.f32.mrf.mxu0
    %v2782 = vadd.f32 0.0, %v2781
    %v2783 = vpop.f32.mrf.mxu0
    %2784 = vmatprep.mubr.bf16.mxu0 0
    %2785 = vmatmul.mubr.bf16.gmra.mxu0 %v2593
    %v2786 = vpop.f32.mrf.mxu0
    %v2787 = vadd.f32 0.0, %v2786
    %v2788 = vpop.f32.mrf.mxu0
    %v2789 = vpop.f32.mrf.mxu0
    %v2790 = vadd.f32 0.0, %v2789
    %v2791 = vpop.f32.mrf.mxu0
    %2792 = vmatprep.mubr.bf16.mxu0 0
    %2793 = vmatmul.mubr.bf16.gmra.mxu0 %v2594
    %v2794 = vpop.f32.mrf.mxu0
    %v2795 = vadd.f32 0.0, %v2794
    %v2796 = vpop.f32.mrf.mxu0
    %v2797 = vpop.f32.mrf.mxu0
    %v2798 = vadd.f32 0.0, %v2797
    %v2799 = vpop.f32.mrf.mxu0
    %2800 = vmatprep.mubr.bf16.mxu0 0
    %2801 = vmatmul.mubr.bf16.gmra.mxu0 %v2595
    %v2802 = vpop.f32.mrf.mxu0
    %v2803 = vadd.f32 0.0, %v2802
    %v2804 = vpop.f32.mrf.mxu0
    %v2805 = vpop.f32.mrf.mxu0
    %v2806 = vadd.f32 0.0, %v2805
    %v2807 = vpop.f32.mrf.mxu0
    %2808 = vmatprep.mubr.bf16.mxu0 0
    %2809 = vmatmul.mubr.bf16.gmra.mxu0 %v2596
    %v2810 = vpop.f32.mrf.mxu0
    %v2811 = vadd.f32 0.0, %v2810
    %v2812 = vpop.f32.mrf.mxu0
    %v2813 = vpop.f32.mrf.mxu0
    %v2814 = vadd.f32 0.0, %v2813
    %v2815 = vpop.f32.mrf.mxu0
    %2816 = vmatprep.mubr.bf16.mxu0 0
    %2817 = vmatmul.mubr.bf16.gmra.mxu0 %v2597
    %v2818 = vpop.f32.mrf.mxu0
    %v2819 = vadd.f32 0.0, %v2818
    %v2820 = vpop.f32.mrf.mxu0
    %v2821 = vpop.f32.mrf.mxu0
    %v2822 = vadd.f32 0.0, %v2821
    %v2823 = vpop.f32.mrf.mxu0
    %2824 = vmatprep.mubr.bf16.mxu0 0
    %2825 = vmatmul.mubr.bf16.gmra.mxu0 %v2598
    %v2826 = vpop.f32.mrf.mxu0
    %v2827 = vadd.f32 0.0, %v2826
    %v2828 = vpop.f32.mrf.mxu0
    %v2829 = vpop.f32.mrf.mxu0
    %v2830 = vadd.f32 0.0, %v2829
    %v2831 = vpop.f32.mrf.mxu0
    %2832 = vmatprep.mubr.bf16.mxu0 0
    %2833 = vmatmul.mubr.bf16.gmra.mxu0 %v2599
    %v2834 = vpop.f32.mrf.mxu0
    %v2835 = vadd.f32 0.0, %v2834
    %v2836 = vpop.f32.mrf.mxu0
    %v2837 = vpop.f32.mrf.mxu0
    %v2838 = vadd.f32 0.0, %v2837
    %v2839 = vpop.f32.mrf.mxu0
    %2840 = vmatprep.mubr.bf16.mxu0 0
    %2841 = vmatmul.mubr.bf16.gmra.mxu0 %v2600
    %v2842 = vpop.f32.mrf.mxu0
    %v2843 = vadd.f32 0.0, %v2842
    %v2844 = vpop.f32.mrf.mxu0
    %v2845 = vpop.f32.mrf.mxu0
    %v2846 = vadd.f32 0.0, %v2845
    %v2847 = vpop.f32.mrf.mxu0
    %2848 = vmatprep.mubr.bf16.mxu0 0
    %2849 = vmatmul.mubr.bf16.gmra.mxu0 %v2601
    %v2850 = vpop.f32.mrf.mxu0
    %v2851 = vadd.f32 0.0, %v2850
    %v2852 = vpop.f32.mrf.mxu0
    %v2853 = vpop.f32.mrf.mxu0
    %v2854 = vadd.f32 0.0, %v2853
    %v2855 = vpop.f32.mrf.mxu0
    %2856 = vmatprep.mubr.bf16.mxu0 0
    %2857 = vmatmul.mubr.bf16.gmra.mxu0 %v2602
    %v2858 = vpop.f32.mrf.mxu0
    %v2859 = vadd.f32 0.0, %v2858
    %v2860 = vpop.f32.mrf.mxu0
    %v2861 = vpop.f32.mrf.mxu0
    %v2862 = vadd.f32 0.0, %v2861
    %v2863 = vpop.f32.mrf.mxu0
    %2864 = vmatprep.mubr.bf16.mxu0 0
    %2865 = vmatmul.mubr.bf16.gmra.mxu0 %v2603
    %v2866 = vpop.f32.mrf.mxu0
    %v2867 = vadd.f32 0.0, %v2866
    %v2868 = vpop.f32.mrf.mxu0
    %v2869 = vpop.f32.mrf.mxu0
    %v2870 = vadd.f32 0.0, %v2869
    %v2871 = vpop.f32.mrf.mxu0
    %2872 = vmatprep.mubr.bf16.mxu0 0
    %2873 = vmatmul.mubr.bf16.gmra.mxu0 %v2604
    %v2874 = vpop.f32.mrf.mxu0
    %v2875 = vadd.f32 0.0, %v2874
    %v2876 = vpop.f32.mrf.mxu0
    %v2877 = vpop.f32.mrf.mxu0
    %v2878 = vadd.f32 0.0, %v2877
    %v2879 = vpop.f32.mrf.mxu0
    %2880 = vmatprep.mubr.bf16.mxu0 0
    %2881 = vmatmul.mubr.bf16.gmra.mxu0 %v2605
    %v2882 = vpop.f32.mrf.mxu0
    %v2883 = vadd.f32 0.0, %v2882
    %v2884 = vpop.f32.mrf.mxu0
    %v2885 = vpop.f32.mrf.mxu0
    %v2886 = vadd.f32 0.0, %v2885
    %v2887 = vpop.f32.mrf.mxu0
    %2888 = vmatprep.mubr.bf16.mxu0 0
    %2889 = vmatmul.mubr.bf16.gmra.mxu0 %v2606
    %v2890 = vpop.f32.mrf.mxu0
    %v2891 = vadd.f32 0.0, %v2890
    %v2892 = vpop.f32.mrf.mxu0
    %v2893 = vpop.f32.mrf.mxu0
    %v2894 = vadd.f32 0.0, %v2893
    %v2895 = vpop.f32.mrf.mxu0
    %2896 = vmatprep.mubr.bf16.mxu0 0
    %2897 = vmatmul.mubr.bf16.gmra.mxu0 %v2607
    %v2898 = vpop.f32.mrf.mxu0
    %v2899 = vadd.f32 0.0, %v2898
    %v2900 = vpop.f32.mrf.mxu0
    %v2901 = vpop.f32.mrf.mxu0
    %v2902 = vadd.f32 0.0, %v2901
    %v2903 = vpop.f32.mrf.mxu0
    %2904 = vmatprep.mubr.bf16.mxu0 0
    %2905 = vmatmul.mubr.bf16.gmra.mxu0 %v2608
    %v2906 = vpop.f32.mrf.mxu0
    %v2907 = vadd.f32 0.0, %v2906
    %v2908 = vpop.f32.mrf.mxu0
    %v2909 = vpop.f32.mrf.mxu0
    %v2910 = vadd.f32 0.0, %v2909
    %v2911 = vpop.f32.mrf.mxu0
    %2912 = vmatprep.mubr.bf16.mxu0 0
    %2913 = vmatmul.mubr.bf16.gmra.mxu0 %v2609
    %v2914 = vpop.f32.mrf.mxu0
    %v2915 = vadd.f32 0.0, %v2914
    %v2916 = vpop.f32.mrf.mxu0
    %v2917 = vpop.f32.mrf.mxu0
    %v2918 = vadd.f32 0.0, %v2917
    %v2919 = vpop.f32.mrf.mxu0
    %2920 = vmatprep.mubr.bf16.mxu0 0
    %2921 = vmatmul.mubr.bf16.gmra.mxu0 %v2610
    %v2922 = vpop.f32.mrf.mxu0
    %v2923 = vadd.f32 0.0, %v2922
    %v2924 = vpop.f32.mrf.mxu0
    %v2925 = vpop.f32.mrf.mxu0
    %v2926 = vadd.f32 0.0, %v2925
    %v2927 = vpop.f32.mrf.mxu0
    %2928 = vmatprep.mubr.bf16.mxu0 0
    %2929 = vmatmul.mubr.bf16.gmra.mxu0 %v2611
    %v2930 = vpop.f32.mrf.mxu0
    %v2931 = vadd.f32 0.0, %v2930
    %v2932 = vpop.f32.mrf.mxu0
    %v2933 = vpop.f32.mrf.mxu0
    %v2934 = vadd.f32 0.0, %v2933
    %v2935 = vpop.f32.mrf.mxu0
    %2936 = vmatprep.mubr.bf16.mxu0 0
    %2937 = vmatmul.mubr.bf16.gmra.mxu0 %v2612
    %v2938 = vpop.f32.mrf.mxu0
    %v2939 = vadd.f32 0.0, %v2938
    %v2940 = vpop.f32.mrf.mxu0
    %v2941 = vpop.f32.mrf.mxu0
    %v2942 = vadd.f32 0.0, %v2941
    %v2943 = vpop.f32.mrf.mxu0
    %2944 = vmatprep.mubr.bf16.mxu0 0
    %2945 = vmatmul.mubr.bf16.gmra.mxu0 %v2613
    %v2946 = vpop.f32.mrf.mxu0
    %v2947 = vadd.f32 0.0, %v2946
    %v2948 = vpop.f32.mrf.mxu0
    %v2949 = vpop.f32.mrf.mxu0
    %v2950 = vadd.f32 0.0, %v2949
    %v2951 = vpop.f32.mrf.mxu0
    %2952 = vmatprep.mubr.bf16.mxu0 0
    %2953 = vmatmul.mubr.bf16.gmra.mxu0 %v2614
    %v2954 = vpop.f32.mrf.mxu0
    %v2955 = vadd.f32 0.0, %v2954
    %v2956 = vpop.f32.mrf.mxu0
    %v2957 = vpop.f32.mrf.mxu0
    %v2958 = vadd.f32 0.0, %v2957
    %v2959 = vpop.f32.mrf.mxu0
    %2960 = vmatprep.mubr.bf16.mxu0 0
    %2961 = vmatmul.mubr.bf16.gmra.mxu0 %v2615
    %v2962 = vpop.f32.mrf.mxu0
    %v2963 = vadd.f32 0.0, %v2962
    %v2964 = vpop.f32.mrf.mxu0
    %v2965 = vpop.f32.mrf.mxu0
    %v2966 = vadd.f32 0.0, %v2965
    %v2967 = vpop.f32.mrf.mxu0
    %2968 = vdwg.mxu0
    %v2969 = vadd.f32 %v2009, %v2715
    %v2970 = vadd.f32 %v2012, %v2718
    %v2971 = vadd.f32 %v2017, %v2723
    %v2972 = vadd.f32 %v2020, %v2726
    %v2973 = vadd.f32 %v2025, %v2731
    %v2974 = vadd.f32 %v2028, %v2734
    %v2975 = vadd.f32 %v2033, %v2739
    %v2976 = vadd.f32 %v2036, %v2742
    %v2977 = vadd.f32 %v2041, %v2747
    %v2978 = vadd.f32 %v2044, %v2750
    %v2979 = vadd.f32 %v2049, %v2755
    %v2980 = vadd.f32 %v2052, %v2758
    %v2981 = vadd.f32 %v2057, %v2763
    %v2982 = vadd.f32 %v2060, %v2766
    %v2983 = vadd.f32 %v2065, %v2771
    %v2984 = vadd.f32 %v2068, %v2774
    %v2985 = vadd.f32 %v2073, %v2779
    %v2986 = vadd.f32 %v2076, %v2782
    %v2987 = vadd.f32 %v2081, %v2787
    %v2988 = vadd.f32 %v2084, %v2790
    %v2989 = vadd.f32 %v2089, %v2795
    %v2990 = vadd.f32 %v2092, %v2798
    %v2991 = vadd.f32 %v2097, %v2803
    %v2992 = vadd.f32 %v2100, %v2806
    %v2993 = vadd.f32 %v2105, %v2811
    %v2994 = vadd.f32 %v2108, %v2814
    %v2995 = vadd.f32 %v2113, %v2819
    %v2996 = vadd.f32 %v2116, %v2822
    %v2997 = vadd.f32 %v2121, %v2827
    %v2998 = vadd.f32 %v2124, %v2830
    %v2999 = vadd.f32 %v2129, %v2835
    %v3000 = vadd.f32 %v2132, %v2838
    %v3001 = vadd.f32 %v2137, %v2843
    %v3002 = vadd.f32 %v2140, %v2846
    %v3003 = vadd.f32 %v2145, %v2851
    %v3004 = vadd.f32 %v2148, %v2854
    %v3005 = vadd.f32 %v2153, %v2859
    %v3006 = vadd.f32 %v2156, %v2862
    %v3007 = vadd.f32 %v2161, %v2867
    %v3008 = vadd.f32 %v2164, %v2870
    %v3009 = vadd.f32 %v2169, %v2875
    %v3010 = vadd.f32 %v2172, %v2878
    %v3011 = vadd.f32 %v2177, %v2883
    %v3012 = vadd.f32 %v2180, %v2886
    %v3013 = vadd.f32 %v2185, %v2891
    %v3014 = vadd.f32 %v2188, %v2894
    %v3015 = vadd.f32 %v2193, %v2899
    %v3016 = vadd.f32 %v2196, %v2902
    %v3017 = vadd.f32 %v2201, %v2907
    %v3018 = vadd.f32 %v2204, %v2910
    %v3019 = vadd.f32 %v2209, %v2915
    %v3020 = vadd.f32 %v2212, %v2918
    %v3021 = vadd.f32 %v2217, %v2923
    %v3022 = vadd.f32 %v2220, %v2926
    %v3023 = vadd.f32 %v2225, %v2931
    %v3024 = vadd.f32 %v2228, %v2934
    %v3025 = vadd.f32 %v2233, %v2939
    %v3026 = vadd.f32 %v2236, %v2942
    %v3027 = vadd.f32 %v2241, %v2947
    %v3028 = vadd.f32 %v2244, %v2950
    %v3029 = vadd.f32 %v2249, %v2955
    %v3030 = vadd.f32 %v2252, %v2958
    %v3031 = vadd.f32 %v2257, %v2963
    %v3032 = vadd.f32 %v2260, %v2966
    %v3033 = vrot.slane %v1807, 1
    %v3034 = vrot.slane %v1808, 1
    %v3035 = vrot.slane %v1809, 1
    %v3036 = vrot.slane %v1810, 1
    %v3037 = vrot.slane %v1811, 1
    %v3038 = vrot.slane %v1812, 1
    %v3039 = vrot.slane %v1813, 1
    %v3040 = vrot.slane %v1814, 1
    %v3041 = vrot.slane %v1815, 1
    %v3042 = vrot.slane %v1816, 1
    %v3043 = vrot.slane %v1817, 1
    %v3044 = vrot.slane %v1818, 1
    %v3045 = vrot.slane %v1819, 1
    %v3046 = vrot.slane %v1820, 1
    %v3047 = vrot.slane %v1821, 1
    %v3048 = vrot.slane %v1822, 1
    %v3049 = vrot.slane %v1823, 1
    %v3050 = vrot.slane %v1824, 1
    %v3051 = vrot.slane %v1825, 1
    %v3052 = vrot.slane %v1826, 1
    %v3053 = vrot.slane %v1827, 1
    %v3054 = vrot.slane %v1828, 1
    %v3055 = vrot.slane %v1829, 1
    %v3056 = vrot.slane %v1830, 1
    %v3057 = vrot.slane %v1831, 1
    %v3058 = vrot.slane %v1832, 1
    %v3059 = vrot.slane %v1833, 1
    %v3060 = vrot.slane %v1834, 1
    %v3061 = vrot.slane %v1835, 1
    %v3062 = vrot.slane %v1836, 1
    %v3063 = vrot.slane %v1837, 1
    %v3064 = vrot.slane %v1838, 1
    %v3065 = vrot.slane %v1839, 1
    %v3066 = vrot.slane %v1840, 1
    %v3067 = vrot.slane %v1841, 1
    %v3068 = vrot.slane %v1842, 1
    %v3069 = vrot.slane %v1843, 1
    %v3070 = vrot.slane %v1844, 1
    %v3071 = vrot.slane %v1845, 1
    %v3072 = vrot.slane %v1846, 1
    %v3073 = vrot.slane %v1847, 1
    %v3074 = vrot.slane %v1848, 1
    %v3075 = vrot.slane %v1849, 1
    %v3076 = vrot.slane %v1850, 1
    %v3077 = vrot.slane %v1851, 1
    %v3078 = vrot.slane %v1852, 1
    %v3079 = vrot.slane %v1853, 1
    %v3080 = vrot.slane %v1854, 1
    %v3081 = vrot.slane %v1855, 1
    %v3082 = vrot.slane %v1856, 1
    %v3083 = vrot.slane %v1857, 1
    %v3084 = vrot.slane %v1858, 1
    %v3085 = vrot.slane %v1859, 1
    %v3086 = vrot.slane %v1860, 1
    %v3087 = vrot.slane %v1861, 1
    %v3088 = vrot.slane %v1862, 1
    %v3089 = vrot.slane %v1863, 1
    %v3090 = vrot.slane %v1864, 1
    %v3091 = vrot.slane %v1865, 1
    %v3092 = vrot.slane %v1866, 1
    %v3093 = vrot.slane %v1867, 1
    %v3094 = vrot.slane %v1868, 1
    %v3095 = vrot.slane %v1869, 1
    %v3096 = vrot.slane %v1870, 1
    %vm3097 = vcmp.lt.s32.totalorder %v167, 7
    %v3098 = vsel %vm3097, %v3095, %v3096
    %v3099 = vsel %vm3097, %v3094, %v3095
    %v3100 = vsel %vm3097, %v3093, %v3094
    %v3101 = vsel %vm3097, %v3092, %v3093
    %v3102 = vsel %vm3097, %v3091, %v3092
    %v3103 = vsel %vm3097, %v3090, %v3091
    %v3104 = vsel %vm3097, %v3089, %v3090
    %v3105 = vsel %vm3097, %v3088, %v3089
    %v3106 = vsel %vm3097, %v3087, %v3088
    %v3107 = vsel %vm3097, %v3086, %v3087
    %v3108 = vsel %vm3097, %v3085, %v3086
    %v3109 = vsel %vm3097, %v3084, %v3085
    %v3110 = vsel %vm3097, %v3083, %v3084
    %v3111 = vsel %vm3097, %v3082, %v3083
    %v3112 = vsel %vm3097, %v3081, %v3082
    %v3113 = vsel %vm3097, %v3080, %v3081
    %v3114 = vsel %vm3097, %v3079, %v3080
    %v3115 = vsel %vm3097, %v3078, %v3079
    %v3116 = vsel %vm3097, %v3077, %v3078
    %v3117 = vsel %vm3097, %v3076, %v3077
    %v3118 = vsel %vm3097, %v3075, %v3076
    %v3119 = vsel %vm3097, %v3074, %v3075
    %v3120 = vsel %vm3097, %v3073, %v3074
    %v3121 = vsel %vm3097, %v3072, %v3073
    %v3122 = vsel %vm3097, %v3071, %v3072
    %v3123 = vsel %vm3097, %v3070, %v3071
    %v3124 = vsel %vm3097, %v3069, %v3070
    %v3125 = vsel %vm3097, %v3068, %v3069
    %v3126 = vsel %vm3097, %v3067, %v3068
    %v3127 = vsel %vm3097, %v3066, %v3067
    %v3128 = vsel %vm3097, %v3065, %v3066
    %v3129 = vsel %vm3097, %v3064, %v3065
    %v3130 = vsel %vm3097, %v3063, %v3064
    %v3131 = vsel %vm3097, %v3062, %v3063
    %v3132 = vsel %vm3097, %v3061, %v3062
    %v3133 = vsel %vm3097, %v3060, %v3061
    %v3134 = vsel %vm3097, %v3059, %v3060
    %v3135 = vsel %vm3097, %v3058, %v3059
    %v3136 = vsel %vm3097, %v3057, %v3058
    %v3137 = vsel %vm3097, %v3056, %v3057
    %v3138 = vsel %vm3097, %v3055, %v3056
    %v3139 = vsel %vm3097, %v3054, %v3055
    %v3140 = vsel %vm3097, %v3053, %v3054
    %v3141 = vsel %vm3097, %v3052, %v3053
    %v3142 = vsel %vm3097, %v3051, %v3052
    %v3143 = vsel %vm3097, %v3050, %v3051
    %v3144 = vsel %vm3097, %v3049, %v3050
    %v3145 = vsel %vm3097, %v3048, %v3049
    %v3146 = vsel %vm3097, %v3047, %v3048
    %v3147 = vsel %vm3097, %v3046, %v3047
    %v3148 = vsel %vm3097, %v3045, %v3046
    %v3149 = vsel %vm3097, %v3044, %v3045
    %v3150 = vsel %vm3097, %v3043, %v3044
    %v3151 = vsel %vm3097, %v3042, %v3043
    %v3152 = vsel %vm3097, %v3041, %v3042
    %v3153 = vsel %vm3097, %v3040, %v3041
    %v3154 = vsel %vm3097, %v3039, %v3040
    %v3155 = vsel %vm3097, %v3038, %v3039
    %v3156 = vsel %vm3097, %v3037, %v3038
    %v3157 = vsel %vm3097, %v3036, %v3037
    %v3158 = vsel %vm3097, %v3035, %v3036
    %v3159 = vsel %vm3097, %v3034, %v3035
    %v3160 = vsel %vm3097, %v3033, %v3034
    %v3161 = vsel %vm3097, %v3096, %v3033
    %v3162 = vsel %vm1063, 1, 0
    %v3163 = vsel %vm1064, 1, 0
    %v3164 = vsel %vm1065, 1, 0
    %v3165 = vsel %vm1066, 1, 0
    %v3166 = vsel %vm1067, 1, 0
    %v3167 = vsel %vm1068, 1, 0
    %v3168 = vsel %vm1069, 1, 0
    %v3169 = vsel %vm1070, 1, 0
    %v3170 = vsel %vm1071, 1, 0
    %v3171 = vsel %vm1072, 1, 0
    %v3172 = vsel %vm1073, 1, 0
    %v3173 = vsel %vm1074, 1, 0
    %v3174 = vsel %vm1075, 1, 0
    %v3175 = vsel %vm1076, 1, 0
    %v3176 = vsel %vm1077, 1, 0
    %v3177 = vsel %vm1078, 1, 0
    %v3178 = vsel %vm1079, 1, 0
    %v3179 = vsel %vm1080, 1, 0
    %v3180 = vsel %vm1081, 1, 0
    %v3181 = vsel %vm1082, 1, 0
    %v3182 = vsel %vm1083, 1, 0
    %v3183 = vsel %vm1084, 1, 0
    %v3184 = vsel %vm1085, 1, 0
    %v3185 = vsel %vm1086, 1, 0
    %v3186 = vsel %vm1087, 1, 0
    %v3187 = vsel %vm1088, 1, 0
    %v3188 = vsel %vm1089, 1, 0
    %v3189 = vsel %vm1090, 1, 0
    %v3190 = vsel %vm1091, 1, 0
    %v3191 = vsel %vm1092, 1, 0
    %v3192 = vsel %vm1093, 1, 0
    %v3193 = vsel %vm1094, 1, 0
    %v3194 = vsel %vm1095, 1, 0
    %v3195 = vsel %vm1096, 1, 0
    %v3196 = vsel %vm1097, 1, 0
    %v3197 = vsel %vm1098, 1, 0
    %v3198 = vsel %vm1099, 1, 0
    %v3199 = vsel %vm1100, 1, 0
    %v3200 = vsel %vm1101, 1, 0
    %v3201 = vsel %vm1102, 1, 0
    %v3202 = vsel %vm1103, 1, 0
    %v3203 = vsel %vm1104, 1, 0
    %v3204 = vsel %vm1105, 1, 0
    %v3205 = vsel %vm1106, 1, 0
    %v3206 = vsel %vm1107, 1, 0
    %v3207 = vsel %vm1108, 1, 0
    %v3208 = vsel %vm1109, 1, 0
    %v3209 = vsel %vm1110, 1, 0
    %v3210 = vsel %vm1111, 1, 0
    %v3211 = vsel %vm1112, 1, 0
    %v3212 = vsel %vm1113, 1, 0
    %v3213 = vsel %vm1114, 1, 0
    %v3214 = vsel %vm1115, 1, 0
    %v3215 = vsel %vm1116, 1, 0
    %v3216 = vsel %vm1117, 1, 0
    %v3217 = vsel %vm1118, 1, 0
    %v3218 = vsel %vm1119, 1, 0
    %v3219 = vsel %vm1120, 1, 0
    %v3220 = vsel %vm1121, 1, 0
    %v3221 = vsel %vm1122, 1, 0
    %v3222 = vsel %vm1123, 1, 0
    %v3223 = vsel %vm1124, 1, 0
    %v3224 = vsel %vm1125, 1, 0
    %v3225 = vsel %vm1126, 1, 0
    %vm3226 = vcmp.eq.s32.totalorder %v3162, 1
    %vm3227 = vcmp.eq.s32.totalorder %v3163, 1
    %vm3228 = vcmp.eq.s32.totalorder %v3164, 1
    %vm3229 = vcmp.eq.s32.totalorder %v3165, 1
    %vm3230 = vcmp.eq.s32.totalorder %v3166, 1
    %vm3231 = vcmp.eq.s32.totalorder %v3167, 1
    %vm3232 = vcmp.eq.s32.totalorder %v3168, 1
    %vm3233 = vcmp.eq.s32.totalorder %v3169, 1
    %vm3234 = vcmp.eq.s32.totalorder %v3170, 1
    %vm3235 = vcmp.eq.s32.totalorder %v3171, 1
    %vm3236 = vcmp.eq.s32.totalorder %v3172, 1
    %vm3237 = vcmp.eq.s32.totalorder %v3173, 1
    %vm3238 = vcmp.eq.s32.totalorder %v3174, 1
    %vm3239 = vcmp.eq.s32.totalorder %v3175, 1
    %vm3240 = vcmp.eq.s32.totalorder %v3176, 1
    %vm3241 = vcmp.eq.s32.totalorder %v3177, 1
    %vm3242 = vcmp.eq.s32.totalorder %v3178, 1
    %vm3243 = vcmp.eq.s32.totalorder %v3179, 1
    %vm3244 = vcmp.eq.s32.totalorder %v3180, 1
    %vm3245 = vcmp.eq.s32.totalorder %v3181, 1
    %vm3246 = vcmp.eq.s32.totalorder %v3182, 1
    %vm3247 = vcmp.eq.s32.totalorder %v3183, 1
    %vm3248 = vcmp.eq.s32.totalorder %v3184, 1
    %vm3249 = vcmp.eq.s32.totalorder %v3185, 1
    %vm3250 = vcmp.eq.s32.totalorder %v3186, 1
    %vm3251 = vcmp.eq.s32.totalorder %v3187, 1
    %vm3252 = vcmp.eq.s32.totalorder %v3188, 1
    %vm3253 = vcmp.eq.s32.totalorder %v3189, 1
    %vm3254 = vcmp.eq.s32.totalorder %v3190, 1
    %vm3255 = vcmp.eq.s32.totalorder %v3191, 1
    %vm3256 = vcmp.eq.s32.totalorder %v3192, 1
    %vm3257 = vcmp.eq.s32.totalorder %v3193, 1
    %vm3258 = vcmp.eq.s32.totalorder %v3194, 1
    %vm3259 = vcmp.eq.s32.totalorder %v3195, 1
    %vm3260 = vcmp.eq.s32.totalorder %v3196, 1
    %vm3261 = vcmp.eq.s32.totalorder %v3197, 1
    %vm3262 = vcmp.eq.s32.totalorder %v3198, 1
    %vm3263 = vcmp.eq.s32.totalorder %v3199, 1
    %vm3264 = vcmp.eq.s32.totalorder %v3200, 1
    %vm3265 = vcmp.eq.s32.totalorder %v3201, 1
    %vm3266 = vcmp.eq.s32.totalorder %v3202, 1
    %vm3267 = vcmp.eq.s32.totalorder %v3203, 1
    %vm3268 = vcmp.eq.s32.totalorder %v3204, 1
    %vm3269 = vcmp.eq.s32.totalorder %v3205, 1
    %vm3270 = vcmp.eq.s32.totalorder %v3206, 1
    %vm3271 = vcmp.eq.s32.totalorder %v3207, 1
    %vm3272 = vcmp.eq.s32.totalorder %v3208, 1
    %vm3273 = vcmp.eq.s32.totalorder %v3209, 1
    %vm3274 = vcmp.eq.s32.totalorder %v3210, 1
    %vm3275 = vcmp.eq.s32.totalorder %v3211, 1
    %vm3276 = vcmp.eq.s32.totalorder %v3212, 1
    %vm3277 = vcmp.eq.s32.totalorder %v3213, 1
    %vm3278 = vcmp.eq.s32.totalorder %v3214, 1
    %vm3279 = vcmp.eq.s32.totalorder %v3215, 1
    %vm3280 = vcmp.eq.s32.totalorder %v3216, 1
    %vm3281 = vcmp.eq.s32.totalorder %v3217, 1
    %vm3282 = vcmp.eq.s32.totalorder %v3218, 1
    %vm3283 = vcmp.eq.s32.totalorder %v3219, 1
    %vm3284 = vcmp.eq.s32.totalorder %v3220, 1
    %vm3285 = vcmp.eq.s32.totalorder %v3221, 1
    %vm3286 = vcmp.eq.s32.totalorder %v3222, 1
    %vm3287 = vcmp.eq.s32.totalorder %v3223, 1
    %vm3288 = vcmp.eq.s32.totalorder %v3224, 1
    %vm3289 = vcmp.eq.s32.totalorder %v3225, 1
    %v3290 = vsel %vm3226, 0.0, %v3160
    %v3291 = vsel %vm3227, 0.0, %v3159
    %v3292 = vsel %vm3228, 0.0, %v3158
    %v3293 = vsel %vm3229, 0.0, %v3157
    %v3294 = vsel %vm3230, 0.0, %v3156
    %v3295 = vsel %vm3231, 0.0, %v3155
    %v3296 = vsel %vm3232, 0.0, %v3154
    %v3297 = vsel %vm3233, 0.0, %v3153
    %v3298 = vsel %vm3234, 0.0, %v3152
    %v3299 = vsel %vm3235, 0.0, %v3151
    %v3300 = vsel %vm3236, 0.0, %v3150
    %v3301 = vsel %vm3237, 0.0, %v3149
    %v3302 = vsel %vm3238, 0.0, %v3148
    %v3303 = vsel %vm3239, 0.0, %v3147
    %v3304 = vsel %vm3240, 0.0, %v3146
    %v3305 = vsel %vm3241, 0.0, %v3145
    %v3306 = vsel %vm3242, 0.0, %v3144
    %v3307 = vsel %vm3243, 0.0, %v3143
    %v3308 = vsel %vm3244, 0.0, %v3142
    %v3309 = vsel %vm3245, 0.0, %v3141
    %v3310 = vsel %vm3246, 0.0, %v3140
    %v3311 = vsel %vm3247, 0.0, %v3139
    %v3312 = vsel %vm3248, 0.0, %v3138
    %v3313 = vsel %vm3249, 0.0, %v3137
    %v3314 = vsel %vm3250, 0.0, %v3136
    %v3315 = vsel %vm3251, 0.0, %v3135
    %v3316 = vsel %vm3252, 0.0, %v3134
    %v3317 = vsel %vm3253, 0.0, %v3133
    %v3318 = vsel %vm3254, 0.0, %v3132
    %v3319 = vsel %vm3255, 0.0, %v3131
    %v3320 = vsel %vm3256, 0.0, %v3130
    %v3321 = vsel %vm3257, 0.0, %v3129
    %v3322 = vsel %vm3258, 0.0, %v3128
    %v3323 = vsel %vm3259, 0.0, %v3127
    %v3324 = vsel %vm3260, 0.0, %v3126
    %v3325 = vsel %vm3261, 0.0, %v3125
    %v3326 = vsel %vm3262, 0.0, %v3124
    %v3327 = vsel %vm3263, 0.0, %v3123
    %v3328 = vsel %vm3264, 0.0, %v3122
    %v3329 = vsel %vm3265, 0.0, %v3121
    %v3330 = vsel %vm3266, 0.0, %v3120
    %v3331 = vsel %vm3267, 0.0, %v3119
    %v3332 = vsel %vm3268, 0.0, %v3118
    %v3333 = vsel %vm3269, 0.0, %v3117
    %v3334 = vsel %vm3270, 0.0, %v3116
    %v3335 = vsel %vm3271, 0.0, %v3115
    %v3336 = vsel %vm3272, 0.0, %v3114
    %v3337 = vsel %vm3273, 0.0, %v3113
    %v3338 = vsel %vm3274, 0.0, %v3112
    %v3339 = vsel %vm3275, 0.0, %v3111
    %v3340 = vsel %vm3276, 0.0, %v3110
    %v3341 = vsel %vm3277, 0.0, %v3109
    %v3342 = vsel %vm3278, 0.0, %v3108
    %v3343 = vsel %vm3279, 0.0, %v3107
    %v3344 = vsel %vm3280, 0.0, %v3106
    %v3345 = vsel %vm3281, 0.0, %v3105
    %v3346 = vsel %vm3282, 0.0, %v3104
    %v3347 = vsel %vm3283, 0.0, %v3103
    %v3348 = vsel %vm3284, 0.0, %v3102
    %v3349 = vsel %vm3285, 0.0, %v3101
    %v3350 = vsel %vm3286, 0.0, %v3100
    %v3351 = vsel %vm3287, 0.0, %v3099
    %v3352 = vsel %vm3288, 0.0, %v3098
    %v3353 = vsel %vm3289, 0.0, %v3161
    %v3354 = vpack.c.bf16 %v3291, %v3290
    %v3355 = vpack.c.bf16 %v3293, %v3292
    %v3356 = vpack.c.bf16 %v3295, %v3294
    %v3357 = vpack.c.bf16 %v3297, %v3296
    %v3358 = vpack.c.bf16 %v3299, %v3298
    %v3359 = vpack.c.bf16 %v3301, %v3300
    %v3360 = vpack.c.bf16 %v3303, %v3302
    %v3361 = vpack.c.bf16 %v3305, %v3304
    %v3362 = vpack.c.bf16 %v3307, %v3306
    %v3363 = vpack.c.bf16 %v3309, %v3308
    %v3364 = vpack.c.bf16 %v3311, %v3310
    %v3365 = vpack.c.bf16 %v3313, %v3312
    %v3366 = vpack.c.bf16 %v3315, %v3314
    %v3367 = vpack.c.bf16 %v3317, %v3316
    %v3368 = vpack.c.bf16 %v3319, %v3318
    %v3369 = vpack.c.bf16 %v3321, %v3320
    %v3370 = vpack.c.bf16 %v3323, %v3322
    %v3371 = vpack.c.bf16 %v3325, %v3324
    %v3372 = vpack.c.bf16 %v3327, %v3326
    %v3373 = vpack.c.bf16 %v3329, %v3328
    %v3374 = vpack.c.bf16 %v3331, %v3330
    %v3375 = vpack.c.bf16 %v3333, %v3332
    %v3376 = vpack.c.bf16 %v3335, %v3334
    %v3377 = vpack.c.bf16 %v3337, %v3336
    %v3378 = vpack.c.bf16 %v3339, %v3338
    %v3379 = vpack.c.bf16 %v3341, %v3340
    %v3380 = vpack.c.bf16 %v3343, %v3342
    %v3381 = vpack.c.bf16 %v3345, %v3344
    %v3382 = vpack.c.bf16 %v3347, %v3346
    %v3383 = vpack.c.bf16 %v3349, %v3348
    %v3384 = vpack.c.bf16 %v3351, %v3350
    %v3385 = vpack.c.bf16 %v3353, %v3352
    %v3386 = vld [vmem:[#allocation7 + $0x80] sm:$0xf]
    %v3387 = vld [vmem:[#allocation7 + $0x84] sm:$0xf]
    %v3388 = vld [vmem:[#allocation7 + $0x88] sm:$0xf]
    %v3389 = vld [vmem:[#allocation7 + $0x8c] sm:$0xf]
    %v3390 = vld [vmem:[#allocation7 + $0x90] sm:$0xf]
    %v3391 = vld [vmem:[#allocation7 + $0x94] sm:$0xf]
    %v3392 = vld [vmem:[#allocation7 + $0x98] sm:$0xf]
    %v3393 = vld [vmem:[#allocation7 + $0x9c] sm:$0xf]
    %v3394 = vld [vmem:[#allocation7 + $0xa0] sm:$0xf]
    %v3395 = vld [vmem:[#allocation7 + $0xa4] sm:$0xf]
    %v3396 = vld [vmem:[#allocation7 + $0xa8] sm:$0xf]
    %v3397 = vld [vmem:[#allocation7 + $0xac] sm:$0xf]
    %v3398 = vld [vmem:[#allocation7 + $0xb0] sm:$0xf]
    %v3399 = vld [vmem:[#allocation7 + $0xb4] sm:$0xf]
    %v3400 = vld [vmem:[#allocation7 + $0xb8] sm:$0xf]
    %v3401 = vld [vmem:[#allocation7 + $0xbc] sm:$0xf]
    %v3418 = vunpack.c.l.b16 %v3386
    %v3419 = vunpack.c.l.b16 %v3387
    %v3420 = vunpack.c.l.b16 %v3388
    %v3421 = vunpack.c.l.b16 %v3389
    %v3422 = vunpack.c.l.b16 %v3390
    %v3423 = vunpack.c.l.b16 %v3391
    %v3424 = vunpack.c.l.b16 %v3392
    %v3425 = vunpack.c.l.b16 %v3393
    %v3426 = vunpack.c.l.b16 %v3394
    %v3427 = vunpack.c.l.b16 %v3395
    %v3428 = vunpack.c.l.b16 %v3396
    %v3429 = vunpack.c.l.b16 %v3397
    %v3430 = vunpack.c.l.b16 %v3398
    %v3431 = vunpack.c.l.b16 %v3399
    %v3432 = vunpack.c.l.b16 %v3400
    %v3433 = vunpack.c.l.b16 %v3401
    %v3434 = vpack.c.b16 %v3419, %v3418
    %v3435 = vpack.c.b16 %v3421, %v3420
    %v3436 = vpack.c.b16 %v3423, %v3422
    %v3437 = vpack.c.b16 %v3425, %v3424
    %v3438 = vpack.c.b16 %v3427, %v3426
    %v3439 = vpack.c.b16 %v3429, %v3428
    %v3440 = vpack.c.b16 %v3431, %v3430
    %v3441 = vpack.c.b16 %v3433, %v3432
    %3450 = vmatprep.subr.bf16.mxu0 0
    %3451 = vmatpush1.bf16.msra.mxu0 %v3441
    %3452 = vmatprep.subr.bf16.mxu0 0
    %3453 = vmatpush1.bf16.msra.mxu0 %v3440
    %3454 = vmatprep.subr.bf16.mxu0 0
    %3455 = vmatpush1.bf16.msra.mxu0 %v3439
    %3456 = vmatprep.subr.bf16.mxu0 0
    %3457 = vmatpush1.bf16.msra.mxu0 %v3438
    %3458 = vmatprep.subr.bf16.mxu0 0
    %3459 = vmatpush1.bf16.msra.mxu0 %v3437
    %3460 = vmatprep.subr.bf16.mxu0 0
    %3461 = vmatpush1.bf16.msra.mxu0 %v3436
    %3462 = vmatprep.subr.bf16.mxu0 0
    %3463 = vmatpush1.bf16.msra.mxu0 %v3435
    %3464 = vmatprep.subr.bf16.mxu0 0
    %3465 = vmatpush1.bf16.msra.mxu0 %v3434
    %3466 = vmatprep.subr.bf16.mxu0 0
    %3467 = vmatpush2.bf16.msra.mxu0 0
    %3468 = vmatprep.subr.bf16.mxu0 0
    %3469 = vmatpush2.bf16.msra.mxu0 0
    %3470 = vmatprep.subr.bf16.mxu0 0
    %3471 = vmatpush2.bf16.msra.mxu0 0
    %3472 = vmatprep.subr.bf16.mxu0 0
    %3473 = vmatpush2.bf16.msra.mxu0 0
    %3474 = vmatprep.subr.bf16.mxu0 0
    %3475 = vmatpush2.bf16.msra.mxu0 0
    %3476 = vmatprep.subr.bf16.mxu0 0
    %3477 = vmatpush2.bf16.msra.mxu0 0
    %3478 = vmatprep.subr.bf16.mxu0 0
    %3479 = vmatpush2.bf16.msra.mxu0 0
    %3480 = vmatprep.subr.bf16.mxu0 0
    %3481 = vmatpush2.bf16.msra.mxu0 0
    %3482 = vmatprep.mubr.bf16.mxu0 0
    %3483 = vmatmul.mubr.bf16.gmra.mxu0 %v3354
    %v3484 = vpop.f32.mrf.mxu0
    %v3485 = vadd.f32 0.0, %v3484
    %v3486 = vpop.f32.mrf.mxu0
    %v3487 = vpop.f32.mrf.mxu0
    %v3488 = vadd.f32 0.0, %v3487
    %v3489 = vpop.f32.mrf.mxu0
    %3490 = vmatprep.mubr.bf16.mxu0 0
    %3491 = vmatmul.mubr.bf16.gmra.mxu0 %v3355
    %v3492 = vpop.f32.mrf.mxu0
    %v3493 = vadd.f32 0.0, %v3492
    %v3494 = vpop.f32.mrf.mxu0
    %v3495 = vpop.f32.mrf.mxu0
    %v3496 = vadd.f32 0.0, %v3495
    %v3497 = vpop.f32.mrf.mxu0
    %3498 = vmatprep.mubr.bf16.mxu0 0
    %3499 = vmatmul.mubr.bf16.gmra.mxu0 %v3356
    %v3500 = vpop.f32.mrf.mxu0
    %v3501 = vadd.f32 0.0, %v3500
    %v3502 = vpop.f32.mrf.mxu0
    %v3503 = vpop.f32.mrf.mxu0
    %v3504 = vadd.f32 0.0, %v3503
    %v3505 = vpop.f32.mrf.mxu0
    %3506 = vmatprep.mubr.bf16.mxu0 0
    %3507 = vmatmul.mubr.bf16.gmra.mxu0 %v3357
    %v3508 = vpop.f32.mrf.mxu0
    %v3509 = vadd.f32 0.0, %v3508
    %v3510 = vpop.f32.mrf.mxu0
    %v3511 = vpop.f32.mrf.mxu0
    %v3512 = vadd.f32 0.0, %v3511
    %v3513 = vpop.f32.mrf.mxu0
    %3514 = vmatprep.mubr.bf16.mxu0 0
    %3515 = vmatmul.mubr.bf16.gmra.mxu0 %v3358
    %v3516 = vpop.f32.mrf.mxu0
    %v3517 = vadd.f32 0.0, %v3516
    %v3518 = vpop.f32.mrf.mxu0
    %v3519 = vpop.f32.mrf.mxu0
    %v3520 = vadd.f32 0.0, %v3519
    %v3521 = vpop.f32.mrf.mxu0
    %3522 = vmatprep.mubr.bf16.mxu0 0
    %3523 = vmatmul.mubr.bf16.gmra.mxu0 %v3359
    %v3524 = vpop.f32.mrf.mxu0
    %v3525 = vadd.f32 0.0, %v3524
    %v3526 = vpop.f32.mrf.mxu0
    %v3527 = vpop.f32.mrf.mxu0
    %v3528 = vadd.f32 0.0, %v3527
    %v3529 = vpop.f32.mrf.mxu0
    %3530 = vmatprep.mubr.bf16.mxu0 0
    %3531 = vmatmul.mubr.bf16.gmra.mxu0 %v3360
    %v3532 = vpop.f32.mrf.mxu0
    %v3533 = vadd.f32 0.0, %v3532
    %v3534 = vpop.f32.mrf.mxu0
    %v3535 = vpop.f32.mrf.mxu0
    %v3536 = vadd.f32 0.0, %v3535
    %v3537 = vpop.f32.mrf.mxu0
    %3538 = vmatprep.mubr.bf16.mxu0 0
    %3539 = vmatmul.mubr.bf16.gmra.mxu0 %v3361
    %v3540 = vpop.f32.mrf.mxu0
    %v3541 = vadd.f32 0.0, %v3540
    %v3542 = vpop.f32.mrf.mxu0
    %v3543 = vpop.f32.mrf.mxu0
    %v3544 = vadd.f32 0.0, %v3543
    %v3545 = vpop.f32.mrf.mxu0
    %3546 = vmatprep.mubr.bf16.mxu0 0
    %3547 = vmatmul.mubr.bf16.gmra.mxu0 %v3362
    %v3548 = vpop.f32.mrf.mxu0
    %v3549 = vadd.f32 0.0, %v3548
    %v3550 = vpop.f32.mrf.mxu0
    %v3551 = vpop.f32.mrf.mxu0
    %v3552 = vadd.f32 0.0, %v3551
    %v3553 = vpop.f32.mrf.mxu0
    %3554 = vmatprep.mubr.bf16.mxu0 0
    %3555 = vmatmul.mubr.bf16.gmra.mxu0 %v3363
    %v3556 = vpop.f32.mrf.mxu0
    %v3557 = vadd.f32 0.0, %v3556
    %v3558 = vpop.f32.mrf.mxu0
    %v3559 = vpop.f32.mrf.mxu0
    %v3560 = vadd.f32 0.0, %v3559
    %v3561 = vpop.f32.mrf.mxu0
    %3562 = vmatprep.mubr.bf16.mxu0 0
    %3563 = vmatmul.mubr.bf16.gmra.mxu0 %v3364
    %v3564 = vpop.f32.mrf.mxu0
    %v3565 = vadd.f32 0.0, %v3564
    %v3566 = vpop.f32.mrf.mxu0
    %v3567 = vpop.f32.mrf.mxu0
    %v3568 = vadd.f32 0.0, %v3567
    %v3569 = vpop.f32.mrf.mxu0
    %3570 = vmatprep.mubr.bf16.mxu0 0
    %3571 = vmatmul.mubr.bf16.gmra.mxu0 %v3365
    %v3572 = vpop.f32.mrf.mxu0
    %v3573 = vadd.f32 0.0, %v3572
    %v3574 = vpop.f32.mrf.mxu0
    %v3575 = vpop.f32.mrf.mxu0
    %v3576 = vadd.f32 0.0, %v3575
    %v3577 = vpop.f32.mrf.mxu0
    %3578 = vmatprep.mubr.bf16.mxu0 0
    %3579 = vmatmul.mubr.bf16.gmra.mxu0 %v3366
    %v3580 = vpop.f32.mrf.mxu0
    %v3581 = vadd.f32 0.0, %v3580
    %v3582 = vpop.f32.mrf.mxu0
    %v3583 = vpop.f32.mrf.mxu0
    %v3584 = vadd.f32 0.0, %v3583
    %v3585 = vpop.f32.mrf.mxu0
    %3586 = vmatprep.mubr.bf16.mxu0 0
    %3587 = vmatmul.mubr.bf16.gmra.mxu0 %v3367
    %v3588 = vpop.f32.mrf.mxu0
    %v3589 = vadd.f32 0.0, %v3588
    %v3590 = vpop.f32.mrf.mxu0
    %v3591 = vpop.f32.mrf.mxu0
    %v3592 = vadd.f32 0.0, %v3591
    %v3593 = vpop.f32.mrf.mxu0
    %3594 = vmatprep.mubr.bf16.mxu0 0
    %3595 = vmatmul.mubr.bf16.gmra.mxu0 %v3368
    %v3596 = vpop.f32.mrf.mxu0
    %v3597 = vadd.f32 0.0, %v3596
    %v3598 = vpop.f32.mrf.mxu0
    %v3599 = vpop.f32.mrf.mxu0
    %v3600 = vadd.f32 0.0, %v3599
    %v3601 = vpop.f32.mrf.mxu0
    %3602 = vmatprep.mubr.bf16.mxu0 0
    %3603 = vmatmul.mubr.bf16.gmra.mxu0 %v3369
    %v3604 = vpop.f32.mrf.mxu0
    %v3605 = vadd.f32 0.0, %v3604
    %v3606 = vpop.f32.mrf.mxu0
    %v3607 = vpop.f32.mrf.mxu0
    %v3608 = vadd.f32 0.0, %v3607
    %v3609 = vpop.f32.mrf.mxu0
    %3610 = vmatprep.mubr.bf16.mxu0 0
    %3611 = vmatmul.mubr.bf16.gmra.mxu0 %v3370
    %v3612 = vpop.f32.mrf.mxu0
    %v3613 = vadd.f32 0.0, %v3612
    %v3614 = vpop.f32.mrf.mxu0
    %v3615 = vpop.f32.mrf.mxu0
    %v3616 = vadd.f32 0.0, %v3615
    %v3617 = vpop.f32.mrf.mxu0
    %3618 = vmatprep.mubr.bf16.mxu0 0
    %3619 = vmatmul.mubr.bf16.gmra.mxu0 %v3371
    %v3620 = vpop.f32.mrf.mxu0
    %v3621 = vadd.f32 0.0, %v3620
    %v3622 = vpop.f32.mrf.mxu0
    %v3623 = vpop.f32.mrf.mxu0
    %v3624 = vadd.f32 0.0, %v3623
    %v3625 = vpop.f32.mrf.mxu0
    %3626 = vmatprep.mubr.bf16.mxu0 0
    %3627 = vmatmul.mubr.bf16.gmra.mxu0 %v3372
    %v3628 = vpop.f32.mrf.mxu0
    %v3629 = vadd.f32 0.0, %v3628
    %v3630 = vpop.f32.mrf.mxu0
    %v3631 = vpop.f32.mrf.mxu0
    %v3632 = vadd.f32 0.0, %v3631
    %v3633 = vpop.f32.mrf.mxu0
    %3634 = vmatprep.mubr.bf16.mxu0 0
    %3635 = vmatmul.mubr.bf16.gmra.mxu0 %v3373
    %v3636 = vpop.f32.mrf.mxu0
    %v3637 = vadd.f32 0.0, %v3636
    %v3638 = vpop.f32.mrf.mxu0
    %v3639 = vpop.f32.mrf.mxu0
    %v3640 = vadd.f32 0.0, %v3639
    %v3641 = vpop.f32.mrf.mxu0
    %3642 = vmatprep.mubr.bf16.mxu0 0
    %3643 = vmatmul.mubr.bf16.gmra.mxu0 %v3374
    %v3644 = vpop.f32.mrf.mxu0
    %v3645 = vadd.f32 0.0, %v3644
    %v3646 = vpop.f32.mrf.mxu0
    %v3647 = vpop.f32.mrf.mxu0
    %v3648 = vadd.f32 0.0, %v3647
    %v3649 = vpop.f32.mrf.mxu0
    %3650 = vmatprep.mubr.bf16.mxu0 0
    %3651 = vmatmul.mubr.bf16.gmra.mxu0 %v3375
    %v3652 = vpop.f32.mrf.mxu0
    %v3653 = vadd.f32 0.0, %v3652
    %v3654 = vpop.f32.mrf.mxu0
    %v3655 = vpop.f32.mrf.mxu0
    %v3656 = vadd.f32 0.0, %v3655
    %v3657 = vpop.f32.mrf.mxu0
    %3658 = vmatprep.mubr.bf16.mxu0 0
    %3659 = vmatmul.mubr.bf16.gmra.mxu0 %v3376
    %v3660 = vpop.f32.mrf.mxu0
    %v3661 = vadd.f32 0.0, %v3660
    %v3662 = vpop.f32.mrf.mxu0
    %v3663 = vpop.f32.mrf.mxu0
    %v3664 = vadd.f32 0.0, %v3663
    %v3665 = vpop.f32.mrf.mxu0
    %3666 = vmatprep.mubr.bf16.mxu0 0
    %3667 = vmatmul.mubr.bf16.gmra.mxu0 %v3377
    %v3668 = vpop.f32.mrf.mxu0
    %v3669 = vadd.f32 0.0, %v3668
    %v3670 = vpop.f32.mrf.mxu0
    %v3671 = vpop.f32.mrf.mxu0
    %v3672 = vadd.f32 0.0, %v3671
    %v3673 = vpop.f32.mrf.mxu0
    %3674 = vmatprep.mubr.bf16.mxu0 0
    %3675 = vmatmul.mubr.bf16.gmra.mxu0 %v3378
    %v3676 = vpop.f32.mrf.mxu0
    %v3677 = vadd.f32 0.0, %v3676
    %v3678 = vpop.f32.mrf.mxu0
    %v3679 = vpop.f32.mrf.mxu0
    %v3680 = vadd.f32 0.0, %v3679
    %v3681 = vpop.f32.mrf.mxu0
    %3682 = vmatprep.mubr.bf16.mxu0 0
    %3683 = vmatmul.mubr.bf16.gmra.mxu0 %v3379
    %v3684 = vpop.f32.mrf.mxu0
    %v3685 = vadd.f32 0.0, %v3684
    %v3686 = vpop.f32.mrf.mxu0
    %v3687 = vpop.f32.mrf.mxu0
    %v3688 = vadd.f32 0.0, %v3687
    %v3689 = vpop.f32.mrf.mxu0
    %3690 = vmatprep.mubr.bf16.mxu0 0
    %3691 = vmatmul.mubr.bf16.gmra.mxu0 %v3380
    %v3692 = vpop.f32.mrf.mxu0
    %v3693 = vadd.f32 0.0, %v3692
    %v3694 = vpop.f32.mrf.mxu0
    %v3695 = vpop.f32.mrf.mxu0
    %v3696 = vadd.f32 0.0, %v3695
    %v3697 = vpop.f32.mrf.mxu0
    %3698 = vmatprep.mubr.bf16.mxu0 0
    %3699 = vmatmul.mubr.bf16.gmra.mxu0 %v3381
    %v3700 = vpop.f32.mrf.mxu0
    %v3701 = vadd.f32 0.0, %v3700
    %v3702 = vpop.f32.mrf.mxu0
    %v3703 = vpop.f32.mrf.mxu0
    %v3704 = vadd.f32 0.0, %v3703
    %v3705 = vpop.f32.mrf.mxu0
    %3706 = vmatprep.mubr.bf16.mxu0 0
    %3707 = vmatmul.mubr.bf16.gmra.mxu0 %v3382
    %v3708 = vpop.f32.mrf.mxu0
    %v3709 = vadd.f32 0.0, %v3708
    %v3710 = vpop.f32.mrf.mxu0
    %v3711 = vpop.f32.mrf.mxu0
    %v3712 = vadd.f32 0.0, %v3711
    %v3713 = vpop.f32.mrf.mxu0
    %3714 = vmatprep.mubr.bf16.mxu0 0
    %3715 = vmatmul.mubr.bf16.gmra.mxu0 %v3383
    %v3716 = vpop.f32.mrf.mxu0
    %v3717 = vadd.f32 0.0, %v3716
    %v3718 = vpop.f32.mrf.mxu0
    %v3719 = vpop.f32.mrf.mxu0
    %v3720 = vadd.f32 0.0, %v3719
    %v3721 = vpop.f32.mrf.mxu0
    %3722 = vmatprep.mubr.bf16.mxu0 0
    %3723 = vmatmul.mubr.bf16.gmra.mxu0 %v3384
    %v3724 = vpop.f32.mrf.mxu0
    %v3725 = vadd.f32 0.0, %v3724
    %v3726 = vpop.f32.mrf.mxu0
    %v3727 = vpop.f32.mrf.mxu0
    %v3728 = vadd.f32 0.0, %v3727
    %v3729 = vpop.f32.mrf.mxu0
    %3730 = vmatprep.mubr.bf16.mxu0 0
    %3731 = vmatmul.mubr.bf16.gmra.mxu0 %v3385
    %v3732 = vpop.f32.mrf.mxu0
    %v3733 = vadd.f32 0.0, %v3732
    %v3734 = vpop.f32.mrf.mxu0
    %v3735 = vpop.f32.mrf.mxu0
    %v3736 = vadd.f32 0.0, %v3735
    %v3737 = vpop.f32.mrf.mxu0
    %3738 = vdwg.mxu0
    %v3739 = vadd.f32 %v2969, %v3485
    %v3740 = vadd.f32 %v2970, %v3488
    %v3741 = vadd.f32 %v2971, %v3493
    %v3742 = vadd.f32 %v2972, %v3496
    %v3743 = vadd.f32 %v2973, %v3501
    %v3744 = vadd.f32 %v2974, %v3504
    %v3745 = vadd.f32 %v2975, %v3509
    %v3746 = vadd.f32 %v2976, %v3512
    %v3747 = vadd.f32 %v2977, %v3517
    %v3748 = vadd.f32 %v2978, %v3520
    %v3749 = vadd.f32 %v2979, %v3525
    %v3750 = vadd.f32 %v2980, %v3528
    %v3751 = vadd.f32 %v2981, %v3533
    %v3752 = vadd.f32 %v2982, %v3536
    %v3753 = vadd.f32 %v2983, %v3541
    %v3754 = vadd.f32 %v2984, %v3544
    %v3755 = vadd.f32 %v2985, %v3549
    %v3756 = vadd.f32 %v2986, %v3552
    %v3757 = vadd.f32 %v2987, %v3557
    %v3758 = vadd.f32 %v2988, %v3560
    %v3759 = vadd.f32 %v2989, %v3565
    %v3760 = vadd.f32 %v2990, %v3568
    %v3761 = vadd.f32 %v2991, %v3573
    %v3762 = vadd.f32 %v2992, %v3576
    %v3763 = vadd.f32 %v2993, %v3581
    %v3764 = vadd.f32 %v2994, %v3584
    %v3765 = vadd.f32 %v2995, %v3589
    %v3766 = vadd.f32 %v2996, %v3592
    %v3767 = vadd.f32 %v2997, %v3597
    %v3768 = vadd.f32 %v2998, %v3600
    %v3769 = vadd.f32 %v2999, %v3605
    %v3770 = vadd.f32 %v3000, %v3608
    %v3771 = vadd.f32 %v3001, %v3613
    %v3772 = vadd.f32 %v3002, %v3616
    %v3773 = vadd.f32 %v3003, %v3621
    %v3774 = vadd.f32 %v3004, %v3624
    %v3775 = vadd.f32 %v3005, %v3629
    %v3776 = vadd.f32 %v3006, %v3632
    %v3777 = vadd.f32 %v3007, %v3637
    %v3778 = vadd.f32 %v3008, %v3640
    %v3779 = vadd.f32 %v3009, %v3645
    %v3780 = vadd.f32 %v3010, %v3648
    %v3781 = vadd.f32 %v3011, %v3653
    %v3782 = vadd.f32 %v3012, %v3656
    %v3783 = vadd.f32 %v3013, %v3661
    %v3784 = vadd.f32 %v3014, %v3664
    %v3785 = vadd.f32 %v3015, %v3669
    %v3786 = vadd.f32 %v3016, %v3672
    %v3787 = vadd.f32 %v3017, %v3677
    %v3788 = vadd.f32 %v3018, %v3680
    %v3789 = vadd.f32 %v3019, %v3685
    %v3790 = vadd.f32 %v3020, %v3688
    %v3791 = vadd.f32 %v3021, %v3693
    %v3792 = vadd.f32 %v3022, %v3696
    %v3793 = vadd.f32 %v3023, %v3701
    %v3794 = vadd.f32 %v3024, %v3704
    %v3795 = vadd.f32 %v3025, %v3709
    %v3796 = vadd.f32 %v3026, %v3712
    %v3797 = vadd.f32 %v3027, %v3717
    %v3798 = vadd.f32 %v3028, %v3720
    %v3799 = vadd.f32 %v3029, %v3725
    %v3800 = vadd.f32 %v3030, %v3728
    %v3801 = vadd.f32 %v3031, %v3733
    %v3802 = vadd.f32 %v3032, %v3736
    %v3803 = vmax.f32 %v3739, 0.0
    %v3804 = vmax.f32 %v3740, 0.0
    %v3805 = vmax.f32 %v3741, 0.0
    %v3806 = vmax.f32 %v3742, 0.0
    %v3807 = vmax.f32 %v3743, 0.0
    %v3808 = vmax.f32 %v3744, 0.0
    %v3809 = vmax.f32 %v3745, 0.0
    %v3810 = vmax.f32 %v3746, 0.0
    %v3811 = vmax.f32 %v3747, 0.0
    %v3812 = vmax.f32 %v3748, 0.0
    %v3813 = vmax.f32 %v3749, 0.0
    %v3814 = vmax.f32 %v3750, 0.0
    %v3815 = vmax.f32 %v3751, 0.0
    %v3816 = vmax.f32 %v3752, 0.0
    %v3817 = vmax.f32 %v3753, 0.0
    %v3818 = vmax.f32 %v3754, 0.0
    %v3819 = vmax.f32 %v3755, 0.0
    %v3820 = vmax.f32 %v3756, 0.0
    %v3821 = vmax.f32 %v3757, 0.0
    %v3822 = vmax.f32 %v3758, 0.0
    %v3823 = vmax.f32 %v3759, 0.0
    %v3824 = vmax.f32 %v3760, 0.0
    %v3825 = vmax.f32 %v3761, 0.0
    %v3826 = vmax.f32 %v3762, 0.0
    %v3827 = vmax.f32 %v3763, 0.0
    %v3828 = vmax.f32 %v3764, 0.0
    %v3829 = vmax.f32 %v3765, 0.0
    %v3830 = vmax.f32 %v3766, 0.0
    %v3831 = vmax.f32 %v3767, 0.0
    %v3832 = vmax.f32 %v3768, 0.0
    %v3833 = vmax.f32 %v3769, 0.0
    %v3834 = vmax.f32 %v3770, 0.0
    %v3835 = vmax.f32 %v3771, 0.0
    %v3836 = vmax.f32 %v3772, 0.0
    %v3837 = vmax.f32 %v3773, 0.0
    %v3838 = vmax.f32 %v3774, 0.0
    %v3839 = vmax.f32 %v3775, 0.0
    %v3840 = vmax.f32 %v3776, 0.0
    %v3841 = vmax.f32 %v3777, 0.0
    %v3842 = vmax.f32 %v3778, 0.0
    %v3843 = vmax.f32 %v3779, 0.0
    %v3844 = vmax.f32 %v3780, 0.0
    %v3845 = vmax.f32 %v3781, 0.0
    %v3846 = vmax.f32 %v3782, 0.0
    %v3847 = vmax.f32 %v3783, 0.0
    %v3848 = vmax.f32 %v3784, 0.0
    %v3849 = vmax.f32 %v3785, 0.0
    %v3850 = vmax.f32 %v3786, 0.0
    %v3851 = vmax.f32 %v3787, 0.0
    %v3852 = vmax.f32 %v3788, 0.0
    %v3853 = vmax.f32 %v3789, 0.0
    %v3854 = vmax.f32 %v3790, 0.0
    %v3855 = vmax.f32 %v3791, 0.0
    %v3856 = vmax.f32 %v3792, 0.0
    %v3857 = vmax.f32 %v3793, 0.0
    %v3858 = vmax.f32 %v3794, 0.0
    %v3859 = vmax.f32 %v3795, 0.0
    %v3860 = vmax.f32 %v3796, 0.0
    %v3861 = vmax.f32 %v3797, 0.0
    %v3862 = vmax.f32 %v3798, 0.0
    %v3863 = vmax.f32 %v3799, 0.0
    %v3864 = vmax.f32 %v3800, 0.0
    %v3865 = vmax.f32 %v3801, 0.0
    %v3866 = vmax.f32 %v3802, 0.0
    %v3867 = vpack.c.bf16 %v3804, %v3803
    %v3868 = vpack.c.bf16 %v3806, %v3805
    %v3869 = vpack.c.bf16 %v3808, %v3807
    %v3870 = vpack.c.bf16 %v3810, %v3809
    %v3871 = vpack.c.bf16 %v3812, %v3811
    %v3872 = vpack.c.bf16 %v3814, %v3813
    %v3873 = vpack.c.bf16 %v3816, %v3815
    %v3874 = vpack.c.bf16 %v3818, %v3817
    %v3875 = vpack.c.bf16 %v3820, %v3819
    %v3876 = vpack.c.bf16 %v3822, %v3821
    %v3877 = vpack.c.bf16 %v3824, %v3823
    %v3878 = vpack.c.bf16 %v3826, %v3825
    %v3879 = vpack.c.bf16 %v3828, %v3827
    %v3880 = vpack.c.bf16 %v3830, %v3829
    %v3881 = vpack.c.bf16 %v3832, %v3831
    %v3882 = vpack.c.bf16 %v3834, %v3833
    %v3883 = vpack.c.bf16 %v3836, %v3835
    %v3884 = vpack.c.bf16 %v3838, %v3837
    %v3885 = vpack.c.bf16 %v3840, %v3839
    %v3886 = vpack.c.bf16 %v3842, %v3841
    %v3887 = vpack.c.bf16 %v3844, %v3843
    %v3888 = vpack.c.bf16 %v3846, %v3845
    %v3889 = vpack.c.bf16 %v3848, %v3847
    %v3890 = vpack.c.bf16 %v3850, %v3849
    %v3891 = vpack.c.bf16 %v3852, %v3851
    %v3892 = vpack.c.bf16 %v3854, %v3853
    %v3893 = vpack.c.bf16 %v3856, %v3855
    %v3894 = vpack.c.bf16 %v3858, %v3857
    %v3895 = vpack.c.bf16 %v3860, %v3859
    %v3896 = vpack.c.bf16 %v3862, %v3861
    %v3897 = vpack.c.bf16 %v3864, %v3863
    %v3898 = vpack.c.bf16 %v3866, %v3865
    %v3899 = vld [vmem:[#allocation8 + $0x40] sm:$0xf]
    %v3900 = vld [vmem:[#allocation8 + $0x44] sm:$0xf]
    %v3901 = vld [vmem:[#allocation8 + $0x48] sm:$0xf]
    %v3902 = vld [vmem:[#allocation8 + $0x4c] sm:$0xf]
    %v3903 = vld [vmem:[#allocation8 + $0x50] sm:$0xf]
    %v3904 = vld [vmem:[#allocation8 + $0x54] sm:$0xf]
    %v3905 = vld [vmem:[#allocation8 + $0x58] sm:$0xf]
    %v3906 = vld [vmem:[#allocation8 + $0x5c] sm:$0xf]
    %v3907 = vld [vmem:[#allocation8 + $0x60] sm:$0xf]
    %v3908 = vld [vmem:[#allocation8 + $0x64] sm:$0xf]
    %v3909 = vld [vmem:[#allocation8 + $0x68] sm:$0xf]
    %v3910 = vld [vmem:[#allocation8 + $0x6c] sm:$0xf]
    %v3911 = vld [vmem:[#allocation8 + $0x70] sm:$0xf]
    %v3912 = vld [vmem:[#allocation8 + $0x74] sm:$0xf]
    %v3913 = vld [vmem:[#allocation8 + $0x78] sm:$0xf]
    %v3914 = vld [vmem:[#allocation8 + $0x7c] sm:$0xf]
    %v3915 = vld [vmem:[%s6] sm:$0x1]
    %v3917 = vlaneseq
    %v3918 = vshrl.u32 %v3917, 7
    %v3919 = vsub.s32 0, %v3918
    %v3920 = vrot.slane %v3915, %v3919
    %v3938 = vunpack.c.l.b16 %v3899
    %v3939 = vunpack.c.l.b16 %v3900
    %v3940 = vunpack.c.l.b16 %v3901
    %v3941 = vunpack.c.l.b16 %v3902
    %v3942 = vunpack.c.l.b16 %v3903
    %v3943 = vunpack.c.l.b16 %v3904
    %v3944 = vunpack.c.l.b16 %v3905
    %v3945 = vunpack.c.l.b16 %v3906
    %v3946 = vunpack.c.l.b16 %v3907
    %v3947 = vunpack.c.l.b16 %v3908
    %v3948 = vunpack.c.l.b16 %v3909
    %v3949 = vunpack.c.l.b16 %v3910
    %v3950 = vunpack.c.l.b16 %v3911
    %v3951 = vunpack.c.l.b16 %v3912
    %v3952 = vunpack.c.l.b16 %v3913
    %v3953 = vunpack.c.l.b16 %v3914
    %v3954 = vpack.c.b16 %v3939, %v3938
    %v3955 = vpack.c.b16 %v3941, %v3940
    %v3956 = vpack.c.b16 %v3943, %v3942
    %v3957 = vpack.c.b16 %v3945, %v3944
    %v3958 = vpack.c.b16 %v3947, %v3946
    %v3959 = vpack.c.b16 %v3949, %v3948
    %v3960 = vpack.c.b16 %v3951, %v3950
    %v3961 = vpack.c.b16 %v3953, %v3952
    %3970 = vmatprep.subr.bf16.mxu0 0
    %3971 = vmatpush1.bf16.msra.mxu0 %v3961
    %3972 = vmatprep.subr.bf16.mxu0 0
    %3973 = vmatpush1.bf16.msra.mxu0 %v3960
    %3974 = vmatprep.subr.bf16.mxu0 0
    %3975 = vmatpush1.bf16.msra.mxu0 %v3959
    %3976 = vmatprep.subr.bf16.mxu0 0
    %3977 = vmatpush1.bf16.msra.mxu0 %v3958
    %3978 = vmatprep.subr.bf16.mxu0 0
    %3979 = vmatpush1.bf16.msra.mxu0 %v3957
    %3980 = vmatprep.subr.bf16.mxu0 0
    %3981 = vmatpush1.bf16.msra.mxu0 %v3956
    %3982 = vmatprep.subr.bf16.mxu0 0
    %3983 = vmatpush1.bf16.msra.mxu0 %v3955
    %3984 = vmatprep.subr.bf16.mxu0 0
    %3985 = vmatpush1.bf16.msra.mxu0 %v3954
    %3986 = vmatprep.subr.bf16.mxu0 0
    %3987 = vmatpush2.bf16.msra.mxu0 0
    %3988 = vmatprep.subr.bf16.mxu0 0
    %3989 = vmatpush2.bf16.msra.mxu0 0
    %3990 = vmatprep.subr.bf16.mxu0 0
    %3991 = vmatpush2.bf16.msra.mxu0 0
    %3992 = vmatprep.subr.bf16.mxu0 0
    %3993 = vmatpush2.bf16.msra.mxu0 0
    %3994 = vmatprep.subr.bf16.mxu0 0
    %3995 = vmatpush2.bf16.msra.mxu0 0
    %3996 = vmatprep.subr.bf16.mxu0 0
    %3997 = vmatpush2.bf16.msra.mxu0 0
    %3998 = vmatprep.subr.bf16.mxu0 0
    %3999 = vmatpush2.bf16.msra.mxu0 0
    %4000 = vmatprep.subr.bf16.mxu0 0
    %4001 = vmatpush2.bf16.msra.mxu0 0
    %4002 = vmatprep.mubr.bf16.mxu0 0
    %4003 = vmatmul.mubr.bf16.gmra.mxu0 %v3867
    %v4004 = vpop.f32.mrf.mxu0
    %v4005 = vadd.f32 %v3920, %v4004
    %v4006 = vpop.f32.mrf.mxu0
    %v4007 = vpop.f32.mrf.mxu0
    %v4008 = vadd.f32 %v3920, %v4007
    %v4009 = vpop.f32.mrf.mxu0
    %4010 = vmatprep.mubr.bf16.mxu0 0
    %4011 = vmatmul.mubr.bf16.gmra.mxu0 %v3868
    %v4012 = vpop.f32.mrf.mxu0
    %v4013 = vadd.f32 %v3920, %v4012
    %v4014 = vpop.f32.mrf.mxu0
    %v4015 = vpop.f32.mrf.mxu0
    %v4016 = vadd.f32 %v3920, %v4015
    %v4017 = vpop.f32.mrf.mxu0
    %4018 = vmatprep.mubr.bf16.mxu0 0
    %4019 = vmatmul.mubr.bf16.gmra.mxu0 %v3869
    %v4020 = vpop.f32.mrf.mxu0
    %v4021 = vadd.f32 %v3920, %v4020
    %v4022 = vpop.f32.mrf.mxu0
    %v4023 = vpop.f32.mrf.mxu0
    %v4024 = vadd.f32 %v3920, %v4023
    %v4025 = vpop.f32.mrf.mxu0
    %4026 = vmatprep.mubr.bf16.mxu0 0
    %4027 = vmatmul.mubr.bf16.gmra.mxu0 %v3870
    %v4028 = vpop.f32.mrf.mxu0
    %v4029 = vadd.f32 %v3920, %v4028
    %v4030 = vpop.f32.mrf.mxu0
    %v4031 = vpop.f32.mrf.mxu0
    %v4032 = vadd.f32 %v3920, %v4031
    %v4033 = vpop.f32.mrf.mxu0
    %4034 = vmatprep.mubr.bf16.mxu0 0
    %4035 = vmatmul.mubr.bf16.gmra.mxu0 %v3871
    %v4036 = vpop.f32.mrf.mxu0
    %v4037 = vadd.f32 %v3920, %v4036
    %v4038 = vpop.f32.mrf.mxu0
    %v4039 = vpop.f32.mrf.mxu0
    %v4040 = vadd.f32 %v3920, %v4039
    %v4041 = vpop.f32.mrf.mxu0
    %4042 = vmatprep.mubr.bf16.mxu0 0
    %4043 = vmatmul.mubr.bf16.gmra.mxu0 %v3872
    %v4044 = vpop.f32.mrf.mxu0
    %v4045 = vadd.f32 %v3920, %v4044
    %v4046 = vpop.f32.mrf.mxu0
    %v4047 = vpop.f32.mrf.mxu0
    %v4048 = vadd.f32 %v3920, %v4047
    %v4049 = vpop.f32.mrf.mxu0
    %4050 = vmatprep.mubr.bf16.mxu0 0
    %4051 = vmatmul.mubr.bf16.gmra.mxu0 %v3873
    %v4052 = vpop.f32.mrf.mxu0
    %v4053 = vadd.f32 %v3920, %v4052
    %v4054 = vpop.f32.mrf.mxu0
    %v4055 = vpop.f32.mrf.mxu0
    %v4056 = vadd.f32 %v3920, %v4055
    %v4057 = vpop.f32.mrf.mxu0
    %4058 = vmatprep.mubr.bf16.mxu0 0
    %4059 = vmatmul.mubr.bf16.gmra.mxu0 %v3874
    %v4060 = vpop.f32.mrf.mxu0
    %v4061 = vadd.f32 %v3920, %v4060
    %v4062 = vpop.f32.mrf.mxu0
    %v4063 = vpop.f32.mrf.mxu0
    %v4064 = vadd.f32 %v3920, %v4063
    %v4065 = vpop.f32.mrf.mxu0
    %4066 = vmatprep.mubr.bf16.mxu0 0
    %4067 = vmatmul.mubr.bf16.gmra.mxu0 %v3875
    %v4068 = vpop.f32.mrf.mxu0
    %v4069 = vadd.f32 %v3920, %v4068
    %v4070 = vpop.f32.mrf.mxu0
    %v4071 = vpop.f32.mrf.mxu0
    %v4072 = vadd.f32 %v3920, %v4071
    %v4073 = vpop.f32.mrf.mxu0
    %4074 = vmatprep.mubr.bf16.mxu0 0
    %4075 = vmatmul.mubr.bf16.gmra.mxu0 %v3876
    %v4076 = vpop.f32.mrf.mxu0
    %v4077 = vadd.f32 %v3920, %v4076
    %v4078 = vpop.f32.mrf.mxu0
    %v4079 = vpop.f32.mrf.mxu0
    %v4080 = vadd.f32 %v3920, %v4079
    %v4081 = vpop.f32.mrf.mxu0
    %4082 = vmatprep.mubr.bf16.mxu0 0
    %4083 = vmatmul.mubr.bf16.gmra.mxu0 %v3877
    %v4084 = vpop.f32.mrf.mxu0
    %v4085 = vadd.f32 %v3920, %v4084
    %v4086 = vpop.f32.mrf.mxu0
    %v4087 = vpop.f32.mrf.mxu0
    %v4088 = vadd.f32 %v3920, %v4087
    %v4089 = vpop.f32.mrf.mxu0
    %4090 = vmatprep.mubr.bf16.mxu0 0
    %4091 = vmatmul.mubr.bf16.gmra.mxu0 %v3878
    %v4092 = vpop.f32.mrf.mxu0
    %v4093 = vadd.f32 %v3920, %v4092
    %v4094 = vpop.f32.mrf.mxu0
    %v4095 = vpop.f32.mrf.mxu0
    %v4096 = vadd.f32 %v3920, %v4095
    %v4097 = vpop.f32.mrf.mxu0
    %4098 = vmatprep.mubr.bf16.mxu0 0
    %4099 = vmatmul.mubr.bf16.gmra.mxu0 %v3879
    %v4100 = vpop.f32.mrf.mxu0
    %v4101 = vadd.f32 %v3920, %v4100
    %v4102 = vpop.f32.mrf.mxu0
    %v4103 = vpop.f32.mrf.mxu0
    %v4104 = vadd.f32 %v3920, %v4103
    %v4105 = vpop.f32.mrf.mxu0
    %4106 = vmatprep.mubr.bf16.mxu0 0
    %4107 = vmatmul.mubr.bf16.gmra.mxu0 %v3880
    %v4108 = vpop.f32.mrf.mxu0
    %v4109 = vadd.f32 %v3920, %v4108
    %v4110 = vpop.f32.mrf.mxu0
    %v4111 = vpop.f32.mrf.mxu0
    %v4112 = vadd.f32 %v3920, %v4111
    %v4113 = vpop.f32.mrf.mxu0
    %4114 = vmatprep.mubr.bf16.mxu0 0
    %4115 = vmatmul.mubr.bf16.gmra.mxu0 %v3881
    %v4116 = vpop.f32.mrf.mxu0
    %v4117 = vadd.f32 %v3920, %v4116
    %v4118 = vpop.f32.mrf.mxu0
    %v4119 = vpop.f32.mrf.mxu0
    %v4120 = vadd.f32 %v3920, %v4119
    %v4121 = vpop.f32.mrf.mxu0
    %4122 = vmatprep.mubr.bf16.mxu0 0
    %4123 = vmatmul.mubr.bf16.gmra.mxu0 %v3882
    %v4124 = vpop.f32.mrf.mxu0
    %v4125 = vadd.f32 %v3920, %v4124
    %v4126 = vpop.f32.mrf.mxu0
    %v4127 = vpop.f32.mrf.mxu0
    %v4128 = vadd.f32 %v3920, %v4127
    %v4129 = vpop.f32.mrf.mxu0
    %4130 = vmatprep.mubr.bf16.mxu0 0
    %4131 = vmatmul.mubr.bf16.gmra.mxu0 %v3883
    %v4132 = vpop.f32.mrf.mxu0
    %v4133 = vadd.f32 %v3920, %v4132
    %v4134 = vpop.f32.mrf.mxu0
    %v4135 = vpop.f32.mrf.mxu0
    %v4136 = vadd.f32 %v3920, %v4135
    %v4137 = vpop.f32.mrf.mxu0
    %4138 = vmatprep.mubr.bf16.mxu0 0
    %4139 = vmatmul.mubr.bf16.gmra.mxu0 %v3884
    %v4140 = vpop.f32.mrf.mxu0
    %v4141 = vadd.f32 %v3920, %v4140
    %v4142 = vpop.f32.mrf.mxu0
    %v4143 = vpop.f32.mrf.mxu0
    %v4144 = vadd.f32 %v3920, %v4143
    %v4145 = vpop.f32.mrf.mxu0
    %4146 = vmatprep.mubr.bf16.mxu0 0
    %4147 = vmatmul.mubr.bf16.gmra.mxu0 %v3885
    %v4148 = vpop.f32.mrf.mxu0
    %v4149 = vadd.f32 %v3920, %v4148
    %v4150 = vpop.f32.mrf.mxu0
    %v4151 = vpop.f32.mrf.mxu0
    %v4152 = vadd.f32 %v3920, %v4151
    %v4153 = vpop.f32.mrf.mxu0
    %4154 = vmatprep.mubr.bf16.mxu0 0
    %4155 = vmatmul.mubr.bf16.gmra.mxu0 %v3886
    %v4156 = vpop.f32.mrf.mxu0
    %v4157 = vadd.f32 %v3920, %v4156
    %v4158 = vpop.f32.mrf.mxu0
    %v4159 = vpop.f32.mrf.mxu0
    %v4160 = vadd.f32 %v3920, %v4159
    %v4161 = vpop.f32.mrf.mxu0
    %4162 = vmatprep.mubr.bf16.mxu0 0
    %4163 = vmatmul.mubr.bf16.gmra.mxu0 %v3887
    %v4164 = vpop.f32.mrf.mxu0
    %v4165 = vadd.f32 %v3920, %v4164
    %v4166 = vpop.f32.mrf.mxu0
    %v4167 = vpop.f32.mrf.mxu0
    %v4168 = vadd.f32 %v3920, %v4167
    %v4169 = vpop.f32.mrf.mxu0
    %4170 = vmatprep.mubr.bf16.mxu0 0
    %4171 = vmatmul.mubr.bf16.gmra.mxu0 %v3888
    %v4172 = vpop.f32.mrf.mxu0
    %v4173 = vadd.f32 %v3920, %v4172
    %v4174 = vpop.f32.mrf.mxu0
    %v4175 = vpop.f32.mrf.mxu0
    %v4176 = vadd.f32 %v3920, %v4175
    %v4177 = vpop.f32.mrf.mxu0
    %4178 = vmatprep.mubr.bf16.mxu0 0
    %4179 = vmatmul.mubr.bf16.gmra.mxu0 %v3889
    %v4180 = vpop.f32.mrf.mxu0
    %v4181 = vadd.f32 %v3920, %v4180
    %v4182 = vpop.f32.mrf.mxu0
    %v4183 = vpop.f32.mrf.mxu0
    %v4184 = vadd.f32 %v3920, %v4183
    %v4185 = vpop.f32.mrf.mxu0
    %4186 = vmatprep.mubr.bf16.mxu0 0
    %4187 = vmatmul.mubr.bf16.gmra.mxu0 %v3890
    %v4188 = vpop.f32.mrf.mxu0
    %v4189 = vadd.f32 %v3920, %v4188
    %v4190 = vpop.f32.mrf.mxu0
    %v4191 = vpop.f32.mrf.mxu0
    %v4192 = vadd.f32 %v3920, %v4191
    %v4193 = vpop.f32.mrf.mxu0
    %4194 = vmatprep.mubr.bf16.mxu0 0
    %4195 = vmatmul.mubr.bf16.gmra.mxu0 %v3891
    %v4196 = vpop.f32.mrf.mxu0
    %v4197 = vadd.f32 %v3920, %v4196
    %v4198 = vpop.f32.mrf.mxu0
    %v4199 = vpop.f32.mrf.mxu0
    %v4200 = vadd.f32 %v3920, %v4199
    %v4201 = vpop.f32.mrf.mxu0
    %4202 = vmatprep.mubr.bf16.mxu0 0
    %4203 = vmatmul.mubr.bf16.gmra.mxu0 %v3892
    %v4204 = vpop.f32.mrf.mxu0
    %v4205 = vadd.f32 %v3920, %v4204
    %v4206 = vpop.f32.mrf.mxu0
    %v4207 = vpop.f32.mrf.mxu0
    %v4208 = vadd.f32 %v3920, %v4207
    %v4209 = vpop.f32.mrf.mxu0
    %4210 = vmatprep.mubr.bf16.mxu0 0
    %4211 = vmatmul.mubr.bf16.gmra.mxu0 %v3893
    %v4212 = vpop.f32.mrf.mxu0
    %v4213 = vadd.f32 %v3920, %v4212
    %v4214 = vpop.f32.mrf.mxu0
    %v4215 = vpop.f32.mrf.mxu0
    %v4216 = vadd.f32 %v3920, %v4215
    %v4217 = vpop.f32.mrf.mxu0
    %4218 = vmatprep.mubr.bf16.mxu0 0
    %4219 = vmatmul.mubr.bf16.gmra.mxu0 %v3894
    %v4220 = vpop.f32.mrf.mxu0
    %v4221 = vadd.f32 %v3920, %v4220
    %v4222 = vpop.f32.mrf.mxu0
    %v4223 = vpop.f32.mrf.mxu0
    %v4224 = vadd.f32 %v3920, %v4223
    %v4225 = vpop.f32.mrf.mxu0
    %4226 = vmatprep.mubr.bf16.mxu0 0
    %4227 = vmatmul.mubr.bf16.gmra.mxu0 %v3895
    %v4228 = vpop.f32.mrf.mxu0
    %v4229 = vadd.f32 %v3920, %v4228
    %v4230 = vpop.f32.mrf.mxu0
    %v4231 = vpop.f32.mrf.mxu0
    %v4232 = vadd.f32 %v3920, %v4231
    %v4233 = vpop.f32.mrf.mxu0
    %4234 = vmatprep.mubr.bf16.mxu0 0
    %4235 = vmatmul.mubr.bf16.gmra.mxu0 %v3896
    %v4236 = vpop.f32.mrf.mxu0
    %v4237 = vadd.f32 %v3920, %v4236
    %v4238 = vpop.f32.mrf.mxu0
    %v4239 = vpop.f32.mrf.mxu0
    %v4240 = vadd.f32 %v3920, %v4239
    %v4241 = vpop.f32.mrf.mxu0
    %4242 = vmatprep.mubr.bf16.mxu0 0
    %4243 = vmatmul.mubr.bf16.gmra.mxu0 %v3897
    %v4244 = vpop.f32.mrf.mxu0
    %v4245 = vadd.f32 %v3920, %v4244
    %v4246 = vpop.f32.mrf.mxu0
    %v4247 = vpop.f32.mrf.mxu0
    %v4248 = vadd.f32 %v3920, %v4247
    %v4249 = vpop.f32.mrf.mxu0
    %4250 = vmatprep.mubr.bf16.mxu0 0
    %4251 = vmatmul.mubr.bf16.gmra.mxu0 %v3898
    %v4252 = vpop.f32.mrf.mxu0
    %v4253 = vadd.f32 %v3920, %v4252
    %v4254 = vpop.f32.mrf.mxu0
    %v4255 = vpop.f32.mrf.mxu0
    %v4256 = vadd.f32 %v3920, %v4255
    %v4257 = vpop.f32.mrf.mxu0
    %4258 = vdwg.mxu0
    %v4259 = vrot.slane %v3803, 7
    %v4260 = vrot.slane %v3804, 7
    %v4261 = vrot.slane %v3805, 7
    %v4262 = vrot.slane %v3806, 7
    %v4263 = vrot.slane %v3807, 7
    %v4264 = vrot.slane %v3808, 7
    %v4265 = vrot.slane %v3809, 7
    %v4266 = vrot.slane %v3810, 7
    %v4267 = vrot.slane %v3811, 7
    %v4268 = vrot.slane %v3812, 7
    %v4269 = vrot.slane %v3813, 7
    %v4270 = vrot.slane %v3814, 7
    %v4271 = vrot.slane %v3815, 7
    %v4272 = vrot.slane %v3816, 7
    %v4273 = vrot.slane %v3817, 7
    %v4274 = vrot.slane %v3818, 7
    %v4275 = vrot.slane %v3819, 7
    %v4276 = vrot.slane %v3820, 7
    %v4277 = vrot.slane %v3821, 7
    %v4278 = vrot.slane %v3822, 7
    %v4279 = vrot.slane %v3823, 7
    %v4280 = vrot.slane %v3824, 7
    %v4281 = vrot.slane %v3825, 7
    %v4282 = vrot.slane %v3826, 7
    %v4283 = vrot.slane %v3827, 7
    %v4284 = vrot.slane %v3828, 7
    %v4285 = vrot.slane %v3829, 7
    %v4286 = vrot.slane %v3830, 7
    %v4287 = vrot.slane %v3831, 7
    %v4288 = vrot.slane %v3832, 7
    %v4289 = vrot.slane %v3833, 7
    %v4290 = vrot.slane %v3834, 7
    %v4291 = vrot.slane %v3835, 7
    %v4292 = vrot.slane %v3836, 7
    %v4293 = vrot.slane %v3837, 7
    %v4294 = vrot.slane %v3838, 7
    %v4295 = vrot.slane %v3839, 7
    %v4296 = vrot.slane %v3840, 7
    %v4297 = vrot.slane %v3841, 7
    %v4298 = vrot.slane %v3842, 7
    %v4299 = vrot.slane %v3843, 7
    %v4300 = vrot.slane %v3844, 7
    %v4301 = vrot.slane %v3845, 7
    %v4302 = vrot.slane %v3846, 7
    %v4303 = vrot.slane %v3847, 7
    %v4304 = vrot.slane %v3848, 7
    %v4305 = vrot.slane %v3849, 7
    %v4306 = vrot.slane %v3850, 7
    %v4307 = vrot.slane %v3851, 7
    %v4308 = vrot.slane %v3852, 7
    %v4309 = vrot.slane %v3853, 7
    %v4310 = vrot.slane %v3854, 7
    %v4311 = vrot.slane %v3855, 7
    %v4312 = vrot.slane %v3856, 7
    %v4313 = vrot.slane %v3857, 7
    %v4314 = vrot.slane %v3858, 7
    %v4315 = vrot.slane %v3859, 7
    %v4316 = vrot.slane %v3860, 7
    %v4317 = vrot.slane %v3861, 7
    %v4318 = vrot.slane %v3862, 7
    %v4319 = vrot.slane %v3863, 7
    %v4320 = vrot.slane %v3864, 7
    %v4321 = vrot.slane %v3865, 7
    %v4322 = vrot.slane %v3866, 7
    %v4323 = vsel %vm2327, %v4321, %v4322
    %v4324 = vsel %vm2327, %v4320, %v4321
    %v4325 = vsel %vm2327, %v4319, %v4320
    %v4326 = vsel %vm2327, %v4318, %v4319
    %v4327 = vsel %vm2327, %v4317, %v4318
    %v4328 = vsel %vm2327, %v4316, %v4317
    %v4329 = vsel %vm2327, %v4315, %v4316
    %v4330 = vsel %vm2327, %v4314, %v4315
    %v4331 = vsel %vm2327, %v4313, %v4314
    %v4332 = vsel %vm2327, %v4312, %v4313
    %v4333 = vsel %vm2327, %v4311, %v4312
    %v4334 = vsel %vm2327, %v4310, %v4311
    %v4335 = vsel %vm2327, %v4309, %v4310
    %v4336 = vsel %vm2327, %v4308, %v4309
    %v4337 = vsel %vm2327, %v4307, %v4308
    %v4338 = vsel %vm2327, %v4306, %v4307
    %v4339 = vsel %vm2327, %v4305, %v4306
    %v4340 = vsel %vm2327, %v4304, %v4305
    %v4341 = vsel %vm2327, %v4303, %v4304
    %v4342 = vsel %vm2327, %v4302, %v4303
    %v4343 = vsel %vm2327, %v4301, %v4302
    %v4344 = vsel %vm2327, %v4300, %v4301
    %v4345 = vsel %vm2327, %v4299, %v4300
    %v4346 = vsel %vm2327, %v4298, %v4299
    %v4347 = vsel %vm2327, %v4297, %v4298
    %v4348 = vsel %vm2327, %v4296, %v4297
    %v4349 = vsel %vm2327, %v4295, %v4296
    %v4350 = vsel %vm2327, %v4294, %v4295
    %v4351 = vsel %vm2327, %v4293, %v4294
    %v4352 = vsel %vm2327, %v4292, %v4293
    %v4353 = vsel %vm2327, %v4291, %v4292
    %v4354 = vsel %vm2327, %v4290, %v4291
    %v4355 = vsel %vm2327, %v4289, %v4290
    %v4356 = vsel %vm2327, %v4288, %v4289
    %v4357 = vsel %vm2327, %v4287, %v4288
    %v4358 = vsel %vm2327, %v4286, %v4287
    %v4359 = vsel %vm2327, %v4285, %v4286
    %v4360 = vsel %vm2327, %v4284, %v4285
    %v4361 = vsel %vm2327, %v4283, %v4284
    %v4362 = vsel %vm2327, %v4282, %v4283
    %v4363 = vsel %vm2327, %v4281, %v4282
    %v4364 = vsel %vm2327, %v4280, %v4281
    %v4365 = vsel %vm2327, %v4279, %v4280
    %v4366 = vsel %vm2327, %v4278, %v4279
    %v4367 = vsel %vm2327, %v4277, %v4278
    %v4368 = vsel %vm2327, %v4276, %v4277
    %v4369 = vsel %vm2327, %v4275, %v4276
    %v4370 = vsel %vm2327, %v4274, %v4275
    %v4371 = vsel %vm2327, %v4273, %v4274
    %v4372 = vsel %vm2327, %v4272, %v4273
    %v4373 = vsel %vm2327, %v4271, %v4272
    %v4374 = vsel %vm2327, %v4270, %v4271
    %v4375 = vsel %vm2327, %v4269, %v4270
    %v4376 = vsel %vm2327, %v4268, %v4269
    %v4377 = vsel %vm2327, %v4267, %v4268
    %v4378 = vsel %vm2327, %v4266, %v4267
    %v4379 = vsel %vm2327, %v4265, %v4266
    %v4380 = vsel %vm2327, %v4264, %v4265
    %v4381 = vsel %vm2327, %v4263, %v4264
    %v4382 = vsel %vm2327, %v4262, %v4263
    %v4383 = vsel %vm2327, %v4261, %v4262
    %v4384 = vsel %vm2327, %v4260, %v4261
    %v4385 = vsel %vm2327, %v4259, %v4260
    %v4386 = vsel %vm2327, %v4322, %v4259
    %v4387 = vsel %vm2456, 0.0, %v4386
    %v4388 = vsel %vm2457, 0.0, %v4385
    %v4389 = vsel %vm2458, 0.0, %v4384
    %v4390 = vsel %vm2459, 0.0, %v4383
    %v4391 = vsel %vm2460, 0.0, %v4382
    %v4392 = vsel %vm2461, 0.0, %v4381
    %v4393 = vsel %vm2462, 0.0, %v4380
    %v4394 = vsel %vm2463, 0.0, %v4379
    %v4395 = vsel %vm2464, 0.0, %v4378
    %v4396 = vsel %vm2465, 0.0, %v4377
    %v4397 = vsel %vm2466, 0.0, %v4376
    %v4398 = vsel %vm2467, 0.0, %v4375
    %v4399 = vsel %vm2468, 0.0, %v4374
    %v4400 = vsel %vm2469, 0.0, %v4373
    %v4401 = vsel %vm2470, 0.0, %v4372
    %v4402 = vsel %vm2471, 0.0, %v4371
    %v4403 = vsel %vm2472, 0.0, %v4370
    %v4404 = vsel %vm2473, 0.0, %v4369
    %v4405 = vsel %vm2474, 0.0, %v4368
    %v4406 = vsel %vm2475, 0.0, %v4367
    %v4407 = vsel %vm2476, 0.0, %v4366
    %v4408 = vsel %vm2477, 0.0, %v4365
    %v4409 = vsel %vm2478, 0.0, %v4364
    %v4410 = vsel %vm2479, 0.0, %v4363
    %v4411 = vsel %vm2480, 0.0, %v4362
    %v4412 = vsel %vm2481, 0.0, %v4361
    %v4413 = vsel %vm2482, 0.0, %v4360
    %v4414 = vsel %vm2483, 0.0, %v4359
    %v4415 = vsel %vm2484, 0.0, %v4358
    %v4416 = vsel %vm2485, 0.0, %v4357
    %v4417 = vsel %vm2486, 0.0, %v4356
    %v4418 = vsel %vm2487, 0.0, %v4355
    %v4419 = vsel %vm2488, 0.0, %v4354
    %v4420 = vsel %vm2489, 0.0, %v4353
    %v4421 = vsel %vm2490, 0.0, %v4352
    %v4422 = vsel %vm2491, 0.0, %v4351
    %v4423 = vsel %vm2492, 0.0, %v4350
    %v4424 = vsel %vm2493, 0.0, %v4349
    %v4425 = vsel %vm2494, 0.0, %v4348
    %v4426 = vsel %vm2495, 0.0, %v4347
    %v4427 = vsel %vm2496, 0.0, %v4346
    %v4428 = vsel %vm2497, 0.0, %v4345
    %v4429 = vsel %vm2498, 0.0, %v4344
    %v4430 = vsel %vm2499, 0.0, %v4343
    %v4431 = vsel %vm2500, 0.0, %v4342
    %v4432 = vsel %vm2501, 0.0, %v4341
    %v4433 = vsel %vm2502, 0.0, %v4340
    %v4434 = vsel %vm2503, 0.0, %v4339
    %v4435 = vsel %vm2504, 0.0, %v4338
    %v4436 = vsel %vm2505, 0.0, %v4337
    %v4437 = vsel %vm2506, 0.0, %v4336
    %v4438 = vsel %vm2507, 0.0, %v4335
    %v4439 = vsel %vm2508, 0.0, %v4334
    %v4440 = vsel %vm2509, 0.0, %v4333
    %v4441 = vsel %vm2510, 0.0, %v4332
    %v4442 = vsel %vm2511, 0.0, %v4331
    %v4443 = vsel %vm2512, 0.0, %v4330
    %v4444 = vsel %vm2513, 0.0, %v4329
    %v4445 = vsel %vm2514, 0.0, %v4328
    %v4446 = vsel %vm2515, 0.0, %v4327
    %v4447 = vsel %vm2516, 0.0, %v4326
    %v4448 = vsel %vm2517, 0.0, %v4325
    %v4449 = vsel %vm2518, 0.0, %v4324
    %v4450 = vsel %vm2519, 0.0, %v4323
    %v4451 = vpack.c.bf16 %v4388, %v4387
    %v4452 = vpack.c.bf16 %v4390, %v4389
    %v4453 = vpack.c.bf16 %v4392, %v4391
    %v4454 = vpack.c.bf16 %v4394, %v4393
    %v4455 = vpack.c.bf16 %v4396, %v4395
    %v4456 = vpack.c.bf16 %v4398, %v4397
    %v4457 = vpack.c.bf16 %v4400, %v4399
    %v4458 = vpack.c.bf16 %v4402, %v4401
    %v4459 = vpack.c.bf16 %v4404, %v4403
    %v4460 = vpack.c.bf16 %v4406, %v4405
    %v4461 = vpack.c.bf16 %v4408, %v4407
    %v4462 = vpack.c.bf16 %v4410, %v4409
    %v4463 = vpack.c.bf16 %v4412, %v4411
    %v4464 = vpack.c.bf16 %v4414, %v4413
    %v4465 = vpack.c.bf16 %v4416, %v4415
    %v4466 = vpack.c.bf16 %v4418, %v4417
    %v4467 = vpack.c.bf16 %v4420, %v4419
    %v4468 = vpack.c.bf16 %v4422, %v4421
    %v4469 = vpack.c.bf16 %v4424, %v4423
    %v4470 = vpack.c.bf16 %v4426, %v4425
    %v4471 = vpack.c.bf16 %v4428, %v4427
    %v4472 = vpack.c.bf16 %v4430, %v4429
    %v4473 = vpack.c.bf16 %v4432, %v4431
    %v4474 = vpack.c.bf16 %v4434, %v4433
    %v4475 = vpack.c.bf16 %v4436, %v4435
    %v4476 = vpack.c.bf16 %v4438, %v4437
    %v4477 = vpack.c.bf16 %v4440, %v4439
    %v4478 = vpack.c.bf16 %v4442, %v4441
    %v4479 = vpack.c.bf16 %v4444, %v4443
    %v4480 = vpack.c.bf16 %v4446, %v4445
    %v4481 = vpack.c.bf16 %v4448, %v4447
    %v4482 = vpack.c.bf16 %v4450, %v4449
    %v4483 = vld [vmem:[#allocation8] sm:$0xf]
    %v4484 = vld [vmem:[#allocation8 + $0x4] sm:$0xf]
    %v4485 = vld [vmem:[#allocation8 + $0x8] sm:$0xf]
    %v4486 = vld [vmem:[#allocation8 + $0xc] sm:$0xf]
    %v4487 = vld [vmem:[#allocation8 + $0x10] sm:$0xf]
    %v4488 = vld [vmem:[#allocation8 + $0x14] sm:$0xf]
    %v4489 = vld [vmem:[#allocation8 + $0x18] sm:$0xf]
    %v4490 = vld [vmem:[#allocation8 + $0x1c] sm:$0xf]
    %v4491 = vld [vmem:[#allocation8 + $0x20] sm:$0xf]
    %v4492 = vld [vmem:[#allocation8 + $0x24] sm:$0xf]
    %v4493 = vld [vmem:[#allocation8 + $0x28] sm:$0xf]
    %v4494 = vld [vmem:[#allocation8 + $0x2c] sm:$0xf]
    %v4495 = vld [vmem:[#allocation8 + $0x30] sm:$0xf]
    %v4496 = vld [vmem:[#allocation8 + $0x34] sm:$0xf]
    %v4497 = vld [vmem:[#allocation8 + $0x38] sm:$0xf]
    %v4498 = vld [vmem:[#allocation8 + $0x3c] sm:$0xf]
    %v4515 = vunpack.c.l.b16 %v4483
    %v4516 = vunpack.c.l.b16 %v4484
    %v4517 = vunpack.c.l.b16 %v4485
    %v4518 = vunpack.c.l.b16 %v4486
    %v4519 = vunpack.c.l.b16 %v4487
    %v4520 = vunpack.c.l.b16 %v4488
    %v4521 = vunpack.c.l.b16 %v4489
    %v4522 = vunpack.c.l.b16 %v4490
    %v4523 = vunpack.c.l.b16 %v4491
    %v4524 = vunpack.c.l.b16 %v4492
    %v4525 = vunpack.c.l.b16 %v4493
    %v4526 = vunpack.c.l.b16 %v4494
    %v4527 = vunpack.c.l.b16 %v4495
    %v4528 = vunpack.c.l.b16 %v4496
    %v4529 = vunpack.c.l.b16 %v4497
    %v4530 = vunpack.c.l.b16 %v4498
    %v4531 = vpack.c.b16 %v4516, %v4515
    %v4532 = vpack.c.b16 %v4518, %v4517
    %v4533 = vpack.c.b16 %v4520, %v4519
    %v4534 = vpack.c.b16 %v4522, %v4521
    %v4535 = vpack.c.b16 %v4524, %v4523
    %v4536 = vpack.c.b16 %v4526, %v4525
    %v4537 = vpack.c.b16 %v4528, %v4527
    %v4538 = vpack.c.b16 %v4530, %v4529
    %4547 = vmatprep.subr.bf16.mxu0 0
    %4548 = vmatpush1.bf16.msra.mxu0 %v4538
    %4549 = vmatprep.subr.bf16.mxu0 0
    %4550 = vmatpush1.bf16.msra.mxu0 %v4537
    %4551 = vmatprep.subr.bf16.mxu0 0
    %4552 = vmatpush1.bf16.msra.mxu0 %v4536
    %4553 = vmatprep.subr.bf16.mxu0 0
    %4554 = vmatpush1.bf16.msra.mxu0 %v4535
    %4555 = vmatprep.subr.bf16.mxu0 0
    %4556 = vmatpush1.bf16.msra.mxu0 %v4534
    %4557 = vmatprep.subr.bf16.mxu0 0
    %4558 = vmatpush1.bf16.msra.mxu0 %v4533
    %4559 = vmatprep.subr.bf16.mxu0 0
    %4560 = vmatpush1.bf16.msra.mxu0 %v4532
    %4561 = vmatprep.subr.bf16.mxu0 0
    %4562 = vmatpush1.bf16.msra.mxu0 %v4531
    %4563 = vmatprep.subr.bf16.mxu0 0
    %4564 = vmatpush2.bf16.msra.mxu0 0
    %4565 = vmatprep.subr.bf16.mxu0 0
    %4566 = vmatpush2.bf16.msra.mxu0 0
    %4567 = vmatprep.subr.bf16.mxu0 0
    %4568 = vmatpush2.bf16.msra.mxu0 0
    %4569 = vmatprep.subr.bf16.mxu0 0
    %4570 = vmatpush2.bf16.msra.mxu0 0
    %4571 = vmatprep.subr.bf16.mxu0 0
    %4572 = vmatpush2.bf16.msra.mxu0 0
    %4573 = vmatprep.subr.bf16.mxu0 0
    %4574 = vmatpush2.bf16.msra.mxu0 0
    %4575 = vmatprep.subr.bf16.mxu0 0
    %4576 = vmatpush2.bf16.msra.mxu0 0
    %4577 = vmatprep.subr.bf16.mxu0 0
    %4578 = vmatpush2.bf16.msra.mxu0 0
    %4579 = vmatprep.mubr.bf16.mxu0 0
    %4580 = vmatmul.mubr.bf16.gmra.mxu0 %v4451
    %v4581 = vpop.f32.mrf.mxu0
    %v4582 = vadd.f32 0.0, %v4581
    %v4583 = vpop.f32.mrf.mxu0
    %v4584 = vpop.f32.mrf.mxu0
    %v4585 = vadd.f32 0.0, %v4584
    %v4586 = vpop.f32.mrf.mxu0
    %4587 = vmatprep.mubr.bf16.mxu0 0
    %4588 = vmatmul.mubr.bf16.gmra.mxu0 %v4452
    %v4589 = vpop.f32.mrf.mxu0
    %v4590 = vadd.f32 0.0, %v4589
    %v4591 = vpop.f32.mrf.mxu0
    %v4592 = vpop.f32.mrf.mxu0
    %v4593 = vadd.f32 0.0, %v4592
    %v4594 = vpop.f32.mrf.mxu0
    %4595 = vmatprep.mubr.bf16.mxu0 0
    %4596 = vmatmul.mubr.bf16.gmra.mxu0 %v4453
    %v4597 = vpop.f32.mrf.mxu0
    %v4598 = vadd.f32 0.0, %v4597
    %v4599 = vpop.f32.mrf.mxu0
    %v4600 = vpop.f32.mrf.mxu0
    %v4601 = vadd.f32 0.0, %v4600
    %v4602 = vpop.f32.mrf.mxu0
    %4603 = vmatprep.mubr.bf16.mxu0 0
    %4604 = vmatmul.mubr.bf16.gmra.mxu0 %v4454
    %v4605 = vpop.f32.mrf.mxu0
    %v4606 = vadd.f32 0.0, %v4605
    %v4607 = vpop.f32.mrf.mxu0
    %v4608 = vpop.f32.mrf.mxu0
    %v4609 = vadd.f32 0.0, %v4608
    %v4610 = vpop.f32.mrf.mxu0
    %4611 = vmatprep.mubr.bf16.mxu0 0
    %4612 = vmatmul.mubr.bf16.gmra.mxu0 %v4455
    %v4613 = vpop.f32.mrf.mxu0
    %v4614 = vadd.f32 0.0, %v4613
    %v4615 = vpop.f32.mrf.mxu0
    %v4616 = vpop.f32.mrf.mxu0
    %v4617 = vadd.f32 0.0, %v4616
    %v4618 = vpop.f32.mrf.mxu0
    %4619 = vmatprep.mubr.bf16.mxu0 0
    %4620 = vmatmul.mubr.bf16.gmra.mxu0 %v4456
    %v4621 = vpop.f32.mrf.mxu0
    %v4622 = vadd.f32 0.0, %v4621
    %v4623 = vpop.f32.mrf.mxu0
    %v4624 = vpop.f32.mrf.mxu0
    %v4625 = vadd.f32 0.0, %v4624
    %v4626 = vpop.f32.mrf.mxu0
    %4627 = vmatprep.mubr.bf16.mxu0 0
    %4628 = vmatmul.mubr.bf16.gmra.mxu0 %v4457
    %v4629 = vpop.f32.mrf.mxu0
    %v4630 = vadd.f32 0.0, %v4629
    %v4631 = vpop.f32.mrf.mxu0
    %v4632 = vpop.f32.mrf.mxu0
    %v4633 = vadd.f32 0.0, %v4632
    %v4634 = vpop.f32.mrf.mxu0
    %4635 = vmatprep.mubr.bf16.mxu0 0
    %4636 = vmatmul.mubr.bf16.gmra.mxu0 %v4458
    %v4637 = vpop.f32.mrf.mxu0
    %v4638 = vadd.f32 0.0, %v4637
    %v4639 = vpop.f32.mrf.mxu0
    %v4640 = vpop.f32.mrf.mxu0
    %v4641 = vadd.f32 0.0, %v4640
    %v4642 = vpop.f32.mrf.mxu0
    %4643 = vmatprep.mubr.bf16.mxu0 0
    %4644 = vmatmul.mubr.bf16.gmra.mxu0 %v4459
    %v4645 = vpop.f32.mrf.mxu0
    %v4646 = vadd.f32 0.0, %v4645
    %v4647 = vpop.f32.mrf.mxu0
    %v4648 = vpop.f32.mrf.mxu0
    %v4649 = vadd.f32 0.0, %v4648
    %v4650 = vpop.f32.mrf.mxu0
    %4651 = vmatprep.mubr.bf16.mxu0 0
    %4652 = vmatmul.mubr.bf16.gmra.mxu0 %v4460
    %v4653 = vpop.f32.mrf.mxu0
    %v4654 = vadd.f32 0.0, %v4653
    %v4655 = vpop.f32.mrf.mxu0
    %v4656 = vpop.f32.mrf.mxu0
    %v4657 = vadd.f32 0.0, %v4656
    %v4658 = vpop.f32.mrf.mxu0
    %4659 = vmatprep.mubr.bf16.mxu0 0
    %4660 = vmatmul.mubr.bf16.gmra.mxu0 %v4461
    %v4661 = vpop.f32.mrf.mxu0
    %v4662 = vadd.f32 0.0, %v4661
    %v4663 = vpop.f32.mrf.mxu0
    %v4664 = vpop.f32.mrf.mxu0
    %v4665 = vadd.f32 0.0, %v4664
    %v4666 = vpop.f32.mrf.mxu0
    %4667 = vmatprep.mubr.bf16.mxu0 0
    %4668 = vmatmul.mubr.bf16.gmra.mxu0 %v4462
    %v4669 = vpop.f32.mrf.mxu0
    %v4670 = vadd.f32 0.0, %v4669
    %v4671 = vpop.f32.mrf.mxu0
    %v4672 = vpop.f32.mrf.mxu0
    %v4673 = vadd.f32 0.0, %v4672
    %v4674 = vpop.f32.mrf.mxu0
    %4675 = vmatprep.mubr.bf16.mxu0 0
    %4676 = vmatmul.mubr.bf16.gmra.mxu0 %v4463
    %v4677 = vpop.f32.mrf.mxu0
    %v4678 = vadd.f32 0.0, %v4677
    %v4679 = vpop.f32.mrf.mxu0
    %v4680 = vpop.f32.mrf.mxu0
    %v4681 = vadd.f32 0.0, %v4680
    %v4682 = vpop.f32.mrf.mxu0
    %4683 = vmatprep.mubr.bf16.mxu0 0
    %4684 = vmatmul.mubr.bf16.gmra.mxu0 %v4464
    %v4685 = vpop.f32.mrf.mxu0
    %v4686 = vadd.f32 0.0, %v4685
    %v4687 = vpop.f32.mrf.mxu0
    %v4688 = vpop.f32.mrf.mxu0
    %v4689 = vadd.f32 0.0, %v4688
    %v4690 = vpop.f32.mrf.mxu0
    %4691 = vmatprep.mubr.bf16.mxu0 0
    %4692 = vmatmul.mubr.bf16.gmra.mxu0 %v4465
    %v4693 = vpop.f32.mrf.mxu0
    %v4694 = vadd.f32 0.0, %v4693
    %v4695 = vpop.f32.mrf.mxu0
    %v4696 = vpop.f32.mrf.mxu0
    %v4697 = vadd.f32 0.0, %v4696
    %v4698 = vpop.f32.mrf.mxu0
    %4699 = vmatprep.mubr.bf16.mxu0 0
    %4700 = vmatmul.mubr.bf16.gmra.mxu0 %v4466
    %v4701 = vpop.f32.mrf.mxu0
    %v4702 = vadd.f32 0.0, %v4701
    %v4703 = vpop.f32.mrf.mxu0
    %v4704 = vpop.f32.mrf.mxu0
    %v4705 = vadd.f32 0.0, %v4704
    %v4706 = vpop.f32.mrf.mxu0
    %4707 = vmatprep.mubr.bf16.mxu0 0
    %4708 = vmatmul.mubr.bf16.gmra.mxu0 %v4467
    %v4709 = vpop.f32.mrf.mxu0
    %v4710 = vadd.f32 0.0, %v4709
    %v4711 = vpop.f32.mrf.mxu0
    %v4712 = vpop.f32.mrf.mxu0
    %v4713 = vadd.f32 0.0, %v4712
    %v4714 = vpop.f32.mrf.mxu0
    %4715 = vmatprep.mubr.bf16.mxu0 0
    %4716 = vmatmul.mubr.bf16.gmra.mxu0 %v4468
    %v4717 = vpop.f32.mrf.mxu0
    %v4718 = vadd.f32 0.0, %v4717
    %v4719 = vpop.f32.mrf.mxu0
    %v4720 = vpop.f32.mrf.mxu0
    %v4721 = vadd.f32 0.0, %v4720
    %v4722 = vpop.f32.mrf.mxu0
    %4723 = vmatprep.mubr.bf16.mxu0 0
    %4724 = vmatmul.mubr.bf16.gmra.mxu0 %v4469
    %v4725 = vpop.f32.mrf.mxu0
    %v4726 = vadd.f32 0.0, %v4725
    %v4727 = vpop.f32.mrf.mxu0
    %v4728 = vpop.f32.mrf.mxu0
    %v4729 = vadd.f32 0.0, %v4728
    %v4730 = vpop.f32.mrf.mxu0
    %4731 = vmatprep.mubr.bf16.mxu0 0
    %4732 = vmatmul.mubr.bf16.gmra.mxu0 %v4470
    %v4733 = vpop.f32.mrf.mxu0
    %v4734 = vadd.f32 0.0, %v4733
    %v4735 = vpop.f32.mrf.mxu0
    %v4736 = vpop.f32.mrf.mxu0
    %v4737 = vadd.f32 0.0, %v4736
    %v4738 = vpop.f32.mrf.mxu0
    %4739 = vmatprep.mubr.bf16.mxu0 0
    %4740 = vmatmul.mubr.bf16.gmra.mxu0 %v4471
    %v4741 = vpop.f32.mrf.mxu0
    %v4742 = vadd.f32 0.0, %v4741
    %v4743 = vpop.f32.mrf.mxu0
    %v4744 = vpop.f32.mrf.mxu0
    %v4745 = vadd.f32 0.0, %v4744
    %v4746 = vpop.f32.mrf.mxu0
    %4747 = vmatprep.mubr.bf16.mxu0 0
    %4748 = vmatmul.mubr.bf16.gmra.mxu0 %v4472
    %v4749 = vpop.f32.mrf.mxu0
    %v4750 = vadd.f32 0.0, %v4749
    %v4751 = vpop.f32.mrf.mxu0
    %v4752 = vpop.f32.mrf.mxu0
    %v4753 = vadd.f32 0.0, %v4752
    %v4754 = vpop.f32.mrf.mxu0
    %4755 = vmatprep.mubr.bf16.mxu0 0
    %4756 = vmatmul.mubr.bf16.gmra.mxu0 %v4473
    %v4757 = vpop.f32.mrf.mxu0
    %v4758 = vadd.f32 0.0, %v4757
    %v4759 = vpop.f32.mrf.mxu0
    %v4760 = vpop.f32.mrf.mxu0
    %v4761 = vadd.f32 0.0, %v4760
    %v4762 = vpop.f32.mrf.mxu0
    %4763 = vmatprep.mubr.bf16.mxu0 0
    %4764 = vmatmul.mubr.bf16.gmra.mxu0 %v4474
    %v4765 = vpop.f32.mrf.mxu0
    %v4766 = vadd.f32 0.0, %v4765
    %v4767 = vpop.f32.mrf.mxu0
    %v4768 = vpop.f32.mrf.mxu0
    %v4769 = vadd.f32 0.0, %v4768
    %v4770 = vpop.f32.mrf.mxu0
    %4771 = vmatprep.mubr.bf16.mxu0 0
    %4772 = vmatmul.mubr.bf16.gmra.mxu0 %v4475
    %v4773 = vpop.f32.mrf.mxu0
    %v4774 = vadd.f32 0.0, %v4773
    %v4775 = vpop.f32.mrf.mxu0
    %v4776 = vpop.f32.mrf.mxu0
    %v4777 = vadd.f32 0.0, %v4776
    %v4778 = vpop.f32.mrf.mxu0
    %4779 = vmatprep.mubr.bf16.mxu0 0
    %4780 = vmatmul.mubr.bf16.gmra.mxu0 %v4476
    %v4781 = vpop.f32.mrf.mxu0
    %v4782 = vadd.f32 0.0, %v4781
    %v4783 = vpop.f32.mrf.mxu0
    %v4784 = vpop.f32.mrf.mxu0
    %v4785 = vadd.f32 0.0, %v4784
    %v4786 = vpop.f32.mrf.mxu0
    %4787 = vmatprep.mubr.bf16.mxu0 0
    %4788 = vmatmul.mubr.bf16.gmra.mxu0 %v4477
    %v4789 = vpop.f32.mrf.mxu0
    %v4790 = vadd.f32 0.0, %v4789
    %v4791 = vpop.f32.mrf.mxu0
    %v4792 = vpop.f32.mrf.mxu0
    %v4793 = vadd.f32 0.0, %v4792
    %v4794 = vpop.f32.mrf.mxu0
    %4795 = vmatprep.mubr.bf16.mxu0 0
    %4796 = vmatmul.mubr.bf16.gmra.mxu0 %v4478
    %v4797 = vpop.f32.mrf.mxu0
    %v4798 = vadd.f32 0.0, %v4797
    %v4799 = vpop.f32.mrf.mxu0
    %v4800 = vpop.f32.mrf.mxu0
    %v4801 = vadd.f32 0.0, %v4800
    %v4802 = vpop.f32.mrf.mxu0
    %4803 = vmatprep.mubr.bf16.mxu0 0
    %4804 = vmatmul.mubr.bf16.gmra.mxu0 %v4479
    %v4805 = vpop.f32.mrf.mxu0
    %v4806 = vadd.f32 0.0, %v4805
    %v4807 = vpop.f32.mrf.mxu0
    %v4808 = vpop.f32.mrf.mxu0
    %v4809 = vadd.f32 0.0, %v4808
    %v4810 = vpop.f32.mrf.mxu0
    %4811 = vmatprep.mubr.bf16.mxu0 0
    %4812 = vmatmul.mubr.bf16.gmra.mxu0 %v4480
    %v4813 = vpop.f32.mrf.mxu0
    %v4814 = vadd.f32 0.0, %v4813
    %v4815 = vpop.f32.mrf.mxu0
    %v4816 = vpop.f32.mrf.mxu0
    %v4817 = vadd.f32 0.0, %v4816
    %v4818 = vpop.f32.mrf.mxu0
    %4819 = vmatprep.mubr.bf16.mxu0 0
    %4820 = vmatmul.mubr.bf16.gmra.mxu0 %v4481
    %v4821 = vpop.f32.mrf.mxu0
    %v4822 = vadd.f32 0.0, %v4821
    %v4823 = vpop.f32.mrf.mxu0
    %v4824 = vpop.f32.mrf.mxu0
    %v4825 = vadd.f32 0.0, %v4824
    %v4826 = vpop.f32.mrf.mxu0
    %4827 = vmatprep.mubr.bf16.mxu0 0
    %4828 = vmatmul.mubr.bf16.gmra.mxu0 %v4482
    %v4829 = vpop.f32.mrf.mxu0
    %v4830 = vadd.f32 0.0, %v4829
    %v4831 = vpop.f32.mrf.mxu0
    %v4832 = vpop.f32.mrf.mxu0
    %v4833 = vadd.f32 0.0, %v4832
    %v4834 = vpop.f32.mrf.mxu0
    %4835 = vdwg.mxu0
    %v4836 = vadd.f32 %v4005, %v4582
    %v4837 = vadd.f32 %v4008, %v4585
    %v4838 = vadd.f32 %v4013, %v4590
    %v4839 = vadd.f32 %v4016, %v4593
    %v4840 = vadd.f32 %v4021, %v4598
    %v4841 = vadd.f32 %v4024, %v4601
    %v4842 = vadd.f32 %v4029, %v4606
    %v4843 = vadd.f32 %v4032, %v4609
    %v4844 = vadd.f32 %v4037, %v4614
    %v4845 = vadd.f32 %v4040, %v4617
    %v4846 = vadd.f32 %v4045, %v4622
    %v4847 = vadd.f32 %v4048, %v4625
    %v4848 = vadd.f32 %v4053, %v4630
    %v4849 = vadd.f32 %v4056, %v4633
    %v4850 = vadd.f32 %v4061, %v4638
    %v4851 = vadd.f32 %v4064, %v4641
    %v4852 = vadd.f32 %v4069, %v4646
    %v4853 = vadd.f32 %v4072, %v4649
    %v4854 = vadd.f32 %v4077, %v4654
    %v4855 = vadd.f32 %v4080, %v4657
    %v4856 = vadd.f32 %v4085, %v4662
    %v4857 = vadd.f32 %v4088, %v4665
    %v4858 = vadd.f32 %v4093, %v4670
    %v4859 = vadd.f32 %v4096, %v4673
    %v4860 = vadd.f32 %v4101, %v4678
    %v4861 = vadd.f32 %v4104, %v4681
    %v4862 = vadd.f32 %v4109, %v4686
    %v4863 = vadd.f32 %v4112, %v4689
    %v4864 = vadd.f32 %v4117, %v4694
    %v4865 = vadd.f32 %v4120, %v4697
    %v4866 = vadd.f32 %v4125, %v4702
    %v4867 = vadd.f32 %v4128, %v4705
    %v4868 = vadd.f32 %v4133, %v4710
    %v4869 = vadd.f32 %v4136, %v4713
    %v4870 = vadd.f32 %v4141, %v4718
    %v4871 = vadd.f32 %v4144, %v4721
    %v4872 = vadd.f32 %v4149, %v4726
    %v4873 = vadd.f32 %v4152, %v4729
    %v4874 = vadd.f32 %v4157, %v4734
    %v4875 = vadd.f32 %v4160, %v4737
    %v4876 = vadd.f32 %v4165, %v4742
    %v4877 = vadd.f32 %v4168, %v4745
    %v4878 = vadd.f32 %v4173, %v4750
    %v4879 = vadd.f32 %v4176, %v4753
    %v4880 = vadd.f32 %v4181, %v4758
    %v4881 = vadd.f32 %v4184, %v4761
    %v4882 = vadd.f32 %v4189, %v4766
    %v4883 = vadd.f32 %v4192, %v4769
    %v4884 = vadd.f32 %v4197, %v4774
    %v4885 = vadd.f32 %v4200, %v4777
    %v4886 = vadd.f32 %v4205, %v4782
    %v4887 = vadd.f32 %v4208, %v4785
    %v4888 = vadd.f32 %v4213, %v4790
    %v4889 = vadd.f32 %v4216, %v4793
    %v4890 = vadd.f32 %v4221, %v4798
    %v4891 = vadd.f32 %v4224, %v4801
    %v4892 = vadd.f32 %v4229, %v4806
    %v4893 = vadd.f32 %v4232, %v4809
    %v4894 = vadd.f32 %v4237, %v4814
    %v4895 = vadd.f32 %v4240, %v4817
    %v4896 = vadd.f32 %v4245, %v4822
    %v4897 = vadd.f32 %v4248, %v4825
    %v4898 = vadd.f32 %v4253, %v4830
    %v4899 = vadd.f32 %v4256, %v4833
    %v4900 = vrot.slane %v3803, 1
    %v4901 = vrot.slane %v3804, 1
    %v4902 = vrot.slane %v3805, 1
    %v4903 = vrot.slane %v3806, 1
    %v4904 = vrot.slane %v3807, 1
    %v4905 = vrot.slane %v3808, 1
    %v4906 = vrot.slane %v3809, 1
    %v4907 = vrot.slane %v3810, 1
    %v4908 = vrot.slane %v3811, 1
    %v4909 = vrot.slane %v3812, 1
    %v4910 = vrot.slane %v3813, 1
    %v4911 = vrot.slane %v3814, 1
    %v4912 = vrot.slane %v3815, 1
    %v4913 = vrot.slane %v3816, 1
    %v4914 = vrot.slane %v3817, 1
    %v4915 = vrot.slane %v3818, 1
    %v4916 = vrot.slane %v3819, 1
    %v4917 = vrot.slane %v3820, 1
    %v4918 = vrot.slane %v3821, 1
    %v4919 = vrot.slane %v3822, 1
    %v4920 = vrot.slane %v3823, 1
    %v4921 = vrot.slane %v3824, 1
    %v4922 = vrot.slane %v3825, 1
    %v4923 = vrot.slane %v3826, 1
    %v4924 = vrot.slane %v3827, 1
    %v4925 = vrot.slane %v3828, 1
    %v4926 = vrot.slane %v3829, 1
    %v4927 = vrot.slane %v3830, 1
    %v4928 = vrot.slane %v3831, 1
    %v4929 = vrot.slane %v3832, 1
    %v4930 = vrot.slane %v3833, 1
    %v4931 = vrot.slane %v3834, 1
    %v4932 = vrot.slane %v3835, 1
    %v4933 = vrot.slane %v3836, 1
    %v4934 = vrot.slane %v3837, 1
    %v4935 = vrot.slane %v3838, 1
    %v4936 = vrot.slane %v3839, 1
    %v4937 = vrot.slane %v3840, 1
    %v4938 = vrot.slane %v3841, 1
    %v4939 = vrot.slane %v3842, 1
    %v4940 = vrot.slane %v3843, 1
    %v4941 = vrot.slane %v3844, 1
    %v4942 = vrot.slane %v3845, 1
    %v4943 = vrot.slane %v3846, 1
    %v4944 = vrot.slane %v3847, 1
    %v4945 = vrot.slane %v3848, 1
    %v4946 = vrot.slane %v3849, 1
    %v4947 = vrot.slane %v3850, 1
    %v4948 = vrot.slane %v3851, 1
    %v4949 = vrot.slane %v3852, 1
    %v4950 = vrot.slane %v3853, 1
    %v4951 = vrot.slane %v3854, 1
    %v4952 = vrot.slane %v3855, 1
    %v4953 = vrot.slane %v3856, 1
    %v4954 = vrot.slane %v3857, 1
    %v4955 = vrot.slane %v3858, 1
    %v4956 = vrot.slane %v3859, 1
    %v4957 = vrot.slane %v3860, 1
    %v4958 = vrot.slane %v3861, 1
    %v4959 = vrot.slane %v3862, 1
    %v4960 = vrot.slane %v3863, 1
    %v4961 = vrot.slane %v3864, 1
    %v4962 = vrot.slane %v3865, 1
    %v4963 = vrot.slane %v3866, 1
    %v4964 = vsel %vm3097, %v4962, %v4963
    %v4965 = vsel %vm3097, %v4961, %v4962
    %v4966 = vsel %vm3097, %v4960, %v4961
    %v4967 = vsel %vm3097, %v4959, %v4960
    %v4968 = vsel %vm3097, %v4958, %v4959
    %v4969 = vsel %vm3097, %v4957, %v4958
    %v4970 = vsel %vm3097, %v4956, %v4957
    %v4971 = vsel %vm3097, %v4955, %v4956
    %v4972 = vsel %vm3097, %v4954, %v4955
    %v4973 = vsel %vm3097, %v4953, %v4954
    %v4974 = vsel %vm3097, %v4952, %v4953
    %v4975 = vsel %vm3097, %v4951, %v4952
    %v4976 = vsel %vm3097, %v4950, %v4951
    %v4977 = vsel %vm3097, %v4949, %v4950
    %v4978 = vsel %vm3097, %v4948, %v4949
    %v4979 = vsel %vm3097, %v4947, %v4948
    %v4980 = vsel %vm3097, %v4946, %v4947
    %v4981 = vsel %vm3097, %v4945, %v4946
    %v4982 = vsel %vm3097, %v4944, %v4945
    %v4983 = vsel %vm3097, %v4943, %v4944
    %v4984 = vsel %vm3097, %v4942, %v4943
    %v4985 = vsel %vm3097, %v4941, %v4942
    %v4986 = vsel %vm3097, %v4940, %v4941
    %v4987 = vsel %vm3097, %v4939, %v4940
    %v4988 = vsel %vm3097, %v4938, %v4939
    %v4989 = vsel %vm3097, %v4937, %v4938
    %v4990 = vsel %vm3097, %v4936, %v4937
    %v4991 = vsel %vm3097, %v4935, %v4936
    %v4992 = vsel %vm3097, %v4934, %v4935
    %v4993 = vsel %vm3097, %v4933, %v4934
    %v4994 = vsel %vm3097, %v4932, %v4933
    %v4995 = vsel %vm3097, %v4931, %v4932
    %v4996 = vsel %vm3097, %v4930, %v4931
    %v4997 = vsel %vm3097, %v4929, %v4930
    %v4998 = vsel %vm3097, %v4928, %v4929
    %v4999 = vsel %vm3097, %v4927, %v4928
    %v5000 = vsel %vm3097, %v4926, %v4927
    %v5001 = vsel %vm3097, %v4925, %v4926
    %v5002 = vsel %vm3097, %v4924, %v4925
    %v5003 = vsel %vm3097, %v4923, %v4924
    %v5004 = vsel %vm3097, %v4922, %v4923
    %v5005 = vsel %vm3097, %v4921, %v4922
    %v5006 = vsel %vm3097, %v4920, %v4921
    %v5007 = vsel %vm3097, %v4919, %v4920
    %v5008 = vsel %vm3097, %v4918, %v4919
    %v5009 = vsel %vm3097, %v4917, %v4918
    %v5010 = vsel %vm3097, %v4916, %v4917
    %v5011 = vsel %vm3097, %v4915, %v4916
    %v5012 = vsel %vm3097, %v4914, %v4915
    %v5013 = vsel %vm3097, %v4913, %v4914
    %v5014 = vsel %vm3097, %v4912, %v4913
    %v5015 = vsel %vm3097, %v4911, %v4912
    %v5016 = vsel %vm3097, %v4910, %v4911
    %v5017 = vsel %vm3097, %v4909, %v4910
    %v5018 = vsel %vm3097, %v4908, %v4909
    %v5019 = vsel %vm3097, %v4907, %v4908
    %v5020 = vsel %vm3097, %v4906, %v4907
    %v5021 = vsel %vm3097, %v4905, %v4906
    %v5022 = vsel %vm3097, %v4904, %v4905
    %v5023 = vsel %vm3097, %v4903, %v4904
    %v5024 = vsel %vm3097, %v4902, %v4903
    %v5025 = vsel %vm3097, %v4901, %v4902
    %v5026 = vsel %vm3097, %v4900, %v4901
    %v5027 = vsel %vm3097, %v4963, %v4900
    %v5028 = vsel %vm3226, 0.0, %v5026
    %v5029 = vsel %vm3227, 0.0, %v5025
    %v5030 = vsel %vm3228, 0.0, %v5024
    %v5031 = vsel %vm3229, 0.0, %v5023
    %v5032 = vsel %vm3230, 0.0, %v5022
    %v5033 = vsel %vm3231, 0.0, %v5021
    %v5034 = vsel %vm3232, 0.0, %v5020
    %v5035 = vsel %vm3233, 0.0, %v5019
    %v5036 = vsel %vm3234, 0.0, %v5018
    %v5037 = vsel %vm3235, 0.0, %v5017
    %v5038 = vsel %vm3236, 0.0, %v5016
    %v5039 = vsel %vm3237, 0.0, %v5015
    %v5040 = vsel %vm3238, 0.0, %v5014
    %v5041 = vsel %vm3239, 0.0, %v5013
    %v5042 = vsel %vm3240, 0.0, %v5012
    %v5043 = vsel %vm3241, 0.0, %v5011
    %v5044 = vsel %vm3242, 0.0, %v5010
    %v5045 = vsel %vm3243, 0.0, %v5009
    %v5046 = vsel %vm3244, 0.0, %v5008
    %v5047 = vsel %vm3245, 0.0, %v5007
    %v5048 = vsel %vm3246, 0.0, %v5006
    %v5049 = vsel %vm3247, 0.0, %v5005
    %v5050 = vsel %vm3248, 0.0, %v5004
    %v5051 = vsel %vm3249, 0.0, %v5003
    %v5052 = vsel %vm3250, 0.0, %v5002
    %v5053 = vsel %vm3251, 0.0, %v5001
    %v5054 = vsel %vm3252, 0.0, %v5000
    %v5055 = vsel %vm3253, 0.0, %v4999
    %v5056 = vsel %vm3254, 0.0, %v4998
    %v5057 = vsel %vm3255, 0.0, %v4997
    %v5058 = vsel %vm3256, 0.0, %v4996
    %v5059 = vsel %vm3257, 0.0, %v4995
    %v5060 = vsel %vm3258, 0.0, %v4994
    %v5061 = vsel %vm3259, 0.0, %v4993
    %v5062 = vsel %vm3260, 0.0, %v4992
    %v5063 = vsel %vm3261, 0.0, %v4991
    %v5064 = vsel %vm3262, 0.0, %v4990
    %v5065 = vsel %vm3263, 0.0, %v4989
    %v5066 = vsel %vm3264, 0.0, %v4988
    %v5067 = vsel %vm3265, 0.0, %v4987
    %v5068 = vsel %vm3266, 0.0, %v4986
    %v5069 = vsel %vm3267, 0.0, %v4985
    %v5070 = vsel %vm3268, 0.0, %v4984
    %v5071 = vsel %vm3269, 0.0, %v4983
    %v5072 = vsel %vm3270, 0.0, %v4982
    %v5073 = vsel %vm3271, 0.0, %v4981
    %v5074 = vsel %vm3272, 0.0, %v4980
    %v5075 = vsel %vm3273, 0.0, %v4979
    %v5076 = vsel %vm3274, 0.0, %v4978
    %v5077 = vsel %vm3275, 0.0, %v4977
    %v5078 = vsel %vm3276, 0.0, %v4976
    %v5079 = vsel %vm3277, 0.0, %v4975
    %v5080 = vsel %vm3278, 0.0, %v4974
    %v5081 = vsel %vm3279, 0.0, %v4973
    %v5082 = vsel %vm3280, 0.0, %v4972
    %v5083 = vsel %vm3281, 0.0, %v4971
    %v5084 = vsel %vm3282, 0.0, %v4970
    %v5085 = vsel %vm3283, 0.0, %v4969
    %v5086 = vsel %vm3284, 0.0, %v4968
    %v5087 = vsel %vm3285, 0.0, %v4967
    %v5088 = vsel %vm3286, 0.0, %v4966
    %v5089 = vsel %vm3287, 0.0, %v4965
    %v5090 = vsel %vm3288, 0.0, %v4964
    %v5091 = vsel %vm3289, 0.0, %v5027
    %v5092 = vpack.c.bf16 %v5029, %v5028
    %v5093 = vpack.c.bf16 %v5031, %v5030
    %v5094 = vpack.c.bf16 %v5033, %v5032
    %v5095 = vpack.c.bf16 %v5035, %v5034
    %v5096 = vpack.c.bf16 %v5037, %v5036
    %v5097 = vpack.c.bf16 %v5039, %v5038
    %v5098 = vpack.c.bf16 %v5041, %v5040
    %v5099 = vpack.c.bf16 %v5043, %v5042
    %v5100 = vpack.c.bf16 %v5045, %v5044
    %v5101 = vpack.c.bf16 %v5047, %v5046
    %v5102 = vpack.c.bf16 %v5049, %v5048
    %v5103 = vpack.c.bf16 %v5051, %v5050
    %v5104 = vpack.c.bf16 %v5053, %v5052
    %v5105 = vpack.c.bf16 %v5055, %v5054
    %v5106 = vpack.c.bf16 %v5057, %v5056
    %v5107 = vpack.c.bf16 %v5059, %v5058
    %v5108 = vpack.c.bf16 %v5061, %v5060
    %v5109 = vpack.c.bf16 %v5063, %v5062
    %v5110 = vpack.c.bf16 %v5065, %v5064
    %v5111 = vpack.c.bf16 %v5067, %v5066
    %v5112 = vpack.c.bf16 %v5069, %v5068
    %v5113 = vpack.c.bf16 %v5071, %v5070
    %v5114 = vpack.c.bf16 %v5073, %v5072
    %v5115 = vpack.c.bf16 %v5075, %v5074
    %v5116 = vpack.c.bf16 %v5077, %v5076
    %v5117 = vpack.c.bf16 %v5079, %v5078
    %v5118 = vpack.c.bf16 %v5081, %v5080
    %v5119 = vpack.c.bf16 %v5083, %v5082
    %v5120 = vpack.c.bf16 %v5085, %v5084
    %v5121 = vpack.c.bf16 %v5087, %v5086
    %v5122 = vpack.c.bf16 %v5089, %v5088
    %v5123 = vpack.c.bf16 %v5091, %v5090
    %v5124 = vld [vmem:[#allocation8 + $0x80] sm:$0xf]
    %v5125 = vld [vmem:[#allocation8 + $0x84] sm:$0xf]
    %v5126 = vld [vmem:[#allocation8 + $0x88] sm:$0xf]
    %v5127 = vld [vmem:[#allocation8 + $0x8c] sm:$0xf]
    %v5128 = vld [vmem:[#allocation8 + $0x90] sm:$0xf]
    %v5129 = vld [vmem:[#allocation8 + $0x94] sm:$0xf]
    %v5130 = vld [vmem:[#allocation8 + $0x98] sm:$0xf]
    %v5131 = vld [vmem:[#allocation8 + $0x9c] sm:$0xf]
    %v5132 = vld [vmem:[#allocation8 + $0xa0] sm:$0xf]
    %v5133 = vld [vmem:[#allocation8 + $0xa4] sm:$0xf]
    %v5134 = vld [vmem:[#allocation8 + $0xa8] sm:$0xf]
    %v5135 = vld [vmem:[#allocation8 + $0xac] sm:$0xf]
    %v5136 = vld [vmem:[#allocation8 + $0xb0] sm:$0xf]
    %v5137 = vld [vmem:[#allocation8 + $0xb4] sm:$0xf]
    %v5138 = vld [vmem:[#allocation8 + $0xb8] sm:$0xf]
    %v5139 = vld [vmem:[#allocation8 + $0xbc] sm:$0xf]
    %v5156 = vunpack.c.l.b16 %v5124
    %v5157 = vunpack.c.l.b16 %v5125
    %v5158 = vunpack.c.l.b16 %v5126
    %v5159 = vunpack.c.l.b16 %v5127
    %v5160 = vunpack.c.l.b16 %v5128
    %v5161 = vunpack.c.l.b16 %v5129
    %v5162 = vunpack.c.l.b16 %v5130
    %v5163 = vunpack.c.l.b16 %v5131
    %v5164 = vunpack.c.l.b16 %v5132
    %v5165 = vunpack.c.l.b16 %v5133
    %v5166 = vunpack.c.l.b16 %v5134
    %v5167 = vunpack.c.l.b16 %v5135
    %v5168 = vunpack.c.l.b16 %v5136
    %v5169 = vunpack.c.l.b16 %v5137
    %v5170 = vunpack.c.l.b16 %v5138
    %v5171 = vunpack.c.l.b16 %v5139
    %v5172 = vpack.c.b16 %v5157, %v5156
    %v5173 = vpack.c.b16 %v5159, %v5158
    %v5174 = vpack.c.b16 %v5161, %v5160
    %v5175 = vpack.c.b16 %v5163, %v5162
    %v5176 = vpack.c.b16 %v5165, %v5164
    %v5177 = vpack.c.b16 %v5167, %v5166
    %v5178 = vpack.c.b16 %v5169, %v5168
    %v5179 = vpack.c.b16 %v5171, %v5170
    %5188 = vmatprep.subr.bf16.mxu0 0
    %5189 = vmatpush1.bf16.msra.mxu0 %v5179
    %5190 = vmatprep.subr.bf16.mxu0 0
    %5191 = vmatpush1.bf16.msra.mxu0 %v5178
    %5192 = vmatprep.subr.bf16.mxu0 0
    %5193 = vmatpush1.bf16.msra.mxu0 %v5177
    %5194 = vmatprep.subr.bf16.mxu0 0
    %5195 = vmatpush1.bf16.msra.mxu0 %v5176
    %5196 = vmatprep.subr.bf16.mxu0 0
    %5197 = vmatpush1.bf16.msra.mxu0 %v5175
    %5198 = vmatprep.subr.bf16.mxu0 0
    %5199 = vmatpush1.bf16.msra.mxu0 %v5174
    %5200 = vmatprep.subr.bf16.mxu0 0
    %5201 = vmatpush1.bf16.msra.mxu0 %v5173
    %5202 = vmatprep.subr.bf16.mxu0 0
    %5203 = vmatpush1.bf16.msra.mxu0 %v5172
    %5204 = vmatprep.subr.bf16.mxu0 0
    %5205 = vmatpush2.bf16.msra.mxu0 0
    %5206 = vmatprep.subr.bf16.mxu0 0
    %5207 = vmatpush2.bf16.msra.mxu0 0
    %5208 = vmatprep.subr.bf16.mxu0 0
    %5209 = vmatpush2.bf16.msra.mxu0 0
    %5210 = vmatprep.subr.bf16.mxu0 0
    %5211 = vmatpush2.bf16.msra.mxu0 0
    %5212 = vmatprep.subr.bf16.mxu0 0
    %5213 = vmatpush2.bf16.msra.mxu0 0
    %5214 = vmatprep.subr.bf16.mxu0 0
    %5215 = vmatpush2.bf16.msra.mxu0 0
    %5216 = vmatprep.subr.bf16.mxu0 0
    %5217 = vmatpush2.bf16.msra.mxu0 0
    %5218 = vmatprep.subr.bf16.mxu0 0
    %5219 = vmatpush2.bf16.msra.mxu0 0
    %5220 = vmatprep.mubr.bf16.mxu0 0
    %5221 = vmatmul.mubr.bf16.gmra.mxu0 %v5092
    %v5222 = vpop.f32.mrf.mxu0
    %v5223 = vadd.f32 0.0, %v5222
    %v5224 = vpop.f32.mrf.mxu0
    %v5225 = vpop.f32.mrf.mxu0
    %v5226 = vadd.f32 0.0, %v5225
    %v5227 = vpop.f32.mrf.mxu0
    %5228 = vmatprep.mubr.bf16.mxu0 0
    %5229 = vmatmul.mubr.bf16.gmra.mxu0 %v5093
    %v5230 = vpop.f32.mrf.mxu0
    %v5231 = vadd.f32 0.0, %v5230
    %v5232 = vpop.f32.mrf.mxu0
    %v5233 = vpop.f32.mrf.mxu0
    %v5234 = vadd.f32 0.0, %v5233
    %v5235 = vpop.f32.mrf.mxu0
    %5236 = vmatprep.mubr.bf16.mxu0 0
    %5237 = vmatmul.mubr.bf16.gmra.mxu0 %v5094
    %v5238 = vpop.f32.mrf.mxu0
    %v5239 = vadd.f32 0.0, %v5238
    %v5240 = vpop.f32.mrf.mxu0
    %v5241 = vpop.f32.mrf.mxu0
    %v5242 = vadd.f32 0.0, %v5241
    %v5243 = vpop.f32.mrf.mxu0
    %5244 = vmatprep.mubr.bf16.mxu0 0
    %5245 = vmatmul.mubr.bf16.gmra.mxu0 %v5095
    %v5246 = vpop.f32.mrf.mxu0
    %v5247 = vadd.f32 0.0, %v5246
    %v5248 = vpop.f32.mrf.mxu0
    %v5249 = vpop.f32.mrf.mxu0
    %v5250 = vadd.f32 0.0, %v5249
    %v5251 = vpop.f32.mrf.mxu0
    %5252 = vmatprep.mubr.bf16.mxu0 0
    %5253 = vmatmul.mubr.bf16.gmra.mxu0 %v5096
    %v5254 = vpop.f32.mrf.mxu0
    %v5255 = vadd.f32 0.0, %v5254
    %v5256 = vpop.f32.mrf.mxu0
    %v5257 = vpop.f32.mrf.mxu0
    %v5258 = vadd.f32 0.0, %v5257
    %v5259 = vpop.f32.mrf.mxu0
    %5260 = vmatprep.mubr.bf16.mxu0 0
    %5261 = vmatmul.mubr.bf16.gmra.mxu0 %v5097
    %v5262 = vpop.f32.mrf.mxu0
    %v5263 = vadd.f32 0.0, %v5262
    %v5264 = vpop.f32.mrf.mxu0
    %v5265 = vpop.f32.mrf.mxu0
    %v5266 = vadd.f32 0.0, %v5265
    %v5267 = vpop.f32.mrf.mxu0
    %5268 = vmatprep.mubr.bf16.mxu0 0
    %5269 = vmatmul.mubr.bf16.gmra.mxu0 %v5098
    %v5270 = vpop.f32.mrf.mxu0
    %v5271 = vadd.f32 0.0, %v5270
    %v5272 = vpop.f32.mrf.mxu0
    %v5273 = vpop.f32.mrf.mxu0
    %v5274 = vadd.f32 0.0, %v5273
    %v5275 = vpop.f32.mrf.mxu0
    %5276 = vmatprep.mubr.bf16.mxu0 0
    %5277 = vmatmul.mubr.bf16.gmra.mxu0 %v5099
    %v5278 = vpop.f32.mrf.mxu0
    %v5279 = vadd.f32 0.0, %v5278
    %v5280 = vpop.f32.mrf.mxu0
    %v5281 = vpop.f32.mrf.mxu0
    %v5282 = vadd.f32 0.0, %v5281
    %v5283 = vpop.f32.mrf.mxu0
    %5284 = vmatprep.mubr.bf16.mxu0 0
    %5285 = vmatmul.mubr.bf16.gmra.mxu0 %v5100
    %v5286 = vpop.f32.mrf.mxu0
    %v5287 = vadd.f32 0.0, %v5286
    %v5288 = vpop.f32.mrf.mxu0
    %v5289 = vpop.f32.mrf.mxu0
    %v5290 = vadd.f32 0.0, %v5289
    %v5291 = vpop.f32.mrf.mxu0
    %5292 = vmatprep.mubr.bf16.mxu0 0
    %5293 = vmatmul.mubr.bf16.gmra.mxu0 %v5101
    %v5294 = vpop.f32.mrf.mxu0
    %v5295 = vadd.f32 0.0, %v5294
    %v5296 = vpop.f32.mrf.mxu0
    %v5297 = vpop.f32.mrf.mxu0
    %v5298 = vadd.f32 0.0, %v5297
    %v5299 = vpop.f32.mrf.mxu0
    %5300 = vmatprep.mubr.bf16.mxu0 0
    %5301 = vmatmul.mubr.bf16.gmra.mxu0 %v5102
    %v5302 = vpop.f32.mrf.mxu0
    %v5303 = vadd.f32 0.0, %v5302
    %v5304 = vpop.f32.mrf.mxu0
    %v5305 = vpop.f32.mrf.mxu0
    %v5306 = vadd.f32 0.0, %v5305
    %v5307 = vpop.f32.mrf.mxu0
    %5308 = vmatprep.mubr.bf16.mxu0 0
    %5309 = vmatmul.mubr.bf16.gmra.mxu0 %v5103
    %v5310 = vpop.f32.mrf.mxu0
    %v5311 = vadd.f32 0.0, %v5310
    %v5312 = vpop.f32.mrf.mxu0
    %v5313 = vpop.f32.mrf.mxu0
    %v5314 = vadd.f32 0.0, %v5313
    %v5315 = vpop.f32.mrf.mxu0
    %5316 = vmatprep.mubr.bf16.mxu0 0
    %5317 = vmatmul.mubr.bf16.gmra.mxu0 %v5104
    %v5318 = vpop.f32.mrf.mxu0
    %v5319 = vadd.f32 0.0, %v5318
    %v5320 = vpop.f32.mrf.mxu0
    %v5321 = vpop.f32.mrf.mxu0
    %v5322 = vadd.f32 0.0, %v5321
    %v5323 = vpop.f32.mrf.mxu0
    %5324 = vmatprep.mubr.bf16.mxu0 0
    %5325 = vmatmul.mubr.bf16.gmra.mxu0 %v5105
    %v5326 = vpop.f32.mrf.mxu0
    %v5327 = vadd.f32 0.0, %v5326
    %v5328 = vpop.f32.mrf.mxu0
    %v5329 = vpop.f32.mrf.mxu0
    %v5330 = vadd.f32 0.0, %v5329
    %v5331 = vpop.f32.mrf.mxu0
    %5332 = vmatprep.mubr.bf16.mxu0 0
    %5333 = vmatmul.mubr.bf16.gmra.mxu0 %v5106
    %v5334 = vpop.f32.mrf.mxu0
    %v5335 = vadd.f32 0.0, %v5334
    %v5336 = vpop.f32.mrf.mxu0
    %v5337 = vpop.f32.mrf.mxu0
    %v5338 = vadd.f32 0.0, %v5337
    %v5339 = vpop.f32.mrf.mxu0
    %5340 = vmatprep.mubr.bf16.mxu0 0
    %5341 = vmatmul.mubr.bf16.gmra.mxu0 %v5107
    %v5342 = vpop.f32.mrf.mxu0
    %v5343 = vadd.f32 0.0, %v5342
    %v5344 = vpop.f32.mrf.mxu0
    %v5345 = vpop.f32.mrf.mxu0
    %v5346 = vadd.f32 0.0, %v5345
    %v5347 = vpop.f32.mrf.mxu0
    %5348 = vmatprep.mubr.bf16.mxu0 0
    %5349 = vmatmul.mubr.bf16.gmra.mxu0 %v5108
    %v5350 = vpop.f32.mrf.mxu0
    %v5351 = vadd.f32 0.0, %v5350
    %v5352 = vpop.f32.mrf.mxu0
    %v5353 = vpop.f32.mrf.mxu0
    %v5354 = vadd.f32 0.0, %v5353
    %v5355 = vpop.f32.mrf.mxu0
    %5356 = vmatprep.mubr.bf16.mxu0 0
    %5357 = vmatmul.mubr.bf16.gmra.mxu0 %v5109
    %v5358 = vpop.f32.mrf.mxu0
    %v5359 = vadd.f32 0.0, %v5358
    %v5360 = vpop.f32.mrf.mxu0
    %v5361 = vpop.f32.mrf.mxu0
    %v5362 = vadd.f32 0.0, %v5361
    %v5363 = vpop.f32.mrf.mxu0
    %5364 = vmatprep.mubr.bf16.mxu0 0
    %5365 = vmatmul.mubr.bf16.gmra.mxu0 %v5110
    %v5366 = vpop.f32.mrf.mxu0
    %v5367 = vadd.f32 0.0, %v5366
    %v5368 = vpop.f32.mrf.mxu0
    %v5369 = vpop.f32.mrf.mxu0
    %v5370 = vadd.f32 0.0, %v5369
    %v5371 = vpop.f32.mrf.mxu0
    %5372 = vmatprep.mubr.bf16.mxu0 0
    %5373 = vmatmul.mubr.bf16.gmra.mxu0 %v5111
    %v5374 = vpop.f32.mrf.mxu0
    %v5375 = vadd.f32 0.0, %v5374
    %v5376 = vpop.f32.mrf.mxu0
    %v5377 = vpop.f32.mrf.mxu0
    %v5378 = vadd.f32 0.0, %v5377
    %v5379 = vpop.f32.mrf.mxu0
    %5380 = vmatprep.mubr.bf16.mxu0 0
    %5381 = vmatmul.mubr.bf16.gmra.mxu0 %v5112
    %v5382 = vpop.f32.mrf.mxu0
    %v5383 = vadd.f32 0.0, %v5382
    %v5384 = vpop.f32.mrf.mxu0
    %v5385 = vpop.f32.mrf.mxu0
    %v5386 = vadd.f32 0.0, %v5385
    %v5387 = vpop.f32.mrf.mxu0
    %5388 = vmatprep.mubr.bf16.mxu0 0
    %5389 = vmatmul.mubr.bf16.gmra.mxu0 %v5113
    %v5390 = vpop.f32.mrf.mxu0
    %v5391 = vadd.f32 0.0, %v5390
    %v5392 = vpop.f32.mrf.mxu0
    %v5393 = vpop.f32.mrf.mxu0
    %v5394 = vadd.f32 0.0, %v5393
    %v5395 = vpop.f32.mrf.mxu0
    %5396 = vmatprep.mubr.bf16.mxu0 0
    %5397 = vmatmul.mubr.bf16.gmra.mxu0 %v5114
    %v5398 = vpop.f32.mrf.mxu0
    %v5399 = vadd.f32 0.0, %v5398
    %v5400 = vpop.f32.mrf.mxu0
    %v5401 = vpop.f32.mrf.mxu0
    %v5402 = vadd.f32 0.0, %v5401
    %v5403 = vpop.f32.mrf.mxu0
    %5404 = vmatprep.mubr.bf16.mxu0 0
    %5405 = vmatmul.mubr.bf16.gmra.mxu0 %v5115
    %v5406 = vpop.f32.mrf.mxu0
    %v5407 = vadd.f32 0.0, %v5406
    %v5408 = vpop.f32.mrf.mxu0
    %v5409 = vpop.f32.mrf.mxu0
    %v5410 = vadd.f32 0.0, %v5409
    %v5411 = vpop.f32.mrf.mxu0
    %5412 = vmatprep.mubr.bf16.mxu0 0
    %5413 = vmatmul.mubr.bf16.gmra.mxu0 %v5116
    %v5414 = vpop.f32.mrf.mxu0
    %v5415 = vadd.f32 0.0, %v5414
    %v5416 = vpop.f32.mrf.mxu0
    %v5417 = vpop.f32.mrf.mxu0
    %v5418 = vadd.f32 0.0, %v5417
    %v5419 = vpop.f32.mrf.mxu0
    %5420 = vmatprep.mubr.bf16.mxu0 0
    %5421 = vmatmul.mubr.bf16.gmra.mxu0 %v5117
    %v5422 = vpop.f32.mrf.mxu0
    %v5423 = vadd.f32 0.0, %v5422
    %v5424 = vpop.f32.mrf.mxu0
    %v5425 = vpop.f32.mrf.mxu0
    %v5426 = vadd.f32 0.0, %v5425
    %v5427 = vpop.f32.mrf.mxu0
    %5428 = vmatprep.mubr.bf16.mxu0 0
    %5429 = vmatmul.mubr.bf16.gmra.mxu0 %v5118
    %v5430 = vpop.f32.mrf.mxu0
    %v5431 = vadd.f32 0.0, %v5430
    %v5432 = vpop.f32.mrf.mxu0
    %v5433 = vpop.f32.mrf.mxu0
    %v5434 = vadd.f32 0.0, %v5433
    %v5435 = vpop.f32.mrf.mxu0
    %5436 = vmatprep.mubr.bf16.mxu0 0
    %5437 = vmatmul.mubr.bf16.gmra.mxu0 %v5119
    %v5438 = vpop.f32.mrf.mxu0
    %v5439 = vadd.f32 0.0, %v5438
    %v5440 = vpop.f32.mrf.mxu0
    %v5441 = vpop.f32.mrf.mxu0
    %v5442 = vadd.f32 0.0, %v5441
    %v5443 = vpop.f32.mrf.mxu0
    %5444 = vmatprep.mubr.bf16.mxu0 0
    %5445 = vmatmul.mubr.bf16.gmra.mxu0 %v5120
    %v5446 = vpop.f32.mrf.mxu0
    %v5447 = vadd.f32 0.0, %v5446
    %v5448 = vpop.f32.mrf.mxu0
    %v5449 = vpop.f32.mrf.mxu0
    %v5450 = vadd.f32 0.0, %v5449
    %v5451 = vpop.f32.mrf.mxu0
    %5452 = vmatprep.mubr.bf16.mxu0 0
    %5453 = vmatmul.mubr.bf16.gmra.mxu0 %v5121
    %v5454 = vpop.f32.mrf.mxu0
    %v5455 = vadd.f32 0.0, %v5454
    %v5456 = vpop.f32.mrf.mxu0
    %v5457 = vpop.f32.mrf.mxu0
    %v5458 = vadd.f32 0.0, %v5457
    %v5459 = vpop.f32.mrf.mxu0
    %5460 = vmatprep.mubr.bf16.mxu0 0
    %5461 = vmatmul.mubr.bf16.gmra.mxu0 %v5122
    %v5462 = vpop.f32.mrf.mxu0
    %v5463 = vadd.f32 0.0, %v5462
    %v5464 = vpop.f32.mrf.mxu0
    %v5465 = vpop.f32.mrf.mxu0
    %v5466 = vadd.f32 0.0, %v5465
    %v5467 = vpop.f32.mrf.mxu0
    %5468 = vmatprep.mubr.bf16.mxu0 0
    %5469 = vmatmul.mubr.bf16.gmra.mxu0 %v5123
    %v5470 = vpop.f32.mrf.mxu0
    %v5471 = vadd.f32 0.0, %v5470
    %v5472 = vpop.f32.mrf.mxu0
    %v5473 = vpop.f32.mrf.mxu0
    %v5474 = vadd.f32 0.0, %v5473
    %v5475 = vpop.f32.mrf.mxu0
    %5476 = vdwg.mxu0
    %v5477 = vadd.f32 %v4836, %v5223
    %v5478 = vadd.f32 %v4837, %v5226
    %v5479 = vadd.f32 %v4838, %v5231
    %v5480 = vadd.f32 %v4839, %v5234
    %v5481 = vadd.f32 %v4840, %v5239
    %v5482 = vadd.f32 %v4841, %v5242
    %v5483 = vadd.f32 %v4842, %v5247
    %v5484 = vadd.f32 %v4843, %v5250
    %v5485 = vadd.f32 %v4844, %v5255
    %v5486 = vadd.f32 %v4845, %v5258
    %v5487 = vadd.f32 %v4846, %v5263
    %v5488 = vadd.f32 %v4847, %v5266
    %v5489 = vadd.f32 %v4848, %v5271
    %v5490 = vadd.f32 %v4849, %v5274
    %v5491 = vadd.f32 %v4850, %v5279
    %v5492 = vadd.f32 %v4851, %v5282
    %v5493 = vadd.f32 %v4852, %v5287
    %v5494 = vadd.f32 %v4853, %v5290
    %v5495 = vadd.f32 %v4854, %v5295
    %v5496 = vadd.f32 %v4855, %v5298
    %v5497 = vadd.f32 %v4856, %v5303
    %v5498 = vadd.f32 %v4857, %v5306
    %v5499 = vadd.f32 %v4858, %v5311
    %v5500 = vadd.f32 %v4859, %v5314
    %v5501 = vadd.f32 %v4860, %v5319
    %v5502 = vadd.f32 %v4861, %v5322
    %v5503 = vadd.f32 %v4862, %v5327
    %v5504 = vadd.f32 %v4863, %v5330
    %v5505 = vadd.f32 %v4864, %v5335
    %v5506 = vadd.f32 %v4865, %v5338
    %v5507 = vadd.f32 %v4866, %v5343
    %v5508 = vadd.f32 %v4867, %v5346
    %v5509 = vadd.f32 %v4868, %v5351
    %v5510 = vadd.f32 %v4869, %v5354
    %v5511 = vadd.f32 %v4870, %v5359
    %v5512 = vadd.f32 %v4871, %v5362
    %v5513 = vadd.f32 %v4872, %v5367
    %v5514 = vadd.f32 %v4873, %v5370
    %v5515 = vadd.f32 %v4874, %v5375
    %v5516 = vadd.f32 %v4875, %v5378
    %v5517 = vadd.f32 %v4876, %v5383
    %v5518 = vadd.f32 %v4877, %v5386
    %v5519 = vadd.f32 %v4878, %v5391
    %v5520 = vadd.f32 %v4879, %v5394
    %v5521 = vadd.f32 %v4880, %v5399
    %v5522 = vadd.f32 %v4881, %v5402
    %v5523 = vadd.f32 %v4882, %v5407
    %v5524 = vadd.f32 %v4883, %v5410
    %v5525 = vadd.f32 %v4884, %v5415
    %v5526 = vadd.f32 %v4885, %v5418
    %v5527 = vadd.f32 %v4886, %v5423
    %v5528 = vadd.f32 %v4887, %v5426
    %v5529 = vadd.f32 %v4888, %v5431
    %v5530 = vadd.f32 %v4889, %v5434
    %v5531 = vadd.f32 %v4890, %v5439
    %v5532 = vadd.f32 %v4891, %v5442
    %v5533 = vadd.f32 %v4892, %v5447
    %v5534 = vadd.f32 %v4893, %v5450
    %v5535 = vadd.f32 %v4894, %v5455
    %v5536 = vadd.f32 %v4895, %v5458
    %v5537 = vadd.f32 %v4896, %v5463
    %v5538 = vadd.f32 %v4897, %v5466
    %v5539 = vadd.f32 %v4898, %v5471
    %v5540 = vadd.f32 %v4899, %v5474
    %v5541 = vmax.f32 %v5477, 0.0
    %v5542 = vmax.f32 %v5478, 0.0
    %v5543 = vmax.f32 %v5479, 0.0
    %v5544 = vmax.f32 %v5480, 0.0
    %v5545 = vmax.f32 %v5481, 0.0
    %v5546 = vmax.f32 %v5482, 0.0
    %v5547 = vmax.f32 %v5483, 0.0
    %v5548 = vmax.f32 %v5484, 0.0
    %v5549 = vmax.f32 %v5485, 0.0
    %v5550 = vmax.f32 %v5486, 0.0
    %v5551 = vmax.f32 %v5487, 0.0
    %v5552 = vmax.f32 %v5488, 0.0
    %v5553 = vmax.f32 %v5489, 0.0
    %v5554 = vmax.f32 %v5490, 0.0
    %v5555 = vmax.f32 %v5491, 0.0
    %v5556 = vmax.f32 %v5492, 0.0
    %v5557 = vmax.f32 %v5493, 0.0
    %v5558 = vmax.f32 %v5494, 0.0
    %v5559 = vmax.f32 %v5495, 0.0
    %v5560 = vmax.f32 %v5496, 0.0
    %v5561 = vmax.f32 %v5497, 0.0
    %v5562 = vmax.f32 %v5498, 0.0
    %v5563 = vmax.f32 %v5499, 0.0
    %v5564 = vmax.f32 %v5500, 0.0
    %v5565 = vmax.f32 %v5501, 0.0
    %v5566 = vmax.f32 %v5502, 0.0
    %v5567 = vmax.f32 %v5503, 0.0
    %v5568 = vmax.f32 %v5504, 0.0
    %v5569 = vmax.f32 %v5505, 0.0
    %v5570 = vmax.f32 %v5506, 0.0
    %v5571 = vmax.f32 %v5507, 0.0
    %v5572 = vmax.f32 %v5508, 0.0
    %v5573 = vmax.f32 %v5509, 0.0
    %v5574 = vmax.f32 %v5510, 0.0
    %v5575 = vmax.f32 %v5511, 0.0
    %v5576 = vmax.f32 %v5512, 0.0
    %v5577 = vmax.f32 %v5513, 0.0
    %v5578 = vmax.f32 %v5514, 0.0
    %v5579 = vmax.f32 %v5515, 0.0
    %v5580 = vmax.f32 %v5516, 0.0
    %v5581 = vmax.f32 %v5517, 0.0
    %v5582 = vmax.f32 %v5518, 0.0
    %v5583 = vmax.f32 %v5519, 0.0
    %v5584 = vmax.f32 %v5520, 0.0
    %v5585 = vmax.f32 %v5521, 0.0
    %v5586 = vmax.f32 %v5522, 0.0
    %v5587 = vmax.f32 %v5523, 0.0
    %v5588 = vmax.f32 %v5524, 0.0
    %v5589 = vmax.f32 %v5525, 0.0
    %v5590 = vmax.f32 %v5526, 0.0
    %v5591 = vmax.f32 %v5527, 0.0
    %v5592 = vmax.f32 %v5528, 0.0
    %v5593 = vmax.f32 %v5529, 0.0
    %v5594 = vmax.f32 %v5530, 0.0
    %v5595 = vmax.f32 %v5531, 0.0
    %v5596 = vmax.f32 %v5532, 0.0
    %v5597 = vmax.f32 %v5533, 0.0
    %v5598 = vmax.f32 %v5534, 0.0
    %v5599 = vmax.f32 %v5535, 0.0
    %v5600 = vmax.f32 %v5536, 0.0
    %v5601 = vmax.f32 %v5537, 0.0
    %v5602 = vmax.f32 %v5538, 0.0
    %v5603 = vmax.f32 %v5539, 0.0
    %v5604 = vmax.f32 %v5540, 0.0
    %v5605 = vpack.c.bf16 %v5542, %v5541
    %v5606 = vpack.c.bf16 %v5544, %v5543
    %v5607 = vpack.c.bf16 %v5546, %v5545
    %v5608 = vpack.c.bf16 %v5548, %v5547
    %v5609 = vpack.c.bf16 %v5550, %v5549
    %v5610 = vpack.c.bf16 %v5552, %v5551
    %v5611 = vpack.c.bf16 %v5554, %v5553
    %v5612 = vpack.c.bf16 %v5556, %v5555
    %v5613 = vpack.c.bf16 %v5558, %v5557
    %v5614 = vpack.c.bf16 %v5560, %v5559
    %v5615 = vpack.c.bf16 %v5562, %v5561
    %v5616 = vpack.c.bf16 %v5564, %v5563
    %v5617 = vpack.c.bf16 %v5566, %v5565
    %v5618 = vpack.c.bf16 %v5568, %v5567
    %v5619 = vpack.c.bf16 %v5570, %v5569
    %v5620 = vpack.c.bf16 %v5572, %v5571
    %v5621 = vpack.c.bf16 %v5574, %v5573
    %v5622 = vpack.c.bf16 %v5576, %v5575
    %v5623 = vpack.c.bf16 %v5578, %v5577
    %v5624 = vpack.c.bf16 %v5580, %v5579
    %v5625 = vpack.c.bf16 %v5582, %v5581
    %v5626 = vpack.c.bf16 %v5584, %v5583
    %v5627 = vpack.c.bf16 %v5586, %v5585
    %v5628 = vpack.c.bf16 %v5588, %v5587
    %v5629 = vpack.c.bf16 %v5590, %v5589
    %v5630 = vpack.c.bf16 %v5592, %v5591
    %v5631 = vpack.c.bf16 %v5594, %v5593
    %v5632 = vpack.c.bf16 %v5596, %v5595
    %v5633 = vpack.c.bf16 %v5598, %v5597
    %v5634 = vpack.c.bf16 %v5600, %v5599
    %v5635 = vpack.c.bf16 %v5602, %v5601
    %v5636 = vpack.c.bf16 %v5604, %v5603
    %v5637 = vld [vmem:[#allocation10] sm:$0xf]
    %v5638 = vld [vmem:[#allocation10 + $0x4] sm:$0xf]
    %v5639 = vld [vmem:[#allocation10 + $0x8] sm:$0xf]
    %v5640 = vld [vmem:[#allocation10 + $0xc] sm:$0xf]
    %v5641 = vld [vmem:[#allocation10 + $0x10] sm:$0xf]
    %v5642 = vld [vmem:[#allocation10 + $0x14] sm:$0xf]
    %v5643 = vld [vmem:[#allocation10 + $0x18] sm:$0xf]
    %v5644 = vld [vmem:[#allocation10 + $0x1c] sm:$0xf]
    %v5645 = vld [vmem:[#allocation10 + $0x20] sm:$0xf]
    %v5646 = vld [vmem:[#allocation10 + $0x24] sm:$0xf]
    %v5647 = vld [vmem:[#allocation10 + $0x28] sm:$0xf]
    %v5648 = vld [vmem:[#allocation10 + $0x2c] sm:$0xf]
    %v5649 = vld [vmem:[#allocation10 + $0x30] sm:$0xf]
    %v5650 = vld [vmem:[#allocation10 + $0x34] sm:$0xf]
    %v5651 = vld [vmem:[#allocation10 + $0x38] sm:$0xf]
    %v5652 = vld [vmem:[#allocation10 + $0x3c] sm:$0xf]
    %v5653 = vld [vmem:[%s8] sm:$0x1]
    %v5655 = vlaneseq
    %v5656 = vshrl.u32 %v5655, 7
    %v5657 = vsub.s32 0, %v5656
    %v5658 = vrot.slane %v5653, %v5657
    %v5676 = vunpack.c.l.b16 %v5637
    %v5677 = vunpack.c.l.b16 %v5638
    %v5678 = vunpack.c.l.b16 %v5639
    %v5679 = vunpack.c.l.b16 %v5640
    %v5680 = vunpack.c.l.b16 %v5641
    %v5681 = vunpack.c.l.b16 %v5642
    %v5682 = vunpack.c.l.b16 %v5643
    %v5683 = vunpack.c.l.b16 %v5644
    %v5684 = vunpack.c.l.b16 %v5645
    %v5685 = vunpack.c.l.b16 %v5646
    %v5686 = vunpack.c.l.b16 %v5647
    %v5687 = vunpack.c.l.b16 %v5648
    %v5688 = vunpack.c.l.b16 %v5649
    %v5689 = vunpack.c.l.b16 %v5650
    %v5690 = vunpack.c.l.b16 %v5651
    %v5691 = vunpack.c.l.b16 %v5652
    %v5692 = vpack.c.b16 %v5677, %v5676
    %v5693 = vpack.c.b16 %v5679, %v5678
    %v5694 = vpack.c.b16 %v5681, %v5680
    %v5695 = vpack.c.b16 %v5683, %v5682
    %v5696 = vpack.c.b16 %v5685, %v5684
    %v5697 = vpack.c.b16 %v5687, %v5686
    %v5698 = vpack.c.b16 %v5689, %v5688
    %v5699 = vpack.c.b16 %v5691, %v5690
    %5708 = vmatprep.subr.bf16.mxu0 0
    %5709 = vmatpush1.bf16.msra.mxu0 %v5699
    %5710 = vmatprep.subr.bf16.mxu0 0
    %5711 = vmatpush1.bf16.msra.mxu0 %v5698
    %5712 = vmatprep.subr.bf16.mxu0 0
    %5713 = vmatpush1.bf16.msra.mxu0 %v5697
    %5714 = vmatprep.subr.bf16.mxu0 0
    %5715 = vmatpush1.bf16.msra.mxu0 %v5696
    %5716 = vmatprep.subr.bf16.mxu0 0
    %5717 = vmatpush1.bf16.msra.mxu0 %v5695
    %5718 = vmatprep.subr.bf16.mxu0 0
    %5719 = vmatpush1.bf16.msra.mxu0 %v5694
    %5720 = vmatprep.subr.bf16.mxu0 0
    %5721 = vmatpush1.bf16.msra.mxu0 %v5693
    %5722 = vmatprep.subr.bf16.mxu0 0
    %5723 = vmatpush1.bf16.msra.mxu0 %v5692
    %5724 = vmatprep.subr.bf16.mxu0 0
    %5725 = vmatpush2.bf16.msra.mxu0 0
    %5726 = vmatprep.subr.bf16.mxu0 0
    %5727 = vmatpush2.bf16.msra.mxu0 0
    %5728 = vmatprep.subr.bf16.mxu0 0
    %5729 = vmatpush2.bf16.msra.mxu0 0
    %5730 = vmatprep.subr.bf16.mxu0 0
    %5731 = vmatpush2.bf16.msra.mxu0 0
    %5732 = vmatprep.subr.bf16.mxu0 0
    %5733 = vmatpush2.bf16.msra.mxu0 0
    %5734 = vmatprep.subr.bf16.mxu0 0
    %5735 = vmatpush2.bf16.msra.mxu0 0
    %5736 = vmatprep.subr.bf16.mxu0 0
    %5737 = vmatpush2.bf16.msra.mxu0 0
    %5738 = vmatprep.subr.bf16.mxu0 0
    %5739 = vmatpush2.bf16.msra.mxu0 0
    %5740 = vmatprep.mubr.bf16.mxu0 0
    %5741 = vmatmul.mubr.bf16.gmra.mxu0 %v5605
    %v5742 = vpop.f32.mrf.mxu0
    %v5743 = vadd.f32 %v5658, %v5742
    %v5744 = vpop.f32.mrf.mxu0
    %v5745 = vpop.f32.mrf.mxu0
    %v5746 = vadd.f32 %v5658, %v5745
    %v5747 = vpop.f32.mrf.mxu0
    %5748 = vmatprep.mubr.bf16.mxu0 0
    %5749 = vmatmul.mubr.bf16.gmra.mxu0 %v5606
    %v5750 = vpop.f32.mrf.mxu0
    %v5751 = vadd.f32 %v5658, %v5750
    %v5752 = vpop.f32.mrf.mxu0
    %v5753 = vpop.f32.mrf.mxu0
    %v5754 = vadd.f32 %v5658, %v5753
    %v5755 = vpop.f32.mrf.mxu0
    %5756 = vmatprep.mubr.bf16.mxu0 0
    %5757 = vmatmul.mubr.bf16.gmra.mxu0 %v5607
    %v5758 = vpop.f32.mrf.mxu0
    %v5759 = vadd.f32 %v5658, %v5758
    %v5760 = vpop.f32.mrf.mxu0
    %v5761 = vpop.f32.mrf.mxu0
    %v5762 = vadd.f32 %v5658, %v5761
    %v5763 = vpop.f32.mrf.mxu0
    %5764 = vmatprep.mubr.bf16.mxu0 0
    %5765 = vmatmul.mubr.bf16.gmra.mxu0 %v5608
    %v5766 = vpop.f32.mrf.mxu0
    %v5767 = vadd.f32 %v5658, %v5766
    %v5768 = vpop.f32.mrf.mxu0
    %v5769 = vpop.f32.mrf.mxu0
    %v5770 = vadd.f32 %v5658, %v5769
    %v5771 = vpop.f32.mrf.mxu0
    %5772 = vmatprep.mubr.bf16.mxu0 0
    %5773 = vmatmul.mubr.bf16.gmra.mxu0 %v5609
    %v5774 = vpop.f32.mrf.mxu0
    %v5775 = vadd.f32 %v5658, %v5774
    %v5776 = vpop.f32.mrf.mxu0
    %v5777 = vpop.f32.mrf.mxu0
    %v5778 = vadd.f32 %v5658, %v5777
    %v5779 = vpop.f32.mrf.mxu0
    %5780 = vmatprep.mubr.bf16.mxu0 0
    %5781 = vmatmul.mubr.bf16.gmra.mxu0 %v5610
    %v5782 = vpop.f32.mrf.mxu0
    %v5783 = vadd.f32 %v5658, %v5782
    %v5784 = vpop.f32.mrf.mxu0
    %v5785 = vpop.f32.mrf.mxu0
    %v5786 = vadd.f32 %v5658, %v5785
    %v5787 = vpop.f32.mrf.mxu0
    %5788 = vmatprep.mubr.bf16.mxu0 0
    %5789 = vmatmul.mubr.bf16.gmra.mxu0 %v5611
    %v5790 = vpop.f32.mrf.mxu0
    %v5791 = vadd.f32 %v5658, %v5790
    %v5792 = vpop.f32.mrf.mxu0
    %v5793 = vpop.f32.mrf.mxu0
    %v5794 = vadd.f32 %v5658, %v5793
    %v5795 = vpop.f32.mrf.mxu0
    %5796 = vmatprep.mubr.bf16.mxu0 0
    %5797 = vmatmul.mubr.bf16.gmra.mxu0 %v5612
    %v5798 = vpop.f32.mrf.mxu0
    %v5799 = vadd.f32 %v5658, %v5798
    %v5800 = vpop.f32.mrf.mxu0
    %v5801 = vpop.f32.mrf.mxu0
    %v5802 = vadd.f32 %v5658, %v5801
    %v5803 = vpop.f32.mrf.mxu0
    %5804 = vmatprep.mubr.bf16.mxu0 0
    %5805 = vmatmul.mubr.bf16.gmra.mxu0 %v5613
    %v5806 = vpop.f32.mrf.mxu0
    %v5807 = vadd.f32 %v5658, %v5806
    %v5808 = vpop.f32.mrf.mxu0
    %v5809 = vpop.f32.mrf.mxu0
    %v5810 = vadd.f32 %v5658, %v5809
    %v5811 = vpop.f32.mrf.mxu0
    %5812 = vmatprep.mubr.bf16.mxu0 0
    %5813 = vmatmul.mubr.bf16.gmra.mxu0 %v5614
    %v5814 = vpop.f32.mrf.mxu0
    %v5815 = vadd.f32 %v5658, %v5814
    %v5816 = vpop.f32.mrf.mxu0
    %v5817 = vpop.f32.mrf.mxu0
    %v5818 = vadd.f32 %v5658, %v5817
    %v5819 = vpop.f32.mrf.mxu0
    %5820 = vmatprep.mubr.bf16.mxu0 0
    %5821 = vmatmul.mubr.bf16.gmra.mxu0 %v5615
    %v5822 = vpop.f32.mrf.mxu0
    %v5823 = vadd.f32 %v5658, %v5822
    %v5824 = vpop.f32.mrf.mxu0
    %v5825 = vpop.f32.mrf.mxu0
    %v5826 = vadd.f32 %v5658, %v5825
    %v5827 = vpop.f32.mrf.mxu0
    %5828 = vmatprep.mubr.bf16.mxu0 0
    %5829 = vmatmul.mubr.bf16.gmra.mxu0 %v5616
    %v5830 = vpop.f32.mrf.mxu0
    %v5831 = vadd.f32 %v5658, %v5830
    %v5832 = vpop.f32.mrf.mxu0
    %v5833 = vpop.f32.mrf.mxu0
    %v5834 = vadd.f32 %v5658, %v5833
    %v5835 = vpop.f32.mrf.mxu0
    %5836 = vmatprep.mubr.bf16.mxu0 0
    %5837 = vmatmul.mubr.bf16.gmra.mxu0 %v5617
    %v5838 = vpop.f32.mrf.mxu0
    %v5839 = vadd.f32 %v5658, %v5838
    %v5840 = vpop.f32.mrf.mxu0
    %v5841 = vpop.f32.mrf.mxu0
    %v5842 = vadd.f32 %v5658, %v5841
    %v5843 = vpop.f32.mrf.mxu0
    %5844 = vmatprep.mubr.bf16.mxu0 0
    %5845 = vmatmul.mubr.bf16.gmra.mxu0 %v5618
    %v5846 = vpop.f32.mrf.mxu0
    %v5847 = vadd.f32 %v5658, %v5846
    %v5848 = vpop.f32.mrf.mxu0
    %v5849 = vpop.f32.mrf.mxu0
    %v5850 = vadd.f32 %v5658, %v5849
    %v5851 = vpop.f32.mrf.mxu0
    %5852 = vmatprep.mubr.bf16.mxu0 0
    %5853 = vmatmul.mubr.bf16.gmra.mxu0 %v5619
    %v5854 = vpop.f32.mrf.mxu0
    %v5855 = vadd.f32 %v5658, %v5854
    %v5856 = vpop.f32.mrf.mxu0
    %v5857 = vpop.f32.mrf.mxu0
    %v5858 = vadd.f32 %v5658, %v5857
    %v5859 = vpop.f32.mrf.mxu0
    %5860 = vmatprep.mubr.bf16.mxu0 0
    %5861 = vmatmul.mubr.bf16.gmra.mxu0 %v5620
    %v5862 = vpop.f32.mrf.mxu0
    %v5863 = vadd.f32 %v5658, %v5862
    %v5864 = vpop.f32.mrf.mxu0
    %v5865 = vpop.f32.mrf.mxu0
    %v5866 = vadd.f32 %v5658, %v5865
    %v5867 = vpop.f32.mrf.mxu0
    %5868 = vmatprep.mubr.bf16.mxu0 0
    %5869 = vmatmul.mubr.bf16.gmra.mxu0 %v5621
    %v5870 = vpop.f32.mrf.mxu0
    %v5871 = vadd.f32 %v5658, %v5870
    %v5872 = vpop.f32.mrf.mxu0
    %v5873 = vpop.f32.mrf.mxu0
    %v5874 = vadd.f32 %v5658, %v5873
    %v5875 = vpop.f32.mrf.mxu0
    %5876 = vmatprep.mubr.bf16.mxu0 0
    %5877 = vmatmul.mubr.bf16.gmra.mxu0 %v5622
    %v5878 = vpop.f32.mrf.mxu0
    %v5879 = vadd.f32 %v5658, %v5878
    %v5880 = vpop.f32.mrf.mxu0
    %v5881 = vpop.f32.mrf.mxu0
    %v5882 = vadd.f32 %v5658, %v5881
    %v5883 = vpop.f32.mrf.mxu0
    %5884 = vmatprep.mubr.bf16.mxu0 0
    %5885 = vmatmul.mubr.bf16.gmra.mxu0 %v5623
    %v5886 = vpop.f32.mrf.mxu0
    %v5887 = vadd.f32 %v5658, %v5886
    %v5888 = vpop.f32.mrf.mxu0
    %v5889 = vpop.f32.mrf.mxu0
    %v5890 = vadd.f32 %v5658, %v5889
    %v5891 = vpop.f32.mrf.mxu0
    %5892 = vmatprep.mubr.bf16.mxu0 0
    %5893 = vmatmul.mubr.bf16.gmra.mxu0 %v5624
    %v5894 = vpop.f32.mrf.mxu0
    %v5895 = vadd.f32 %v5658, %v5894
    %v5896 = vpop.f32.mrf.mxu0
    %v5897 = vpop.f32.mrf.mxu0
    %v5898 = vadd.f32 %v5658, %v5897
    %v5899 = vpop.f32.mrf.mxu0
    %5900 = vmatprep.mubr.bf16.mxu0 0
    %5901 = vmatmul.mubr.bf16.gmra.mxu0 %v5625
    %v5902 = vpop.f32.mrf.mxu0
    %v5903 = vadd.f32 %v5658, %v5902
    %v5904 = vpop.f32.mrf.mxu0
    %v5905 = vpop.f32.mrf.mxu0
    %v5906 = vadd.f32 %v5658, %v5905
    %v5907 = vpop.f32.mrf.mxu0
    %5908 = vmatprep.mubr.bf16.mxu0 0
    %5909 = vmatmul.mubr.bf16.gmra.mxu0 %v5626
    %v5910 = vpop.f32.mrf.mxu0
    %v5911 = vadd.f32 %v5658, %v5910
    %v5912 = vpop.f32.mrf.mxu0
    %v5913 = vpop.f32.mrf.mxu0
    %v5914 = vadd.f32 %v5658, %v5913
    %v5915 = vpop.f32.mrf.mxu0
    %5916 = vmatprep.mubr.bf16.mxu0 0
    %5917 = vmatmul.mubr.bf16.gmra.mxu0 %v5627
    %v5918 = vpop.f32.mrf.mxu0
    %v5919 = vadd.f32 %v5658, %v5918
    %v5920 = vpop.f32.mrf.mxu0
    %v5921 = vpop.f32.mrf.mxu0
    %v5922 = vadd.f32 %v5658, %v5921
    %v5923 = vpop.f32.mrf.mxu0
    %5924 = vmatprep.mubr.bf16.mxu0 0
    %5925 = vmatmul.mubr.bf16.gmra.mxu0 %v5628
    %v5926 = vpop.f32.mrf.mxu0
    %v5927 = vadd.f32 %v5658, %v5926
    %v5928 = vpop.f32.mrf.mxu0
    %v5929 = vpop.f32.mrf.mxu0
    %v5930 = vadd.f32 %v5658, %v5929
    %v5931 = vpop.f32.mrf.mxu0
    %5932 = vmatprep.mubr.bf16.mxu0 0
    %5933 = vmatmul.mubr.bf16.gmra.mxu0 %v5629
    %v5934 = vpop.f32.mrf.mxu0
    %v5935 = vadd.f32 %v5658, %v5934
    %v5936 = vpop.f32.mrf.mxu0
    %v5937 = vpop.f32.mrf.mxu0
    %v5938 = vadd.f32 %v5658, %v5937
    %v5939 = vpop.f32.mrf.mxu0
    %5940 = vmatprep.mubr.bf16.mxu0 0
    %5941 = vmatmul.mubr.bf16.gmra.mxu0 %v5630
    %v5942 = vpop.f32.mrf.mxu0
    %v5943 = vadd.f32 %v5658, %v5942
    %v5944 = vpop.f32.mrf.mxu0
    %v5945 = vpop.f32.mrf.mxu0
    %v5946 = vadd.f32 %v5658, %v5945
    %v5947 = vpop.f32.mrf.mxu0
    %5948 = vmatprep.mubr.bf16.mxu0 0
    %5949 = vmatmul.mubr.bf16.gmra.mxu0 %v5631
    %v5950 = vpop.f32.mrf.mxu0
    %v5951 = vadd.f32 %v5658, %v5950
    %v5952 = vpop.f32.mrf.mxu0
    %v5953 = vpop.f32.mrf.mxu0
    %v5954 = vadd.f32 %v5658, %v5953
    %v5955 = vpop.f32.mrf.mxu0
    %5956 = vmatprep.mubr.bf16.mxu0 0
    %5957 = vmatmul.mubr.bf16.gmra.mxu0 %v5632
    %v5958 = vpop.f32.mrf.mxu0
    %v5959 = vadd.f32 %v5658, %v5958
    %v5960 = vpop.f32.mrf.mxu0
    %v5961 = vpop.f32.mrf.mxu0
    %v5962 = vadd.f32 %v5658, %v5961
    %v5963 = vpop.f32.mrf.mxu0
    %5964 = vmatprep.mubr.bf16.mxu0 0
    %5965 = vmatmul.mubr.bf16.gmra.mxu0 %v5633
    %v5966 = vpop.f32.mrf.mxu0
    %v5967 = vadd.f32 %v5658, %v5966
    %v5968 = vpop.f32.mrf.mxu0
    %v5969 = vpop.f32.mrf.mxu0
    %v5970 = vadd.f32 %v5658, %v5969
    %v5971 = vpop.f32.mrf.mxu0
    %5972 = vmatprep.mubr.bf16.mxu0 0
    %5973 = vmatmul.mubr.bf16.gmra.mxu0 %v5634
    %v5974 = vpop.f32.mrf.mxu0
    %v5975 = vadd.f32 %v5658, %v5974
    %v5976 = vpop.f32.mrf.mxu0
    %v5977 = vpop.f32.mrf.mxu0
    %v5978 = vadd.f32 %v5658, %v5977
    %v5979 = vpop.f32.mrf.mxu0
    %5980 = vmatprep.mubr.bf16.mxu0 0
    %5981 = vmatmul.mubr.bf16.gmra.mxu0 %v5635
    %v5982 = vpop.f32.mrf.mxu0
    %v5983 = vadd.f32 %v5658, %v5982
    %v5984 = vpop.f32.mrf.mxu0
    %v5985 = vpop.f32.mrf.mxu0
    %v5986 = vadd.f32 %v5658, %v5985
    %v5987 = vpop.f32.mrf.mxu0
    %5988 = vmatprep.mubr.bf16.mxu0 0
    %5989 = vmatmul.mubr.bf16.gmra.mxu0 %v5636
    %v5990 = vpop.f32.mrf.mxu0
    %v5991 = vadd.f32 %v5658, %v5990
    %v5992 = vpop.f32.mrf.mxu0
    %v5993 = vpop.f32.mrf.mxu0
    %v5994 = vadd.f32 %v5658, %v5993
    %v5995 = vpop.f32.mrf.mxu0
    %5996 = vdwg.mxu0
    %v5997 = vadd.f32 %v5743, %v5746
    %v5998 = vadd.f32 %v5997, %v5751
    %v5999 = vadd.f32 %v5998, %v5754
    %v6000 = vadd.f32 %v5999, %v5759
    %v6001 = vadd.f32 %v6000, %v5762
    %v6002 = vadd.f32 %v6001, %v5767
    %v6003 = vadd.f32 %v6002, %v5770
    %v6004 = vrot.slane %v6003, 4
    %v6005 = vadd.f32 %v6003, %v6004
    %v6006 = vrot.slane %v6005, 2
    %v6007 = vadd.f32 %v6005, %v6006
    %v6008 = vrot.slane %v6007, 1
    %v6009 = vadd.f32 %v6007, %v6008
    %v6010 = vadd.f32 %v5775, %v5778
    %v6011 = vadd.f32 %v6010, %v5783
    %v6012 = vadd.f32 %v6011, %v5786
    %v6013 = vadd.f32 %v6012, %v5791
    %v6014 = vadd.f32 %v6013, %v5794
    %v6015 = vadd.f32 %v6014, %v5799
    %v6016 = vadd.f32 %v6015, %v5802
    %v6017 = vrot.slane %v6016, 4
    %v6018 = vadd.f32 %v6016, %v6017
    %v6019 = vrot.slane %v6018, 2
    %v6020 = vadd.f32 %v6018, %v6019
    %v6021 = vrot.slane %v6020, 1
    %v6022 = vadd.f32 %v6020, %v6021
    %v6023 = vadd.f32 %v5807, %v5810
    %v6024 = vadd.f32 %v6023, %v5815
    %v6025 = vadd.f32 %v6024, %v5818
    %v6026 = vadd.f32 %v6025, %v5823
    %v6027 = vadd.f32 %v6026, %v5826
    %v6028 = vadd.f32 %v6027, %v5831
    %v6029 = vadd.f32 %v6028, %v5834
    %v6030 = vrot.slane %v6029, 4
    %v6031 = vadd.f32 %v6029, %v6030
    %v6032 = vrot.slane %v6031, 2
    %v6033 = vadd.f32 %v6031, %v6032
    %v6034 = vrot.slane %v6033, 1
    %v6035 = vadd.f32 %v6033, %v6034
    %v6036 = vadd.f32 %v5839, %v5842
    %v6037 = vadd.f32 %v6036, %v5847
    %v6038 = vadd.f32 %v6037, %v5850
    %v6039 = vadd.f32 %v6038, %v5855
    %v6040 = vadd.f32 %v6039, %v5858
    %v6041 = vadd.f32 %v6040, %v5863
    %v6042 = vadd.f32 %v6041, %v5866
    %v6043 = vrot.slane %v6042, 4
    %v6044 = vadd.f32 %v6042, %v6043
    %v6045 = vrot.slane %v6044, 2
    %v6046 = vadd.f32 %v6044, %v6045
    %v6047 = vrot.slane %v6046, 1
    %v6048 = vadd.f32 %v6046, %v6047
    %v6049 = vadd.f32 %v5871, %v5874
    %v6050 = vadd.f32 %v6049, %v5879
    %v6051 = vadd.f32 %v6050, %v5882
    %v6052 = vadd.f32 %v6051, %v5887
    %v6053 = vadd.f32 %v6052, %v5890
    %v6054 = vadd.f32 %v6053, %v5895
    %v6055 = vadd.f32 %v6054, %v5898
    %v6056 = vrot.slane %v6055, 4
    %v6057 = vadd.f32 %v6055, %v6056
    %v6058 = vrot.slane %v6057, 2
    %v6059 = vadd.f32 %v6057, %v6058
    %v6060 = vrot.slane %v6059, 1
    %v6061 = vadd.f32 %v6059, %v6060
    %v6062 = vadd.f32 %v5903, %v5906
    %v6063 = vadd.f32 %v6062, %v5911
    %v6064 = vadd.f32 %v6063, %v5914
    %v6065 = vadd.f32 %v6064, %v5919
    %v6066 = vadd.f32 %v6065, %v5922
    %v6067 = vadd.f32 %v6066, %v5927
    %v6068 = vadd.f32 %v6067, %v5930
    %v6069 = vrot.slane %v6068, 4
    %v6070 = vadd.f32 %v6068, %v6069
    %v6071 = vrot.slane %v6070, 2
    %v6072 = vadd.f32 %v6070, %v6071
    %v6073 = vrot.slane %v6072, 1
    %v6074 = vadd.f32 %v6072, %v6073
    %v6075 = vadd.f32 %v5935, %v5938
    %v6076 = vadd.f32 %v6075, %v5943
    %v6077 = vadd.f32 %v6076, %v5946
    %v6078 = vadd.f32 %v6077, %v5951
    %v6079 = vadd.f32 %v6078, %v5954
    %v6080 = vadd.f32 %v6079, %v5959
    %v6081 = vadd.f32 %v6080, %v5962
    %v6082 = vrot.slane %v6081, 4
    %v6083 = vadd.f32 %v6081, %v6082
    %v6084 = vrot.slane %v6083, 2
    %v6085 = vadd.f32 %v6083, %v6084
    %v6086 = vrot.slane %v6085, 1
    %v6087 = vadd.f32 %v6085, %v6086
    %v6088 = vadd.f32 %v5967, %v5970
    %v6089 = vadd.f32 %v6088, %v5975
    %v6090 = vadd.f32 %v6089, %v5978
    %v6091 = vadd.f32 %v6090, %v5983
    %v6092 = vadd.f32 %v6091, %v5986
    %v6093 = vadd.f32 %v6092, %v5991
    %v6094 = vadd.f32 %v6093, %v5994
    %v6095 = vrot.slane %v6094, 4
    %v6096 = vadd.f32 %v6094, %v6095
    %v6097 = vrot.slane %v6096, 2
    %v6098 = vadd.f32 %v6096, %v6097
    %v6099 = vrot.slane %v6098, 1
    %v6100 = vadd.f32 %v6098, %v6099
    %v6101 = vrcp.pop 64.0
    %v6102 = vmul.f32 %v6009, %v6101
    %v6103 = vmul.f32 %v6022, %v6101
    %v6104 = vmul.f32 %v6035, %v6101
    %v6105 = vmul.f32 %v6048, %v6101
    %v6106 = vmul.f32 %v6061, %v6101
    %v6107 = vmul.f32 %v6074, %v6101
    %v6108 = vmul.f32 %v6087, %v6101
    %v6109 = vmul.f32 %v6100, %v6101
    %v6110 = vxor.u32 %v6102, 2147483648
    %v6111 = vxor.u32 %v6103, 2147483648
    %v6112 = vxor.u32 %v6104, 2147483648
    %v6113 = vxor.u32 %v6105, 2147483648
    %v6114 = vxor.u32 %v6106, 2147483648
    %v6115 = vxor.u32 %v6107, 2147483648
    %v6116 = vxor.u32 %v6108, 2147483648
    %v6117 = vxor.u32 %v6109, 2147483648
    %v6118 = vmul.f32 %v6110, 1.442695
    %v6119 = vpow.pop %v6118
    %v6120 = vmul.f32 %v6111, 1.442695
    %v6121 = vpow.pop %v6120
    %v6122 = vmul.f32 %v6112, 1.442695
    %v6123 = vpow.pop %v6122
    %v6124 = vmul.f32 %v6113, 1.442695
    %v6125 = vpow.pop %v6124
    %v6126 = vmul.f32 %v6114, 1.442695
    %v6127 = vpow.pop %v6126
    %v6128 = vmul.f32 %v6115, 1.442695
    %v6129 = vpow.pop %v6128
    %v6130 = vmul.f32 %v6116, 1.442695
    %v6131 = vpow.pop %v6130
    %v6132 = vmul.f32 %v6117, 1.442695
    %v6133 = vpow.pop %v6132
    %v6134 = vadd.f32 %v6119, 1.0
    %v6135 = vadd.f32 %v6121, 1.0
    %v6136 = vadd.f32 %v6123, 1.0
    %v6137 = vadd.f32 %v6125, 1.0
    %v6138 = vadd.f32 %v6127, 1.0
    %v6139 = vadd.f32 %v6129, 1.0
    %v6140 = vadd.f32 %v6131, 1.0
    %v6141 = vadd.f32 %v6133, 1.0
    %v6142 = vrcp.pop %v6134
    %v6143 = vmul.f32 1.0, %v6142
    %v6144 = vrcp.pop %v6135
    %v6145 = vmul.f32 1.0, %v6144
    %v6146 = vrcp.pop %v6136
    %v6147 = vmul.f32 1.0, %v6146
    %v6148 = vrcp.pop %v6137
    %v6149 = vmul.f32 1.0, %v6148
    %v6150 = vrcp.pop %v6138
    %v6151 = vmul.f32 1.0, %v6150
    %v6152 = vrcp.pop %v6139
    %v6153 = vmul.f32 1.0, %v6152
    %v6154 = vrcp.pop %v6140
    %v6155 = vmul.f32 1.0, %v6154
    %v6156 = vrcp.pop %v6141
    %v6157 = vmul.f32 1.0, %v6156
    %v6158 = vmul.f32 %v6143, 2.0
    %v6159 = vmul.f32 %v6145, 2.0
    %v6160 = vmul.f32 %v6147, 2.0
    %v6161 = vmul.f32 %v6149, 2.0
    %v6162 = vmul.f32 %v6151, 2.0
    %v6163 = vmul.f32 %v6153, 2.0
    %v6164 = vmul.f32 %v6155, 2.0
    %v6165 = vmul.f32 %v6157, 2.0
    %v6166 = vmul.f32 %v5743, %v6158
    %v6167 = vmul.f32 %v5746, %v6158
    %v6168 = vmul.f32 %v5751, %v6158
    %v6169 = vmul.f32 %v5754, %v6158
    %v6170 = vmul.f32 %v5759, %v6158
    %v6171 = vmul.f32 %v5762, %v6158
    %v6172 = vmul.f32 %v5767, %v6158
    %v6173 = vmul.f32 %v5770, %v6158
    %v6174 = vmul.f32 %v5775, %v6159
    %v6175 = vmul.f32 %v5778, %v6159
    %v6176 = vmul.f32 %v5783, %v6159
    %v6177 = vmul.f32 %v5786, %v6159
    %v6178 = vmul.f32 %v5791, %v6159
    %v6179 = vmul.f32 %v5794, %v6159
    %v6180 = vmul.f32 %v5799, %v6159
    %v6181 = vmul.f32 %v5802, %v6159
    %v6182 = vmul.f32 %v5807, %v6160
    %v6183 = vmul.f32 %v5810, %v6160
    %v6184 = vmul.f32 %v5815, %v6160
    %v6185 = vmul.f32 %v5818, %v6160
    %v6186 = vmul.f32 %v5823, %v6160
    %v6187 = vmul.f32 %v5826, %v6160
    %v6188 = vmul.f32 %v5831, %v6160
    %v6189 = vmul.f32 %v5834, %v6160
    %v6190 = vmul.f32 %v5839, %v6161
    %v6191 = vmul.f32 %v5842, %v6161
    %v6192 = vmul.f32 %v5847, %v6161
    %v6193 = vmul.f32 %v5850, %v6161
    %v6194 = vmul.f32 %v5855, %v6161
    %v6195 = vmul.f32 %v5858, %v6161
    %v6196 = vmul.f32 %v5863, %v6161
    %v6197 = vmul.f32 %v5866, %v6161
    %v6198 = vmul.f32 %v5871, %v6162
    %v6199 = vmul.f32 %v5874, %v6162
    %v6200 = vmul.f32 %v5879, %v6162
    %v6201 = vmul.f32 %v5882, %v6162
    %v6202 = vmul.f32 %v5887, %v6162
    %v6203 = vmul.f32 %v5890, %v6162
    %v6204 = vmul.f32 %v5895, %v6162
    %v6205 = vmul.f32 %v5898, %v6162
    %v6206 = vmul.f32 %v5903, %v6163
    %v6207 = vmul.f32 %v5906, %v6163
    %v6208 = vmul.f32 %v5911, %v6163
    %v6209 = vmul.f32 %v5914, %v6163
    %v6210 = vmul.f32 %v5919, %v6163
    %v6211 = vmul.f32 %v5922, %v6163
    %v6212 = vmul.f32 %v5927, %v6163
    %v6213 = vmul.f32 %v5930, %v6163
    %v6214 = vmul.f32 %v5935, %v6164
    %v6215 = vmul.f32 %v5938, %v6164
    %v6216 = vmul.f32 %v5943, %v6164
    %v6217 = vmul.f32 %v5946, %v6164
    %v6218 = vmul.f32 %v5951, %v6164
    %v6219 = vmul.f32 %v5954, %v6164
    %v6220 = vmul.f32 %v5959, %v6164
    %v6221 = vmul.f32 %v5962, %v6164
    %v6222 = vmul.f32 %v5967, %v6165
    %v6223 = vmul.f32 %v5970, %v6165
    %v6224 = vmul.f32 %v5975, %v6165
    %v6225 = vmul.f32 %v5978, %v6165
    %v6226 = vmul.f32 %v5983, %v6165
    %v6227 = vmul.f32 %v5986, %v6165
    %v6228 = vmul.f32 %v5991, %v6165
    %v6229 = vmul.f32 %v5994, %v6165
    %v6230 = vunpack.c.l.bf16 %v102
    %v6231 = vunpack.c.l.bf16 %v103
    %v6232 = vunpack.c.l.bf16 %v104
    %v6233 = vunpack.c.l.bf16 %v105
    %v6234 = vunpack.c.l.bf16 %v106
    %v6235 = vunpack.c.l.bf16 %v107
    %v6236 = vunpack.c.l.bf16 %v108
    %v6237 = vunpack.c.l.bf16 %v109
    %v6238 = vunpack.c.l.bf16 %v110
    %v6239 = vunpack.c.l.bf16 %v111
    %v6240 = vunpack.c.l.bf16 %v112
    %v6241 = vunpack.c.l.bf16 %v113
    %v6242 = vunpack.c.l.bf16 %v114
    %v6243 = vunpack.c.l.bf16 %v115
    %v6244 = vunpack.c.l.bf16 %v116
    %v6245 = vunpack.c.l.bf16 %v117
    %v6246 = vunpack.c.l.bf16 %v118
    %v6247 = vunpack.c.l.bf16 %v119
    %v6248 = vunpack.c.l.bf16 %v120
    %v6249 = vunpack.c.l.bf16 %v121
    %v6250 = vunpack.c.l.bf16 %v122
    %v6251 = vunpack.c.l.bf16 %v123
    %v6252 = vunpack.c.l.bf16 %v124
    %v6253 = vunpack.c.l.bf16 %v125
    %v6254 = vunpack.c.l.bf16 %v126
    %v6255 = vunpack.c.l.bf16 %v127
    %v6256 = vunpack.c.l.bf16 %v128
    %v6257 = vunpack.c.l.bf16 %v129
    %v6258 = vunpack.c.l.bf16 %v130
    %v6259 = vunpack.c.l.bf16 %v131
    %v6260 = vunpack.c.l.bf16 %v132
    %v6261 = vunpack.c.l.bf16 %v133
    %v6262 = vunpack.c.l.bf16 %v134
    %v6263 = vunpack.c.l.bf16 %v135
    %v6264 = vunpack.c.l.bf16 %v136
    %v6265 = vunpack.c.l.bf16 %v137
    %v6266 = vunpack.c.l.bf16 %v138
    %v6267 = vunpack.c.l.bf16 %v139
    %v6268 = vunpack.c.l.bf16 %v140
    %v6269 = vunpack.c.l.bf16 %v141
    %v6270 = vunpack.c.l.bf16 %v142
    %v6271 = vunpack.c.l.bf16 %v143
    %v6272 = vunpack.c.l.bf16 %v144
    %v6273 = vunpack.c.l.bf16 %v145
    %v6274 = vunpack.c.l.bf16 %v146
    %v6275 = vunpack.c.l.bf16 %v147
    %v6276 = vunpack.c.l.bf16 %v148
    %v6277 = vunpack.c.l.bf16 %v149
    %v6278 = vunpack.c.l.bf16 %v150
    %v6279 = vunpack.c.l.bf16 %v151
    %v6280 = vunpack.c.l.bf16 %v152
    %v6281 = vunpack.c.l.bf16 %v153
    %v6282 = vunpack.c.l.bf16 %v154
    %v6283 = vunpack.c.l.bf16 %v155
    %v6284 = vunpack.c.l.bf16 %v156
    %v6285 = vunpack.c.l.bf16 %v157
    %v6286 = vunpack.c.l.bf16 %v158
    %v6287 = vunpack.c.l.bf16 %v159
    %v6288 = vunpack.c.l.bf16 %v160
    %v6289 = vunpack.c.l.bf16 %v161
    %v6290 = vunpack.c.l.bf16 %v162
    %v6291 = vunpack.c.l.bf16 %v163
    %v6292 = vunpack.c.l.bf16 %v164
    %v6293 = vunpack.c.l.bf16 %v165
    %v6294 = vmul.f32 %v6166, 0.2
    %v6295 = vmul.f32 %v6167, 0.2
    %v6296 = vmul.f32 %v6168, 0.2
    %v6297 = vmul.f32 %v6169, 0.2
    %v6298 = vmul.f32 %v6170, 0.2
    %v6299 = vmul.f32 %v6171, 0.2
    %v6300 = vmul.f32 %v6172, 0.2
    %v6301 = vmul.f32 %v6173, 0.2
    %v6302 = vmul.f32 %v6174, 0.2
    %v6303 = vmul.f32 %v6175, 0.2
    %v6304 = vmul.f32 %v6176, 0.2
    %v6305 = vmul.f32 %v6177, 0.2
    %v6306 = vmul.f32 %v6178, 0.2
    %v6307 = vmul.f32 %v6179, 0.2
    %v6308 = vmul.f32 %v6180, 0.2
    %v6309 = vmul.f32 %v6181, 0.2
    %v6310 = vmul.f32 %v6182, 0.2
    %v6311 = vmul.f32 %v6183, 0.2
    %v6312 = vmul.f32 %v6184, 0.2
    %v6313 = vmul.f32 %v6185, 0.2
    %v6314 = vmul.f32 %v6186, 0.2
    %v6315 = vmul.f32 %v6187, 0.2
    %v6316 = vmul.f32 %v6188, 0.2
    %v6317 = vmul.f32 %v6189, 0.2
    %v6318 = vmul.f32 %v6190, 0.2
    %v6319 = vmul.f32 %v6191, 0.2
    %v6320 = vmul.f32 %v6192, 0.2
    %v6321 = vmul.f32 %v6193, 0.2
    %v6322 = vmul.f32 %v6194, 0.2
    %v6323 = vmul.f32 %v6195, 0.2
    %v6324 = vmul.f32 %v6196, 0.2
    %v6325 = vmul.f32 %v6197, 0.2
    %v6326 = vmul.f32 %v6198, 0.2
    %v6327 = vmul.f32 %v6199, 0.2
    %v6328 = vmul.f32 %v6200, 0.2
    %v6329 = vmul.f32 %v6201, 0.2
    %v6330 = vmul.f32 %v6202, 0.2
    %v6331 = vmul.f32 %v6203, 0.2
    %v6332 = vmul.f32 %v6204, 0.2
    %v6333 = vmul.f32 %v6205, 0.2
    %v6334 = vmul.f32 %v6206, 0.2
    %v6335 = vmul.f32 %v6207, 0.2
    %v6336 = vmul.f32 %v6208, 0.2
    %v6337 = vmul.f32 %v6209, 0.2
    %v6338 = vmul.f32 %v6210, 0.2
    %v6339 = vmul.f32 %v6211, 0.2
    %v6340 = vmul.f32 %v6212, 0.2
    %v6341 = vmul.f32 %v6213, 0.2
    %v6342 = vmul.f32 %v6214, 0.2
    %v6343 = vmul.f32 %v6215, 0.2
    %v6344 = vmul.f32 %v6216, 0.2
    %v6345 = vmul.f32 %v6217, 0.2
    %v6346 = vmul.f32 %v6218, 0.2
    %v6347 = vmul.f32 %v6219, 0.2
    %v6348 = vmul.f32 %v6220, 0.2
    %v6349 = vmul.f32 %v6221, 0.2
    %v6350 = vmul.f32 %v6222, 0.2
    %v6351 = vmul.f32 %v6223, 0.2
    %v6352 = vmul.f32 %v6224, 0.2
    %v6353 = vmul.f32 %v6225, 0.2
    %v6354 = vmul.f32 %v6226, 0.2
    %v6355 = vmul.f32 %v6227, 0.2
    %v6356 = vmul.f32 %v6228, 0.2
    %v6357 = vmul.f32 %v6229, 0.2
    %v6358 = vadd.f32 %v6230, %v6294
    %v6359 = vadd.f32 %v6231, %v6295
    %v6360 = vadd.f32 %v6232, %v6296
    %v6361 = vadd.f32 %v6233, %v6297
    %v6362 = vadd.f32 %v6234, %v6298
    %v6363 = vadd.f32 %v6235, %v6299
    %v6364 = vadd.f32 %v6236, %v6300
    %v6365 = vadd.f32 %v6237, %v6301
    %v6366 = vadd.f32 %v6238, %v6302
    %v6367 = vadd.f32 %v6239, %v6303
    %v6368 = vadd.f32 %v6240, %v6304
    %v6369 = vadd.f32 %v6241, %v6305
    %v6370 = vadd.f32 %v6242, %v6306
    %v6371 = vadd.f32 %v6243, %v6307
    %v6372 = vadd.f32 %v6244, %v6308
    %v6373 = vadd.f32 %v6245, %v6309
    %v6374 = vadd.f32 %v6246, %v6310
    %v6375 = vadd.f32 %v6247, %v6311
    %v6376 = vadd.f32 %v6248, %v6312
    %v6377 = vadd.f32 %v6249, %v6313
    %v6378 = vadd.f32 %v6250, %v6314
    %v6379 = vadd.f32 %v6251, %v6315
    %v6380 = vadd.f32 %v6252, %v6316
    %v6381 = vadd.f32 %v6253, %v6317
    %v6382 = vadd.f32 %v6254, %v6318
    %v6383 = vadd.f32 %v6255, %v6319
    %v6384 = vadd.f32 %v6256, %v6320
    %v6385 = vadd.f32 %v6257, %v6321
    %v6386 = vadd.f32 %v6258, %v6322
    %v6387 = vadd.f32 %v6259, %v6323
    %v6388 = vadd.f32 %v6260, %v6324
    %v6389 = vadd.f32 %v6261, %v6325
    %v6390 = vadd.f32 %v6262, %v6326
    %v6391 = vadd.f32 %v6263, %v6327
    %v6392 = vadd.f32 %v6264, %v6328
    %v6393 = vadd.f32 %v6265, %v6329
    %v6394 = vadd.f32 %v6266, %v6330
    %v6395 = vadd.f32 %v6267, %v6331
    %v6396 = vadd.f32 %v6268, %v6332
    %v6397 = vadd.f32 %v6269, %v6333
    %v6398 = vadd.f32 %v6270, %v6334
    %v6399 = vadd.f32 %v6271, %v6335
    %v6400 = vadd.f32 %v6272, %v6336
    %v6401 = vadd.f32 %v6273, %v6337
    %v6402 = vadd.f32 %v6274, %v6338
    %v6403 = vadd.f32 %v6275, %v6339
    %v6404 = vadd.f32 %v6276, %v6340
    %v6405 = vadd.f32 %v6277, %v6341
    %v6406 = vadd.f32 %v6278, %v6342
    %v6407 = vadd.f32 %v6279, %v6343
    %v6408 = vadd.f32 %v6280, %v6344
    %v6409 = vadd.f32 %v6281, %v6345
    %v6410 = vadd.f32 %v6282, %v6346
    %v6411 = vadd.f32 %v6283, %v6347
    %v6412 = vadd.f32 %v6284, %v6348
    %v6413 = vadd.f32 %v6285, %v6349
    %v6414 = vadd.f32 %v6286, %v6350
    %v6415 = vadd.f32 %v6287, %v6351
    %v6416 = vadd.f32 %v6288, %v6352
    %v6417 = vadd.f32 %v6289, %v6353
    %v6418 = vadd.f32 %v6290, %v6354
    %v6419 = vadd.f32 %v6291, %v6355
    %v6420 = vadd.f32 %v6292, %v6356
    %v6421 = vadd.f32 %v6293, %v6357
    %v6422 = vpack.c.bf16 %v6359, %v6358
    %v6423 = vpack.c.bf16 %v6361, %v6360
    %v6424 = vpack.c.bf16 %v6363, %v6362
    %v6425 = vpack.c.bf16 %v6365, %v6364
    %v6426 = vpack.c.bf16 %v6367, %v6366
    %v6427 = vpack.c.bf16 %v6369, %v6368
    %v6428 = vpack.c.bf16 %v6371, %v6370
    %v6429 = vpack.c.bf16 %v6373, %v6372
    %v6430 = vpack.c.bf16 %v6375, %v6374
    %v6431 = vpack.c.bf16 %v6377, %v6376
    %v6432 = vpack.c.bf16 %v6379, %v6378
    %v6433 = vpack.c.bf16 %v6381, %v6380
    %v6434 = vpack.c.bf16 %v6383, %v6382
    %v6435 = vpack.c.bf16 %v6385, %v6384
    %v6436 = vpack.c.bf16 %v6387, %v6386
    %v6437 = vpack.c.bf16 %v6389, %v6388
    %v6438 = vpack.c.bf16 %v6391, %v6390
    %v6439 = vpack.c.bf16 %v6393, %v6392
    %v6440 = vpack.c.bf16 %v6395, %v6394
    %v6441 = vpack.c.bf16 %v6397, %v6396
    %v6442 = vpack.c.bf16 %v6399, %v6398
    %v6443 = vpack.c.bf16 %v6401, %v6400
    %v6444 = vpack.c.bf16 %v6403, %v6402
    %v6445 = vpack.c.bf16 %v6405, %v6404
    %v6446 = vpack.c.bf16 %v6407, %v6406
    %v6447 = vpack.c.bf16 %v6409, %v6408
    %v6448 = vpack.c.bf16 %v6411, %v6410
    %v6449 = vpack.c.bf16 %v6413, %v6412
    %v6450 = vpack.c.bf16 %v6415, %v6414
    %v6451 = vpack.c.bf16 %v6417, %v6416
    %v6452 = vpack.c.bf16 %v6419, %v6418
    %v6453 = vpack.c.bf16 %v6421, %v6420
    %v6486 = vunpack.c.l.b16 %v6422
    %v6487 = vunpack.c.h.b16 %v6422
    %v6488 = vunpack.c.l.b16 %v6423
    %v6489 = vunpack.c.h.b16 %v6423
    %v6490 = vunpack.c.l.b16 %v6424
    %v6491 = vunpack.c.h.b16 %v6424
    %v6492 = vunpack.c.l.b16 %v6425
    %v6493 = vunpack.c.h.b16 %v6425
    %v6494 = vunpack.c.l.b16 %v6426
    %v6495 = vunpack.c.h.b16 %v6426
    %v6496 = vunpack.c.l.b16 %v6427
    %v6497 = vunpack.c.h.b16 %v6427
    %v6498 = vunpack.c.l.b16 %v6428
    %v6499 = vunpack.c.h.b16 %v6428
    %v6500 = vunpack.c.l.b16 %v6429
    %v6501 = vunpack.c.h.b16 %v6429
    %v6502 = vunpack.c.l.b16 %v6430
    %v6503 = vunpack.c.h.b16 %v6430
    %v6504 = vunpack.c.l.b16 %v6431
    %v6505 = vunpack.c.h.b16 %v6431
    %v6506 = vunpack.c.l.b16 %v6432
    %v6507 = vunpack.c.h.b16 %v6432
    %v6508 = vunpack.c.l.b16 %v6433
    %v6509 = vunpack.c.h.b16 %v6433
    %v6510 = vunpack.c.l.b16 %v6434
    %v6511 = vunpack.c.h.b16 %v6434
    %v6512 = vunpack.c.l.b16 %v6435
    %v6513 = vunpack.c.h.b16 %v6435
    %v6514 = vunpack.c.l.b16 %v6436
    %v6515 = vunpack.c.h.b16 %v6436
    %v6516 = vunpack.c.l.b16 %v6437
    %v6517 = vunpack.c.h.b16 %v6437
    %v6518 = vunpack.c.l.b16 %v6438
    %v6519 = vunpack.c.h.b16 %v6438
    %v6520 = vunpack.c.l.b16 %v6439
    %v6521 = vunpack.c.h.b16 %v6439
    %v6522 = vunpack.c.l.b16 %v6440
    %v6523 = vunpack.c.h.b16 %v6440
    %v6524 = vunpack.c.l.b16 %v6441
    %v6525 = vunpack.c.h.b16 %v6441
    %v6526 = vunpack.c.l.b16 %v6442
    %v6527 = vunpack.c.h.b16 %v6442
    %v6528 = vunpack.c.l.b16 %v6443
    %v6529 = vunpack.c.h.b16 %v6443
    %v6530 = vunpack.c.l.b16 %v6444
    %v6531 = vunpack.c.h.b16 %v6444
    %v6532 = vunpack.c.l.b16 %v6445
    %v6533 = vunpack.c.h.b16 %v6445
    %v6534 = vunpack.c.l.b16 %v6446
    %v6535 = vunpack.c.h.b16 %v6446
    %v6536 = vunpack.c.l.b16 %v6447
    %v6537 = vunpack.c.h.b16 %v6447
    %v6538 = vunpack.c.l.b16 %v6448
    %v6539 = vunpack.c.h.b16 %v6448
    %v6540 = vunpack.c.l.b16 %v6449
    %v6541 = vunpack.c.h.b16 %v6449
    %v6542 = vunpack.c.l.b16 %v6450
    %v6543 = vunpack.c.h.b16 %v6450
    %v6544 = vunpack.c.l.b16 %v6451
    %v6545 = vunpack.c.h.b16 %v6451
    %v6546 = vunpack.c.l.b16 %v6452
    %v6547 = vunpack.c.h.b16 %v6452
    %v6548 = vunpack.c.l.b16 %v6453
    %v6549 = vunpack.c.h.b16 %v6453
    %v6550 = vpack.c.b16 %v6486, %v6486
    %v6551 = vpack.c.b16 %v6487, %v6487
    %v6552 = vpack.c.b16 %v6488, %v6488
    %v6553 = vpack.c.b16 %v6489, %v6489
    %v6554 = vpack.c.b16 %v6490, %v6490
    %v6555 = vpack.c.b16 %v6491, %v6491
    %v6556 = vpack.c.b16 %v6492, %v6492
    %v6557 = vpack.c.b16 %v6493, %v6493
    %v6558 = vpack.c.b16 %v6494, %v6494
    %v6559 = vpack.c.b16 %v6495, %v6495
    %v6560 = vpack.c.b16 %v6496, %v6496
    %v6561 = vpack.c.b16 %v6497, %v6497
    %v6562 = vpack.c.b16 %v6498, %v6498
    %v6563 = vpack.c.b16 %v6499, %v6499
    %v6564 = vpack.c.b16 %v6500, %v6500
    %v6565 = vpack.c.b16 %v6501, %v6501
    %v6566 = vpack.c.b16 %v6502, %v6502
    %v6567 = vpack.c.b16 %v6503, %v6503
    %v6568 = vpack.c.b16 %v6504, %v6504
    %v6569 = vpack.c.b16 %v6505, %v6505
    %v6570 = vpack.c.b16 %v6506, %v6506
    %v6571 = vpack.c.b16 %v6507, %v6507
    %v6572 = vpack.c.b16 %v6508, %v6508
    %v6573 = vpack.c.b16 %v6509, %v6509
    %v6574 = vpack.c.b16 %v6510, %v6510
    %v6575 = vpack.c.b16 %v6511, %v6511
    %v6576 = vpack.c.b16 %v6512, %v6512
    %v6577 = vpack.c.b16 %v6513, %v6513
    %v6578 = vpack.c.b16 %v6514, %v6514
    %v6579 = vpack.c.b16 %v6515, %v6515
    %v6580 = vpack.c.b16 %v6516, %v6516
    %v6581 = vpack.c.b16 %v6517, %v6517
    %v6582 = vpack.c.b16 %v6518, %v6518
    %v6583 = vpack.c.b16 %v6519, %v6519
    %v6584 = vpack.c.b16 %v6520, %v6520
    %v6585 = vpack.c.b16 %v6521, %v6521
    %v6586 = vpack.c.b16 %v6522, %v6522
    %v6587 = vpack.c.b16 %v6523, %v6523
    %v6588 = vpack.c.b16 %v6524, %v6524
    %v6589 = vpack.c.b16 %v6525, %v6525
    %v6590 = vpack.c.b16 %v6526, %v6526
    %v6591 = vpack.c.b16 %v6527, %v6527
    %v6592 = vpack.c.b16 %v6528, %v6528
    %v6593 = vpack.c.b16 %v6529, %v6529
    %v6594 = vpack.c.b16 %v6530, %v6530
    %v6595 = vpack.c.b16 %v6531, %v6531
    %v6596 = vpack.c.b16 %v6532, %v6532
    %v6597 = vpack.c.b16 %v6533, %v6533
    %v6598 = vpack.c.b16 %v6534, %v6534
    %v6599 = vpack.c.b16 %v6535, %v6535
    %v6600 = vpack.c.b16 %v6536, %v6536
    %v6601 = vpack.c.b16 %v6537, %v6537
    %v6602 = vpack.c.b16 %v6538, %v6538
    %v6603 = vpack.c.b16 %v6539, %v6539
    %v6604 = vpack.c.b16 %v6540, %v6540
    %v6605 = vpack.c.b16 %v6541, %v6541
    %v6606 = vpack.c.b16 %v6542, %v6542
    %v6607 = vpack.c.b16 %v6543, %v6543
    %v6608 = vpack.c.b16 %v6544, %v6544
    %v6609 = vpack.c.b16 %v6545, %v6545
    %v6610 = vpack.c.b16 %v6546, %v6546
    %v6611 = vpack.c.b16 %v6547, %v6547
    %v6612 = vpack.c.b16 %v6548, %v6548
    %v6613 = vpack.c.b16 %v6549, %v6549
    %6678 = vst [vmem:[#allocation11] sm:$0xf] %v6550
    %6679 = vst [vmem:[#allocation11 + $0x4] sm:$0xf] %v6551
    %6680 = vst [vmem:[#allocation11 + $0x8] sm:$0xf] %v6552
    %6681 = vst [vmem:[#allocation11 + $0xc] sm:$0xf] %v6553
    %6682 = vst [vmem:[#allocation11 + $0x10] sm:$0xf] %v6554
    %6683 = vst [vmem:[#allocation11 + $0x14] sm:$0xf] %v6555
    %6684 = vst [vmem:[#allocation11 + $0x18] sm:$0xf] %v6556
    %6685 = vst [vmem:[#allocation11 + $0x1c] sm:$0xf] %v6557
    %6686 = vst [vmem:[#allocation11 + $0x20] sm:$0xf] %v6558
    %6687 = vst [vmem:[#allocation11 + $0x24] sm:$0xf] %v6559
    %6688 = vst [vmem:[#allocation11 + $0x28] sm:$0xf] %v6560
    %6689 = vst [vmem:[#allocation11 + $0x2c] sm:$0xf] %v6561
    %6690 = vst [vmem:[#allocation11 + $0x30] sm:$0xf] %v6562
    %6691 = vst [vmem:[#allocation11 + $0x34] sm:$0xf] %v6563
    %6692 = vst [vmem:[#allocation11 + $0x38] sm:$0xf] %v6564
    %6693 = vst [vmem:[#allocation11 + $0x3c] sm:$0xf] %v6565
    %6694 = vst [vmem:[#allocation11 + $0x40] sm:$0xf] %v6566
    %6695 = vst [vmem:[#allocation11 + $0x44] sm:$0xf] %v6567
    %6696 = vst [vmem:[#allocation11 + $0x48] sm:$0xf] %v6568
    %6697 = vst [vmem:[#allocation11 + $0x4c] sm:$0xf] %v6569
    %6698 = vst [vmem:[#allocation11 + $0x50] sm:$0xf] %v6570
    %6699 = vst [vmem:[#allocation11 + $0x54] sm:$0xf] %v6571
    %6700 = vst [vmem:[#allocation11 + $0x58] sm:$0xf] %v6572
    %6701 = vst [vmem:[#allocation11 + $0x5c] sm:$0xf] %v6573
    %6702 = vst [vmem:[#allocation11 + $0x60] sm:$0xf] %v6574
    %6703 = vst [vmem:[#allocation11 + $0x64] sm:$0xf] %v6575
    %6704 = vst [vmem:[#allocation11 + $0x68] sm:$0xf] %v6576
    %6705 = vst [vmem:[#allocation11 + $0x6c] sm:$0xf] %v6577
    %6706 = vst [vmem:[#allocation11 + $0x70] sm:$0xf] %v6578
    %6707 = vst [vmem:[#allocation11 + $0x74] sm:$0xf] %v6579
    %6708 = vst [vmem:[#allocation11 + $0x78] sm:$0xf] %v6580
    %6709 = vst [vmem:[#allocation11 + $0x7c] sm:$0xf] %v6581
    %6710 = vst [vmem:[#allocation11 + $0x80] sm:$0xf] %v6582
    %6711 = vst [vmem:[#allocation11 + $0x84] sm:$0xf] %v6583
    %6712 = vst [vmem:[#allocation11 + $0x88] sm:$0xf] %v6584
    %6713 = vst [vmem:[#allocation11 + $0x8c] sm:$0xf] %v6585
    %6714 = vst [vmem:[#allocation11 + $0x90] sm:$0xf] %v6586
    %6715 = vst [vmem:[#allocation11 + $0x94] sm:$0xf] %v6587
    %6716 = vst [vmem:[#allocation11 + $0x98] sm:$0xf] %v6588
    %6717 = vst [vmem:[#allocation11 + $0x9c] sm:$0xf] %v6589
    %6718 = vst [vmem:[#allocation11 + $0xa0] sm:$0xf] %v6590
    %6719 = vst [vmem:[#allocation11 + $0xa4] sm:$0xf] %v6591
    %6720 = vst [vmem:[#allocation11 + $0xa8] sm:$0xf] %v6592
    %6721 = vst [vmem:[#allocation11 + $0xac] sm:$0xf] %v6593
    %6722 = vst [vmem:[#allocation11 + $0xb0] sm:$0xf] %v6594
    %6723 = vst [vmem:[#allocation11 + $0xb4] sm:$0xf] %v6595
    %6724 = vst [vmem:[#allocation11 + $0xb8] sm:$0xf] %v6596
    %6725 = vst [vmem:[#allocation11 + $0xbc] sm:$0xf] %v6597
    %6726 = vst [vmem:[#allocation11 + $0xc0] sm:$0xf] %v6598
    %6727 = vst [vmem:[#allocation11 + $0xc4] sm:$0xf] %v6599
    %6728 = vst [vmem:[#allocation11 + $0xc8] sm:$0xf] %v6600
    %6729 = vst [vmem:[#allocation11 + $0xcc] sm:$0xf] %v6601
    %6730 = vst [vmem:[#allocation11 + $0xd0] sm:$0xf] %v6602
    %6731 = vst [vmem:[#allocation11 + $0xd4] sm:$0xf] %v6603
    %6732 = vst [vmem:[#allocation11 + $0xd8] sm:$0xf] %v6604
    %6733 = vst [vmem:[#allocation11 + $0xdc] sm:$0xf] %v6605
    %6734 = vst [vmem:[#allocation11 + $0xe0] sm:$0xf] %v6606
    %6735 = vst [vmem:[#allocation11 + $0xe4] sm:$0xf] %v6607
    %6736 = vst [vmem:[#allocation11 + $0xe8] sm:$0xf] %v6608
    %6737 = vst [vmem:[#allocation11 + $0xec] sm:$0xf] %v6609
    %6738 = vst [vmem:[#allocation11 + $0xf0] sm:$0xf] %v6610
    %6739 = vst [vmem:[#allocation11 + $0xf4] sm:$0xf] %v6611
    %6740 = vst [vmem:[#allocation11 + $0xf8] sm:$0xf] %v6612
    %6741 = vst [vmem:[#allocation11 + $0xfc] sm:$0xf] %v6613
    // Predicated region
    $region58: #{tpu_custom_call.1} parent=1 // pred_check
      _
    $region59: #{tpu_custom_call.1} parent=1 // pred_check_branch
      %6743 = sbr.rel (0) target = $region61
    $region60: #{tpu_custom_call.1} parent=1 // pred_region
      %s6745 = ssub.s32 4096, 4096
      %6746 = vsyncadd [#allocation4], %s6745
      %s6747 = sshll.u32 [#allocation11], 4
      %s6748 = int_to_ptr.vmem [resolvable:$true] %s6747
      %6753 = dma.vmem_to_hbm [thread:$0]  %s6748, 4096, %s9, [#allocation4], 64, 64, 4
    $region61: #{tpu_custom_call.1} parent=1 // pred_fallthru
      _
    // Predicated region
    $region62: #{tpu_custom_call.1} parent=1 // pred_check
      _
    $region63: #{tpu_custom_call.1} parent=1 // pred_check_branch
      %6755 = sbr.rel (0) target = $region65
    $region64: #{tpu_custom_call.1} parent=1 // pred_region
      %6756 = dma.done [#allocation4], 4096
    $region65: #{tpu_custom_call.1} parent=1 // pred_fallthru
      _
    %6757 = vsyncpa [#allocation3], 1
    %6758 = vsyncpa [#allocation6], 1
    %6759 = vsyncpa [#allocation9], 1
    %6760 = vsyncpa [#allocation4], 1

</llo_original>
